<compile_context>
chip_gen: v5e
topology: v5e:2x2
jax: 0.10.0
libtpu: 0.0.40
codegen_flags: <defaults>
</compile_context>

<pallas_src>
import functools
import numpy as np
import jax
import jax.numpy as jnp
from jax import lax
from jax.experimental import pallas as pl
from jax.experimental.pallas import tpu as pltpu

# MXU operand dtype (accumulation is always f32).  bf16 doubles MXU throughput
# on v6e/v7x and halves the VMEM of the spatial-operator constants; set to
# jnp.float32 for bit-faithful f32 numerics.
_MXU_DTYPE = jnp.bfloat16


def _round_up(v, m):
    return ((v + m - 1) // m) * m


# ---------------------------------------------------------------------------
# Host-side constant builders (numpy, baked once at trace time)
# ---------------------------------------------------------------------------
def _pool1d(n):
    # AvgPool2d(2) 1-D operator (even n, so count_include_pad/ceil_mode moot).
    assert n % 2 == 0, "AvgPool2d(2) path assumes even spatial dims"
    P = np.zeros((n // 2, n), np.float32)
    for i in range(n // 2):
        P[i, 2 * i] = 0.5
        P[i, 2 * i + 1] = 0.5
    return P


def _up1d(n):
    # bilinear x2, align_corners=False (PyTorch nn.Upsample semantics).
    A = np.zeros((2 * n, n), np.float32)
    for i in range(2 * n):
        src = (i + 0.5) / 2.0 - 0.5
        src = max(src, 0.0)
        i0 = int(np.floor(src))
        frac = src - i0
        i0 = min(i0, n - 1)
        i1 = min(i0 + 1, n - 1)
        A[i, i0] += 1.0 - frac
        A[i, i1] += frac
    return A


def _spatial_op_T(Ah, Aw, NB, Lp_in, Lp_out):
    """Block-diagonal (over the NB images of a block) transposed spatial op.

    Per image the 2-D operator is M = kron(Ah, Aw): (HW_out, HW_in).  The
    returned T has shape (Lp_in, Lp_out) so that `y = x @ T` applies it on the
    lane axis of a (C, Lp_in) slab; lane-padding rows/cols are zero.
    All entries are exactly representable in bf16 (0, 1, and x/16 multiples).
    """
    M = np.kron(Ah, Aw).astype(np.float32)
    HW_out, HW_in = M.shape
    T = np.zeros((Lp_in, Lp_out), np.float32)
    for b in range(NB):
        T[b * HW_in:(b + 1) * HW_in, b * HW_out:(b + 1) * HW_out] = M.T
    return T


def _conv_masks(NB, H, W, Lp):
    """(9, Lp) f32 validity masks for the 9 taps of a padding=1 3x3 conv.

    Lane flattening is p = b*H*W + h*W + w; tap k reads lane p + (dh*W + dw)
    with dh = k//3 - 1, dw = k%3 - 1 (the kernel's pltpu.roll uses exactly this
    offset).  Mask is 1 iff (h+dh, w+dw) is inside the same image and lane p is
    a real (non-padding) lane.  The center tap (k == 4) equals the real-lane
    indicator.
    """
    HW = H * W
    L = NB * HW
    p = np.arange(Lp)
    h = (p % HW) // W
    w = p % W
    real = p < L
    masks = np.zeros((9, Lp), np.float32)
    for k in range(9):
        dh, dw = k // 3 - 1, k % 3 - 1
        ok = (h + dh >= 0) & (h + dh < H) & (w + dw >= 0) & (w + dw < W) & real
        masks[k] = ok.astype(np.float32)
    assert np.array_equal(masks[4], real.astype(np.float32))
    return masks


def _img_indicator(NB, H, W, Lp):
    """(NB, Lp) f32 per-image lane indicator (padding lanes belong to no image)."""
    HW = H * W
    p = np.arange(Lp)
    img = np.where(p < NB * HW, p // HW, NB)
    return (np.arange(NB)[:, None] == img[None, :]).astype(np.float32)


# ---------------------------------------------------------------------------
# In-kernel helpers (traced inside the single fused kernel)
# ---------------------------------------------------------------------------
def _lrelu(x):
    return jnp.maximum(x, 0.2 * x)


def _mm(a, b):
    # MXU matmul: bf16 operands, f32 accumulation.
    return jnp.dot(a.astype(_MXU_DTYPE), b.astype(_MXU_DTYPE),
                   preferred_element_type=jnp.float32)


def _lane_contract(a, g):
    # (C, Lp) x (NB, Lp) contracted on lanes -> (C, NB).
    return lax.dot_general(a.astype(_MXU_DTYPE), g.astype(_MXU_DTYPE),
                           (((1,), (1,)), ((), ())),
                           preferred_element_type=jnp.float32)


def _bcast_lanes(v, gf):
    """(C, NB) per-image vector -> (C, Lp): broadcast onto each image's lanes."""
    if gf.shape[0] == 1:
        return v * gf                  # pure VPU broadcast when NB == 1
    return _mm(v, gf)                  # tiny K=NB matmul otherwise


def _geometry(mask9, gf):
    """Per-scale geometry: (gf, boolean image mask, padding-lane indicator)."""
    real = mask9[4:5]                  # center conv tap == real-lane mask (1, Lp)
    return (gf, gf > 0.0, 1.0 - real)


def _conv3x3(x, w_flat, mask9, W):
    """3x3 conv (padding=1, groups=1) on a (C_in, Lp) lane-flattened slab.

    One fused matmul: the 9 rolled + masked tap slabs are stacked along
    sublanes (K = 9*C_in) and contracted with the host-flattened weight
    (C_out, 9*C_in).
    """
    Lp = x.shape[1]
    parts = []
    for k in range(9):
        dh, dw = k // 3 - 1, k % 3 - 1
        d = dh * W + dw
        xs = x if d == 0 else pltpu.roll(x, (-d) % Lp, axis=1)
        parts.append(xs * mask9[k:k + 1])
    stacked = jnp.concatenate(parts, axis=0)          # (9*C_in, Lp)
    return _mm(w_flat, stacked)                       # (C_out, Lp)


def _context_block(r, w_msk, w_c1, w_c2, geo):
    """GCNet-style ContextBlock on (C, Lp); per-image softmax over H*W."""
    gf, gmask, pad = geo
    # conv_mask logits on the VPU (broadcast-mul + sublane reduce).
    logits = jnp.sum(w_msk * r, axis=0, keepdims=True)                  # (1, Lp)
    m = jnp.max(jnp.where(gmask, logits, -1e30), axis=-1, keepdims=True)  # (NB, 1)
    m_full = jnp.sum(m * gf, axis=0, keepdims=True)                     # (1, Lp)
    e = jnp.exp(logits - m_full)
    den = jnp.sum(e * gf, axis=-1, keepdims=True)                       # (NB, 1)
    den_full = jnp.sum(den * gf, axis=0, keepdims=True) + pad           # pad lanes -> 1
    attn = e * pl.reciprocal(den_full, approx=True)                     # per-image softmax
    ctx = _lane_contract(r * attn, gf)                                  # (C, NB)
    add = _mm(w_c2, _lrelu(_mm(w_c1, ctx)))                             # (C, NB)
    return r + _bcast_lanes(add, gf)


def _rcb(x, wts, mask9, geo, W):
    w_b1, w_b2, w_msk, w_c1, w_c2 = wts
    r = _lrelu(_conv3x3(x, w_b1, mask9, W))
    r = _conv3x3(r, w_b2, mask9, W)
    r = _context_block(r, w_msk, w_c1, w_c2, geo)
    return _lrelu(r) + x


def _skff2(a, b, wts, geo, inv_hw):
    w_d, w_f1, w_f2 = wts
    gf = geo[0]
    s = _lane_contract(a + b, gf) * inv_hw              # per-image GAP (C, NB)
    z = _lrelu(_mm(w_d, s))                             # (d, NB)
    a1 = _mm(w_f1, z)
    a2 = _mm(w_f2, z)                                   # (C, NB)
    m = jnp.maximum(a1, a2)
    e1 = jnp.exp(a1 - m)
    e2 = jnp.exp(a2 - m)
    inv = pl.reciprocal(e1 + e2, approx=True)
    return a * _bcast_lanes(e1 * inv, gf) + b * _bcast_lanes(e2 * inv, gf)


# ---------------------------------------------------------------------------
# The single fused MRB kernel
# ---------------------------------------------------------------------------
def _mrb_kernel(x_ref,
                mt_ref, mm_ref, mb_ref,
                gft_ref, gfm_ref, gfb_ref,
                pt_tm_ref, pt_mb_ref, ut_bm_ref, ut_mt_ref,
                w_dn2_ref, w_d4a_ref, w_d4b_ref,
                w_u32a_ref, w_u32b_ref, w_u21a_ref, w_u21b_ref, w_out_ref,
                t_b1_ref, t_b2_ref, t_mk_ref, t_c1_ref, t_c2_ref,
                m_b1_ref, m_b2_ref, m_mk_ref, m_c1_ref, m_c2_ref,
                b_b1_ref, b_b2_ref, b_mk_ref, b_c1_ref, b_c2_ref,
                sm_d_ref, sm_1_ref, sm_2_ref,
                st_d_ref, st_1_ref, st_2_ref,
                o_ref, *, dims):
    (Ht, Wt), (Hm, Wm), (Hb, Wb) = dims

    mask_t, mask_m, mask_b = mt_ref[...], mm_ref[...], mb_ref[...]
    geo_t = _geometry(mask_t, gft_ref[...])
    geo_m = _geometry(mask_m, gfm_ref[...])
    geo_b = _geometry(mask_b, gfb_ref[...])

    pt_tm, pt_mb = pt_tm_ref[...], pt_mb_ref[...]
    ut_bm, ut_mt = ut_bm_ref[...], ut_mt_ref[...]

    x0 = x_ref[0]                                             # (C0, Lpt) f32

    # ---- Down(2) / Down(4): the weight-free first AvgPool2d(2) is shared ----
    pool_t = _mm(x0, pt_tm)                                   # (C0, Lpm)
    xt = x0
    xm = _mm(w_dn2_ref[...], pool_t)                          # (C1, Lpm)
    xb = _mm(w_d4b_ref[...],
             _mm(_mm(w_d4a_ref[...], pool_t), pt_mb))         # (C2, Lpb)

    rcb_t = (t_b1_ref[...], t_b2_ref[...], t_mk_ref[...], t_c1_ref[...], t_c2_ref[...])
    rcb_m = (m_b1_ref[...], m_b2_ref[...], m_mk_ref[...], m_c1_ref[...], m_c2_ref[...])
    rcb_b = (b_b1_ref[...], b_b2_ref[...], b_mk_ref[...], b_c1_ref[...], b_c2_ref[...])
    skff_m = (sm_d_ref[...], sm_1_ref[...], sm_2_ref[...])
    skff_t = (st_d_ref[...], st_1_ref[...], st_2_ref[...])

    # ---- pass 1: RCB at every scale, SKFF fuse bottom-up --------------------
    xt = _rcb(xt, rcb_t, mask_t, geo_t, Wt)
    xm = _rcb(xm, rcb_m, mask_m, geo_m, Wm)
    xb = _rcb(xb, rcb_b, mask_b, geo_b, Wb)
    xm = _skff2(xm, _mm(_mm(w_u32a_ref[...], xb), ut_bm), skff_m, geo_m, 1.0 / (Hm * Wm))
    xt = _skff2(xt, _mm(_mm(w_u21a_ref[...], xm), ut_mt), skff_t, geo_t, 1.0 / (Ht * Wt))

    # ---- pass 2 (RCB / SKFF modules are shared -> same weights) -------------
    xt = _rcb(xt, rcb_t, mask_t, geo_t, Wt)
    xm = _rcb(xm, rcb_m, mask_m, geo_m, Wm)
    xb = _rcb(xb, rcb_b, mask_b, geo_b, Wb)
    xm = _skff2(xm, _mm(_mm(w_u32b_ref[...], xb), ut_bm), skff_m, geo_m, 1.0 / (Hm * Wm))
    xt = _skff2(xt, _mm(_mm(w_u21b_ref[...], xm), ut_mt), skff_t, geo_t, 1.0 / (Ht * Wt))

    o_ref[0] = (_mm(w_out_ref[...], xt) + x0).astype(o_ref.dtype)


# ---------------------------------------------------------------------------
# Host wrapper
# ---------------------------------------------------------------------------
def _const_spec(a):
    assert a.ndim == 2
    return pl.BlockSpec(a.shape, lambda g: (0, 0))


def _num_tensorcores():
    try:
        return max(1, int(getattr(jax.devices()[0], "num_cores", 1)))
    except Exception:  # pragma: no cover - best-effort hint only
        return 1


def _pick_nb(n, hwt, hwb, *, min_blocks=1,
             max_top_lanes=4096, max_op_bytes=8 << 20):
    """Batch elements per grid step.

    Grow NB until the bottom scale is lane-dense (>= 128 real lanes) or the
    top-slab / dense-spatial-operator VMEM budget is hit, while never shrinking
    the grid below `min_blocks` steps (so multi-TensorCore chips keep work).
    """
    itemsize = np.dtype(_MXU_DTYPE).itemsize
    max_nb = max(1, n // max(1, min_blocks))
    best = 1
    for d in range(1, max_nb + 1):
        if n % d:
            continue
        if d * hwt > max_top_lanes:
            break
        lpt = _round_up(d * hwt, 128)
        lpm = _round_up(d * hwt // 4, 128)
        # biggest dense spatial operators: pt_tm (lpt x lpm) and ut_mt (lpm x lpt)
        if 2 * lpt * lpm * itemsize > max_op_bytes:
            break
        best = d
        if d * hwb >= 128:
            break
    return best


def _pack_slab(x, NB, Lp):
    """NCHW -> (GB, C, NB*H*W) lane slab (zero-padded to Lp lanes)."""
    N, C, H, W = x.shape
    GB = N // NB
    L = NB * H * W
    xs = x.reshape(GB, NB, C, H * W).transpose(0, 2, 1, 3).reshape(GB, C, L)
    if Lp > L:
        xs = jnp.pad(xs, ((0, 0), (0, 0), (0, Lp - L)))
    return xs


def _unpack_slab(y, N, NB, C, H, W):
    GB = N // NB
    L = NB * H * W
    y = y[:, :, :L].reshape(GB, C, NB, H * W).transpose(0, 2, 1, 3)
    return y.reshape(N, C, H, W)


def _flat9(w9):
    # (9, C_out, C_in) tap-major -> (C_out, 9*C_in); column block k holds tap k.
    c_out, c_in = w9.shape[1], w9.shape[2]
    return jnp.transpose(w9, (1, 0, 2)).reshape(c_out, 9 * c_in).astype(_MXU_DTYPE)


def mrb_core(x_top, P):
    """x_top: (N, C0, H, W) float32 -> (N, C0, H, W)."""
    N, C0, H, W = x_top.shape
    assert H % 4 == 0 and W % 4 == 0, "even H, W at every scale assumed"
    Hm, Wm, Hb, Wb = H // 2, W // 2, H // 4, W // 4
    HWt, HWb = H * W, Hb * Wb
    NB = _pick_nb(N, HWt, HWb, min_blocks=_num_tensorcores())
    GB = N // NB
    Lt, Lm, Lb = NB * HWt, NB * Hm * Wm, NB * HWb
    Lpt, Lpm, Lpb = (_round_up(l, 128) for l in (Lt, Lm, Lb))

    xs = _pack_slab(x_top, NB, Lpt)                       # (GB, C0, Lpt)

    # ---- host-built constants ----------------------------------------------
    f32, f16 = jnp.float32, _MXU_DTYPE
    mask_t = jnp.asarray(_conv_masks(NB, H, W, Lpt), f32)
    mask_m = jnp.asarray(_conv_masks(NB, Hm, Wm, Lpm), f32)
    mask_b = jnp.asarray(_conv_masks(NB, Hb, Wb, Lpb), f32)
    gf_t = jnp.asarray(_img_indicator(NB, H, W, Lpt), f32)
    gf_m = jnp.asarray(_img_indicator(NB, Hm, Wm, Lpm), f32)
    gf_b = jnp.asarray(_img_indicator(NB, Hb, Wb, Lpb), f32)
    pt_tm = jnp.asarray(_spatial_op_T(_pool1d(H), _pool1d(W), NB, Lpt, Lpm), f16)
    pt_mb = jnp.asarray(_spatial_op_T(_pool1d(Hm), _pool1d(Wm), NB, Lpm, Lpb), f16)
    ut_bm = jnp.asarray(_spatial_op_T(_up1d(Hb), _up1d(Wb), NB, Lpb, Lpm), f16)
    ut_mt = jnp.asarray(_spatial_op_T(_up1d(Hm), _up1d(Wm), NB, Lpm, Lpt), f16)

    def rcb_pack(p):
        b1, b2, mk, c1, c2 = p
        return (_flat9(b1), _flat9(b2), mk, c1, c2)

    inputs = [
        xs,
        mask_t, mask_m, mask_b,
        gf_t, gf_m, gf_b,
        pt_tm, pt_mb, ut_bm, ut_mt,
        P['w_down2'].astype(f16), P['w_down4_a'].astype(f16), P['w_down4_b'].astype(f16),
        P['w_up32_1'].astype(f16), P['w_up32_2'].astype(f16),
        P['w_up21_1'].astype(f16), P['w_up21_2'].astype(f16),
        P['w_conv_out'].astype(f16),
        *rcb_pack(P['dau_top']), *rcb_pack(P['dau_mid']), *rcb_pack(P['dau_bot']),
        *P['skff_mid'], *P['skff_top'],
    ]

    in_specs = ([pl.BlockSpec((1, C0, Lpt), lambda g: (g, 0, 0))] +
                [_const_spec(a) for a in inputs[1:]])
    out_spec = pl.BlockSpec((1, C0, Lpt), lambda g: (g, 0, 0))

    kern = functools.partial(_mrb_kernel, dims=((H, W), (Hm, Wm), (Hb, Wb)))

    out = pl.pallas_call(
        kern,
        out_shape=jax.ShapeDtypeStruct((GB, C0, Lpt), jnp.float32),
        grid=(GB,),
        in_specs=in_specs,
        out_specs=out_spec,
        compiler_params=pltpu.CompilerParams(
            dimension_semantics=("parallel",),
            vmem_limit_bytes=64 * 1024 * 1024),
    )(*inputs)

    return _unpack_slab(out, N, NB, C0, H, W)


def mrb_forward(x, P):
    """MRB_douinp.forward: MRB on the first n_feat channels, pass-through rest."""
    n_feat = P['w_conv_out'].shape[0]
    y = mrb_core(x[:, :n_feat], P)
    if x.shape[1] > n_feat:
        y = jnp.concatenate([y, x[:, n_feat:]], axis=1)
    return y


# ---------------------------------------------------------------------------
# Deterministic parameter initialization (bias=False everywhere, groups=1)
# ---------------------------------------------------------------------------
def init_params(key, n_feat=4, chan_factor=2):
    C0 = int(n_feat * chan_factor ** 0)
    C1 = int(n_feat * chan_factor ** 1)
    C2 = int(n_feat * chan_factor ** 2)
    d0 = max(C0 // 8, 4)
    d1 = max(C1 // 8, 4)
    keys = iter(jax.random.split(key, 64))

    def w(shape, fan_in):
        return jax.random.normal(next(keys), shape, jnp.float32) / np.sqrt(fan_in)

    def rcb_params(C):
        # 3x3 conv weights stored tap-major (9, C_out, C_in), k = kh*3 + kw
        # (== torch_weight.transpose(2, 3, 0, 1).reshape(9, C, C)).
        return (
            w((9, C, C), C * 9),     # body conv1
            w((9, C, C), C * 9),     # body conv2
            w((C, 1), C),            # conv_mask, stored as a column vector
            w((C, C), C),            # channel_add conv1
            w((C, C), C),            # channel_add conv2
        )

    def skff_params(C, d):
        return (w((d, C), C), w((C, d), d), w((C, d), d))

    return dict(
        dau_top=rcb_params(C0),
        dau_mid=rcb_params(C1),
        dau_bot=rcb_params(C2),
        w_down2=w((C1, C0), C0),
        w_down4_a=w((C1, C0), C0),
        w_down4_b=w((C2, C1), C1),
        w_up21_1=w((C0, C1), C1),
        w_up21_2=w((C0, C1), C1),
        w_up32_1=w((C1, C2), C2),
        w_up32_2=w((C1, C2), C2),
        w_conv_out=w((C0, C0), C0),
        skff_top=skff_params(C0, d0),
        skff_mid=skff_params(C1, d1),
    )


if __name__ == "__main__":
    key = jax.random.PRNGKey(0)
    kx, kp = jax.random.split(key)
    # MRB_douinp(n_feat=4, height=3, width=2, chan_factor=2, bias=False, groups=1)
    # "dou(ble)inp": input carries 2*n_feat channels; the trailing n_feat
    # channels bypass the block and are concatenated back at the end.
    x = jax.random.normal(kx, (2, 8, 16, 16), jnp.float32)
    params = init_params(kp, n_feat=4, chan_factor=2)

    fwd = jax.jit(mrb_forward)
    out = jax.block_until_ready(fwd(x, params))
    assert out.shape == x.shape and out.dtype == jnp.float32
    assert bool(jnp.all(jnp.isfinite(out)))
    print("KERNEL_OK")
</pallas_src>

<mosaic_0001>
module attributes {stable_mosaic.version = 11 : i64} {
  func.func @_mrb_kernel(%arg0: i32, %arg1: memref<1x4x512xf32, #tpu.memory_space<vmem>>, %arg2: memref<9x512xf32, #tpu.memory_space<vmem>>, %arg3: memref<9x128xf32, #tpu.memory_space<vmem>>, %arg4: memref<9x128xf32, #tpu.memory_space<vmem>>, %arg5: memref<2x512xf32, #tpu.memory_space<vmem>>, %arg6: memref<2x128xf32, #tpu.memory_space<vmem>>, %arg7: memref<2x128xf32, #tpu.memory_space<vmem>>, %arg8: memref<512x128xbf16, #tpu.memory_space<vmem>>, %arg9: memref<128x128xbf16, #tpu.memory_space<vmem>>, %arg10: memref<128x128xbf16, #tpu.memory_space<vmem>>, %arg11: memref<128x512xbf16, #tpu.memory_space<vmem>>, %arg12: memref<8x4xbf16, #tpu.memory_space<vmem>>, %arg13: memref<8x4xbf16, #tpu.memory_space<vmem>>, %arg14: memref<16x8xbf16, #tpu.memory_space<vmem>>, %arg15: memref<8x16xbf16, #tpu.memory_space<vmem>>, %arg16: memref<8x16xbf16, #tpu.memory_space<vmem>>, %arg17: memref<4x8xbf16, #tpu.memory_space<vmem>>, %arg18: memref<4x8xbf16, #tpu.memory_space<vmem>>, %arg19: memref<4x4xbf16, #tpu.memory_space<vmem>>, %arg20: memref<4x36xbf16, #tpu.memory_space<vmem>>, %arg21: memref<4x36xbf16, #tpu.memory_space<vmem>>, %arg22: memref<4x1xf32, #tpu.memory_space<vmem>>, %arg23: memref<4x4xf32, #tpu.memory_space<vmem>>, %arg24: memref<4x4xf32, #tpu.memory_space<vmem>>, %arg25: memref<8x72xbf16, #tpu.memory_space<vmem>>, %arg26: memref<8x72xbf16, #tpu.memory_space<vmem>>, %arg27: memref<8x1xf32, #tpu.memory_space<vmem>>, %arg28: memref<8x8xf32, #tpu.memory_space<vmem>>, %arg29: memref<8x8xf32, #tpu.memory_space<vmem>>, %arg30: memref<16x144xbf16, #tpu.memory_space<vmem>>, %arg31: memref<16x144xbf16, #tpu.memory_space<vmem>>, %arg32: memref<16x1xf32, #tpu.memory_space<vmem>>, %arg33: memref<16x16xf32, #tpu.memory_space<vmem>>, %arg34: memref<16x16xf32, #tpu.memory_space<vmem>>, %arg35: memref<4x8xf32, #tpu.memory_space<vmem>>, %arg36: memref<8x4xf32, #tpu.memory_space<vmem>>, %arg37: memref<8x4xf32, #tpu.memory_space<vmem>>, %arg38: memref<4x4xf32, #tpu.memory_space<vmem>>, %arg39: memref<4x4xf32, #tpu.memory_space<vmem>>, %arg40: memref<4x4xf32, #tpu.memory_space<vmem>>, %arg41: memref<1x4x512xf32, #tpu.memory_space<vmem>>) attributes {dimension_semantics = [#tpu.dimension_semantics<parallel>], iteration_bounds = array<i64: 1>, scalar_prefetch = 0 : i64, scratch_operands = 0 : i64, tpu.core_type = #tpu.core_type<tc>, window_params = [{transform_indices = @transform_0, window_bounds = array<i64: 1, 4, 512>}, {pipeline_mode = #tpu.pipeline_mode<synchronous>, transform_indices = @transform_1, window_bounds = array<i64: 9, 512>}, {pipeline_mode = #tpu.pipeline_mode<synchronous>, transform_indices = @transform_2, window_bounds = array<i64: 9, 128>}, {pipeline_mode = #tpu.pipeline_mode<synchronous>, transform_indices = @transform_3, window_bounds = array<i64: 9, 128>}, {pipeline_mode = #tpu.pipeline_mode<synchronous>, transform_indices = @transform_4, window_bounds = array<i64: 2, 512>}, {pipeline_mode = #tpu.pipeline_mode<synchronous>, transform_indices = @transform_5, window_bounds = array<i64: 2, 128>}, {pipeline_mode = #tpu.pipeline_mode<synchronous>, transform_indices = @transform_6, window_bounds = array<i64: 2, 128>}, {pipeline_mode = #tpu.pipeline_mode<synchronous>, transform_indices = @transform_7, window_bounds = array<i64: 512, 128>}, {pipeline_mode = #tpu.pipeline_mode<synchronous>, transform_indices = @transform_8, window_bounds = array<i64: 128, 128>}, {pipeline_mode = #tpu.pipeline_mode<synchronous>, transform_indices = @transform_9, window_bounds = array<i64: 128, 128>}, {pipeline_mode = #tpu.pipeline_mode<synchronous>, transform_indices = @transform_10, window_bounds = array<i64: 128, 512>}, {pipeline_mode = #tpu.pipeline_mode<synchronous>, transform_indices = @transform_11, window_bounds = array<i64: 8, 4>}, {pipeline_mode = #tpu.pipeline_mode<synchronous>, transform_indices = @transform_12, window_bounds = array<i64: 8, 4>}, {pipeline_mode = #tpu.pipeline_mode<synchronous>, transform_indices = @transform_13, window_bounds = array<i64: 16, 8>}, {pipeline_mode = #tpu.pipeline_mode<synchronous>, transform_indices = @transform_14, window_bounds = array<i64: 8, 16>}, {pipeline_mode = #tpu.pipeline_mode<synchronous>, transform_indices = @transform_15, window_bounds = array<i64: 8, 16>}, {pipeline_mode = #tpu.pipeline_mode<synchronous>, transform_indices = @transform_16, window_bounds = array<i64: 4, 8>}, {pipeline_mode = #tpu.pipeline_mode<synchronous>, transform_indices = @transform_17, window_bounds = array<i64: 4, 8>}, {pipeline_mode = #tpu.pipeline_mode<synchronous>, transform_indices = @transform_18, window_bounds = array<i64: 4, 4>}, {pipeline_mode = #tpu.pipeline_mode<synchronous>, transform_indices = @transform_19, window_bounds = array<i64: 4, 36>}, {pipeline_mode = #tpu.pipeline_mode<synchronous>, transform_indices = @transform_20, window_bounds = array<i64: 4, 36>}, {pipeline_mode = #tpu.pipeline_mode<synchronous>, transform_indices = @transform_21, window_bounds = array<i64: 4, 1>}, {pipeline_mode = #tpu.pipeline_mode<synchronous>, transform_indices = @transform_22, window_bounds = array<i64: 4, 4>}, {pipeline_mode = #tpu.pipeline_mode<synchronous>, transform_indices = @transform_23, window_bounds = array<i64: 4, 4>}, {pipeline_mode = #tpu.pipeline_mode<synchronous>, transform_indices = @transform_24, window_bounds = array<i64: 8, 72>}, {pipeline_mode = #tpu.pipeline_mode<synchronous>, transform_indices = @transform_25, window_bounds = array<i64: 8, 72>}, {pipeline_mode = #tpu.pipeline_mode<synchronous>, transform_indices = @transform_26, window_bounds = array<i64: 8, 1>}, {pipeline_mode = #tpu.pipeline_mode<synchronous>, transform_indices = @transform_27, window_bounds = array<i64: 8, 8>}, {pipeline_mode = #tpu.pipeline_mode<synchronous>, transform_indices = @transform_28, window_bounds = array<i64: 8, 8>}, {pipeline_mode = #tpu.pipeline_mode<synchronous>, transform_indices = @transform_29, window_bounds = array<i64: 16, 144>}, {pipeline_mode = #tpu.pipeline_mode<synchronous>, transform_indices = @transform_30, window_bounds = array<i64: 16, 144>}, {pipeline_mode = #tpu.pipeline_mode<synchronous>, transform_indices = @transform_31, window_bounds = array<i64: 16, 1>}, {pipeline_mode = #tpu.pipeline_mode<synchronous>, transform_indices = @transform_32, window_bounds = array<i64: 16, 16>}, {pipeline_mode = #tpu.pipeline_mode<synchronous>, transform_indices = @transform_33, window_bounds = array<i64: 16, 16>}, {pipeline_mode = #tpu.pipeline_mode<synchronous>, transform_indices = @transform_34, window_bounds = array<i64: 4, 8>}, {pipeline_mode = #tpu.pipeline_mode<synchronous>, transform_indices = @transform_35, window_bounds = array<i64: 8, 4>}, {pipeline_mode = #tpu.pipeline_mode<synchronous>, transform_indices = @transform_36, window_bounds = array<i64: 8, 4>}, {pipeline_mode = #tpu.pipeline_mode<synchronous>, transform_indices = @transform_37, window_bounds = array<i64: 4, 4>}, {pipeline_mode = #tpu.pipeline_mode<synchronous>, transform_indices = @transform_38, window_bounds = array<i64: 4, 4>}, {pipeline_mode = #tpu.pipeline_mode<synchronous>, transform_indices = @transform_39, window_bounds = array<i64: 4, 4>}, {transform_indices = @transform_40, window_bounds = array<i64: 1, 4, 512>}]} {
    %c0 = arith.constant 0 : index
    %c0_0 = arith.constant 0 : index
    %0 = vector.load %arg2[%c0, %c0_0] : memref<9x512xf32, #tpu.memory_space<vmem>>, vector<9x512xf32>
    %c0_1 = arith.constant 0 : index
    %c0_2 = arith.constant 0 : index
    %1 = vector.load %arg3[%c0_1, %c0_2] : memref<9x128xf32, #tpu.memory_space<vmem>>, vector<9x128xf32>
    %c0_3 = arith.constant 0 : index
    %c0_4 = arith.constant 0 : index
    %2 = vector.load %arg4[%c0_3, %c0_4] : memref<9x128xf32, #tpu.memory_space<vmem>>, vector<9x128xf32>
    %c0_5 = arith.constant 0 : index
    %c0_6 = arith.constant 0 : index
    %3 = vector.load %arg5[%c0_5, %c0_6] : memref<2x512xf32, #tpu.memory_space<vmem>>, vector<2x512xf32>
    %4 = vector.extract_strided_slice %0 {offsets = [4, 0], sizes = [1, 512], strides = [1, 1]} : vector<9x512xf32> to vector<1x512xf32>
    %cst = arith.constant 0.000000e+00 : f32
    %5 = vector.broadcast %cst : f32 to vector<2x512xf32>
    %6 = arith.cmpf ogt, %3, %5 : vector<2x512xf32>
    %cst_7 = arith.constant 1.000000e+00 : f32
    %7 = vector.broadcast %cst_7 : f32 to vector<1x512xf32>
    %8 = arith.subf %7, %4 : vector<1x512xf32>
    %c0_8 = arith.constant 0 : index
    %c0_9 = arith.constant 0 : index
    %9 = vector.load %arg6[%c0_8, %c0_9] : memref<2x128xf32, #tpu.memory_space<vmem>>, vector<2x128xf32>
    %10 = vector.extract_strided_slice %1 {offsets = [4, 0], sizes = [1, 128], strides = [1, 1]} : vector<9x128xf32> to vector<1x128xf32>
    %cst_10 = arith.constant 0.000000e+00 : f32
    %11 = vector.broadcast %cst_10 : f32 to vector<2x128xf32>
    %12 = arith.cmpf ogt, %9, %11 : vector<2x128xf32>
    %cst_11 = arith.constant 1.000000e+00 : f32
    %13 = vector.broadcast %cst_11 : f32 to vector<1x128xf32>
    %14 = arith.subf %13, %10 : vector<1x128xf32>
    %c0_12 = arith.constant 0 : index
    %c0_13 = arith.constant 0 : index
    %15 = vector.load %arg7[%c0_12, %c0_13] : memref<2x128xf32, #tpu.memory_space<vmem>>, vector<2x128xf32>
    %16 = vector.extract_strided_slice %2 {offsets = [4, 0], sizes = [1, 128], strides = [1, 1]} : vector<9x128xf32> to vector<1x128xf32>
    %cst_14 = arith.constant 0.000000e+00 : f32
    %17 = vector.broadcast %cst_14 : f32 to vector<2x128xf32>
    %18 = arith.cmpf ogt, %15, %17 : vector<2x128xf32>
    %cst_15 = arith.constant 1.000000e+00 : f32
    %19 = vector.broadcast %cst_15 : f32 to vector<1x128xf32>
    %20 = arith.subf %19, %16 : vector<1x128xf32>
    %c0_16 = arith.constant 0 : index
    %c0_17 = arith.constant 0 : index
    %21 = vector.load %arg8[%c0_16, %c0_17] : memref<512x128xbf16, #tpu.memory_space<vmem>>, vector<512x128xbf16>
    %c0_18 = arith.constant 0 : index
    %c0_19 = arith.constant 0 : index
    %22 = vector.load %arg9[%c0_18, %c0_19] : memref<128x128xbf16, #tpu.memory_space<vmem>>, vector<128x128xbf16>
    %c0_20 = arith.constant 0 : index
    %c0_21 = arith.constant 0 : index
    %23 = vector.load %arg10[%c0_20, %c0_21] : memref<128x128xbf16, #tpu.memory_space<vmem>>, vector<128x128xbf16>
    %c0_22 = arith.constant 0 : index
    %c0_23 = arith.constant 0 : index
    %24 = vector.load %arg11[%c0_22, %c0_23] : memref<128x512xbf16, #tpu.memory_space<vmem>>, vector<128x512xbf16>
    %c0_24 = arith.constant 0 : index
    %c0_25 = arith.constant 0 : index
    %c0_26 = arith.constant 0 : index
    %25 = vector.load %arg1[%c0_24, %c0_25, %c0_26] : memref<1x4x512xf32, #tpu.memory_space<vmem>>, vector<1x4x512xf32>
    %26 = vector.shape_cast %25 : vector<1x4x512xf32> to vector<4x512xf32>
    %27 = arith.truncf %26 : vector<4x512xf32> to vector<4x512xbf16>
    %cst_27 = arith.constant dense<0.000000e+00> : vector<4x128xf32>
    %28 = tpu.matmul %27, %21, %cst_27 {dimension_numbers = #tpu.dot_dimension_numbers<[1], [0], [0], [1], [0, 0, 1, 1], [], []>} : vector<4x512xbf16>, vector<512x128xbf16>, vector<4x128xf32> -> vector<4x128xf32>
    %c0_28 = arith.constant 0 : index
    %c0_29 = arith.constant 0 : index
    %29 = vector.load %arg12[%c0_28, %c0_29] : memref<8x4xbf16, #tpu.memory_space<vmem>>, vector<8x4xbf16>
    %30 = arith.truncf %28 : vector<4x128xf32> to vector<4x128xbf16>
    %cst_30 = arith.constant dense<0.000000e+00> : vector<8x128xf32>
    %31 = tpu.matmul %29, %30, %cst_30 {dimension_numbers = #tpu.dot_dimension_numbers<[1], [0], [0], [1], [0, 0, 1, 1], [], []>} : vector<8x4xbf16>, vector<4x128xbf16>, vector<8x128xf32> -> vector<8x128xf32>
    %c0_31 = arith.constant 0 : index
    %c0_32 = arith.constant 0 : index
    %32 = vector.load %arg14[%c0_31, %c0_32] : memref<16x8xbf16, #tpu.memory_space<vmem>>, vector<16x8xbf16>
    %c0_33 = arith.constant 0 : index
    %c0_34 = arith.constant 0 : index
    %33 = vector.load %arg13[%c0_33, %c0_34] : memref<8x4xbf16, #tpu.memory_space<vmem>>, vector<8x4xbf16>
    %34 = arith.truncf %28 : vector<4x128xf32> to vector<4x128xbf16>
    %cst_35 = arith.constant dense<0.000000e+00> : vector<8x128xf32>
    %35 = tpu.matmul %33, %34, %cst_35 {dimension_numbers = #tpu.dot_dimension_numbers<[1], [0], [0], [1], [0, 0, 1, 1], [], []>} : vector<8x4xbf16>, vector<4x128xbf16>, vector<8x128xf32> -> vector<8x128xf32>
    %36 = arith.truncf %35 : vector<8x128xf32> to vector<8x128xbf16>
    %cst_36 = arith.constant dense<0.000000e+00> : vector<8x128xf32>
    %37 = tpu.matmul %36, %22, %cst_36 {dimension_numbers = #tpu.dot_dimension_numbers<[1], [0], [0], [1], [0, 0, 1, 1], [], []>} : vector<8x128xbf16>, vector<128x128xbf16>, vector<8x128xf32> -> vector<8x128xf32>
    %38 = arith.truncf %37 : vector<8x128xf32> to vector<8x128xbf16>
    %cst_37 = arith.constant dense<0.000000e+00> : vector<16x128xf32>
    %39 = tpu.matmul %32, %38, %cst_37 {dimension_numbers = #tpu.dot_dimension_numbers<[1], [0], [0], [1], [0, 0, 1, 1], [], []>} : vector<16x8xbf16>, vector<8x128xbf16>, vector<16x128xf32> -> vector<16x128xf32>
    %c0_38 = arith.constant 0 : index
    %c0_39 = arith.constant 0 : index
    %40 = vector.load %arg20[%c0_38, %c0_39] : memref<4x36xbf16, #tpu.memory_space<vmem>>, vector<4x36xbf16>
    %c0_40 = arith.constant 0 : index
    %c0_41 = arith.constant 0 : index
    %41 = vector.load %arg21[%c0_40, %c0_41] : memref<4x36xbf16, #tpu.memory_space<vmem>>, vector<4x36xbf16>
    %c0_42 = arith.constant 0 : index
    %c0_43 = arith.constant 0 : index
    %42 = vector.load %arg22[%c0_42, %c0_43] : memref<4x1xf32, #tpu.memory_space<vmem>>, vector<4x1xf32>
    %c0_44 = arith.constant 0 : index
    %c0_45 = arith.constant 0 : index
    %43 = vector.load %arg23[%c0_44, %c0_45] : memref<4x4xf32, #tpu.memory_space<vmem>>, vector<4x4xf32>
    %c0_46 = arith.constant 0 : index
    %c0_47 = arith.constant 0 : index
    %44 = vector.load %arg24[%c0_46, %c0_47] : memref<4x4xf32, #tpu.memory_space<vmem>>, vector<4x4xf32>
    %c0_48 = arith.constant 0 : index
    %c0_49 = arith.constant 0 : index
    %45 = vector.load %arg25[%c0_48, %c0_49] : memref<8x72xbf16, #tpu.memory_space<vmem>>, vector<8x72xbf16>
    %c0_50 = arith.constant 0 : index
    %c0_51 = arith.constant 0 : index
    %46 = vector.load %arg26[%c0_50, %c0_51] : memref<8x72xbf16, #tpu.memory_space<vmem>>, vector<8x72xbf16>
    %c0_52 = arith.constant 0 : index
    %c0_53 = arith.constant 0 : index
    %47 = vector.load %arg27[%c0_52, %c0_53] : memref<8x1xf32, #tpu.memory_space<vmem>>, vector<8x1xf32>
    %c0_54 = arith.constant 0 : index
    %c0_55 = arith.constant 0 : index
    %48 = vector.load %arg28[%c0_54, %c0_55] : memref<8x8xf32, #tpu.memory_space<vmem>>, vector<8x8xf32>
    %c0_56 = arith.constant 0 : index
    %c0_57 = arith.constant 0 : index
    %49 = vector.load %arg29[%c0_56, %c0_57] : memref<8x8xf32, #tpu.memory_space<vmem>>, vector<8x8xf32>
    %c0_58 = arith.constant 0 : index
    %c0_59 = arith.constant 0 : index
    %50 = vector.load %arg30[%c0_58, %c0_59] : memref<16x144xbf16, #tpu.memory_space<vmem>>, vector<16x144xbf16>
    %c0_60 = arith.constant 0 : index
    %c0_61 = arith.constant 0 : index
    %51 = vector.load %arg31[%c0_60, %c0_61] : memref<16x144xbf16, #tpu.memory_space<vmem>>, vector<16x144xbf16>
    %c0_62 = arith.constant 0 : index
    %c0_63 = arith.constant 0 : index
    %52 = vector.load %arg32[%c0_62, %c0_63] : memref<16x1xf32, #tpu.memory_space<vmem>>, vector<16x1xf32>
    %c0_64 = arith.constant 0 : index
    %c0_65 = arith.constant 0 : index
    %53 = vector.load %arg33[%c0_64, %c0_65] : memref<16x16xf32, #tpu.memory_space<vmem>>, vector<16x16xf32>
    %c0_66 = arith.constant 0 : index
    %c0_67 = arith.constant 0 : index
    %54 = vector.load %arg34[%c0_66, %c0_67] : memref<16x16xf32, #tpu.memory_space<vmem>>, vector<16x16xf32>
    %c0_68 = arith.constant 0 : index
    %c0_69 = arith.constant 0 : index
    %55 = vector.load %arg35[%c0_68, %c0_69] : memref<4x8xf32, #tpu.memory_space<vmem>>, vector<4x8xf32>
    %c0_70 = arith.constant 0 : index
    %c0_71 = arith.constant 0 : index
    %56 = vector.load %arg36[%c0_70, %c0_71] : memref<8x4xf32, #tpu.memory_space<vmem>>, vector<8x4xf32>
    %c0_72 = arith.constant 0 : index
    %c0_73 = arith.constant 0 : index
    %57 = vector.load %arg37[%c0_72, %c0_73] : memref<8x4xf32, #tpu.memory_space<vmem>>, vector<8x4xf32>
    %c0_74 = arith.constant 0 : index
    %c0_75 = arith.constant 0 : index
    %58 = vector.load %arg38[%c0_74, %c0_75] : memref<4x4xf32, #tpu.memory_space<vmem>>, vector<4x4xf32>
    %c0_76 = arith.constant 0 : index
    %c0_77 = arith.constant 0 : index
    %59 = vector.load %arg39[%c0_76, %c0_77] : memref<4x4xf32, #tpu.memory_space<vmem>>, vector<4x4xf32>
    %c0_78 = arith.constant 0 : index
    %c0_79 = arith.constant 0 : index
    %60 = vector.load %arg40[%c0_78, %c0_79] : memref<4x4xf32, #tpu.memory_space<vmem>>, vector<4x4xf32>
    %c17_i32 = arith.constant 17 : i32
    %61 = tpu.dynamic_rotate %26 by %c17_i32 dim 1 : vector<4x512xf32>, i32 -> vector<4x512xf32>
    %62 = vector.extract_strided_slice %0 {offsets = [0, 0], sizes = [1, 512], strides = [1, 1]} : vector<9x512xf32> to vector<1x512xf32>
    %63 = vector.broadcast %62 : vector<1x512xf32> to vector<4x512xf32>
    %64 = arith.mulf %61, %63 : vector<4x512xf32>
    %c16_i32 = arith.constant 16 : i32
    %65 = tpu.dynamic_rotate %26 by %c16_i32 dim 1 : vector<4x512xf32>, i32 -> vector<4x512xf32>
    %66 = vector.extract_strided_slice %0 {offsets = [1, 0], sizes = [1, 512], strides = [1, 1]} : vector<9x512xf32> to vector<1x512xf32>
    %67 = vector.broadcast %66 : vector<1x512xf32> to vector<4x512xf32>
    %68 = arith.mulf %65, %67 : vector<4x512xf32>
    %c15_i32 = arith.constant 15 : i32
    %69 = tpu.dynamic_rotate %26 by %c15_i32 dim 1 : vector<4x512xf32>, i32 -> vector<4x512xf32>
    %70 = vector.extract_strided_slice %0 {offsets = [2, 0], sizes = [1, 512], strides = [1, 1]} : vector<9x512xf32> to vector<1x512xf32>
    %71 = vector.broadcast %70 : vector<1x512xf32> to vector<4x512xf32>
    %72 = arith.mulf %69, %71 : vector<4x512xf32>
    %c1_i32 = arith.constant 1 : i32
    %73 = tpu.dynamic_rotate %26 by %c1_i32 dim 1 : vector<4x512xf32>, i32 -> vector<4x512xf32>
    %74 = vector.extract_strided_slice %0 {offsets = [3, 0], sizes = [1, 512], strides = [1, 1]} : vector<9x512xf32> to vector<1x512xf32>
    %75 = vector.broadcast %74 : vector<1x512xf32> to vector<4x512xf32>
    %76 = arith.mulf %73, %75 : vector<4x512xf32>
    %77 = vector.extract_strided_slice %0 {offsets = [4, 0], sizes = [1, 512], strides = [1, 1]} : vector<9x512xf32> to vector<1x512xf32>
    %78 = vector.broadcast %77 : vector<1x512xf32> to vector<4x512xf32>
    %79 = arith.mulf %26, %78 : vector<4x512xf32>
    %c511_i32 = arith.constant 511 : i32
    %80 = tpu.dynamic_rotate %26 by %c511_i32 dim 1 : vector<4x512xf32>, i32 -> vector<4x512xf32>
    %81 = vector.extract_strided_slice %0 {offsets = [5, 0], sizes = [1, 512], strides = [1, 1]} : vector<9x512xf32> to vector<1x512xf32>
    %82 = vector.broadcast %81 : vector<1x512xf32> to vector<4x512xf32>
    %83 = arith.mulf %80, %82 : vector<4x512xf32>
    %c497_i32 = arith.constant 497 : i32
    %84 = tpu.dynamic_rotate %26 by %c497_i32 dim 1 : vector<4x512xf32>, i32 -> vector<4x512xf32>
    %85 = vector.extract_strided_slice %0 {offsets = [6, 0], sizes = [1, 512], strides = [1, 1]} : vector<9x512xf32> to vector<1x512xf32>
    %86 = vector.broadcast %85 : vector<1x512xf32> to vector<4x512xf32>
    %87 = arith.mulf %84, %86 : vector<4x512xf32>
    %c496_i32 = arith.constant 496 : i32
    %88 = tpu.dynamic_rotate %26 by %c496_i32 dim 1 : vector<4x512xf32>, i32 -> vector<4x512xf32>
    %89 = vector.extract_strided_slice %0 {offsets = [7, 0], sizes = [1, 512], strides = [1, 1]} : vector<9x512xf32> to vector<1x512xf32>
    %90 = vector.broadcast %89 : vector<1x512xf32> to vector<4x512xf32>
    %91 = arith.mulf %88, %90 : vector<4x512xf32>
    %c495_i32 = arith.constant 495 : i32
    %92 = tpu.dynamic_rotate %26 by %c495_i32 dim 1 : vector<4x512xf32>, i32 -> vector<4x512xf32>
    %93 = vector.extract_strided_slice %0 {offsets = [8, 0], sizes = [1, 512], strides = [1, 1]} : vector<9x512xf32> to vector<1x512xf32>
    %94 = vector.broadcast %93 : vector<1x512xf32> to vector<4x512xf32>
    %95 = arith.mulf %92, %94 : vector<4x512xf32>
    %96 = tpu.concatenate %64, %68, %72, %76, %79, %83, %87, %91, %95 in 0 : vector<4x512xf32>, vector<4x512xf32>, vector<4x512xf32>, vector<4x512xf32>, vector<4x512xf32>, vector<4x512xf32>, vector<4x512xf32>, vector<4x512xf32>, vector<4x512xf32> -> vector<36x512xf32>
    %97 = arith.truncf %96 : vector<36x512xf32> to vector<36x512xbf16>
    %cst_80 = arith.constant dense<0.000000e+00> : vector<4x512xf32>
    %98 = tpu.matmul %40, %97, %cst_80 {dimension_numbers = #tpu.dot_dimension_numbers<[1], [0], [0], [1], [0, 0, 1, 1], [], []>} : vector<4x36xbf16>, vector<36x512xbf16>, vector<4x512xf32> -> vector<4x512xf32>
    %cst_81 = arith.constant 2.000000e-01 : f32
    %99 = vector.broadcast %cst_81 : f32 to vector<4x512xf32>
    %100 = arith.mulf %99, %98 : vector<4x512xf32>
    %101 = arith.maximumf %98, %100 : vector<4x512xf32>
    %c17_i32_82 = arith.constant 17 : i32
    %102 = tpu.dynamic_rotate %101 by %c17_i32_82 dim 1 : vector<4x512xf32>, i32 -> vector<4x512xf32>
    %103 = vector.extract_strided_slice %0 {offsets = [0, 0], sizes = [1, 512], strides = [1, 1]} : vector<9x512xf32> to vector<1x512xf32>
    %104 = vector.broadcast %103 : vector<1x512xf32> to vector<4x512xf32>
    %105 = arith.mulf %102, %104 : vector<4x512xf32>
    %c16_i32_83 = arith.constant 16 : i32
    %106 = tpu.dynamic_rotate %101 by %c16_i32_83 dim 1 : vector<4x512xf32>, i32 -> vector<4x512xf32>
    %107 = vector.extract_strided_slice %0 {offsets = [1, 0], sizes = [1, 512], strides = [1, 1]} : vector<9x512xf32> to vector<1x512xf32>
    %108 = vector.broadcast %107 : vector<1x512xf32> to vector<4x512xf32>
    %109 = arith.mulf %106, %108 : vector<4x512xf32>
    %c15_i32_84 = arith.constant 15 : i32
    %110 = tpu.dynamic_rotate %101 by %c15_i32_84 dim 1 : vector<4x512xf32>, i32 -> vector<4x512xf32>
    %111 = vector.extract_strided_slice %0 {offsets = [2, 0], sizes = [1, 512], strides = [1, 1]} : vector<9x512xf32> to vector<1x512xf32>
    %112 = vector.broadcast %111 : vector<1x512xf32> to vector<4x512xf32>
    %113 = arith.mulf %110, %112 : vector<4x512xf32>
    %c1_i32_85 = arith.constant 1 : i32
    %114 = tpu.dynamic_rotate %101 by %c1_i32_85 dim 1 : vector<4x512xf32>, i32 -> vector<4x512xf32>
    %115 = vector.extract_strided_slice %0 {offsets = [3, 0], sizes = [1, 512], strides = [1, 1]} : vector<9x512xf32> to vector<1x512xf32>
    %116 = vector.broadcast %115 : vector<1x512xf32> to vector<4x512xf32>
    %117 = arith.mulf %114, %116 : vector<4x512xf32>
    %118 = vector.extract_strided_slice %0 {offsets = [4, 0], sizes = [1, 512], strides = [1, 1]} : vector<9x512xf32> to vector<1x512xf32>
    %119 = vector.broadcast %118 : vector<1x512xf32> to vector<4x512xf32>
    %120 = arith.mulf %101, %119 : vector<4x512xf32>
    %c511_i32_86 = arith.constant 511 : i32
    %121 = tpu.dynamic_rotate %101 by %c511_i32_86 dim 1 : vector<4x512xf32>, i32 -> vector<4x512xf32>
    %122 = vector.extract_strided_slice %0 {offsets = [5, 0], sizes = [1, 512], strides = [1, 1]} : vector<9x512xf32> to vector<1x512xf32>
    %123 = vector.broadcast %122 : vector<1x512xf32> to vector<4x512xf32>
    %124 = arith.mulf %121, %123 : vector<4x512xf32>
    %c497_i32_87 = arith.constant 497 : i32
    %125 = tpu.dynamic_rotate %101 by %c497_i32_87 dim 1 : vector<4x512xf32>, i32 -> vector<4x512xf32>
    %126 = vector.extract_strided_slice %0 {offsets = [6, 0], sizes = [1, 512], strides = [1, 1]} : vector<9x512xf32> to vector<1x512xf32>
    %127 = vector.broadcast %126 : vector<1x512xf32> to vector<4x512xf32>
    %128 = arith.mulf %125, %127 : vector<4x512xf32>
    %c496_i32_88 = arith.constant 496 : i32
    %129 = tpu.dynamic_rotate %101 by %c496_i32_88 dim 1 : vector<4x512xf32>, i32 -> vector<4x512xf32>
    %130 = vector.extract_strided_slice %0 {offsets = [7, 0], sizes = [1, 512], strides = [1, 1]} : vector<9x512xf32> to vector<1x512xf32>
    %131 = vector.broadcast %130 : vector<1x512xf32> to vector<4x512xf32>
    %132 = arith.mulf %129, %131 : vector<4x512xf32>
    %c495_i32_89 = arith.constant 495 : i32
    %133 = tpu.dynamic_rotate %101 by %c495_i32_89 dim 1 : vector<4x512xf32>, i32 -> vector<4x512xf32>
    %134 = vector.extract_strided_slice %0 {offsets = [8, 0], sizes = [1, 512], strides = [1, 1]} : vector<9x512xf32> to vector<1x512xf32>
    %135 = vector.broadcast %134 : vector<1x512xf32> to vector<4x512xf32>
    %136 = arith.mulf %133, %135 : vector<4x512xf32>
    %137 = tpu.concatenate %105, %109, %113, %117, %120, %124, %128, %132, %136 in 0 : vector<4x512xf32>, vector<4x512xf32>, vector<4x512xf32>, vector<4x512xf32>, vector<4x512xf32>, vector<4x512xf32>, vector<4x512xf32>, vector<4x512xf32>, vector<4x512xf32> -> vector<36x512xf32>
    %138 = arith.truncf %137 : vector<36x512xf32> to vector<36x512xbf16>
    %cst_90 = arith.constant dense<0.000000e+00> : vector<4x512xf32>
    %139 = tpu.matmul %41, %138, %cst_90 {dimension_numbers = #tpu.dot_dimension_numbers<[1], [0], [0], [1], [0, 0, 1, 1], [], []>} : vector<4x36xbf16>, vector<36x512xbf16>, vector<4x512xf32> -> vector<4x512xf32>
    %140 = vector.broadcast %42 : vector<4x1xf32> to vector<4x512xf32>
    %141 = arith.mulf %140, %139 : vector<4x512xf32>
    %cst_91 = arith.constant dense<0.000000e+00> : vector<512xf32>
    %142 = vector.multi_reduction <add>, %141, %cst_91 [0] : vector<4x512xf32> to vector<512xf32>
    %143 = vector.shape_cast %142 : vector<512xf32> to vector<1x512xf32>
    %cst_92 = arith.constant -1.000000e+30 : f32
    %144 = vector.shape_cast %143 : vector<1x512xf32> to vector<1x512xf32>
    %145 = vector.broadcast %144 : vector<1x512xf32> to vector<2x512xf32>
    %146 = vector.broadcast %cst_92 : f32 to vector<2x512xf32>
    %147 = arith.select %6, %145, %146 : vector<2x512xi1>, vector<2x512xf32>
    %cst_93 = arith.constant dense<0xFF800000> : vector<2xf32>
    %148 = vector.multi_reduction <maximumf>, %147, %cst_93 [1] : vector<2x512xf32> to vector<2xf32>
    %149 = vector.shape_cast %148 : vector<2xf32> to vector<2x1xf32>
    %150 = vector.broadcast %149 : vector<2x1xf32> to vector<2x512xf32>
    %151 = arith.mulf %150, %3 : vector<2x512xf32>
    %cst_94 = arith.constant dense<0.000000e+00> : vector<512xf32>
    %152 = vector.multi_reduction <add>, %151, %cst_94 [0] : vector<2x512xf32> to vector<512xf32>
    %153 = vector.shape_cast %152 : vector<512xf32> to vector<1x512xf32>
    %154 = arith.subf %143, %153 : vector<1x512xf32>
    %155 = math.exp %154 : vector<1x512xf32>
    %156 = vector.broadcast %155 : vector<1x512xf32> to vector<2x512xf32>
    %157 = arith.mulf %156, %3 : vector<2x512xf32>
    %cst_95 = arith.constant dense<0.000000e+00> : vector<2xf32>
    %158 = vector.multi_reduction <add>, %157, %cst_95 [1] : vector<2x512xf32> to vector<2xf32>
    %159 = vector.shape_cast %158 : vector<2xf32> to vector<2x1xf32>
    %160 = vector.broadcast %159 : vector<2x1xf32> to vector<2x512xf32>
    %161 = arith.mulf %160, %3 : vector<2x512xf32>
    %cst_96 = arith.constant dense<0.000000e+00> : vector<512xf32>
    %162 = vector.multi_reduction <add>, %161, %cst_96 [0] : vector<2x512xf32> to vector<512xf32>
    %163 = vector.shape_cast %162 : vector<512xf32> to vector<1x512xf32>
    %164 = arith.addf %163, %8 : vector<1x512xf32>
    %165 = tpu.reciprocal %164 {approx = true} : vector<1x512xf32> -> vector<1x512xf32>
    %166 = arith.mulf %155, %165 : vector<1x512xf32>
    %167 = vector.broadcast %166 : vector<1x512xf32> to vector<4x512xf32>
    %168 = arith.mulf %139, %167 : vector<4x512xf32>
    %169 = arith.truncf %168 : vector<4x512xf32> to vector<4x512xbf16>
    %170 = arith.truncf %3 : vector<2x512xf32> to vector<2x512xbf16>
    %cst_97 = arith.constant dense<0.000000e+00> : vector<4x2xf32>
    %171 = tpu.matmul %169, %170, %cst_97 {dimension_numbers = #tpu.dot_dimension_numbers<[1], [1], [0], [0], [0, 0, 1, 0], [], []>} : vector<4x512xbf16>, vector<2x512xbf16>, vector<4x2xf32> -> vector<4x2xf32>
    %172 = arith.truncf %43 : vector<4x4xf32> to vector<4x4xbf16>
    %173 = arith.truncf %171 : vector<4x2xf32> to vector<4x2xbf16>
    %cst_98 = arith.constant dense<0.000000e+00> : vector<4x2xf32>
    %174 = tpu.matmul %172, %173, %cst_98 {dimension_numbers = #tpu.dot_dimension_numbers<[1], [0], [0], [1], [0, 0, 1, 1], [], []>} : vector<4x4xbf16>, vector<4x2xbf16>, vector<4x2xf32> -> vector<4x2xf32>
    %cst_99 = arith.constant 2.000000e-01 : f32
    %175 = vector.broadcast %cst_99 : f32 to vector<4x2xf32>
    %176 = arith.mulf %175, %174 : vector<4x2xf32>
    %177 = arith.maximumf %174, %176 : vector<4x2xf32>
    %178 = arith.truncf %44 : vector<4x4xf32> to vector<4x4xbf16>
    %179 = arith.truncf %177 : vector<4x2xf32> to vector<4x2xbf16>
    %cst_100 = arith.constant dense<0.000000e+00> : vector<4x2xf32>
    %180 = tpu.matmul %178, %179, %cst_100 {dimension_numbers = #tpu.dot_dimension_numbers<[1], [0], [0], [1], [0, 0, 1, 1], [], []>} : vector<4x4xbf16>, vector<4x2xbf16>, vector<4x2xf32> -> vector<4x2xf32>
    %181 = arith.truncf %180 : vector<4x2xf32> to vector<4x2xbf16>
    %182 = arith.truncf %3 : vector<2x512xf32> to vector<2x512xbf16>
    %cst_101 = arith.constant dense<0.000000e+00> : vector<4x512xf32>
    %183 = tpu.matmul %181, %182, %cst_101 {dimension_numbers = #tpu.dot_dimension_numbers<[1], [0], [0], [1], [0, 0, 1, 1], [], []>} : vector<4x2xbf16>, vector<2x512xbf16>, vector<4x512xf32> -> vector<4x512xf32>
    %184 = arith.addf %139, %183 : vector<4x512xf32>
    %cst_102 = arith.constant 2.000000e-01 : f32
    %185 = vector.broadcast %cst_102 : f32 to vector<4x512xf32>
    %186 = arith.mulf %185, %184 : vector<4x512xf32>
    %187 = arith.maximumf %184, %186 : vector<4x512xf32>
    %188 = arith.addf %187, %26 : vector<4x512xf32>
    %c9_i32 = arith.constant 9 : i32
    %189 = tpu.dynamic_rotate %31 by %c9_i32 dim 1 : vector<8x128xf32>, i32 -> vector<8x128xf32>
    %190 = vector.extract_strided_slice %1 {offsets = [0, 0], sizes = [1, 128], strides = [1, 1]} : vector<9x128xf32> to vector<1x128xf32>
    %191 = vector.broadcast %190 : vector<1x128xf32> to vector<8x128xf32>
    %192 = arith.mulf %189, %191 : vector<8x128xf32>
    %c8_i32 = arith.constant 8 : i32
    %193 = tpu.dynamic_rotate %31 by %c8_i32 dim 1 : vector<8x128xf32>, i32 -> vector<8x128xf32>
    %194 = vector.extract_strided_slice %1 {offsets = [1, 0], sizes = [1, 128], strides = [1, 1]} : vector<9x128xf32> to vector<1x128xf32>
    %195 = vector.broadcast %194 : vector<1x128xf32> to vector<8x128xf32>
    %196 = arith.mulf %193, %195 : vector<8x128xf32>
    %c7_i32 = arith.constant 7 : i32
    %197 = tpu.dynamic_rotate %31 by %c7_i32 dim 1 : vector<8x128xf32>, i32 -> vector<8x128xf32>
    %198 = vector.extract_strided_slice %1 {offsets = [2, 0], sizes = [1, 128], strides = [1, 1]} : vector<9x128xf32> to vector<1x128xf32>
    %199 = vector.broadcast %198 : vector<1x128xf32> to vector<8x128xf32>
    %200 = arith.mulf %197, %199 : vector<8x128xf32>
    %c1_i32_103 = arith.constant 1 : i32
    %201 = tpu.dynamic_rotate %31 by %c1_i32_103 dim 1 : vector<8x128xf32>, i32 -> vector<8x128xf32>
    %202 = vector.extract_strided_slice %1 {offsets = [3, 0], sizes = [1, 128], strides = [1, 1]} : vector<9x128xf32> to vector<1x128xf32>
    %203 = vector.broadcast %202 : vector<1x128xf32> to vector<8x128xf32>
    %204 = arith.mulf %201, %203 : vector<8x128xf32>
    %205 = vector.extract_strided_slice %1 {offsets = [4, 0], sizes = [1, 128], strides = [1, 1]} : vector<9x128xf32> to vector<1x128xf32>
    %206 = vector.broadcast %205 : vector<1x128xf32> to vector<8x128xf32>
    %207 = arith.mulf %31, %206 : vector<8x128xf32>
    %c127_i32 = arith.constant 127 : i32
    %208 = tpu.dynamic_rotate %31 by %c127_i32 dim 1 : vector<8x128xf32>, i32 -> vector<8x128xf32>
    %209 = vector.extract_strided_slice %1 {offsets = [5, 0], sizes = [1, 128], strides = [1, 1]} : vector<9x128xf32> to vector<1x128xf32>
    %210 = vector.broadcast %209 : vector<1x128xf32> to vector<8x128xf32>
    %211 = arith.mulf %208, %210 : vector<8x128xf32>
    %c121_i32 = arith.constant 121 : i32
    %212 = tpu.dynamic_rotate %31 by %c121_i32 dim 1 : vector<8x128xf32>, i32 -> vector<8x128xf32>
    %213 = vector.extract_strided_slice %1 {offsets = [6, 0], sizes = [1, 128], strides = [1, 1]} : vector<9x128xf32> to vector<1x128xf32>
    %214 = vector.broadcast %213 : vector<1x128xf32> to vector<8x128xf32>
    %215 = arith.mulf %212, %214 : vector<8x128xf32>
    %c120_i32 = arith.constant 120 : i32
    %216 = tpu.dynamic_rotate %31 by %c120_i32 dim 1 : vector<8x128xf32>, i32 -> vector<8x128xf32>
    %217 = vector.extract_strided_slice %1 {offsets = [7, 0], sizes = [1, 128], strides = [1, 1]} : vector<9x128xf32> to vector<1x128xf32>
    %218 = vector.broadcast %217 : vector<1x128xf32> to vector<8x128xf32>
    %219 = arith.mulf %216, %218 : vector<8x128xf32>
    %c119_i32 = arith.constant 119 : i32
    %220 = tpu.dynamic_rotate %31 by %c119_i32 dim 1 : vector<8x128xf32>, i32 -> vector<8x128xf32>
    %221 = vector.extract_strided_slice %1 {offsets = [8, 0], sizes = [1, 128], strides = [1, 1]} : vector<9x128xf32> to vector<1x128xf32>
    %222 = vector.broadcast %221 : vector<1x128xf32> to vector<8x128xf32>
    %223 = arith.mulf %220, %222 : vector<8x128xf32>
    %224 = tpu.concatenate %192, %196, %200, %204, %207, %211, %215, %219, %223 in 0 : vector<8x128xf32>, vector<8x128xf32>, vector<8x128xf32>, vector<8x128xf32>, vector<8x128xf32>, vector<8x128xf32>, vector<8x128xf32>, vector<8x128xf32>, vector<8x128xf32> -> vector<72x128xf32>
    %225 = arith.truncf %224 : vector<72x128xf32> to vector<72x128xbf16>
    %cst_104 = arith.constant dense<0.000000e+00> : vector<8x128xf32>
    %226 = tpu.matmul %45, %225, %cst_104 {dimension_numbers = #tpu.dot_dimension_numbers<[1], [0], [0], [1], [0, 0, 1, 1], [], []>} : vector<8x72xbf16>, vector<72x128xbf16>, vector<8x128xf32> -> vector<8x128xf32>
    %cst_105 = arith.constant 2.000000e-01 : f32
    %227 = vector.broadcast %cst_105 : f32 to vector<8x128xf32>
    %228 = arith.mulf %227, %226 : vector<8x128xf32>
    %229 = arith.maximumf %226, %228 : vector<8x128xf32>
    %c9_i32_106 = arith.constant 9 : i32
    %230 = tpu.dynamic_rotate %229 by %c9_i32_106 dim 1 : vector<8x128xf32>, i32 -> vector<8x128xf32>
    %231 = vector.extract_strided_slice %1 {offsets = [0, 0], sizes = [1, 128], strides = [1, 1]} : vector<9x128xf32> to vector<1x128xf32>
    %232 = vector.broadcast %231 : vector<1x128xf32> to vector<8x128xf32>
    %233 = arith.mulf %230, %232 : vector<8x128xf32>
    %c8_i32_107 = arith.constant 8 : i32
    %234 = tpu.dynamic_rotate %229 by %c8_i32_107 dim 1 : vector<8x128xf32>, i32 -> vector<8x128xf32>
    %235 = vector.extract_strided_slice %1 {offsets = [1, 0], sizes = [1, 128], strides = [1, 1]} : vector<9x128xf32> to vector<1x128xf32>
    %236 = vector.broadcast %235 : vector<1x128xf32> to vector<8x128xf32>
    %237 = arith.mulf %234, %236 : vector<8x128xf32>
    %c7_i32_108 = arith.constant 7 : i32
    %238 = tpu.dynamic_rotate %229 by %c7_i32_108 dim 1 : vector<8x128xf32>, i32 -> vector<8x128xf32>
    %239 = vector.extract_strided_slice %1 {offsets = [2, 0], sizes = [1, 128], strides = [1, 1]} : vector<9x128xf32> to vector<1x128xf32>
    %240 = vector.broadcast %239 : vector<1x128xf32> to vector<8x128xf32>
    %241 = arith.mulf %238, %240 : vector<8x128xf32>
    %c1_i32_109 = arith.constant 1 : i32
    %242 = tpu.dynamic_rotate %229 by %c1_i32_109 dim 1 : vector<8x128xf32>, i32 -> vector<8x128xf32>
    %243 = vector.extract_strided_slice %1 {offsets = [3, 0], sizes = [1, 128], strides = [1, 1]} : vector<9x128xf32> to vector<1x128xf32>
    %244 = vector.broadcast %243 : vector<1x128xf32> to vector<8x128xf32>
    %245 = arith.mulf %242, %244 : vector<8x128xf32>
    %246 = vector.extract_strided_slice %1 {offsets = [4, 0], sizes = [1, 128], strides = [1, 1]} : vector<9x128xf32> to vector<1x128xf32>
    %247 = vector.broadcast %246 : vector<1x128xf32> to vector<8x128xf32>
    %248 = arith.mulf %229, %247 : vector<8x128xf32>
    %c127_i32_110 = arith.constant 127 : i32
    %249 = tpu.dynamic_rotate %229 by %c127_i32_110 dim 1 : vector<8x128xf32>, i32 -> vector<8x128xf32>
    %250 = vector.extract_strided_slice %1 {offsets = [5, 0], sizes = [1, 128], strides = [1, 1]} : vector<9x128xf32> to vector<1x128xf32>
    %251 = vector.broadcast %250 : vector<1x128xf32> to vector<8x128xf32>
    %252 = arith.mulf %249, %251 : vector<8x128xf32>
    %c121_i32_111 = arith.constant 121 : i32
    %253 = tpu.dynamic_rotate %229 by %c121_i32_111 dim 1 : vector<8x128xf32>, i32 -> vector<8x128xf32>
    %254 = vector.extract_strided_slice %1 {offsets = [6, 0], sizes = [1, 128], strides = [1, 1]} : vector<9x128xf32> to vector<1x128xf32>
    %255 = vector.broadcast %254 : vector<1x128xf32> to vector<8x128xf32>
    %256 = arith.mulf %253, %255 : vector<8x128xf32>
    %c120_i32_112 = arith.constant 120 : i32
    %257 = tpu.dynamic_rotate %229 by %c120_i32_112 dim 1 : vector<8x128xf32>, i32 -> vector<8x128xf32>
    %258 = vector.extract_strided_slice %1 {offsets = [7, 0], sizes = [1, 128], strides = [1, 1]} : vector<9x128xf32> to vector<1x128xf32>
    %259 = vector.broadcast %258 : vector<1x128xf32> to vector<8x128xf32>
    %260 = arith.mulf %257, %259 : vector<8x128xf32>
    %c119_i32_113 = arith.constant 119 : i32
    %261 = tpu.dynamic_rotate %229 by %c119_i32_113 dim 1 : vector<8x128xf32>, i32 -> vector<8x128xf32>
    %262 = vector.extract_strided_slice %1 {offsets = [8, 0], sizes = [1, 128], strides = [1, 1]} : vector<9x128xf32> to vector<1x128xf32>
    %263 = vector.broadcast %262 : vector<1x128xf32> to vector<8x128xf32>
    %264 = arith.mulf %261, %263 : vector<8x128xf32>
    %265 = tpu.concatenate %233, %237, %241, %245, %248, %252, %256, %260, %264 in 0 : vector<8x128xf32>, vector<8x128xf32>, vector<8x128xf32>, vector<8x128xf32>, vector<8x128xf32>, vector<8x128xf32>, vector<8x128xf32>, vector<8x128xf32>, vector<8x128xf32> -> vector<72x128xf32>
    %266 = arith.truncf %265 : vector<72x128xf32> to vector<72x128xbf16>
    %cst_114 = arith.constant dense<0.000000e+00> : vector<8x128xf32>
    %267 = tpu.matmul %46, %266, %cst_114 {dimension_numbers = #tpu.dot_dimension_numbers<[1], [0], [0], [1], [0, 0, 1, 1], [], []>} : vector<8x72xbf16>, vector<72x128xbf16>, vector<8x128xf32> -> vector<8x128xf32>
    %268 = vector.broadcast %47 : vector<8x1xf32> to vector<8x128xf32>
    %269 = arith.mulf %268, %267 : vector<8x128xf32>
    %cst_115 = arith.constant dense<0.000000e+00> : vector<128xf32>
    %270 = vector.multi_reduction <add>, %269, %cst_115 [0] : vector<8x128xf32> to vector<128xf32>
    %271 = vector.shape_cast %270 : vector<128xf32> to vector<1x128xf32>
    %cst_116 = arith.constant -1.000000e+30 : f32
    %272 = vector.shape_cast %271 : vector<1x128xf32> to vector<1x128xf32>
    %273 = vector.broadcast %272 : vector<1x128xf32> to vector<2x128xf32>
    %274 = vector.broadcast %cst_116 : f32 to vector<2x128xf32>
    %275 = arith.select %12, %273, %274 : vector<2x128xi1>, vector<2x128xf32>
    %cst_117 = arith.constant dense<0xFF800000> : vector<2xf32>
    %276 = vector.multi_reduction <maximumf>, %275, %cst_117 [1] : vector<2x128xf32> to vector<2xf32>
    %277 = vector.shape_cast %276 : vector<2xf32> to vector<2x1xf32>
    %278 = vector.broadcast %277 : vector<2x1xf32> to vector<2x128xf32>
    %279 = arith.mulf %278, %9 : vector<2x128xf32>
    %cst_118 = arith.constant dense<0.000000e+00> : vector<128xf32>
    %280 = vector.multi_reduction <add>, %279, %cst_118 [0] : vector<2x128xf32> to vector<128xf32>
    %281 = vector.shape_cast %280 : vector<128xf32> to vector<1x128xf32>
    %282 = arith.subf %271, %281 : vector<1x128xf32>
    %283 = math.exp %282 : vector<1x128xf32>
    %284 = vector.broadcast %283 : vector<1x128xf32> to vector<2x128xf32>
    %285 = arith.mulf %284, %9 : vector<2x128xf32>
    %cst_119 = arith.constant dense<0.000000e+00> : vector<2xf32>
    %286 = vector.multi_reduction <add>, %285, %cst_119 [1] : vector<2x128xf32> to vector<2xf32>
    %287 = vector.shape_cast %286 : vector<2xf32> to vector<2x1xf32>
    %288 = vector.broadcast %287 : vector<2x1xf32> to vector<2x128xf32>
    %289 = arith.mulf %288, %9 : vector<2x128xf32>
    %cst_120 = arith.constant dense<0.000000e+00> : vector<128xf32>
    %290 = vector.multi_reduction <add>, %289, %cst_120 [0] : vector<2x128xf32> to vector<128xf32>
    %291 = vector.shape_cast %290 : vector<128xf32> to vector<1x128xf32>
    %292 = arith.addf %291, %14 : vector<1x128xf32>
    %293 = tpu.reciprocal %292 {approx = true} : vector<1x128xf32> -> vector<1x128xf32>
    %294 = arith.mulf %283, %293 : vector<1x128xf32>
    %295 = vector.broadcast %294 : vector<1x128xf32> to vector<8x128xf32>
    %296 = arith.mulf %267, %295 : vector<8x128xf32>
    %297 = arith.truncf %296 : vector<8x128xf32> to vector<8x128xbf16>
    %298 = arith.truncf %9 : vector<2x128xf32> to vector<2x128xbf16>
    %cst_121 = arith.constant dense<0.000000e+00> : vector<8x2xf32>
    %299 = tpu.matmul %297, %298, %cst_121 {dimension_numbers = #tpu.dot_dimension_numbers<[1], [1], [0], [0], [0, 0, 1, 0], [], []>} : vector<8x128xbf16>, vector<2x128xbf16>, vector<8x2xf32> -> vector<8x2xf32>
    %300 = arith.truncf %48 : vector<8x8xf32> to vector<8x8xbf16>
    %301 = arith.truncf %299 : vector<8x2xf32> to vector<8x2xbf16>
    %cst_122 = arith.constant dense<0.000000e+00> : vector<8x2xf32>
    %302 = tpu.matmul %300, %301, %cst_122 {dimension_numbers = #tpu.dot_dimension_numbers<[1], [0], [0], [1], [0, 0, 1, 1], [], []>} : vector<8x8xbf16>, vector<8x2xbf16>, vector<8x2xf32> -> vector<8x2xf32>
    %cst_123 = arith.constant 2.000000e-01 : f32
    %303 = vector.broadcast %cst_123 : f32 to vector<8x2xf32>
    %304 = arith.mulf %303, %302 : vector<8x2xf32>
    %305 = arith.maximumf %302, %304 : vector<8x2xf32>
    %306 = arith.truncf %49 : vector<8x8xf32> to vector<8x8xbf16>
    %307 = arith.truncf %305 : vector<8x2xf32> to vector<8x2xbf16>
    %cst_124 = arith.constant dense<0.000000e+00> : vector<8x2xf32>
    %308 = tpu.matmul %306, %307, %cst_124 {dimension_numbers = #tpu.dot_dimension_numbers<[1], [0], [0], [1], [0, 0, 1, 1], [], []>} : vector<8x8xbf16>, vector<8x2xbf16>, vector<8x2xf32> -> vector<8x2xf32>
    %309 = arith.truncf %308 : vector<8x2xf32> to vector<8x2xbf16>
    %310 = arith.truncf %9 : vector<2x128xf32> to vector<2x128xbf16>
    %cst_125 = arith.constant dense<0.000000e+00> : vector<8x128xf32>
    %311 = tpu.matmul %309, %310, %cst_125 {dimension_numbers = #tpu.dot_dimension_numbers<[1], [0], [0], [1], [0, 0, 1, 1], [], []>} : vector<8x2xbf16>, vector<2x128xbf16>, vector<8x128xf32> -> vector<8x128xf32>
    %312 = arith.addf %267, %311 : vector<8x128xf32>
    %cst_126 = arith.constant 2.000000e-01 : f32
    %313 = vector.broadcast %cst_126 : f32 to vector<8x128xf32>
    %314 = arith.mulf %313, %312 : vector<8x128xf32>
    %315 = arith.maximumf %312, %314 : vector<8x128xf32>
    %316 = arith.addf %315, %31 : vector<8x128xf32>
    %c5_i32 = arith.constant 5 : i32
    %317 = tpu.dynamic_rotate %39 by %c5_i32 dim 1 : vector<16x128xf32>, i32 -> vector<16x128xf32>
    %318 = vector.extract_strided_slice %2 {offsets = [0, 0], sizes = [1, 128], strides = [1, 1]} : vector<9x128xf32> to vector<1x128xf32>
    %319 = vector.broadcast %318 : vector<1x128xf32> to vector<16x128xf32>
    %320 = arith.mulf %317, %319 : vector<16x128xf32>
    %c4_i32 = arith.constant 4 : i32
    %321 = tpu.dynamic_rotate %39 by %c4_i32 dim 1 : vector<16x128xf32>, i32 -> vector<16x128xf32>
    %322 = vector.extract_strided_slice %2 {offsets = [1, 0], sizes = [1, 128], strides = [1, 1]} : vector<9x128xf32> to vector<1x128xf32>
    %323 = vector.broadcast %322 : vector<1x128xf32> to vector<16x128xf32>
    %324 = arith.mulf %321, %323 : vector<16x128xf32>
    %c3_i32 = arith.constant 3 : i32
    %325 = tpu.dynamic_rotate %39 by %c3_i32 dim 1 : vector<16x128xf32>, i32 -> vector<16x128xf32>
    %326 = vector.extract_strided_slice %2 {offsets = [2, 0], sizes = [1, 128], strides = [1, 1]} : vector<9x128xf32> to vector<1x128xf32>
    %327 = vector.broadcast %326 : vector<1x128xf32> to vector<16x128xf32>
    %328 = arith.mulf %325, %327 : vector<16x128xf32>
    %c1_i32_127 = arith.constant 1 : i32
    %329 = tpu.dynamic_rotate %39 by %c1_i32_127 dim 1 : vector<16x128xf32>, i32 -> vector<16x128xf32>
    %330 = vector.extract_strided_slice %2 {offsets = [3, 0], sizes = [1, 128], strides = [1, 1]} : vector<9x128xf32> to vector<1x128xf32>
    %331 = vector.broadcast %330 : vector<1x128xf32> to vector<16x128xf32>
    %332 = arith.mulf %329, %331 : vector<16x128xf32>
    %333 = vector.extract_strided_slice %2 {offsets = [4, 0], sizes = [1, 128], strides = [1, 1]} : vector<9x128xf32> to vector<1x128xf32>
    %334 = vector.broadcast %333 : vector<1x128xf32> to vector<16x128xf32>
    %335 = arith.mulf %39, %334 : vector<16x128xf32>
    %c127_i32_128 = arith.constant 127 : i32
    %336 = tpu.dynamic_rotate %39 by %c127_i32_128 dim 1 : vector<16x128xf32>, i32 -> vector<16x128xf32>
    %337 = vector.extract_strided_slice %2 {offsets = [5, 0], sizes = [1, 128], strides = [1, 1]} : vector<9x128xf32> to vector<1x128xf32>
    %338 = vector.broadcast %337 : vector<1x128xf32> to vector<16x128xf32>
    %339 = arith.mulf %336, %338 : vector<16x128xf32>
    %c125_i32 = arith.constant 125 : i32
    %340 = tpu.dynamic_rotate %39 by %c125_i32 dim 1 : vector<16x128xf32>, i32 -> vector<16x128xf32>
    %341 = vector.extract_strided_slice %2 {offsets = [6, 0], sizes = [1, 128], strides = [1, 1]} : vector<9x128xf32> to vector<1x128xf32>
    %342 = vector.broadcast %341 : vector<1x128xf32> to vector<16x128xf32>
    %343 = arith.mulf %340, %342 : vector<16x128xf32>
    %c124_i32 = arith.constant 124 : i32
    %344 = tpu.dynamic_rotate %39 by %c124_i32 dim 1 : vector<16x128xf32>, i32 -> vector<16x128xf32>
    %345 = vector.extract_strided_slice %2 {offsets = [7, 0], sizes = [1, 128], strides = [1, 1]} : vector<9x128xf32> to vector<1x128xf32>
    %346 = vector.broadcast %345 : vector<1x128xf32> to vector<16x128xf32>
    %347 = arith.mulf %344, %346 : vector<16x128xf32>
    %c123_i32 = arith.constant 123 : i32
    %348 = tpu.dynamic_rotate %39 by %c123_i32 dim 1 : vector<16x128xf32>, i32 -> vector<16x128xf32>
    %349 = vector.extract_strided_slice %2 {offsets = [8, 0], sizes = [1, 128], strides = [1, 1]} : vector<9x128xf32> to vector<1x128xf32>
    %350 = vector.broadcast %349 : vector<1x128xf32> to vector<16x128xf32>
    %351 = arith.mulf %348, %350 : vector<16x128xf32>
    %352 = tpu.concatenate %320, %324, %328, %332, %335, %339, %343, %347, %351 in 0 : vector<16x128xf32>, vector<16x128xf32>, vector<16x128xf32>, vector<16x128xf32>, vector<16x128xf32>, vector<16x128xf32>, vector<16x128xf32>, vector<16x128xf32>, vector<16x128xf32> -> vector<144x128xf32>
    %353 = arith.truncf %352 : vector<144x128xf32> to vector<144x128xbf16>
    %cst_129 = arith.constant dense<0.000000e+00> : vector<16x128xf32>
    %354 = tpu.matmul %50, %353, %cst_129 {dimension_numbers = #tpu.dot_dimension_numbers<[1], [0], [0], [1], [0, 0, 1, 1], [], []>} : vector<16x144xbf16>, vector<144x128xbf16>, vector<16x128xf32> -> vector<16x128xf32>
    %cst_130 = arith.constant 2.000000e-01 : f32
    %355 = vector.broadcast %cst_130 : f32 to vector<16x128xf32>
    %356 = arith.mulf %355, %354 : vector<16x128xf32>
    %357 = arith.maximumf %354, %356 : vector<16x128xf32>
    %c5_i32_131 = arith.constant 5 : i32
    %358 = tpu.dynamic_rotate %357 by %c5_i32_131 dim 1 : vector<16x128xf32>, i32 -> vector<16x128xf32>
    %359 = vector.extract_strided_slice %2 {offsets = [0, 0], sizes = [1, 128], strides = [1, 1]} : vector<9x128xf32> to vector<1x128xf32>
    %360 = vector.broadcast %359 : vector<1x128xf32> to vector<16x128xf32>
    %361 = arith.mulf %358, %360 : vector<16x128xf32>
    %c4_i32_132 = arith.constant 4 : i32
    %362 = tpu.dynamic_rotate %357 by %c4_i32_132 dim 1 : vector<16x128xf32>, i32 -> vector<16x128xf32>
    %363 = vector.extract_strided_slice %2 {offsets = [1, 0], sizes = [1, 128], strides = [1, 1]} : vector<9x128xf32> to vector<1x128xf32>
    %364 = vector.broadcast %363 : vector<1x128xf32> to vector<16x128xf32>
    %365 = arith.mulf %362, %364 : vector<16x128xf32>
    %c3_i32_133 = arith.constant 3 : i32
    %366 = tpu.dynamic_rotate %357 by %c3_i32_133 dim 1 : vector<16x128xf32>, i32 -> vector<16x128xf32>
    %367 = vector.extract_strided_slice %2 {offsets = [2, 0], sizes = [1, 128], strides = [1, 1]} : vector<9x128xf32> to vector<1x128xf32>
    %368 = vector.broadcast %367 : vector<1x128xf32> to vector<16x128xf32>
    %369 = arith.mulf %366, %368 : vector<16x128xf32>
    %c1_i32_134 = arith.constant 1 : i32
    %370 = tpu.dynamic_rotate %357 by %c1_i32_134 dim 1 : vector<16x128xf32>, i32 -> vector<16x128xf32>
    %371 = vector.extract_strided_slice %2 {offsets = [3, 0], sizes = [1, 128], strides = [1, 1]} : vector<9x128xf32> to vector<1x128xf32>
    %372 = vector.broadcast %371 : vector<1x128xf32> to vector<16x128xf32>
    %373 = arith.mulf %370, %372 : vector<16x128xf32>
    %374 = vector.extract_strided_slice %2 {offsets = [4, 0], sizes = [1, 128], strides = [1, 1]} : vector<9x128xf32> to vector<1x128xf32>
    %375 = vector.broadcast %374 : vector<1x128xf32> to vector<16x128xf32>
    %376 = arith.mulf %357, %375 : vector<16x128xf32>
    %c127_i32_135 = arith.constant 127 : i32
    %377 = tpu.dynamic_rotate %357 by %c127_i32_135 dim 1 : vector<16x128xf32>, i32 -> vector<16x128xf32>
    %378 = vector.extract_strided_slice %2 {offsets = [5, 0], sizes = [1, 128], strides = [1, 1]} : vector<9x128xf32> to vector<1x128xf32>
    %379 = vector.broadcast %378 : vector<1x128xf32> to vector<16x128xf32>
    %380 = arith.mulf %377, %379 : vector<16x128xf32>
    %c125_i32_136 = arith.constant 125 : i32
    %381 = tpu.dynamic_rotate %357 by %c125_i32_136 dim 1 : vector<16x128xf32>, i32 -> vector<16x128xf32>
    %382 = vector.extract_strided_slice %2 {offsets = [6, 0], sizes = [1, 128], strides = [1, 1]} : vector<9x128xf32> to vector<1x128xf32>
    %383 = vector.broadcast %382 : vector<1x128xf32> to vector<16x128xf32>
    %384 = arith.mulf %381, %383 : vector<16x128xf32>
    %c124_i32_137 = arith.constant 124 : i32
    %385 = tpu.dynamic_rotate %357 by %c124_i32_137 dim 1 : vector<16x128xf32>, i32 -> vector<16x128xf32>
    %386 = vector.extract_strided_slice %2 {offsets = [7, 0], sizes = [1, 128], strides = [1, 1]} : vector<9x128xf32> to vector<1x128xf32>
    %387 = vector.broadcast %386 : vector<1x128xf32> to vector<16x128xf32>
    %388 = arith.mulf %385, %387 : vector<16x128xf32>
    %c123_i32_138 = arith.constant 123 : i32
    %389 = tpu.dynamic_rotate %357 by %c123_i32_138 dim 1 : vector<16x128xf32>, i32 -> vector<16x128xf32>
    %390 = vector.extract_strided_slice %2 {offsets = [8, 0], sizes = [1, 128], strides = [1, 1]} : vector<9x128xf32> to vector<1x128xf32>
    %391 = vector.broadcast %390 : vector<1x128xf32> to vector<16x128xf32>
    %392 = arith.mulf %389, %391 : vector<16x128xf32>
    %393 = tpu.concatenate %361, %365, %369, %373, %376, %380, %384, %388, %392 in 0 : vector<16x128xf32>, vector<16x128xf32>, vector<16x128xf32>, vector<16x128xf32>, vector<16x128xf32>, vector<16x128xf32>, vector<16x128xf32>, vector<16x128xf32>, vector<16x128xf32> -> vector<144x128xf32>
    %394 = arith.truncf %393 : vector<144x128xf32> to vector<144x128xbf16>
    %cst_139 = arith.constant dense<0.000000e+00> : vector<16x128xf32>
    %395 = tpu.matmul %51, %394, %cst_139 {dimension_numbers = #tpu.dot_dimension_numbers<[1], [0], [0], [1], [0, 0, 1, 1], [], []>} : vector<16x144xbf16>, vector<144x128xbf16>, vector<16x128xf32> -> vector<16x128xf32>
    %396 = vector.broadcast %52 : vector<16x1xf32> to vector<16x128xf32>
    %397 = arith.mulf %396, %395 : vector<16x128xf32>
    %cst_140 = arith.constant dense<0.000000e+00> : vector<128xf32>
    %398 = vector.multi_reduction <add>, %397, %cst_140 [0] : vector<16x128xf32> to vector<128xf32>
    %399 = vector.shape_cast %398 : vector<128xf32> to vector<1x128xf32>
    %cst_141 = arith.constant -1.000000e+30 : f32
    %400 = vector.shape_cast %399 : vector<1x128xf32> to vector<1x128xf32>
    %401 = vector.broadcast %400 : vector<1x128xf32> to vector<2x128xf32>
    %402 = vector.broadcast %cst_141 : f32 to vector<2x128xf32>
    %403 = arith.select %18, %401, %402 : vector<2x128xi1>, vector<2x128xf32>
    %cst_142 = arith.constant dense<0xFF800000> : vector<2xf32>
    %404 = vector.multi_reduction <maximumf>, %403, %cst_142 [1] : vector<2x128xf32> to vector<2xf32>
    %405 = vector.shape_cast %404 : vector<2xf32> to vector<2x1xf32>
    %406 = vector.broadcast %405 : vector<2x1xf32> to vector<2x128xf32>
    %407 = arith.mulf %406, %15 : vector<2x128xf32>
    %cst_143 = arith.constant dense<0.000000e+00> : vector<128xf32>
    %408 = vector.multi_reduction <add>, %407, %cst_143 [0] : vector<2x128xf32> to vector<128xf32>
    %409 = vector.shape_cast %408 : vector<128xf32> to vector<1x128xf32>
    %410 = arith.subf %399, %409 : vector<1x128xf32>
    %411 = math.exp %410 : vector<1x128xf32>
    %412 = vector.broadcast %411 : vector<1x128xf32> to vector<2x128xf32>
    %413 = arith.mulf %412, %15 : vector<2x128xf32>
    %cst_144 = arith.constant dense<0.000000e+00> : vector<2xf32>
    %414 = vector.multi_reduction <add>, %413, %cst_144 [1] : vector<2x128xf32> to vector<2xf32>
    %415 = vector.shape_cast %414 : vector<2xf32> to vector<2x1xf32>
    %416 = vector.broadcast %415 : vector<2x1xf32> to vector<2x128xf32>
    %417 = arith.mulf %416, %15 : vector<2x128xf32>
    %cst_145 = arith.constant dense<0.000000e+00> : vector<128xf32>
    %418 = vector.multi_reduction <add>, %417, %cst_145 [0] : vector<2x128xf32> to vector<128xf32>
    %419 = vector.shape_cast %418 : vector<128xf32> to vector<1x128xf32>
    %420 = arith.addf %419, %20 : vector<1x128xf32>
    %421 = tpu.reciprocal %420 {approx = true} : vector<1x128xf32> -> vector<1x128xf32>
    %422 = arith.mulf %411, %421 : vector<1x128xf32>
    %423 = vector.broadcast %422 : vector<1x128xf32> to vector<16x128xf32>
    %424 = arith.mulf %395, %423 : vector<16x128xf32>
    %425 = arith.truncf %424 : vector<16x128xf32> to vector<16x128xbf16>
    %426 = arith.truncf %15 : vector<2x128xf32> to vector<2x128xbf16>
    %cst_146 = arith.constant dense<0.000000e+00> : vector<16x2xf32>
    %427 = tpu.matmul %425, %426, %cst_146 {dimension_numbers = #tpu.dot_dimension_numbers<[1], [1], [0], [0], [0, 0, 1, 0], [], []>} : vector<16x128xbf16>, vector<2x128xbf16>, vector<16x2xf32> -> vector<16x2xf32>
    %428 = arith.truncf %53 : vector<16x16xf32> to vector<16x16xbf16>
    %429 = arith.truncf %427 : vector<16x2xf32> to vector<16x2xbf16>
    %cst_147 = arith.constant dense<0.000000e+00> : vector<16x2xf32>
    %430 = tpu.matmul %428, %429, %cst_147 {dimension_numbers = #tpu.dot_dimension_numbers<[1], [0], [0], [1], [0, 0, 1, 1], [], []>} : vector<16x16xbf16>, vector<16x2xbf16>, vector<16x2xf32> -> vector<16x2xf32>
    %cst_148 = arith.constant 2.000000e-01 : f32
    %431 = vector.broadcast %cst_148 : f32 to vector<16x2xf32>
    %432 = arith.mulf %431, %430 : vector<16x2xf32>
    %433 = arith.maximumf %430, %432 : vector<16x2xf32>
    %434 = arith.truncf %54 : vector<16x16xf32> to vector<16x16xbf16>
    %435 = arith.truncf %433 : vector<16x2xf32> to vector<16x2xbf16>
    %cst_149 = arith.constant dense<0.000000e+00> : vector<16x2xf32>
    %436 = tpu.matmul %434, %435, %cst_149 {dimension_numbers = #tpu.dot_dimension_numbers<[1], [0], [0], [1], [0, 0, 1, 1], [], []>} : vector<16x16xbf16>, vector<16x2xbf16>, vector<16x2xf32> -> vector<16x2xf32>
    %437 = arith.truncf %436 : vector<16x2xf32> to vector<16x2xbf16>
    %438 = arith.truncf %15 : vector<2x128xf32> to vector<2x128xbf16>
    %cst_150 = arith.constant dense<0.000000e+00> : vector<16x128xf32>
    %439 = tpu.matmul %437, %438, %cst_150 {dimension_numbers = #tpu.dot_dimension_numbers<[1], [0], [0], [1], [0, 0, 1, 1], [], []>} : vector<16x2xbf16>, vector<2x128xbf16>, vector<16x128xf32> -> vector<16x128xf32>
    %440 = arith.addf %395, %439 : vector<16x128xf32>
    %cst_151 = arith.constant 2.000000e-01 : f32
    %441 = vector.broadcast %cst_151 : f32 to vector<16x128xf32>
    %442 = arith.mulf %441, %440 : vector<16x128xf32>
    %443 = arith.maximumf %440, %442 : vector<16x128xf32>
    %444 = arith.addf %443, %39 : vector<16x128xf32>
    %c0_152 = arith.constant 0 : index
    %c0_153 = arith.constant 0 : index
    %445 = vector.load %arg15[%c0_152, %c0_153] : memref<8x16xbf16, #tpu.memory_space<vmem>>, vector<8x16xbf16>
    %446 = arith.truncf %444 : vector<16x128xf32> to vector<16x128xbf16>
    %cst_154 = arith.constant dense<0.000000e+00> : vector<8x128xf32>
    %447 = tpu.matmul %445, %446, %cst_154 {dimension_numbers = #tpu.dot_dimension_numbers<[1], [0], [0], [1], [0, 0, 1, 1], [], []>} : vector<8x16xbf16>, vector<16x128xbf16>, vector<8x128xf32> -> vector<8x128xf32>
    %448 = arith.truncf %447 : vector<8x128xf32> to vector<8x128xbf16>
    %cst_155 = arith.constant dense<0.000000e+00> : vector<8x128xf32>
    %449 = tpu.matmul %448, %23, %cst_155 {dimension_numbers = #tpu.dot_dimension_numbers<[1], [0], [0], [1], [0, 0, 1, 1], [], []>} : vector<8x128xbf16>, vector<128x128xbf16>, vector<8x128xf32> -> vector<8x128xf32>
    %450 = arith.addf %316, %449 : vector<8x128xf32>
    %451 = arith.truncf %450 : vector<8x128xf32> to vector<8x128xbf16>
    %452 = arith.truncf %9 : vector<2x128xf32> to vector<2x128xbf16>
    %cst_156 = arith.constant dense<0.000000e+00> : vector<8x2xf32>
    %453 = tpu.matmul %451, %452, %cst_156 {dimension_numbers = #tpu.dot_dimension_numbers<[1], [1], [0], [0], [0, 0, 1, 0], [], []>} : vector<8x128xbf16>, vector<2x128xbf16>, vector<8x2xf32> -> vector<8x2xf32>
    %cst_157 = arith.constant 1.562500e-02 : f32
    %454 = vector.broadcast %cst_157 : f32 to vector<8x2xf32>
    %455 = arith.mulf %453, %454 : vector<8x2xf32>
    %456 = arith.truncf %55 : vector<4x8xf32> to vector<4x8xbf16>
    %457 = arith.truncf %455 : vector<8x2xf32> to vector<8x2xbf16>
    %cst_158 = arith.constant dense<0.000000e+00> : vector<4x2xf32>
    %458 = tpu.matmul %456, %457, %cst_158 {dimension_numbers = #tpu.dot_dimension_numbers<[1], [0], [0], [1], [0, 0, 1, 1], [], []>} : vector<4x8xbf16>, vector<8x2xbf16>, vector<4x2xf32> -> vector<4x2xf32>
    %cst_159 = arith.constant 2.000000e-01 : f32
    %459 = vector.broadcast %cst_159 : f32 to vector<4x2xf32>
    %460 = arith.mulf %459, %458 : vector<4x2xf32>
    %461 = arith.maximumf %458, %460 : vector<4x2xf32>
    %462 = arith.truncf %56 : vector<8x4xf32> to vector<8x4xbf16>
    %463 = arith.truncf %461 : vector<4x2xf32> to vector<4x2xbf16>
    %cst_160 = arith.constant dense<0.000000e+00> : vector<8x2xf32>
    %464 = tpu.matmul %462, %463, %cst_160 {dimension_numbers = #tpu.dot_dimension_numbers<[1], [0], [0], [1], [0, 0, 1, 1], [], []>} : vector<8x4xbf16>, vector<4x2xbf16>, vector<8x2xf32> -> vector<8x2xf32>
    %465 = arith.truncf %57 : vector<8x4xf32> to vector<8x4xbf16>
    %466 = arith.truncf %461 : vector<4x2xf32> to vector<4x2xbf16>
    %cst_161 = arith.constant dense<0.000000e+00> : vector<8x2xf32>
    %467 = tpu.matmul %465, %466, %cst_161 {dimension_numbers = #tpu.dot_dimension_numbers<[1], [0], [0], [1], [0, 0, 1, 1], [], []>} : vector<8x4xbf16>, vector<4x2xbf16>, vector<8x2xf32> -> vector<8x2xf32>
    %468 = arith.maximumf %464, %467 : vector<8x2xf32>
    %469 = arith.subf %464, %468 : vector<8x2xf32>
    %470 = math.exp %469 : vector<8x2xf32>
    %471 = arith.subf %467, %468 : vector<8x2xf32>
    %472 = math.exp %471 : vector<8x2xf32>
    %473 = arith.addf %470, %472 : vector<8x2xf32>
    %474 = tpu.reciprocal %473 {approx = true} : vector<8x2xf32> -> vector<8x2xf32>
    %475 = arith.mulf %470, %474 : vector<8x2xf32>
    %476 = arith.truncf %475 : vector<8x2xf32> to vector<8x2xbf16>
    %477 = arith.truncf %9 : vector<2x128xf32> to vector<2x128xbf16>
    %cst_162 = arith.constant dense<0.000000e+00> : vector<8x128xf32>
    %478 = tpu.matmul %476, %477, %cst_162 {dimension_numbers = #tpu.dot_dimension_numbers<[1], [0], [0], [1], [0, 0, 1, 1], [], []>} : vector<8x2xbf16>, vector<2x128xbf16>, vector<8x128xf32> -> vector<8x128xf32>
    %479 = arith.mulf %316, %478 : vector<8x128xf32>
    %480 = arith.mulf %472, %474 : vector<8x2xf32>
    %481 = arith.truncf %480 : vector<8x2xf32> to vector<8x2xbf16>
    %482 = arith.truncf %9 : vector<2x128xf32> to vector<2x128xbf16>
    %cst_163 = arith.constant dense<0.000000e+00> : vector<8x128xf32>
    %483 = tpu.matmul %481, %482, %cst_163 {dimension_numbers = #tpu.dot_dimension_numbers<[1], [0], [0], [1], [0, 0, 1, 1], [], []>} : vector<8x2xbf16>, vector<2x128xbf16>, vector<8x128xf32> -> vector<8x128xf32>
    %484 = arith.mulf %449, %483 : vector<8x128xf32>
    %485 = arith.addf %479, %484 : vector<8x128xf32>
    %c0_164 = arith.constant 0 : index
    %c0_165 = arith.constant 0 : index
    %486 = vector.load %arg17[%c0_164, %c0_165] : memref<4x8xbf16, #tpu.memory_space<vmem>>, vector<4x8xbf16>
    %487 = arith.truncf %485 : vector<8x128xf32> to vector<8x128xbf16>
    %cst_166 = arith.constant dense<0.000000e+00> : vector<4x128xf32>
    %488 = tpu.matmul %486, %487, %cst_166 {dimension_numbers = #tpu.dot_dimension_numbers<[1], [0], [0], [1], [0, 0, 1, 1], [], []>} : vector<4x8xbf16>, vector<8x128xbf16>, vector<4x128xf32> -> vector<4x128xf32>
    %489 = arith.truncf %488 : vector<4x128xf32> to vector<4x128xbf16>
    %cst_167 = arith.constant dense<0.000000e+00> : vector<4x512xf32>
    %490 = tpu.matmul %489, %24, %cst_167 {dimension_numbers = #tpu.dot_dimension_numbers<[1], [0], [0], [1], [0, 0, 1, 1], [], []>} : vector<4x128xbf16>, vector<128x512xbf16>, vector<4x512xf32> -> vector<4x512xf32>
    %491 = arith.addf %188, %490 : vector<4x512xf32>
    %492 = arith.truncf %491 : vector<4x512xf32> to vector<4x512xbf16>
    %493 = arith.truncf %3 : vector<2x512xf32> to vector<2x512xbf16>
    %cst_168 = arith.constant dense<0.000000e+00> : vector<4x2xf32>
    %494 = tpu.matmul %492, %493, %cst_168 {dimension_numbers = #tpu.dot_dimension_numbers<[1], [1], [0], [0], [0, 0, 1, 0], [], []>} : vector<4x512xbf16>, vector<2x512xbf16>, vector<4x2xf32> -> vector<4x2xf32>
    %cst_169 = arith.constant 3.906250e-03 : f32
    %495 = vector.broadcast %cst_169 : f32 to vector<4x2xf32>
    %496 = arith.mulf %494, %495 : vector<4x2xf32>
    %497 = arith.truncf %58 : vector<4x4xf32> to vector<4x4xbf16>
    %498 = arith.truncf %496 : vector<4x2xf32> to vector<4x2xbf16>
    %cst_170 = arith.constant dense<0.000000e+00> : vector<4x2xf32>
    %499 = tpu.matmul %497, %498, %cst_170 {dimension_numbers = #tpu.dot_dimension_numbers<[1], [0], [0], [1], [0, 0, 1, 1], [], []>} : vector<4x4xbf16>, vector<4x2xbf16>, vector<4x2xf32> -> vector<4x2xf32>
    %cst_171 = arith.constant 2.000000e-01 : f32
    %500 = vector.broadcast %cst_171 : f32 to vector<4x2xf32>
    %501 = arith.mulf %500, %499 : vector<4x2xf32>
    %502 = arith.maximumf %499, %501 : vector<4x2xf32>
    %503 = arith.truncf %59 : vector<4x4xf32> to vector<4x4xbf16>
    %504 = arith.truncf %502 : vector<4x2xf32> to vector<4x2xbf16>
    %cst_172 = arith.constant dense<0.000000e+00> : vector<4x2xf32>
    %505 = tpu.matmul %503, %504, %cst_172 {dimension_numbers = #tpu.dot_dimension_numbers<[1], [0], [0], [1], [0, 0, 1, 1], [], []>} : vector<4x4xbf16>, vector<4x2xbf16>, vector<4x2xf32> -> vector<4x2xf32>
    %506 = arith.truncf %60 : vector<4x4xf32> to vector<4x4xbf16>
    %507 = arith.truncf %502 : vector<4x2xf32> to vector<4x2xbf16>
    %cst_173 = arith.constant dense<0.000000e+00> : vector<4x2xf32>
    %508 = tpu.matmul %506, %507, %cst_173 {dimension_numbers = #tpu.dot_dimension_numbers<[1], [0], [0], [1], [0, 0, 1, 1], [], []>} : vector<4x4xbf16>, vector<4x2xbf16>, vector<4x2xf32> -> vector<4x2xf32>
    %509 = arith.maximumf %505, %508 : vector<4x2xf32>
    %510 = arith.subf %505, %509 : vector<4x2xf32>
    %511 = math.exp %510 : vector<4x2xf32>
    %512 = arith.subf %508, %509 : vector<4x2xf32>
    %513 = math.exp %512 : vector<4x2xf32>
    %514 = arith.addf %511, %513 : vector<4x2xf32>
    %515 = tpu.reciprocal %514 {approx = true} : vector<4x2xf32> -> vector<4x2xf32>
    %516 = arith.mulf %511, %515 : vector<4x2xf32>
    %517 = arith.truncf %516 : vector<4x2xf32> to vector<4x2xbf16>
    %518 = arith.truncf %3 : vector<2x512xf32> to vector<2x512xbf16>
    %cst_174 = arith.constant dense<0.000000e+00> : vector<4x512xf32>
    %519 = tpu.matmul %517, %518, %cst_174 {dimension_numbers = #tpu.dot_dimension_numbers<[1], [0], [0], [1], [0, 0, 1, 1], [], []>} : vector<4x2xbf16>, vector<2x512xbf16>, vector<4x512xf32> -> vector<4x512xf32>
    %520 = arith.mulf %188, %519 : vector<4x512xf32>
    %521 = arith.mulf %513, %515 : vector<4x2xf32>
    %522 = arith.truncf %521 : vector<4x2xf32> to vector<4x2xbf16>
    %523 = arith.truncf %3 : vector<2x512xf32> to vector<2x512xbf16>
    %cst_175 = arith.constant dense<0.000000e+00> : vector<4x512xf32>
    %524 = tpu.matmul %522, %523, %cst_175 {dimension_numbers = #tpu.dot_dimension_numbers<[1], [0], [0], [1], [0, 0, 1, 1], [], []>} : vector<4x2xbf16>, vector<2x512xbf16>, vector<4x512xf32> -> vector<4x512xf32>
    %525 = arith.mulf %490, %524 : vector<4x512xf32>
    %526 = arith.addf %520, %525 : vector<4x512xf32>
    %c17_i32_176 = arith.constant 17 : i32
    %527 = tpu.dynamic_rotate %526 by %c17_i32_176 dim 1 : vector<4x512xf32>, i32 -> vector<4x512xf32>
    %528 = vector.extract_strided_slice %0 {offsets = [0, 0], sizes = [1, 512], strides = [1, 1]} : vector<9x512xf32> to vector<1x512xf32>
    %529 = vector.broadcast %528 : vector<1x512xf32> to vector<4x512xf32>
    %530 = arith.mulf %527, %529 : vector<4x512xf32>
    %c16_i32_177 = arith.constant 16 : i32
    %531 = tpu.dynamic_rotate %526 by %c16_i32_177 dim 1 : vector<4x512xf32>, i32 -> vector<4x512xf32>
    %532 = vector.extract_strided_slice %0 {offsets = [1, 0], sizes = [1, 512], strides = [1, 1]} : vector<9x512xf32> to vector<1x512xf32>
    %533 = vector.broadcast %532 : vector<1x512xf32> to vector<4x512xf32>
    %534 = arith.mulf %531, %533 : vector<4x512xf32>
    %c15_i32_178 = arith.constant 15 : i32
    %535 = tpu.dynamic_rotate %526 by %c15_i32_178 dim 1 : vector<4x512xf32>, i32 -> vector<4x512xf32>
    %536 = vector.extract_strided_slice %0 {offsets = [2, 0], sizes = [1, 512], strides = [1, 1]} : vector<9x512xf32> to vector<1x512xf32>
    %537 = vector.broadcast %536 : vector<1x512xf32> to vector<4x512xf32>
    %538 = arith.mulf %535, %537 : vector<4x512xf32>
    %c1_i32_179 = arith.constant 1 : i32
    %539 = tpu.dynamic_rotate %526 by %c1_i32_179 dim 1 : vector<4x512xf32>, i32 -> vector<4x512xf32>
    %540 = vector.extract_strided_slice %0 {offsets = [3, 0], sizes = [1, 512], strides = [1, 1]} : vector<9x512xf32> to vector<1x512xf32>
    %541 = vector.broadcast %540 : vector<1x512xf32> to vector<4x512xf32>
    %542 = arith.mulf %539, %541 : vector<4x512xf32>
    %543 = vector.extract_strided_slice %0 {offsets = [4, 0], sizes = [1, 512], strides = [1, 1]} : vector<9x512xf32> to vector<1x512xf32>
    %544 = vector.broadcast %543 : vector<1x512xf32> to vector<4x512xf32>
    %545 = arith.mulf %526, %544 : vector<4x512xf32>
    %c511_i32_180 = arith.constant 511 : i32
    %546 = tpu.dynamic_rotate %526 by %c511_i32_180 dim 1 : vector<4x512xf32>, i32 -> vector<4x512xf32>
    %547 = vector.extract_strided_slice %0 {offsets = [5, 0], sizes = [1, 512], strides = [1, 1]} : vector<9x512xf32> to vector<1x512xf32>
    %548 = vector.broadcast %547 : vector<1x512xf32> to vector<4x512xf32>
    %549 = arith.mulf %546, %548 : vector<4x512xf32>
    %c497_i32_181 = arith.constant 497 : i32
    %550 = tpu.dynamic_rotate %526 by %c497_i32_181 dim 1 : vector<4x512xf32>, i32 -> vector<4x512xf32>
    %551 = vector.extract_strided_slice %0 {offsets = [6, 0], sizes = [1, 512], strides = [1, 1]} : vector<9x512xf32> to vector<1x512xf32>
    %552 = vector.broadcast %551 : vector<1x512xf32> to vector<4x512xf32>
    %553 = arith.mulf %550, %552 : vector<4x512xf32>
    %c496_i32_182 = arith.constant 496 : i32
    %554 = tpu.dynamic_rotate %526 by %c496_i32_182 dim 1 : vector<4x512xf32>, i32 -> vector<4x512xf32>
    %555 = vector.extract_strided_slice %0 {offsets = [7, 0], sizes = [1, 512], strides = [1, 1]} : vector<9x512xf32> to vector<1x512xf32>
    %556 = vector.broadcast %555 : vector<1x512xf32> to vector<4x512xf32>
    %557 = arith.mulf %554, %556 : vector<4x512xf32>
    %c495_i32_183 = arith.constant 495 : i32
    %558 = tpu.dynamic_rotate %526 by %c495_i32_183 dim 1 : vector<4x512xf32>, i32 -> vector<4x512xf32>
    %559 = vector.extract_strided_slice %0 {offsets = [8, 0], sizes = [1, 512], strides = [1, 1]} : vector<9x512xf32> to vector<1x512xf32>
    %560 = vector.broadcast %559 : vector<1x512xf32> to vector<4x512xf32>
    %561 = arith.mulf %558, %560 : vector<4x512xf32>
    %562 = tpu.concatenate %530, %534, %538, %542, %545, %549, %553, %557, %561 in 0 : vector<4x512xf32>, vector<4x512xf32>, vector<4x512xf32>, vector<4x512xf32>, vector<4x512xf32>, vector<4x512xf32>, vector<4x512xf32>, vector<4x512xf32>, vector<4x512xf32> -> vector<36x512xf32>
    %563 = arith.truncf %562 : vector<36x512xf32> to vector<36x512xbf16>
    %cst_184 = arith.constant dense<0.000000e+00> : vector<4x512xf32>
    %564 = tpu.matmul %40, %563, %cst_184 {dimension_numbers = #tpu.dot_dimension_numbers<[1], [0], [0], [1], [0, 0, 1, 1], [], []>} : vector<4x36xbf16>, vector<36x512xbf16>, vector<4x512xf32> -> vector<4x512xf32>
    %cst_185 = arith.constant 2.000000e-01 : f32
    %565 = vector.broadcast %cst_185 : f32 to vector<4x512xf32>
    %566 = arith.mulf %565, %564 : vector<4x512xf32>
    %567 = arith.maximumf %564, %566 : vector<4x512xf32>
    %c17_i32_186 = arith.constant 17 : i32
    %568 = tpu.dynamic_rotate %567 by %c17_i32_186 dim 1 : vector<4x512xf32>, i32 -> vector<4x512xf32>
    %569 = vector.extract_strided_slice %0 {offsets = [0, 0], sizes = [1, 512], strides = [1, 1]} : vector<9x512xf32> to vector<1x512xf32>
    %570 = vector.broadcast %569 : vector<1x512xf32> to vector<4x512xf32>
    %571 = arith.mulf %568, %570 : vector<4x512xf32>
    %c16_i32_187 = arith.constant 16 : i32
    %572 = tpu.dynamic_rotate %567 by %c16_i32_187 dim 1 : vector<4x512xf32>, i32 -> vector<4x512xf32>
    %573 = vector.extract_strided_slice %0 {offsets = [1, 0], sizes = [1, 512], strides = [1, 1]} : vector<9x512xf32> to vector<1x512xf32>
    %574 = vector.broadcast %573 : vector<1x512xf32> to vector<4x512xf32>
    %575 = arith.mulf %572, %574 : vector<4x512xf32>
    %c15_i32_188 = arith.constant 15 : i32
    %576 = tpu.dynamic_rotate %567 by %c15_i32_188 dim 1 : vector<4x512xf32>, i32 -> vector<4x512xf32>
    %577 = vector.extract_strided_slice %0 {offsets = [2, 0], sizes = [1, 512], strides = [1, 1]} : vector<9x512xf32> to vector<1x512xf32>
    %578 = vector.broadcast %577 : vector<1x512xf32> to vector<4x512xf32>
    %579 = arith.mulf %576, %578 : vector<4x512xf32>
    %c1_i32_189 = arith.constant 1 : i32
    %580 = tpu.dynamic_rotate %567 by %c1_i32_189 dim 1 : vector<4x512xf32>, i32 -> vector<4x512xf32>
    %581 = vector.extract_strided_slice %0 {offsets = [3, 0], sizes = [1, 512], strides = [1, 1]} : vector<9x512xf32> to vector<1x512xf32>
    %582 = vector.broadcast %581 : vector<1x512xf32> to vector<4x512xf32>
    %583 = arith.mulf %580, %582 : vector<4x512xf32>
    %584 = vector.extract_strided_slice %0 {offsets = [4, 0], sizes = [1, 512], strides = [1, 1]} : vector<9x512xf32> to vector<1x512xf32>
    %585 = vector.broadcast %584 : vector<1x512xf32> to vector<4x512xf32>
    %586 = arith.mulf %567, %585 : vector<4x512xf32>
    %c511_i32_190 = arith.constant 511 : i32
    %587 = tpu.dynamic_rotate %567 by %c511_i32_190 dim 1 : vector<4x512xf32>, i32 -> vector<4x512xf32>
    %588 = vector.extract_strided_slice %0 {offsets = [5, 0], sizes = [1, 512], strides = [1, 1]} : vector<9x512xf32> to vector<1x512xf32>
    %589 = vector.broadcast %588 : vector<1x512xf32> to vector<4x512xf32>
    %590 = arith.mulf %587, %589 : vector<4x512xf32>
    %c497_i32_191 = arith.constant 497 : i32
    %591 = tpu.dynamic_rotate %567 by %c497_i32_191 dim 1 : vector<4x512xf32>, i32 -> vector<4x512xf32>
    %592 = vector.extract_strided_slice %0 {offsets = [6, 0], sizes = [1, 512], strides = [1, 1]} : vector<9x512xf32> to vector<1x512xf32>
    %593 = vector.broadcast %592 : vector<1x512xf32> to vector<4x512xf32>
    %594 = arith.mulf %591, %593 : vector<4x512xf32>
    %c496_i32_192 = arith.constant 496 : i32
    %595 = tpu.dynamic_rotate %567 by %c496_i32_192 dim 1 : vector<4x512xf32>, i32 -> vector<4x512xf32>
    %596 = vector.extract_strided_slice %0 {offsets = [7, 0], sizes = [1, 512], strides = [1, 1]} : vector<9x512xf32> to vector<1x512xf32>
    %597 = vector.broadcast %596 : vector<1x512xf32> to vector<4x512xf32>
    %598 = arith.mulf %595, %597 : vector<4x512xf32>
    %c495_i32_193 = arith.constant 495 : i32
    %599 = tpu.dynamic_rotate %567 by %c495_i32_193 dim 1 : vector<4x512xf32>, i32 -> vector<4x512xf32>
    %600 = vector.extract_strided_slice %0 {offsets = [8, 0], sizes = [1, 512], strides = [1, 1]} : vector<9x512xf32> to vector<1x512xf32>
    %601 = vector.broadcast %600 : vector<1x512xf32> to vector<4x512xf32>
    %602 = arith.mulf %599, %601 : vector<4x512xf32>
    %603 = tpu.concatenate %571, %575, %579, %583, %586, %590, %594, %598, %602 in 0 : vector<4x512xf32>, vector<4x512xf32>, vector<4x512xf32>, vector<4x512xf32>, vector<4x512xf32>, vector<4x512xf32>, vector<4x512xf32>, vector<4x512xf32>, vector<4x512xf32> -> vector<36x512xf32>
    %604 = arith.truncf %603 : vector<36x512xf32> to vector<36x512xbf16>
    %cst_194 = arith.constant dense<0.000000e+00> : vector<4x512xf32>
    %605 = tpu.matmul %41, %604, %cst_194 {dimension_numbers = #tpu.dot_dimension_numbers<[1], [0], [0], [1], [0, 0, 1, 1], [], []>} : vector<4x36xbf16>, vector<36x512xbf16>, vector<4x512xf32> -> vector<4x512xf32>
    %606 = vector.broadcast %42 : vector<4x1xf32> to vector<4x512xf32>
    %607 = arith.mulf %606, %605 : vector<4x512xf32>
    %cst_195 = arith.constant dense<0.000000e+00> : vector<512xf32>
    %608 = vector.multi_reduction <add>, %607, %cst_195 [0] : vector<4x512xf32> to vector<512xf32>
    %609 = vector.shape_cast %608 : vector<512xf32> to vector<1x512xf32>
    %cst_196 = arith.constant -1.000000e+30 : f32
    %610 = vector.shape_cast %609 : vector<1x512xf32> to vector<1x512xf32>
    %611 = vector.broadcast %610 : vector<1x512xf32> to vector<2x512xf32>
    %612 = vector.broadcast %cst_196 : f32 to vector<2x512xf32>
    %613 = arith.select %6, %611, %612 : vector<2x512xi1>, vector<2x512xf32>
    %cst_197 = arith.constant dense<0xFF800000> : vector<2xf32>
    %614 = vector.multi_reduction <maximumf>, %613, %cst_197 [1] : vector<2x512xf32> to vector<2xf32>
    %615 = vector.shape_cast %614 : vector<2xf32> to vector<2x1xf32>
    %616 = vector.broadcast %615 : vector<2x1xf32> to vector<2x512xf32>
    %617 = arith.mulf %616, %3 : vector<2x512xf32>
    %cst_198 = arith.constant dense<0.000000e+00> : vector<512xf32>
    %618 = vector.multi_reduction <add>, %617, %cst_198 [0] : vector<2x512xf32> to vector<512xf32>
    %619 = vector.shape_cast %618 : vector<512xf32> to vector<1x512xf32>
    %620 = arith.subf %609, %619 : vector<1x512xf32>
    %621 = math.exp %620 : vector<1x512xf32>
    %622 = vector.broadcast %621 : vector<1x512xf32> to vector<2x512xf32>
    %623 = arith.mulf %622, %3 : vector<2x512xf32>
    %cst_199 = arith.constant dense<0.000000e+00> : vector<2xf32>
    %624 = vector.multi_reduction <add>, %623, %cst_199 [1] : vector<2x512xf32> to vector<2xf32>
    %625 = vector.shape_cast %624 : vector<2xf32> to vector<2x1xf32>
    %626 = vector.broadcast %625 : vector<2x1xf32> to vector<2x512xf32>
    %627 = arith.mulf %626, %3 : vector<2x512xf32>
    %cst_200 = arith.constant dense<0.000000e+00> : vector<512xf32>
    %628 = vector.multi_reduction <add>, %627, %cst_200 [0] : vector<2x512xf32> to vector<512xf32>
    %629 = vector.shape_cast %628 : vector<512xf32> to vector<1x512xf32>
    %630 = arith.addf %629, %8 : vector<1x512xf32>
    %631 = tpu.reciprocal %630 {approx = true} : vector<1x512xf32> -> vector<1x512xf32>
    %632 = arith.mulf %621, %631 : vector<1x512xf32>
    %633 = vector.broadcast %632 : vector<1x512xf32> to vector<4x512xf32>
    %634 = arith.mulf %605, %633 : vector<4x512xf32>
    %635 = arith.truncf %634 : vector<4x512xf32> to vector<4x512xbf16>
    %636 = arith.truncf %3 : vector<2x512xf32> to vector<2x512xbf16>
    %cst_201 = arith.constant dense<0.000000e+00> : vector<4x2xf32>
    %637 = tpu.matmul %635, %636, %cst_201 {dimension_numbers = #tpu.dot_dimension_numbers<[1], [1], [0], [0], [0, 0, 1, 0], [], []>} : vector<4x512xbf16>, vector<2x512xbf16>, vector<4x2xf32> -> vector<4x2xf32>
    %638 = arith.truncf %43 : vector<4x4xf32> to vector<4x4xbf16>
    %639 = arith.truncf %637 : vector<4x2xf32> to vector<4x2xbf16>
    %cst_202 = arith.constant dense<0.000000e+00> : vector<4x2xf32>
    %640 = tpu.matmul %638, %639, %cst_202 {dimension_numbers = #tpu.dot_dimension_numbers<[1], [0], [0], [1], [0, 0, 1, 1], [], []>} : vector<4x4xbf16>, vector<4x2xbf16>, vector<4x2xf32> -> vector<4x2xf32>
    %cst_203 = arith.constant 2.000000e-01 : f32
    %641 = vector.broadcast %cst_203 : f32 to vector<4x2xf32>
    %642 = arith.mulf %641, %640 : vector<4x2xf32>
    %643 = arith.maximumf %640, %642 : vector<4x2xf32>
    %644 = arith.truncf %44 : vector<4x4xf32> to vector<4x4xbf16>
    %645 = arith.truncf %643 : vector<4x2xf32> to vector<4x2xbf16>
    %cst_204 = arith.constant dense<0.000000e+00> : vector<4x2xf32>
    %646 = tpu.matmul %644, %645, %cst_204 {dimension_numbers = #tpu.dot_dimension_numbers<[1], [0], [0], [1], [0, 0, 1, 1], [], []>} : vector<4x4xbf16>, vector<4x2xbf16>, vector<4x2xf32> -> vector<4x2xf32>
    %647 = arith.truncf %646 : vector<4x2xf32> to vector<4x2xbf16>
    %648 = arith.truncf %3 : vector<2x512xf32> to vector<2x512xbf16>
    %cst_205 = arith.constant dense<0.000000e+00> : vector<4x512xf32>
    %649 = tpu.matmul %647, %648, %cst_205 {dimension_numbers = #tpu.dot_dimension_numbers<[1], [0], [0], [1], [0, 0, 1, 1], [], []>} : vector<4x2xbf16>, vector<2x512xbf16>, vector<4x512xf32> -> vector<4x512xf32>
    %650 = arith.addf %605, %649 : vector<4x512xf32>
    %cst_206 = arith.constant 2.000000e-01 : f32
    %651 = vector.broadcast %cst_206 : f32 to vector<4x512xf32>
    %652 = arith.mulf %651, %650 : vector<4x512xf32>
    %653 = arith.maximumf %650, %652 : vector<4x512xf32>
    %654 = arith.addf %653, %526 : vector<4x512xf32>
    %c9_i32_207 = arith.constant 9 : i32
    %655 = tpu.dynamic_rotate %485 by %c9_i32_207 dim 1 : vector<8x128xf32>, i32 -> vector<8x128xf32>
    %656 = vector.extract_strided_slice %1 {offsets = [0, 0], sizes = [1, 128], strides = [1, 1]} : vector<9x128xf32> to vector<1x128xf32>
    %657 = vector.broadcast %656 : vector<1x128xf32> to vector<8x128xf32>
    %658 = arith.mulf %655, %657 : vector<8x128xf32>
    %c8_i32_208 = arith.constant 8 : i32
    %659 = tpu.dynamic_rotate %485 by %c8_i32_208 dim 1 : vector<8x128xf32>, i32 -> vector<8x128xf32>
    %660 = vector.extract_strided_slice %1 {offsets = [1, 0], sizes = [1, 128], strides = [1, 1]} : vector<9x128xf32> to vector<1x128xf32>
    %661 = vector.broadcast %660 : vector<1x128xf32> to vector<8x128xf32>
    %662 = arith.mulf %659, %661 : vector<8x128xf32>
    %c7_i32_209 = arith.constant 7 : i32
    %663 = tpu.dynamic_rotate %485 by %c7_i32_209 dim 1 : vector<8x128xf32>, i32 -> vector<8x128xf32>
    %664 = vector.extract_strided_slice %1 {offsets = [2, 0], sizes = [1, 128], strides = [1, 1]} : vector<9x128xf32> to vector<1x128xf32>
    %665 = vector.broadcast %664 : vector<1x128xf32> to vector<8x128xf32>
    %666 = arith.mulf %663, %665 : vector<8x128xf32>
    %c1_i32_210 = arith.constant 1 : i32
    %667 = tpu.dynamic_rotate %485 by %c1_i32_210 dim 1 : vector<8x128xf32>, i32 -> vector<8x128xf32>
    %668 = vector.extract_strided_slice %1 {offsets = [3, 0], sizes = [1, 128], strides = [1, 1]} : vector<9x128xf32> to vector<1x128xf32>
    %669 = vector.broadcast %668 : vector<1x128xf32> to vector<8x128xf32>
    %670 = arith.mulf %667, %669 : vector<8x128xf32>
    %671 = vector.extract_strided_slice %1 {offsets = [4, 0], sizes = [1, 128], strides = [1, 1]} : vector<9x128xf32> to vector<1x128xf32>
    %672 = vector.broadcast %671 : vector<1x128xf32> to vector<8x128xf32>
    %673 = arith.mulf %485, %672 : vector<8x128xf32>
    %c127_i32_211 = arith.constant 127 : i32
    %674 = tpu.dynamic_rotate %485 by %c127_i32_211 dim 1 : vector<8x128xf32>, i32 -> vector<8x128xf32>
    %675 = vector.extract_strided_slice %1 {offsets = [5, 0], sizes = [1, 128], strides = [1, 1]} : vector<9x128xf32> to vector<1x128xf32>
    %676 = vector.broadcast %675 : vector<1x128xf32> to vector<8x128xf32>
    %677 = arith.mulf %674, %676 : vector<8x128xf32>
    %c121_i32_212 = arith.constant 121 : i32
    %678 = tpu.dynamic_rotate %485 by %c121_i32_212 dim 1 : vector<8x128xf32>, i32 -> vector<8x128xf32>
    %679 = vector.extract_strided_slice %1 {offsets = [6, 0], sizes = [1, 128], strides = [1, 1]} : vector<9x128xf32> to vector<1x128xf32>
    %680 = vector.broadcast %679 : vector<1x128xf32> to vector<8x128xf32>
    %681 = arith.mulf %678, %680 : vector<8x128xf32>
    %c120_i32_213 = arith.constant 120 : i32
    %682 = tpu.dynamic_rotate %485 by %c120_i32_213 dim 1 : vector<8x128xf32>, i32 -> vector<8x128xf32>
    %683 = vector.extract_strided_slice %1 {offsets = [7, 0], sizes = [1, 128], strides = [1, 1]} : vector<9x128xf32> to vector<1x128xf32>
    %684 = vector.broadcast %683 : vector<1x128xf32> to vector<8x128xf32>
    %685 = arith.mulf %682, %684 : vector<8x128xf32>
    %c119_i32_214 = arith.constant 119 : i32
    %686 = tpu.dynamic_rotate %485 by %c119_i32_214 dim 1 : vector<8x128xf32>, i32 -> vector<8x128xf32>
    %687 = vector.extract_strided_slice %1 {offsets = [8, 0], sizes = [1, 128], strides = [1, 1]} : vector<9x128xf32> to vector<1x128xf32>
    %688 = vector.broadcast %687 : vector<1x128xf32> to vector<8x128xf32>
    %689 = arith.mulf %686, %688 : vector<8x128xf32>
    %690 = tpu.concatenate %658, %662, %666, %670, %673, %677, %681, %685, %689 in 0 : vector<8x128xf32>, vector<8x128xf32>, vector<8x128xf32>, vector<8x128xf32>, vector<8x128xf32>, vector<8x128xf32>, vector<8x128xf32>, vector<8x128xf32>, vector<8x128xf32> -> vector<72x128xf32>
    %691 = arith.truncf %690 : vector<72x128xf32> to vector<72x128xbf16>
    %cst_215 = arith.constant dense<0.000000e+00> : vector<8x128xf32>
    %692 = tpu.matmul %45, %691, %cst_215 {dimension_numbers = #tpu.dot_dimension_numbers<[1], [0], [0], [1], [0, 0, 1, 1], [], []>} : vector<8x72xbf16>, vector<72x128xbf16>, vector<8x128xf32> -> vector<8x128xf32>
    %cst_216 = arith.constant 2.000000e-01 : f32
    %693 = vector.broadcast %cst_216 : f32 to vector<8x128xf32>
    %694 = arith.mulf %693, %692 : vector<8x128xf32>
    %695 = arith.maximumf %692, %694 : vector<8x128xf32>
    %c9_i32_217 = arith.constant 9 : i32
    %696 = tpu.dynamic_rotate %695 by %c9_i32_217 dim 1 : vector<8x128xf32>, i32 -> vector<8x128xf32>
    %697 = vector.extract_strided_slice %1 {offsets = [0, 0], sizes = [1, 128], strides = [1, 1]} : vector<9x128xf32> to vector<1x128xf32>
    %698 = vector.broadcast %697 : vector<1x128xf32> to vector<8x128xf32>
    %699 = arith.mulf %696, %698 : vector<8x128xf32>
    %c8_i32_218 = arith.constant 8 : i32
    %700 = tpu.dynamic_rotate %695 by %c8_i32_218 dim 1 : vector<8x128xf32>, i32 -> vector<8x128xf32>
    %701 = vector.extract_strided_slice %1 {offsets = [1, 0], sizes = [1, 128], strides = [1, 1]} : vector<9x128xf32> to vector<1x128xf32>
    %702 = vector.broadcast %701 : vector<1x128xf32> to vector<8x128xf32>
    %703 = arith.mulf %700, %702 : vector<8x128xf32>
    %c7_i32_219 = arith.constant 7 : i32
    %704 = tpu.dynamic_rotate %695 by %c7_i32_219 dim 1 : vector<8x128xf32>, i32 -> vector<8x128xf32>
    %705 = vector.extract_strided_slice %1 {offsets = [2, 0], sizes = [1, 128], strides = [1, 1]} : vector<9x128xf32> to vector<1x128xf32>
    %706 = vector.broadcast %705 : vector<1x128xf32> to vector<8x128xf32>
    %707 = arith.mulf %704, %706 : vector<8x128xf32>
    %c1_i32_220 = arith.constant 1 : i32
    %708 = tpu.dynamic_rotate %695 by %c1_i32_220 dim 1 : vector<8x128xf32>, i32 -> vector<8x128xf32>
    %709 = vector.extract_strided_slice %1 {offsets = [3, 0], sizes = [1, 128], strides = [1, 1]} : vector<9x128xf32> to vector<1x128xf32>
    %710 = vector.broadcast %709 : vector<1x128xf32> to vector<8x128xf32>
    %711 = arith.mulf %708, %710 : vector<8x128xf32>
    %712 = vector.extract_strided_slice %1 {offsets = [4, 0], sizes = [1, 128], strides = [1, 1]} : vector<9x128xf32> to vector<1x128xf32>
    %713 = vector.broadcast %712 : vector<1x128xf32> to vector<8x128xf32>
    %714 = arith.mulf %695, %713 : vector<8x128xf32>
    %c127_i32_221 = arith.constant 127 : i32
    %715 = tpu.dynamic_rotate %695 by %c127_i32_221 dim 1 : vector<8x128xf32>, i32 -> vector<8x128xf32>
    %716 = vector.extract_strided_slice %1 {offsets = [5, 0], sizes = [1, 128], strides = [1, 1]} : vector<9x128xf32> to vector<1x128xf32>
    %717 = vector.broadcast %716 : vector<1x128xf32> to vector<8x128xf32>
    %718 = arith.mulf %715, %717 : vector<8x128xf32>
    %c121_i32_222 = arith.constant 121 : i32
    %719 = tpu.dynamic_rotate %695 by %c121_i32_222 dim 1 : vector<8x128xf32>, i32 -> vector<8x128xf32>
    %720 = vector.extract_strided_slice %1 {offsets = [6, 0], sizes = [1, 128], strides = [1, 1]} : vector<9x128xf32> to vector<1x128xf32>
    %721 = vector.broadcast %720 : vector<1x128xf32> to vector<8x128xf32>
    %722 = arith.mulf %719, %721 : vector<8x128xf32>
    %c120_i32_223 = arith.constant 120 : i32
    %723 = tpu.dynamic_rotate %695 by %c120_i32_223 dim 1 : vector<8x128xf32>, i32 -> vector<8x128xf32>
    %724 = vector.extract_strided_slice %1 {offsets = [7, 0], sizes = [1, 128], strides = [1, 1]} : vector<9x128xf32> to vector<1x128xf32>
    %725 = vector.broadcast %724 : vector<1x128xf32> to vector<8x128xf32>
    %726 = arith.mulf %723, %725 : vector<8x128xf32>
    %c119_i32_224 = arith.constant 119 : i32
    %727 = tpu.dynamic_rotate %695 by %c119_i32_224 dim 1 : vector<8x128xf32>, i32 -> vector<8x128xf32>
    %728 = vector.extract_strided_slice %1 {offsets = [8, 0], sizes = [1, 128], strides = [1, 1]} : vector<9x128xf32> to vector<1x128xf32>
    %729 = vector.broadcast %728 : vector<1x128xf32> to vector<8x128xf32>
    %730 = arith.mulf %727, %729 : vector<8x128xf32>
    %731 = tpu.concatenate %699, %703, %707, %711, %714, %718, %722, %726, %730 in 0 : vector<8x128xf32>, vector<8x128xf32>, vector<8x128xf32>, vector<8x128xf32>, vector<8x128xf32>, vector<8x128xf32>, vector<8x128xf32>, vector<8x128xf32>, vector<8x128xf32> -> vector<72x128xf32>
    %732 = arith.truncf %731 : vector<72x128xf32> to vector<72x128xbf16>
    %cst_225 = arith.constant dense<0.000000e+00> : vector<8x128xf32>
    %733 = tpu.matmul %46, %732, %cst_225 {dimension_numbers = #tpu.dot_dimension_numbers<[1], [0], [0], [1], [0, 0, 1, 1], [], []>} : vector<8x72xbf16>, vector<72x128xbf16>, vector<8x128xf32> -> vector<8x128xf32>
    %734 = vector.broadcast %47 : vector<8x1xf32> to vector<8x128xf32>
    %735 = arith.mulf %734, %733 : vector<8x128xf32>
    %cst_226 = arith.constant dense<0.000000e+00> : vector<128xf32>
    %736 = vector.multi_reduction <add>, %735, %cst_226 [0] : vector<8x128xf32> to vector<128xf32>
    %737 = vector.shape_cast %736 : vector<128xf32> to vector<1x128xf32>
    %cst_227 = arith.constant -1.000000e+30 : f32
    %738 = vector.shape_cast %737 : vector<1x128xf32> to vector<1x128xf32>
    %739 = vector.broadcast %738 : vector<1x128xf32> to vector<2x128xf32>
    %740 = vector.broadcast %cst_227 : f32 to vector<2x128xf32>
    %741 = arith.select %12, %739, %740 : vector<2x128xi1>, vector<2x128xf32>
    %cst_228 = arith.constant dense<0xFF800000> : vector<2xf32>
    %742 = vector.multi_reduction <maximumf>, %741, %cst_228 [1] : vector<2x128xf32> to vector<2xf32>
    %743 = vector.shape_cast %742 : vector<2xf32> to vector<2x1xf32>
    %744 = vector.broadcast %743 : vector<2x1xf32> to vector<2x128xf32>
    %745 = arith.mulf %744, %9 : vector<2x128xf32>
    %cst_229 = arith.constant dense<0.000000e+00> : vector<128xf32>
    %746 = vector.multi_reduction <add>, %745, %cst_229 [0] : vector<2x128xf32> to vector<128xf32>
    %747 = vector.shape_cast %746 : vector<128xf32> to vector<1x128xf32>
    %748 = arith.subf %737, %747 : vector<1x128xf32>
    %749 = math.exp %748 : vector<1x128xf32>
    %750 = vector.broadcast %749 : vector<1x128xf32> to vector<2x128xf32>
    %751 = arith.mulf %750, %9 : vector<2x128xf32>
    %cst_230 = arith.constant dense<0.000000e+00> : vector<2xf32>
    %752 = vector.multi_reduction <add>, %751, %cst_230 [1] : vector<2x128xf32> to vector<2xf32>
    %753 = vector.shape_cast %752 : vector<2xf32> to vector<2x1xf32>
    %754 = vector.broadcast %753 : vector<2x1xf32> to vector<2x128xf32>
    %755 = arith.mulf %754, %9 : vector<2x128xf32>
    %cst_231 = arith.constant dense<0.000000e+00> : vector<128xf32>
    %756 = vector.multi_reduction <add>, %755, %cst_231 [0] : vector<2x128xf32> to vector<128xf32>
    %757 = vector.shape_cast %756 : vector<128xf32> to vector<1x128xf32>
    %758 = arith.addf %757, %14 : vector<1x128xf32>
    %759 = tpu.reciprocal %758 {approx = true} : vector<1x128xf32> -> vector<1x128xf32>
    %760 = arith.mulf %749, %759 : vector<1x128xf32>
    %761 = vector.broadcast %760 : vector<1x128xf32> to vector<8x128xf32>
    %762 = arith.mulf %733, %761 : vector<8x128xf32>
    %763 = arith.truncf %762 : vector<8x128xf32> to vector<8x128xbf16>
    %764 = arith.truncf %9 : vector<2x128xf32> to vector<2x128xbf16>
    %cst_232 = arith.constant dense<0.000000e+00> : vector<8x2xf32>
    %765 = tpu.matmul %763, %764, %cst_232 {dimension_numbers = #tpu.dot_dimension_numbers<[1], [1], [0], [0], [0, 0, 1, 0], [], []>} : vector<8x128xbf16>, vector<2x128xbf16>, vector<8x2xf32> -> vector<8x2xf32>
    %766 = arith.truncf %48 : vector<8x8xf32> to vector<8x8xbf16>
    %767 = arith.truncf %765 : vector<8x2xf32> to vector<8x2xbf16>
    %cst_233 = arith.constant dense<0.000000e+00> : vector<8x2xf32>
    %768 = tpu.matmul %766, %767, %cst_233 {dimension_numbers = #tpu.dot_dimension_numbers<[1], [0], [0], [1], [0, 0, 1, 1], [], []>} : vector<8x8xbf16>, vector<8x2xbf16>, vector<8x2xf32> -> vector<8x2xf32>
    %cst_234 = arith.constant 2.000000e-01 : f32
    %769 = vector.broadcast %cst_234 : f32 to vector<8x2xf32>
    %770 = arith.mulf %769, %768 : vector<8x2xf32>
    %771 = arith.maximumf %768, %770 : vector<8x2xf32>
    %772 = arith.truncf %49 : vector<8x8xf32> to vector<8x8xbf16>
    %773 = arith.truncf %771 : vector<8x2xf32> to vector<8x2xbf16>
    %cst_235 = arith.constant dense<0.000000e+00> : vector<8x2xf32>
    %774 = tpu.matmul %772, %773, %cst_235 {dimension_numbers = #tpu.dot_dimension_numbers<[1], [0], [0], [1], [0, 0, 1, 1], [], []>} : vector<8x8xbf16>, vector<8x2xbf16>, vector<8x2xf32> -> vector<8x2xf32>
    %775 = arith.truncf %774 : vector<8x2xf32> to vector<8x2xbf16>
    %776 = arith.truncf %9 : vector<2x128xf32> to vector<2x128xbf16>
    %cst_236 = arith.constant dense<0.000000e+00> : vector<8x128xf32>
    %777 = tpu.matmul %775, %776, %cst_236 {dimension_numbers = #tpu.dot_dimension_numbers<[1], [0], [0], [1], [0, 0, 1, 1], [], []>} : vector<8x2xbf16>, vector<2x128xbf16>, vector<8x128xf32> -> vector<8x128xf32>
    %778 = arith.addf %733, %777 : vector<8x128xf32>
    %cst_237 = arith.constant 2.000000e-01 : f32
    %779 = vector.broadcast %cst_237 : f32 to vector<8x128xf32>
    %780 = arith.mulf %779, %778 : vector<8x128xf32>
    %781 = arith.maximumf %778, %780 : vector<8x128xf32>
    %782 = arith.addf %781, %485 : vector<8x128xf32>
    %c5_i32_238 = arith.constant 5 : i32
    %783 = tpu.dynamic_rotate %444 by %c5_i32_238 dim 1 : vector<16x128xf32>, i32 -> vector<16x128xf32>
    %784 = vector.extract_strided_slice %2 {offsets = [0, 0], sizes = [1, 128], strides = [1, 1]} : vector<9x128xf32> to vector<1x128xf32>
    %785 = vector.broadcast %784 : vector<1x128xf32> to vector<16x128xf32>
    %786 = arith.mulf %783, %785 : vector<16x128xf32>
    %c4_i32_239 = arith.constant 4 : i32
    %787 = tpu.dynamic_rotate %444 by %c4_i32_239 dim 1 : vector<16x128xf32>, i32 -> vector<16x128xf32>
    %788 = vector.extract_strided_slice %2 {offsets = [1, 0], sizes = [1, 128], strides = [1, 1]} : vector<9x128xf32> to vector<1x128xf32>
    %789 = vector.broadcast %788 : vector<1x128xf32> to vector<16x128xf32>
    %790 = arith.mulf %787, %789 : vector<16x128xf32>
    %c3_i32_240 = arith.constant 3 : i32
    %791 = tpu.dynamic_rotate %444 by %c3_i32_240 dim 1 : vector<16x128xf32>, i32 -> vector<16x128xf32>
    %792 = vector.extract_strided_slice %2 {offsets = [2, 0], sizes = [1, 128], strides = [1, 1]} : vector<9x128xf32> to vector<1x128xf32>
    %793 = vector.broadcast %792 : vector<1x128xf32> to vector<16x128xf32>
    %794 = arith.mulf %791, %793 : vector<16x128xf32>
    %c1_i32_241 = arith.constant 1 : i32
    %795 = tpu.dynamic_rotate %444 by %c1_i32_241 dim 1 : vector<16x128xf32>, i32 -> vector<16x128xf32>
    %796 = vector.extract_strided_slice %2 {offsets = [3, 0], sizes = [1, 128], strides = [1, 1]} : vector<9x128xf32> to vector<1x128xf32>
    %797 = vector.broadcast %796 : vector<1x128xf32> to vector<16x128xf32>
    %798 = arith.mulf %795, %797 : vector<16x128xf32>
    %799 = vector.extract_strided_slice %2 {offsets = [4, 0], sizes = [1, 128], strides = [1, 1]} : vector<9x128xf32> to vector<1x128xf32>
    %800 = vector.broadcast %799 : vector<1x128xf32> to vector<16x128xf32>
    %801 = arith.mulf %444, %800 : vector<16x128xf32>
    %c127_i32_242 = arith.constant 127 : i32
    %802 = tpu.dynamic_rotate %444 by %c127_i32_242 dim 1 : vector<16x128xf32>, i32 -> vector<16x128xf32>
    %803 = vector.extract_strided_slice %2 {offsets = [5, 0], sizes = [1, 128], strides = [1, 1]} : vector<9x128xf32> to vector<1x128xf32>
    %804 = vector.broadcast %803 : vector<1x128xf32> to vector<16x128xf32>
    %805 = arith.mulf %802, %804 : vector<16x128xf32>
    %c125_i32_243 = arith.constant 125 : i32
    %806 = tpu.dynamic_rotate %444 by %c125_i32_243 dim 1 : vector<16x128xf32>, i32 -> vector<16x128xf32>
    %807 = vector.extract_strided_slice %2 {offsets = [6, 0], sizes = [1, 128], strides = [1, 1]} : vector<9x128xf32> to vector<1x128xf32>
    %808 = vector.broadcast %807 : vector<1x128xf32> to vector<16x128xf32>
    %809 = arith.mulf %806, %808 : vector<16x128xf32>
    %c124_i32_244 = arith.constant 124 : i32
    %810 = tpu.dynamic_rotate %444 by %c124_i32_244 dim 1 : vector<16x128xf32>, i32 -> vector<16x128xf32>
    %811 = vector.extract_strided_slice %2 {offsets = [7, 0], sizes = [1, 128], strides = [1, 1]} : vector<9x128xf32> to vector<1x128xf32>
    %812 = vector.broadcast %811 : vector<1x128xf32> to vector<16x128xf32>
    %813 = arith.mulf %810, %812 : vector<16x128xf32>
    %c123_i32_245 = arith.constant 123 : i32
    %814 = tpu.dynamic_rotate %444 by %c123_i32_245 dim 1 : vector<16x128xf32>, i32 -> vector<16x128xf32>
    %815 = vector.extract_strided_slice %2 {offsets = [8, 0], sizes = [1, 128], strides = [1, 1]} : vector<9x128xf32> to vector<1x128xf32>
    %816 = vector.broadcast %815 : vector<1x128xf32> to vector<16x128xf32>
    %817 = arith.mulf %814, %816 : vector<16x128xf32>
    %818 = tpu.concatenate %786, %790, %794, %798, %801, %805, %809, %813, %817 in 0 : vector<16x128xf32>, vector<16x128xf32>, vector<16x128xf32>, vector<16x128xf32>, vector<16x128xf32>, vector<16x128xf32>, vector<16x128xf32>, vector<16x128xf32>, vector<16x128xf32> -> vector<144x128xf32>
    %819 = arith.truncf %818 : vector<144x128xf32> to vector<144x128xbf16>
    %cst_246 = arith.constant dense<0.000000e+00> : vector<16x128xf32>
    %820 = tpu.matmul %50, %819, %cst_246 {dimension_numbers = #tpu.dot_dimension_numbers<[1], [0], [0], [1], [0, 0, 1, 1], [], []>} : vector<16x144xbf16>, vector<144x128xbf16>, vector<16x128xf32> -> vector<16x128xf32>
    %cst_247 = arith.constant 2.000000e-01 : f32
    %821 = vector.broadcast %cst_247 : f32 to vector<16x128xf32>
    %822 = arith.mulf %821, %820 : vector<16x128xf32>
    %823 = arith.maximumf %820, %822 : vector<16x128xf32>
    %c5_i32_248 = arith.constant 5 : i32
    %824 = tpu.dynamic_rotate %823 by %c5_i32_248 dim 1 : vector<16x128xf32>, i32 -> vector<16x128xf32>
    %825 = vector.extract_strided_slice %2 {offsets = [0, 0], sizes = [1, 128], strides = [1, 1]} : vector<9x128xf32> to vector<1x128xf32>
    %826 = vector.broadcast %825 : vector<1x128xf32> to vector<16x128xf32>
    %827 = arith.mulf %824, %826 : vector<16x128xf32>
    %c4_i32_249 = arith.constant 4 : i32
    %828 = tpu.dynamic_rotate %823 by %c4_i32_249 dim 1 : vector<16x128xf32>, i32 -> vector<16x128xf32>
    %829 = vector.extract_strided_slice %2 {offsets = [1, 0], sizes = [1, 128], strides = [1, 1]} : vector<9x128xf32> to vector<1x128xf32>
    %830 = vector.broadcast %829 : vector<1x128xf32> to vector<16x128xf32>
    %831 = arith.mulf %828, %830 : vector<16x128xf32>
    %c3_i32_250 = arith.constant 3 : i32
    %832 = tpu.dynamic_rotate %823 by %c3_i32_250 dim 1 : vector<16x128xf32>, i32 -> vector<16x128xf32>
    %833 = vector.extract_strided_slice %2 {offsets = [2, 0], sizes = [1, 128], strides = [1, 1]} : vector<9x128xf32> to vector<1x128xf32>
    %834 = vector.broadcast %833 : vector<1x128xf32> to vector<16x128xf32>
    %835 = arith.mulf %832, %834 : vector<16x128xf32>
    %c1_i32_251 = arith.constant 1 : i32
    %836 = tpu.dynamic_rotate %823 by %c1_i32_251 dim 1 : vector<16x128xf32>, i32 -> vector<16x128xf32>
    %837 = vector.extract_strided_slice %2 {offsets = [3, 0], sizes = [1, 128], strides = [1, 1]} : vector<9x128xf32> to vector<1x128xf32>
    %838 = vector.broadcast %837 : vector<1x128xf32> to vector<16x128xf32>
    %839 = arith.mulf %836, %838 : vector<16x128xf32>
    %840 = vector.extract_strided_slice %2 {offsets = [4, 0], sizes = [1, 128], strides = [1, 1]} : vector<9x128xf32> to vector<1x128xf32>
    %841 = vector.broadcast %840 : vector<1x128xf32> to vector<16x128xf32>
    %842 = arith.mulf %823, %841 : vector<16x128xf32>
    %c127_i32_252 = arith.constant 127 : i32
    %843 = tpu.dynamic_rotate %823 by %c127_i32_252 dim 1 : vector<16x128xf32>, i32 -> vector<16x128xf32>
    %844 = vector.extract_strided_slice %2 {offsets = [5, 0], sizes = [1, 128], strides = [1, 1]} : vector<9x128xf32> to vector<1x128xf32>
    %845 = vector.broadcast %844 : vector<1x128xf32> to vector<16x128xf32>
    %846 = arith.mulf %843, %845 : vector<16x128xf32>
    %c125_i32_253 = arith.constant 125 : i32
    %847 = tpu.dynamic_rotate %823 by %c125_i32_253 dim 1 : vector<16x128xf32>, i32 -> vector<16x128xf32>
    %848 = vector.extract_strided_slice %2 {offsets = [6, 0], sizes = [1, 128], strides = [1, 1]} : vector<9x128xf32> to vector<1x128xf32>
    %849 = vector.broadcast %848 : vector<1x128xf32> to vector<16x128xf32>
    %850 = arith.mulf %847, %849 : vector<16x128xf32>
    %c124_i32_254 = arith.constant 124 : i32
    %851 = tpu.dynamic_rotate %823 by %c124_i32_254 dim 1 : vector<16x128xf32>, i32 -> vector<16x128xf32>
    %852 = vector.extract_strided_slice %2 {offsets = [7, 0], sizes = [1, 128], strides = [1, 1]} : vector<9x128xf32> to vector<1x128xf32>
    %853 = vector.broadcast %852 : vector<1x128xf32> to vector<16x128xf32>
    %854 = arith.mulf %851, %853 : vector<16x128xf32>
    %c123_i32_255 = arith.constant 123 : i32
    %855 = tpu.dynamic_rotate %823 by %c123_i32_255 dim 1 : vector<16x128xf32>, i32 -> vector<16x128xf32>
    %856 = vector.extract_strided_slice %2 {offsets = [8, 0], sizes = [1, 128], strides = [1, 1]} : vector<9x128xf32> to vector<1x128xf32>
    %857 = vector.broadcast %856 : vector<1x128xf32> to vector<16x128xf32>
    %858 = arith.mulf %855, %857 : vector<16x128xf32>
    %859 = tpu.concatenate %827, %831, %835, %839, %842, %846, %850, %854, %858 in 0 : vector<16x128xf32>, vector<16x128xf32>, vector<16x128xf32>, vector<16x128xf32>, vector<16x128xf32>, vector<16x128xf32>, vector<16x128xf32>, vector<16x128xf32>, vector<16x128xf32> -> vector<144x128xf32>
    %860 = arith.truncf %859 : vector<144x128xf32> to vector<144x128xbf16>
    %cst_256 = arith.constant dense<0.000000e+00> : vector<16x128xf32>
    %861 = tpu.matmul %51, %860, %cst_256 {dimension_numbers = #tpu.dot_dimension_numbers<[1], [0], [0], [1], [0, 0, 1, 1], [], []>} : vector<16x144xbf16>, vector<144x128xbf16>, vector<16x128xf32> -> vector<16x128xf32>
    %862 = vector.broadcast %52 : vector<16x1xf32> to vector<16x128xf32>
    %863 = arith.mulf %862, %861 : vector<16x128xf32>
    %cst_257 = arith.constant dense<0.000000e+00> : vector<128xf32>
    %864 = vector.multi_reduction <add>, %863, %cst_257 [0] : vector<16x128xf32> to vector<128xf32>
    %865 = vector.shape_cast %864 : vector<128xf32> to vector<1x128xf32>
    %cst_258 = arith.constant -1.000000e+30 : f32
    %866 = vector.shape_cast %865 : vector<1x128xf32> to vector<1x128xf32>
    %867 = vector.broadcast %866 : vector<1x128xf32> to vector<2x128xf32>
    %868 = vector.broadcast %cst_258 : f32 to vector<2x128xf32>
    %869 = arith.select %18, %867, %868 : vector<2x128xi1>, vector<2x128xf32>
    %cst_259 = arith.constant dense<0xFF800000> : vector<2xf32>
    %870 = vector.multi_reduction <maximumf>, %869, %cst_259 [1] : vector<2x128xf32> to vector<2xf32>
    %871 = vector.shape_cast %870 : vector<2xf32> to vector<2x1xf32>
    %872 = vector.broadcast %871 : vector<2x1xf32> to vector<2x128xf32>
    %873 = arith.mulf %872, %15 : vector<2x128xf32>
    %cst_260 = arith.constant dense<0.000000e+00> : vector<128xf32>
    %874 = vector.multi_reduction <add>, %873, %cst_260 [0] : vector<2x128xf32> to vector<128xf32>
    %875 = vector.shape_cast %874 : vector<128xf32> to vector<1x128xf32>
    %876 = arith.subf %865, %875 : vector<1x128xf32>
    %877 = math.exp %876 : vector<1x128xf32>
    %878 = vector.broadcast %877 : vector<1x128xf32> to vector<2x128xf32>
    %879 = arith.mulf %878, %15 : vector<2x128xf32>
    %cst_261 = arith.constant dense<0.000000e+00> : vector<2xf32>
    %880 = vector.multi_reduction <add>, %879, %cst_261 [1] : vector<2x128xf32> to vector<2xf32>
    %881 = vector.shape_cast %880 : vector<2xf32> to vector<2x1xf32>
    %882 = vector.broadcast %881 : vector<2x1xf32> to vector<2x128xf32>
    %883 = arith.mulf %882, %15 : vector<2x128xf32>
    %cst_262 = arith.constant dense<0.000000e+00> : vector<128xf32>
    %884 = vector.multi_reduction <add>, %883, %cst_262 [0] : vector<2x128xf32> to vector<128xf32>
    %885 = vector.shape_cast %884 : vector<128xf32> to vector<1x128xf32>
    %886 = arith.addf %885, %20 : vector<1x128xf32>
    %887 = tpu.reciprocal %886 {approx = true} : vector<1x128xf32> -> vector<1x128xf32>
    %888 = arith.mulf %877, %887 : vector<1x128xf32>
    %889 = vector.broadcast %888 : vector<1x128xf32> to vector<16x128xf32>
    %890 = arith.mulf %861, %889 : vector<16x128xf32>
    %891 = arith.truncf %890 : vector<16x128xf32> to vector<16x128xbf16>
    %892 = arith.truncf %15 : vector<2x128xf32> to vector<2x128xbf16>
    %cst_263 = arith.constant dense<0.000000e+00> : vector<16x2xf32>
    %893 = tpu.matmul %891, %892, %cst_263 {dimension_numbers = #tpu.dot_dimension_numbers<[1], [1], [0], [0], [0, 0, 1, 0], [], []>} : vector<16x128xbf16>, vector<2x128xbf16>, vector<16x2xf32> -> vector<16x2xf32>
    %894 = arith.truncf %53 : vector<16x16xf32> to vector<16x16xbf16>
    %895 = arith.truncf %893 : vector<16x2xf32> to vector<16x2xbf16>
    %cst_264 = arith.constant dense<0.000000e+00> : vector<16x2xf32>
    %896 = tpu.matmul %894, %895, %cst_264 {dimension_numbers = #tpu.dot_dimension_numbers<[1], [0], [0], [1], [0, 0, 1, 1], [], []>} : vector<16x16xbf16>, vector<16x2xbf16>, vector<16x2xf32> -> vector<16x2xf32>
    %cst_265 = arith.constant 2.000000e-01 : f32
    %897 = vector.broadcast %cst_265 : f32 to vector<16x2xf32>
    %898 = arith.mulf %897, %896 : vector<16x2xf32>
    %899 = arith.maximumf %896, %898 : vector<16x2xf32>
    %900 = arith.truncf %54 : vector<16x16xf32> to vector<16x16xbf16>
    %901 = arith.truncf %899 : vector<16x2xf32> to vector<16x2xbf16>
    %cst_266 = arith.constant dense<0.000000e+00> : vector<16x2xf32>
    %902 = tpu.matmul %900, %901, %cst_266 {dimension_numbers = #tpu.dot_dimension_numbers<[1], [0], [0], [1], [0, 0, 1, 1], [], []>} : vector<16x16xbf16>, vector<16x2xbf16>, vector<16x2xf32> -> vector<16x2xf32>
    %903 = arith.truncf %902 : vector<16x2xf32> to vector<16x2xbf16>
    %904 = arith.truncf %15 : vector<2x128xf32> to vector<2x128xbf16>
    %cst_267 = arith.constant dense<0.000000e+00> : vector<16x128xf32>
    %905 = tpu.matmul %903, %904, %cst_267 {dimension_numbers = #tpu.dot_dimension_numbers<[1], [0], [0], [1], [0, 0, 1, 1], [], []>} : vector<16x2xbf16>, vector<2x128xbf16>, vector<16x128xf32> -> vector<16x128xf32>
    %906 = arith.addf %861, %905 : vector<16x128xf32>
    %cst_268 = arith.constant 2.000000e-01 : f32
    %907 = vector.broadcast %cst_268 : f32 to vector<16x128xf32>
    %908 = arith.mulf %907, %906 : vector<16x128xf32>
    %909 = arith.maximumf %906, %908 : vector<16x128xf32>
    %910 = arith.addf %909, %444 : vector<16x128xf32>
    %c0_269 = arith.constant 0 : index
    %c0_270 = arith.constant 0 : index
    %911 = vector.load %arg16[%c0_269, %c0_270] : memref<8x16xbf16, #tpu.memory_space<vmem>>, vector<8x16xbf16>
    %912 = arith.truncf %910 : vector<16x128xf32> to vector<16x128xbf16>
    %cst_271 = arith.constant dense<0.000000e+00> : vector<8x128xf32>
    %913 = tpu.matmul %911, %912, %cst_271 {dimension_numbers = #tpu.dot_dimension_numbers<[1], [0], [0], [1], [0, 0, 1, 1], [], []>} : vector<8x16xbf16>, vector<16x128xbf16>, vector<8x128xf32> -> vector<8x128xf32>
    %914 = arith.truncf %913 : vector<8x128xf32> to vector<8x128xbf16>
    %cst_272 = arith.constant dense<0.000000e+00> : vector<8x128xf32>
    %915 = tpu.matmul %914, %23, %cst_272 {dimension_numbers = #tpu.dot_dimension_numbers<[1], [0], [0], [1], [0, 0, 1, 1], [], []>} : vector<8x128xbf16>, vector<128x128xbf16>, vector<8x128xf32> -> vector<8x128xf32>
    %916 = arith.addf %782, %915 : vector<8x128xf32>
    %917 = arith.truncf %916 : vector<8x128xf32> to vector<8x128xbf16>
    %918 = arith.truncf %9 : vector<2x128xf32> to vector<2x128xbf16>
    %cst_273 = arith.constant dense<0.000000e+00> : vector<8x2xf32>
    %919 = tpu.matmul %917, %918, %cst_273 {dimension_numbers = #tpu.dot_dimension_numbers<[1], [1], [0], [0], [0, 0, 1, 0], [], []>} : vector<8x128xbf16>, vector<2x128xbf16>, vector<8x2xf32> -> vector<8x2xf32>
    %cst_274 = arith.constant 1.562500e-02 : f32
    %920 = vector.broadcast %cst_274 : f32 to vector<8x2xf32>
    %921 = arith.mulf %919, %920 : vector<8x2xf32>
    %922 = arith.truncf %55 : vector<4x8xf32> to vector<4x8xbf16>
    %923 = arith.truncf %921 : vector<8x2xf32> to vector<8x2xbf16>
    %cst_275 = arith.constant dense<0.000000e+00> : vector<4x2xf32>
    %924 = tpu.matmul %922, %923, %cst_275 {dimension_numbers = #tpu.dot_dimension_numbers<[1], [0], [0], [1], [0, 0, 1, 1], [], []>} : vector<4x8xbf16>, vector<8x2xbf16>, vector<4x2xf32> -> vector<4x2xf32>
    %cst_276 = arith.constant 2.000000e-01 : f32
    %925 = vector.broadcast %cst_276 : f32 to vector<4x2xf32>
    %926 = arith.mulf %925, %924 : vector<4x2xf32>
    %927 = arith.maximumf %924, %926 : vector<4x2xf32>
    %928 = arith.truncf %56 : vector<8x4xf32> to vector<8x4xbf16>
    %929 = arith.truncf %927 : vector<4x2xf32> to vector<4x2xbf16>
    %cst_277 = arith.constant dense<0.000000e+00> : vector<8x2xf32>
    %930 = tpu.matmul %928, %929, %cst_277 {dimension_numbers = #tpu.dot_dimension_numbers<[1], [0], [0], [1], [0, 0, 1, 1], [], []>} : vector<8x4xbf16>, vector<4x2xbf16>, vector<8x2xf32> -> vector<8x2xf32>
    %931 = arith.truncf %57 : vector<8x4xf32> to vector<8x4xbf16>
    %932 = arith.truncf %927 : vector<4x2xf32> to vector<4x2xbf16>
    %cst_278 = arith.constant dense<0.000000e+00> : vector<8x2xf32>
    %933 = tpu.matmul %931, %932, %cst_278 {dimension_numbers = #tpu.dot_dimension_numbers<[1], [0], [0], [1], [0, 0, 1, 1], [], []>} : vector<8x4xbf16>, vector<4x2xbf16>, vector<8x2xf32> -> vector<8x2xf32>
    %934 = arith.maximumf %930, %933 : vector<8x2xf32>
    %935 = arith.subf %930, %934 : vector<8x2xf32>
    %936 = math.exp %935 : vector<8x2xf32>
    %937 = arith.subf %933, %934 : vector<8x2xf32>
    %938 = math.exp %937 : vector<8x2xf32>
    %939 = arith.addf %936, %938 : vector<8x2xf32>
    %940 = tpu.reciprocal %939 {approx = true} : vector<8x2xf32> -> vector<8x2xf32>
    %941 = arith.mulf %936, %940 : vector<8x2xf32>
    %942 = arith.truncf %941 : vector<8x2xf32> to vector<8x2xbf16>
    %943 = arith.truncf %9 : vector<2x128xf32> to vector<2x128xbf16>
    %cst_279 = arith.constant dense<0.000000e+00> : vector<8x128xf32>
    %944 = tpu.matmul %942, %943, %cst_279 {dimension_numbers = #tpu.dot_dimension_numbers<[1], [0], [0], [1], [0, 0, 1, 1], [], []>} : vector<8x2xbf16>, vector<2x128xbf16>, vector<8x128xf32> -> vector<8x128xf32>
    %945 = arith.mulf %782, %944 : vector<8x128xf32>
    %946 = arith.mulf %938, %940 : vector<8x2xf32>
    %947 = arith.truncf %946 : vector<8x2xf32> to vector<8x2xbf16>
    %948 = arith.truncf %9 : vector<2x128xf32> to vector<2x128xbf16>
    %cst_280 = arith.constant dense<0.000000e+00> : vector<8x128xf32>
    %949 = tpu.matmul %947, %948, %cst_280 {dimension_numbers = #tpu.dot_dimension_numbers<[1], [0], [0], [1], [0, 0, 1, 1], [], []>} : vector<8x2xbf16>, vector<2x128xbf16>, vector<8x128xf32> -> vector<8x128xf32>
    %950 = arith.mulf %915, %949 : vector<8x128xf32>
    %951 = arith.addf %945, %950 : vector<8x128xf32>
    %c0_281 = arith.constant 0 : index
    %c0_282 = arith.constant 0 : index
    %952 = vector.load %arg18[%c0_281, %c0_282] : memref<4x8xbf16, #tpu.memory_space<vmem>>, vector<4x8xbf16>
    %953 = arith.truncf %951 : vector<8x128xf32> to vector<8x128xbf16>
    %cst_283 = arith.constant dense<0.000000e+00> : vector<4x128xf32>
    %954 = tpu.matmul %952, %953, %cst_283 {dimension_numbers = #tpu.dot_dimension_numbers<[1], [0], [0], [1], [0, 0, 1, 1], [], []>} : vector<4x8xbf16>, vector<8x128xbf16>, vector<4x128xf32> -> vector<4x128xf32>
    %955 = arith.truncf %954 : vector<4x128xf32> to vector<4x128xbf16>
    %cst_284 = arith.constant dense<0.000000e+00> : vector<4x512xf32>
    %956 = tpu.matmul %955, %24, %cst_284 {dimension_numbers = #tpu.dot_dimension_numbers<[1], [0], [0], [1], [0, 0, 1, 1], [], []>} : vector<4x128xbf16>, vector<128x512xbf16>, vector<4x512xf32> -> vector<4x512xf32>
    %957 = arith.addf %654, %956 : vector<4x512xf32>
    %958 = arith.truncf %957 : vector<4x512xf32> to vector<4x512xbf16>
    %959 = arith.truncf %3 : vector<2x512xf32> to vector<2x512xbf16>
    %cst_285 = arith.constant dense<0.000000e+00> : vector<4x2xf32>
    %960 = tpu.matmul %958, %959, %cst_285 {dimension_numbers = #tpu.dot_dimension_numbers<[1], [1], [0], [0], [0, 0, 1, 0], [], []>} : vector<4x512xbf16>, vector<2x512xbf16>, vector<4x2xf32> -> vector<4x2xf32>
    %cst_286 = arith.constant 3.906250e-03 : f32
    %961 = vector.broadcast %cst_286 : f32 to vector<4x2xf32>
    %962 = arith.mulf %960, %961 : vector<4x2xf32>
    %963 = arith.truncf %58 : vector<4x4xf32> to vector<4x4xbf16>
    %964 = arith.truncf %962 : vector<4x2xf32> to vector<4x2xbf16>
    %cst_287 = arith.constant dense<0.000000e+00> : vector<4x2xf32>
    %965 = tpu.matmul %963, %964, %cst_287 {dimension_numbers = #tpu.dot_dimension_numbers<[1], [0], [0], [1], [0, 0, 1, 1], [], []>} : vector<4x4xbf16>, vector<4x2xbf16>, vector<4x2xf32> -> vector<4x2xf32>
    %cst_288 = arith.constant 2.000000e-01 : f32
    %966 = vector.broadcast %cst_288 : f32 to vector<4x2xf32>
    %967 = arith.mulf %966, %965 : vector<4x2xf32>
    %968 = arith.maximumf %965, %967 : vector<4x2xf32>
    %969 = arith.truncf %59 : vector<4x4xf32> to vector<4x4xbf16>
    %970 = arith.truncf %968 : vector<4x2xf32> to vector<4x2xbf16>
    %cst_289 = arith.constant dense<0.000000e+00> : vector<4x2xf32>
    %971 = tpu.matmul %969, %970, %cst_289 {dimension_numbers = #tpu.dot_dimension_numbers<[1], [0], [0], [1], [0, 0, 1, 1], [], []>} : vector<4x4xbf16>, vector<4x2xbf16>, vector<4x2xf32> -> vector<4x2xf32>
    %972 = arith.truncf %60 : vector<4x4xf32> to vector<4x4xbf16>
    %973 = arith.truncf %968 : vector<4x2xf32> to vector<4x2xbf16>
    %cst_290 = arith.constant dense<0.000000e+00> : vector<4x2xf32>
    %974 = tpu.matmul %972, %973, %cst_290 {dimension_numbers = #tpu.dot_dimension_numbers<[1], [0], [0], [1], [0, 0, 1, 1], [], []>} : vector<4x4xbf16>, vector<4x2xbf16>, vector<4x2xf32> -> vector<4x2xf32>
    %975 = arith.maximumf %971, %974 : vector<4x2xf32>
    %976 = arith.subf %971, %975 : vector<4x2xf32>
    %977 = math.exp %976 : vector<4x2xf32>
    %978 = arith.subf %974, %975 : vector<4x2xf32>
    %979 = math.exp %978 : vector<4x2xf32>
    %980 = arith.addf %977, %979 : vector<4x2xf32>
    %981 = tpu.reciprocal %980 {approx = true} : vector<4x2xf32> -> vector<4x2xf32>
    %982 = arith.mulf %977, %981 : vector<4x2xf32>
    %983 = arith.truncf %982 : vector<4x2xf32> to vector<4x2xbf16>
    %984 = arith.truncf %3 : vector<2x512xf32> to vector<2x512xbf16>
    %cst_291 = arith.constant dense<0.000000e+00> : vector<4x512xf32>
    %985 = tpu.matmul %983, %984, %cst_291 {dimension_numbers = #tpu.dot_dimension_numbers<[1], [0], [0], [1], [0, 0, 1, 1], [], []>} : vector<4x2xbf16>, vector<2x512xbf16>, vector<4x512xf32> -> vector<4x512xf32>
    %986 = arith.mulf %654, %985 : vector<4x512xf32>
    %987 = arith.mulf %979, %981 : vector<4x2xf32>
    %988 = arith.truncf %987 : vector<4x2xf32> to vector<4x2xbf16>
    %989 = arith.truncf %3 : vector<2x512xf32> to vector<2x512xbf16>
    %cst_292 = arith.constant dense<0.000000e+00> : vector<4x512xf32>
    %990 = tpu.matmul %988, %989, %cst_292 {dimension_numbers = #tpu.dot_dimension_numbers<[1], [0], [0], [1], [0, 0, 1, 1], [], []>} : vector<4x2xbf16>, vector<2x512xbf16>, vector<4x512xf32> -> vector<4x512xf32>
    %991 = arith.mulf %956, %990 : vector<4x512xf32>
    %992 = arith.addf %986, %991 : vector<4x512xf32>
    %c0_293 = arith.constant 0 : index
    %c0_294 = arith.constant 0 : index
    %993 = vector.load %arg19[%c0_293, %c0_294] : memref<4x4xbf16, #tpu.memory_space<vmem>>, vector<4x4xbf16>
    %994 = arith.truncf %992 : vector<4x512xf32> to vector<4x512xbf16>
    %cst_295 = arith.constant dense<0.000000e+00> : vector<4x512xf32>
    %995 = tpu.matmul %993, %994, %cst_295 {dimension_numbers = #tpu.dot_dimension_numbers<[1], [0], [0], [1], [0, 0, 1, 1], [], []>} : vector<4x4xbf16>, vector<4x512xbf16>, vector<4x512xf32> -> vector<4x512xf32>
    %996 = arith.addf %995, %26 : vector<4x512xf32>
    %c0_296 = arith.constant 0 : index
    %c0_297 = arith.constant 0 : index
    %c0_298 = arith.constant 0 : index
    %997 = vector.load %arg41[%c0_296, %c0_297, %c0_298] : memref<1x4x512xf32, #tpu.memory_space<vmem>>, vector<1x4x512xf32>
    %998 = vector.shape_cast %997 : vector<1x4x512xf32> to vector<4x512xf32>
    %999 = vector.shape_cast %996 : vector<4x512xf32> to vector<1x4x512xf32>
    tpu.vector_store %arg41[%c0_296, %c0_297, %c0_298], %999 {strides = array<i32>} : memref<1x4x512xf32, #tpu.memory_space<vmem>>, vector<1x4x512xf32>,
    return
  }
  func.func @transform_0(%arg0: i32) -> (i32, i32, i32) {
    %c0_i32 = arith.constant 0 : i32
    %c0_i32_0 = arith.constant 0 : i32
    %c0_i32_1 = arith.constant 0 : i32
    return %arg0, %c0_i32, %c0_i32_0 : i32, i32, i32
  }
  func.func @transform_1(%arg0: i32) -> (i32, i32) {
    %c0_i32 = arith.constant 0 : i32
    %c0_i32_0 = arith.constant 0 : i32
    %c0_i32_1 = arith.constant 0 : i32
    return %c0_i32, %c0_i32_0 : i32, i32
  }
  func.func @transform_2(%arg0: i32) -> (i32, i32) {
    %c0_i32 = arith.constant 0 : i32
    %c0_i32_0 = arith.constant 0 : i32
    %c0_i32_1 = arith.constant 0 : i32
    return %c0_i32, %c0_i32_0 : i32, i32
  }
  func.func @transform_3(%arg0: i32) -> (i32, i32) {
    %c0_i32 = arith.constant 0 : i32
    %c0_i32_0 = arith.constant 0 : i32
    %c0_i32_1 = arith.constant 0 : i32
    return %c0_i32, %c0_i32_0 : i32, i32
  }
  func.func @transform_4(%arg0: i32) -> (i32, i32) {
    %c0_i32 = arith.constant 0 : i32
    %c0_i32_0 = arith.constant 0 : i32
    %c0_i32_1 = arith.constant 0 : i32
    return %c0_i32, %c0_i32_0 : i32, i32
  }
  func.func @transform_5(%arg0: i32) -> (i32, i32) {
    %c0_i32 = arith.constant 0 : i32
    %c0_i32_0 = arith.constant 0 : i32
    %c0_i32_1 = arith.constant 0 : i32
    return %c0_i32, %c0_i32_0 : i32, i32
  }
  func.func @transform_6(%arg0: i32) -> (i32, i32) {
    %c0_i32 = arith.constant 0 : i32
    %c0_i32_0 = arith.constant 0 : i32
    %c0_i32_1 = arith.constant 0 : i32
    return %c0_i32, %c0_i32_0 : i32, i32
  }
  func.func @transform_7(%arg0: i32) -> (i32, i32) {
    %c0_i32 = arith.constant 0 : i32
    %c0_i32_0 = arith.constant 0 : i32
    %c0_i32_1 = arith.constant 0 : i32
    return %c0_i32, %c0_i32_0 : i32, i32
  }
  func.func @transform_8(%arg0: i32) -> (i32, i32) {
    %c0_i32 = arith.constant 0 : i32
    %c0_i32_0 = arith.constant 0 : i32
    %c0_i32_1 = arith.constant 0 : i32
    return %c0_i32, %c0_i32_0 : i32, i32
  }
  func.func @transform_9(%arg0: i32) -> (i32, i32) {
    %c0_i32 = arith.constant 0 : i32
    %c0_i32_0 = arith.constant 0 : i32
    %c0_i32_1 = arith.constant 0 : i32
    return %c0_i32, %c0_i32_0 : i32, i32
  }
  func.func @transform_10(%arg0: i32) -> (i32, i32) {
    %c0_i32 = arith.constant 0 : i32
    %c0_i32_0 = arith.constant 0 : i32
    %c0_i32_1 = arith.constant 0 : i32
    return %c0_i32, %c0_i32_0 : i32, i32
  }
  func.func @transform_11(%arg0: i32) -> (i32, i32) {
    %c0_i32 = arith.constant 0 : i32
    %c0_i32_0 = arith.constant 0 : i32
    %c0_i32_1 = arith.constant 0 : i32
    return %c0_i32, %c0_i32_0 : i32, i32
  }
  func.func @transform_12(%arg0: i32) -> (i32, i32) {
    %c0_i32 = arith.constant 0 : i32
    %c0_i32_0 = arith.constant 0 : i32
    %c0_i32_1 = arith.constant 0 : i32
    return %c0_i32, %c0_i32_0 : i32, i32
  }
  func.func @transform_13(%arg0: i32) -> (i32, i32) {
    %c0_i32 = arith.constant 0 : i32
    %c0_i32_0 = arith.constant 0 : i32
    %c0_i32_1 = arith.constant 0 : i32
    return %c0_i32, %c0_i32_0 : i32, i32
  }
  func.func @transform_14(%arg0: i32) -> (i32, i32) {
    %c0_i32 = arith.constant 0 : i32
    %c0_i32_0 = arith.constant 0 : i32
    %c0_i32_1 = arith.constant 0 : i32
    return %c0_i32, %c0_i32_0 : i32, i32
  }
  func.func @transform_15(%arg0: i32) -> (i32, i32) {
    %c0_i32 = arith.constant 0 : i32
    %c0_i32_0 = arith.constant 0 : i32
    %c0_i32_1 = arith.constant 0 : i32
    return %c0_i32, %c0_i32_0 : i32, i32
  }
  func.func @transform_16(%arg0: i32) -> (i32, i32) {
    %c0_i32 = arith.constant 0 : i32
    %c0_i32_0 = arith.constant 0 : i32
    %c0_i32_1 = arith.constant 0 : i32
    return %c0_i32, %c0_i32_0 : i32, i32
  }
  func.func @transform_17(%arg0: i32) -> (i32, i32) {
    %c0_i32 = arith.constant 0 : i32
    %c0_i32_0 = arith.constant 0 : i32
    %c0_i32_1 = arith.constant 0 : i32
    return %c0_i32, %c0_i32_0 : i32, i32
  }
  func.func @transform_18(%arg0: i32) -> (i32, i32) {
    %c0_i32 = arith.constant 0 : i32
    %c0_i32_0 = arith.constant 0 : i32
    %c0_i32_1 = arith.constant 0 : i32
    return %c0_i32, %c0_i32_0 : i32, i32
  }
  func.func @transform_19(%arg0: i32) -> (i32, i32) {
    %c0_i32 = arith.constant 0 : i32
    %c0_i32_0 = arith.constant 0 : i32
    %c0_i32_1 = arith.constant 0 : i32
    return %c0_i32, %c0_i32_0 : i32, i32
  }
  func.func @transform_20(%arg0: i32) -> (i32, i32) {
    %c0_i32 = arith.constant 0 : i32
    %c0_i32_0 = arith.constant 0 : i32
    %c0_i32_1 = arith.constant 0 : i32
    return %c0_i32, %c0_i32_0 : i32, i32
  }
  func.func @transform_21(%arg0: i32) -> (i32, i32) {
    %c0_i32 = arith.constant 0 : i32
    %c0_i32_0 = arith.constant 0 : i32
    %c0_i32_1 = arith.constant 0 : i32
    return %c0_i32, %c0_i32_0 : i32, i32
  }
  func.func @transform_22(%arg0: i32) -> (i32, i32) {
    %c0_i32 = arith.constant 0 : i32
    %c0_i32_0 = arith.constant 0 : i32
    %c0_i32_1 = arith.constant 0 : i32
    return %c0_i32, %c0_i32_0 : i32, i32
  }
  func.func @transform_23(%arg0: i32) -> (i32, i32) {
    %c0_i32 = arith.constant 0 : i32
    %c0_i32_0 = arith.constant 0 : i32
    %c0_i32_1 = arith.constant 0 : i32
    return %c0_i32, %c0_i32_0 : i32, i32
  }
  func.func @transform_24(%arg0: i32) -> (i32, i32) {
    %c0_i32 = arith.constant 0 : i32
    %c0_i32_0 = arith.constant 0 : i32
    %c0_i32_1 = arith.constant 0 : i32
    return %c0_i32, %c0_i32_0 : i32, i32
  }
  func.func @transform_25(%arg0: i32) -> (i32, i32) {
    %c0_i32 = arith.constant 0 : i32
    %c0_i32_0 = arith.constant 0 : i32
    %c0_i32_1 = arith.constant 0 : i32
    return %c0_i32, %c0_i32_0 : i32, i32
  }
  func.func @transform_26(%arg0: i32) -> (i32, i32) {
    %c0_i32 = arith.constant 0 : i32
    %c0_i32_0 = arith.constant 0 : i32
    %c0_i32_1 = arith.constant 0 : i32
    return %c0_i32, %c0_i32_0 : i32, i32
  }
  func.func @transform_27(%arg0: i32) -> (i32, i32) {
    %c0_i32 = arith.constant 0 : i32
    %c0_i32_0 = arith.constant 0 : i32
    %c0_i32_1 = arith.constant 0 : i32
    return %c0_i32, %c0_i32_0 : i32, i32
  }
  func.func @transform_28(%arg0: i32) -> (i32, i32) {
    %c0_i32 = arith.constant 0 : i32
    %c0_i32_0 = arith.constant 0 : i32
    %c0_i32_1 = arith.constant 0 : i32
    return %c0_i32, %c0_i32_0 : i32, i32
  }
  func.func @transform_29(%arg0: i32) -> (i32, i32) {
    %c0_i32 = arith.constant 0 : i32
    %c0_i32_0 = arith.constant 0 : i32
    %c0_i32_1 = arith.constant 0 : i32
    return %c0_i32, %c0_i32_0 : i32, i32
  }
  func.func @transform_30(%arg0: i32) -> (i32, i32) {
    %c0_i32 = arith.constant 0 : i32
    %c0_i32_0 = arith.constant 0 : i32
    %c0_i32_1 = arith.constant 0 : i32
    return %c0_i32, %c0_i32_0 : i32, i32
  }
  func.func @transform_31(%arg0: i32) -> (i32, i32) {
    %c0_i32 = arith.constant 0 : i32
    %c0_i32_0 = arith.constant 0 : i32
    %c0_i32_1 = arith.constant 0 : i32
    return %c0_i32, %c0_i32_0 : i32, i32
  }
  func.func @transform_32(%arg0: i32) -> (i32, i32) {
    %c0_i32 = arith.constant 0 : i32
    %c0_i32_0 = arith.constant 0 : i32
    %c0_i32_1 = arith.constant 0 : i32
    return %c0_i32, %c0_i32_0 : i32, i32
  }
  func.func @transform_33(%arg0: i32) -> (i32, i32) {
    %c0_i32 = arith.constant 0 : i32
    %c0_i32_0 = arith.constant 0 : i32
    %c0_i32_1 = arith.constant 0 : i32
    return %c0_i32, %c0_i32_0 : i32, i32
  }
  func.func @transform_34(%arg0: i32) -> (i32, i32) {
    %c0_i32 = arith.constant 0 : i32
    %c0_i32_0 = arith.constant 0 : i32
    %c0_i32_1 = arith.constant 0 : i32
    return %c0_i32, %c0_i32_0 : i32, i32
  }
  func.func @transform_35(%arg0: i32) -> (i32, i32) {
    %c0_i32 = arith.constant 0 : i32
    %c0_i32_0 = arith.constant 0 : i32
    %c0_i32_1 = arith.constant 0 : i32
    return %c0_i32, %c0_i32_0 : i32, i32
  }
  func.func @transform_36(%arg0: i32) -> (i32, i32) {
    %c0_i32 = arith.constant 0 : i32
    %c0_i32_0 = arith.constant 0 : i32
    %c0_i32_1 = arith.constant 0 : i32
    return %c0_i32, %c0_i32_0 : i32, i32
  }
  func.func @transform_37(%arg0: i32) -> (i32, i32) {
    %c0_i32 = arith.constant 0 : i32
    %c0_i32_0 = arith.constant 0 : i32
    %c0_i32_1 = arith.constant 0 : i32
    return %c0_i32, %c0_i32_0 : i32, i32
  }
  func.func @transform_38(%arg0: i32) -> (i32, i32) {
    %c0_i32 = arith.constant 0 : i32
    %c0_i32_0 = arith.constant 0 : i32
    %c0_i32_1 = arith.constant 0 : i32
    return %c0_i32, %c0_i32_0 : i32, i32
  }
  func.func @transform_39(%arg0: i32) -> (i32, i32) {
    %c0_i32 = arith.constant 0 : i32
    %c0_i32_0 = arith.constant 0 : i32
    %c0_i32_1 = arith.constant 0 : i32
    return %c0_i32, %c0_i32_0 : i32, i32
  }
  func.func @transform_40(%arg0: i32) -> (i32, i32, i32) {
    %c0_i32 = arith.constant 0 : i32
    %c0_i32_0 = arith.constant 0 : i32
    %c0_i32_1 = arith.constant 0 : i32
    return %arg0, %c0_i32, %c0_i32_0 : i32, i32, i32
  }
}

</mosaic_0001>

<llo_original>
// kernel: mrb_forward.1
$region0: #{mrb_forward.1}
  #allocation0 [shape = 'u32[]', space=smem, size = 0x4, offset = 0x4, fixed_abs, tag = 'smem constant byte address 0x4 - core index']
  #allocation1 [shape = 'u32[72,128]{1,0:T(1,128)}', space=vmem, size = 0x9000, scoped, tag = 'internal scratch']
  %s0 = inlined_call_operand.smem [shape: u32[41], index: -1, kind: input, shape index: {}]
  %s1 = sld [smem:[%s0]]
  %s2 = scalar_lea.smem %s0, 1
  %s3 = sld [smem:[%s2]]
  %s4 = scalar_lea.smem %s0, 2
  %s5 = sld [smem:[%s4]]
  %s6 = scalar_lea.smem %s0, 3
  %s7 = sld [smem:[%s6]]
  %s8 = scalar_lea.smem %s0, 4
  %s9 = sld [smem:[%s8]]
  %s10 = scalar_lea.smem %s0, 5
  %s11 = sld [smem:[%s10]]
  %s12 = scalar_lea.smem %s0, 6
  %s13 = sld [smem:[%s12]]
  %s14 = scalar_lea.smem %s0, 7
  %s15 = sld [smem:[%s14]]
  %s16 = scalar_lea.smem %s0, 8
  %s17 = sld [smem:[%s16]]
  %s18 = scalar_lea.smem %s0, 9
  %s19 = sld [smem:[%s18]]
  %s20 = scalar_lea.smem %s0, 10
  %s21 = sld [smem:[%s20]]
  %s22 = scalar_lea.smem %s0, 11
  %s23 = sld [smem:[%s22]]
  %s24 = scalar_lea.smem %s0, 12
  %s25 = sld [smem:[%s24]]
  %s26 = scalar_lea.smem %s0, 13
  %s27 = sld [smem:[%s26]]
  %s28 = scalar_lea.smem %s0, 14
  %s29 = sld [smem:[%s28]]
  %s30 = scalar_lea.smem %s0, 15
  %s31 = sld [smem:[%s30]]
  %s32 = scalar_lea.smem %s0, 16
  %s33 = sld [smem:[%s32]]
  %s34 = scalar_lea.smem %s0, 17
  %s35 = sld [smem:[%s34]]
  %s36 = scalar_lea.smem %s0, 18
  %s37 = sld [smem:[%s36]]
  %s38 = scalar_lea.smem %s0, 19
  %s39 = sld [smem:[%s38]]
  %s40 = scalar_lea.smem %s0, 20
  %s41 = sld [smem:[%s40]]
  %s42 = scalar_lea.smem %s0, 21
  %s43 = sld [smem:[%s42]]
  %s44 = scalar_lea.smem %s0, 22
  %s45 = sld [smem:[%s44]]
  %s46 = scalar_lea.smem %s0, 23
  %s47 = sld [smem:[%s46]]
  %s48 = scalar_lea.smem %s0, 24
  %s49 = sld [smem:[%s48]]
  %s50 = scalar_lea.smem %s0, 25
  %s51 = sld [smem:[%s50]]
  %s52 = scalar_lea.smem %s0, 26
  %s53 = sld [smem:[%s52]]
  %s54 = scalar_lea.smem %s0, 27
  %s55 = sld [smem:[%s54]]
  %s56 = scalar_lea.smem %s0, 28
  %s57 = sld [smem:[%s56]]
  %s58 = scalar_lea.smem %s0, 29
  %s59 = sld [smem:[%s58]]
  %s60 = scalar_lea.smem %s0, 30
  %s61 = sld [smem:[%s60]]
  %s62 = scalar_lea.smem %s0, 31
  %s63 = sld [smem:[%s62]]
  %s64 = scalar_lea.smem %s0, 32
  %s65 = sld [smem:[%s64]]
  %s66 = scalar_lea.smem %s0, 33
  %s67 = sld [smem:[%s66]]
  %s68 = scalar_lea.smem %s0, 34
  %s69 = sld [smem:[%s68]]
  %s70 = scalar_lea.smem %s0, 35
  %s71 = sld [smem:[%s70]]
  %s72 = scalar_lea.smem %s0, 36
  %s73 = sld [smem:[%s72]]
  %s74 = scalar_lea.smem %s0, 37
  %s75 = sld [smem:[%s74]]
  %s76 = scalar_lea.smem %s0, 38
  %s77 = sld [smem:[%s76]]
  %s78 = scalar_lea.smem %s0, 39
  %s79 = sld [smem:[%s78]]
  %s80 = scalar_lea.smem %s0, 40
  %s81 = sld [smem:[%s80]]
  %s82 = sld [smem:[#allocation0]]
  $region170: #{mrb_forward.1} parent=0
    _
  %s84 = ssub.s32 1, %s82
  %s85 = scalar_select 0, %s84, %s82
  // Predicated region
  $region2: #{mrb_forward.1} parent=0 // pred_check
    _
  $region3: #{mrb_forward.1} parent=0 // pred_check_branch
    %87 = sbr.rel (0) target = $region5
  $region4: #{mrb_forward.1} parent=0 // pred_region
    _
  $region5: #{mrb_forward.1} parent=0 // pred_fallthru
    _
  // Predicated region
  $region6: #{mrb_forward.1} parent=0 // pred_check
    _
  $region7: #{mrb_forward.1} parent=0 // pred_check_branch
    %89 = sbr.rel (0) target = $region9
  $region8: #{mrb_forward.1} parent=0 // pred_region
    _
  $region9: #{mrb_forward.1} parent=0 // pred_fallthru
    _
  // Predicated region
  $region10: #{mrb_forward.1} parent=0 // pred_check
    _
  $region11: #{mrb_forward.1} parent=0 // pred_check_branch
    %91 = sbr.rel (0) target = $region13
  $region12: #{mrb_forward.1} parent=0 // pred_region
    _
  $region13: #{mrb_forward.1} parent=0 // pred_fallthru
    _
  // Predicated region
  $region14: #{mrb_forward.1} parent=0 // pred_check
    _
  $region15: #{mrb_forward.1} parent=0 // pred_check_branch
    %93 = sbr.rel (0) target = $region17
  $region16: #{mrb_forward.1} parent=0 // pred_region
    _
  $region17: #{mrb_forward.1} parent=0 // pred_fallthru
    _
  // Predicated region
  $region18: #{mrb_forward.1} parent=0 // pred_check
    _
  $region19: #{mrb_forward.1} parent=0 // pred_check_branch
    %95 = sbr.rel (0) target = $region21
  $region20: #{mrb_forward.1} parent=0 // pred_region
    _
  $region21: #{mrb_forward.1} parent=0 // pred_fallthru
    _
  // Predicated region
  $region22: #{mrb_forward.1} parent=0 // pred_check
    _
  $region23: #{mrb_forward.1} parent=0 // pred_check_branch
    %97 = sbr.rel (0) target = $region25
  $region24: #{mrb_forward.1} parent=0 // pred_region
    _
  $region25: #{mrb_forward.1} parent=0 // pred_fallthru
    _
  // Predicated region
  $region26: #{mrb_forward.1} parent=0 // pred_check
    _
  $region27: #{mrb_forward.1} parent=0 // pred_check_branch
    %99 = sbr.rel (0) target = $region29
  $region28: #{mrb_forward.1} parent=0 // pred_region
    _
  $region29: #{mrb_forward.1} parent=0 // pred_fallthru
    _
  // Predicated region
  $region30: #{mrb_forward.1} parent=0 // pred_check
    _
  $region31: #{mrb_forward.1} parent=0 // pred_check_branch
    %101 = sbr.rel (0) target = $region33
  $region32: #{mrb_forward.1} parent=0 // pred_region
    _
  $region33: #{mrb_forward.1} parent=0 // pred_fallthru
    _
  // Predicated region
  $region34: #{mrb_forward.1} parent=0 // pred_check
    _
  $region35: #{mrb_forward.1} parent=0 // pred_check_branch
    %103 = sbr.rel (0) target = $region37
  $region36: #{mrb_forward.1} parent=0 // pred_region
    _
  $region37: #{mrb_forward.1} parent=0 // pred_fallthru
    _
  // Predicated region
  $region38: #{mrb_forward.1} parent=0 // pred_check
    _
  $region39: #{mrb_forward.1} parent=0 // pred_check_branch
    %105 = sbr.rel (0) target = $region41
  $region40: #{mrb_forward.1} parent=0 // pred_region
    _
  $region41: #{mrb_forward.1} parent=0 // pred_fallthru
    _
  // Predicated region
  $region42: #{mrb_forward.1} parent=0 // pred_check
    _
  $region43: #{mrb_forward.1} parent=0 // pred_check_branch
    %107 = sbr.rel (0) target = $region45
  $region44: #{mrb_forward.1} parent=0 // pred_region
    _
  $region45: #{mrb_forward.1} parent=0 // pred_fallthru
    _
  // Predicated region
  $region46: #{mrb_forward.1} parent=0 // pred_check
    _
  $region47: #{mrb_forward.1} parent=0 // pred_check_branch
    %109 = sbr.rel (0) target = $region49
  $region48: #{mrb_forward.1} parent=0 // pred_region
    _
  $region49: #{mrb_forward.1} parent=0 // pred_fallthru
    _
  // Predicated region
  $region50: #{mrb_forward.1} parent=0 // pred_check
    _
  $region51: #{mrb_forward.1} parent=0 // pred_check_branch
    %111 = sbr.rel (0) target = $region53
  $region52: #{mrb_forward.1} parent=0 // pred_region
    _
  $region53: #{mrb_forward.1} parent=0 // pred_fallthru
    _
  // Predicated region
  $region54: #{mrb_forward.1} parent=0 // pred_check
    _
  $region55: #{mrb_forward.1} parent=0 // pred_check_branch
    %113 = sbr.rel (0) target = $region57
  $region56: #{mrb_forward.1} parent=0 // pred_region
    _
  $region57: #{mrb_forward.1} parent=0 // pred_fallthru
    _
  // Predicated region
  $region58: #{mrb_forward.1} parent=0 // pred_check
    _
  $region59: #{mrb_forward.1} parent=0 // pred_check_branch
    %115 = sbr.rel (0) target = $region61
  $region60: #{mrb_forward.1} parent=0 // pred_region
    _
  $region61: #{mrb_forward.1} parent=0 // pred_fallthru
    _
  // Predicated region
  $region62: #{mrb_forward.1} parent=0 // pred_check
    _
  $region63: #{mrb_forward.1} parent=0 // pred_check_branch
    %117 = sbr.rel (0) target = $region65
  $region64: #{mrb_forward.1} parent=0 // pred_region
    _
  $region65: #{mrb_forward.1} parent=0 // pred_fallthru
    _
  // Predicated region
  $region66: #{mrb_forward.1} parent=0 // pred_check
    _
  $region67: #{mrb_forward.1} parent=0 // pred_check_branch
    %119 = sbr.rel (0) target = $region69
  $region68: #{mrb_forward.1} parent=0 // pred_region
    _
  $region69: #{mrb_forward.1} parent=0 // pred_fallthru
    _
  // Predicated region
  $region70: #{mrb_forward.1} parent=0 // pred_check
    _
  $region71: #{mrb_forward.1} parent=0 // pred_check_branch
    %121 = sbr.rel (0) target = $region73
  $region72: #{mrb_forward.1} parent=0 // pred_region
    _
  $region73: #{mrb_forward.1} parent=0 // pred_fallthru
    _
  // Predicated region
  $region74: #{mrb_forward.1} parent=0 // pred_check
    _
  $region75: #{mrb_forward.1} parent=0 // pred_check_branch
    %123 = sbr.rel (0) target = $region77
  $region76: #{mrb_forward.1} parent=0 // pred_region
    _
  $region77: #{mrb_forward.1} parent=0 // pred_fallthru
    _
  // Predicated region
  $region78: #{mrb_forward.1} parent=0 // pred_check
    _
  $region79: #{mrb_forward.1} parent=0 // pred_check_branch
    %125 = sbr.rel (0) target = $region81
  $region80: #{mrb_forward.1} parent=0 // pred_region
    _
  $region81: #{mrb_forward.1} parent=0 // pred_fallthru
    _
  // Predicated region
  $region82: #{mrb_forward.1} parent=0 // pred_check
    _
  $region83: #{mrb_forward.1} parent=0 // pred_check_branch
    %127 = sbr.rel (0) target = $region85
  $region84: #{mrb_forward.1} parent=0 // pred_region
    _
  $region85: #{mrb_forward.1} parent=0 // pred_fallthru
    _
  // Predicated region
  $region86: #{mrb_forward.1} parent=0 // pred_check
    _
  $region87: #{mrb_forward.1} parent=0 // pred_check_branch
    %129 = sbr.rel (0) target = $region89
  $region88: #{mrb_forward.1} parent=0 // pred_region
    _
  $region89: #{mrb_forward.1} parent=0 // pred_fallthru
    _
  // Predicated region
  $region90: #{mrb_forward.1} parent=0 // pred_check
    _
  $region91: #{mrb_forward.1} parent=0 // pred_check_branch
    %131 = sbr.rel (0) target = $region93
  $region92: #{mrb_forward.1} parent=0 // pred_region
    _
  $region93: #{mrb_forward.1} parent=0 // pred_fallthru
    _
  // Predicated region
  $region94: #{mrb_forward.1} parent=0 // pred_check
    _
  $region95: #{mrb_forward.1} parent=0 // pred_check_branch
    %133 = sbr.rel (0) target = $region97
  $region96: #{mrb_forward.1} parent=0 // pred_region
    _
  $region97: #{mrb_forward.1} parent=0 // pred_fallthru
    _
  // Predicated region
  $region98: #{mrb_forward.1} parent=0 // pred_check
    _
  $region99: #{mrb_forward.1} parent=0 // pred_check_branch
    %135 = sbr.rel (0) target = $region101
  $region100: #{mrb_forward.1} parent=0 // pred_region
    _
  $region101: #{mrb_forward.1} parent=0 // pred_fallthru
    _
  // Predicated region
  $region102: #{mrb_forward.1} parent=0 // pred_check
    _
  $region103: #{mrb_forward.1} parent=0 // pred_check_branch
    %137 = sbr.rel (0) target = $region105
  $region104: #{mrb_forward.1} parent=0 // pred_region
    _
  $region105: #{mrb_forward.1} parent=0 // pred_fallthru
    _
  // Predicated region
  $region106: #{mrb_forward.1} parent=0 // pred_check
    _
  $region107: #{mrb_forward.1} parent=0 // pred_check_branch
    %139 = sbr.rel (0) target = $region109
  $region108: #{mrb_forward.1} parent=0 // pred_region
    _
  $region109: #{mrb_forward.1} parent=0 // pred_fallthru
    _
  // Predicated region
  $region110: #{mrb_forward.1} parent=0 // pred_check
    _
  $region111: #{mrb_forward.1} parent=0 // pred_check_branch
    %141 = sbr.rel (0) target = $region113
  $region112: #{mrb_forward.1} parent=0 // pred_region
    _
  $region113: #{mrb_forward.1} parent=0 // pred_fallthru
    _
  // Predicated region
  $region114: #{mrb_forward.1} parent=0 // pred_check
    _
  $region115: #{mrb_forward.1} parent=0 // pred_check_branch
    %143 = sbr.rel (0) target = $region117
  $region116: #{mrb_forward.1} parent=0 // pred_region
    _
  $region117: #{mrb_forward.1} parent=0 // pred_fallthru
    _
  // Predicated region
  $region118: #{mrb_forward.1} parent=0 // pred_check
    _
  $region119: #{mrb_forward.1} parent=0 // pred_check_branch
    %145 = sbr.rel (0) target = $region121
  $region120: #{mrb_forward.1} parent=0 // pred_region
    _
  $region121: #{mrb_forward.1} parent=0 // pred_fallthru
    _
  // Predicated region
  $region122: #{mrb_forward.1} parent=0 // pred_check
    _
  $region123: #{mrb_forward.1} parent=0 // pred_check_branch
    %147 = sbr.rel (0) target = $region125
  $region124: #{mrb_forward.1} parent=0 // pred_region
    _
  $region125: #{mrb_forward.1} parent=0 // pred_fallthru
    _
  // Predicated region
  $region126: #{mrb_forward.1} parent=0 // pred_check
    _
  $region127: #{mrb_forward.1} parent=0 // pred_check_branch
    %149 = sbr.rel (0) target = $region129
  $region128: #{mrb_forward.1} parent=0 // pred_region
    _
  $region129: #{mrb_forward.1} parent=0 // pred_fallthru
    _
  // Predicated region
  $region130: #{mrb_forward.1} parent=0 // pred_check
    _
  $region131: #{mrb_forward.1} parent=0 // pred_check_branch
    %151 = sbr.rel (0) target = $region133
  $region132: #{mrb_forward.1} parent=0 // pred_region
    _
  $region133: #{mrb_forward.1} parent=0 // pred_fallthru
    _
  // Predicated region
  $region134: #{mrb_forward.1} parent=0 // pred_check
    _
  $region135: #{mrb_forward.1} parent=0 // pred_check_branch
    %153 = sbr.rel (0) target = $region137
  $region136: #{mrb_forward.1} parent=0 // pred_region
    _
  $region137: #{mrb_forward.1} parent=0 // pred_fallthru
    _
  // Predicated region
  $region138: #{mrb_forward.1} parent=0 // pred_check
    _
  $region139: #{mrb_forward.1} parent=0 // pred_check_branch
    %155 = sbr.rel (0) target = $region141
  $region140: #{mrb_forward.1} parent=0 // pred_region
    _
  $region141: #{mrb_forward.1} parent=0 // pred_fallthru
    _
  // Predicated region
  $region142: #{mrb_forward.1} parent=0 // pred_check
    _
  $region143: #{mrb_forward.1} parent=0 // pred_check_branch
    %157 = sbr.rel (0) target = $region145
  $region144: #{mrb_forward.1} parent=0 // pred_region
    _
  $region145: #{mrb_forward.1} parent=0 // pred_fallthru
    _
  // Predicated region
  $region146: #{mrb_forward.1} parent=0 // pred_check
    _
  $region147: #{mrb_forward.1} parent=0 // pred_check_branch
    %159 = sbr.rel (0) target = $region149
  $region148: #{mrb_forward.1} parent=0 // pred_region
    _
  $region149: #{mrb_forward.1} parent=0 // pred_fallthru
    _
  // Predicated region
  $region150: #{mrb_forward.1} parent=0 // pred_check
    _
  $region151: #{mrb_forward.1} parent=0 // pred_check_branch
    %161 = sbr.rel (0) target = $region153
  $region152: #{mrb_forward.1} parent=0 // pred_region
    _
  $region153: #{mrb_forward.1} parent=0 // pred_fallthru
    _
  // Predicated region
  $region154: #{mrb_forward.1} parent=0 // pred_check
    _
  $region155: #{mrb_forward.1} parent=0 // pred_check_branch
    %163 = sbr.rel (0) target = $region157
  $region156: #{mrb_forward.1} parent=0 // pred_region
    _
  $region157: #{mrb_forward.1} parent=0 // pred_fallthru
    _
  // Predicated region
  $region158: #{mrb_forward.1} parent=0 // pred_check
    _
  $region159: #{mrb_forward.1} parent=0 // pred_check_branch
    %165 = sbr.rel (0) target = $region161
  $region160: #{mrb_forward.1} parent=0 // pred_region
    _
  $region161: #{mrb_forward.1} parent=0 // pred_fallthru
    _
  %v167 = vld [vmem:[%s3] sm:$0xff]
  %v168 = vld [vmem:[%s3 + $0x8] sm:$0xff]
  %v169 = vld [vmem:[%s3 + $0x10] sm:$0xff]
  %v170 = vld [vmem:[%s3 + $0x18] sm:$0xff]
  %v171 = vld [vmem:[%s3 + $0x20] sm:$0x1]
  %v172 = vld [vmem:[%s3 + $0x28] sm:$0x1]
  %v173 = vld [vmem:[%s3 + $0x30] sm:$0x1]
  %v174 = vld [vmem:[%s3 + $0x38] sm:$0x1]
  %v175 = vld [vmem:[%s5] sm:$0xff]
  %v176 = vld [vmem:[%s5 + $0x8] sm:$0x1]
  %v177 = vld [vmem:[%s7] sm:$0xff]
  %v178 = vld [vmem:[%s7 + $0x8] sm:$0x1]
  %v179 = vld [vmem:[%s9] sm:$0xff]
  %vm180 = vcmp.gt.f32.partialorder %v179, 0.0
  %v181 = vsub.f32 1.0, %v167
  %v182 = vsub.f32 1.0, %v168
  %v183 = vsub.f32 1.0, %v169
  %v184 = vsub.f32 1.0, %v170
  %v185 = vld [vmem:[%s11] sm:$0x3]
  %vm186 = vcmp.gt.f32.partialorder %v185, 0.0
  %v187 = vsub.f32 1.0, %v175
  %v188 = vld [vmem:[%s13] sm:$0x3]
  %vm189 = vcmp.gt.f32.partialorder %v188, 0.0
  %v190 = vsub.f32 1.0, %v177
  %v191 = vld [vmem:[%s15] sm:$0xf]
  %v192 = vld [vmem:[%s15 + $0x4] sm:$0xf]
  %v193 = vld [vmem:[%s15 + $0x8] sm:$0xf]
  %v194 = vld [vmem:[%s15 + $0xc] sm:$0xf]
  %v195 = vld [vmem:[%s15 + $0x10] sm:$0xf]
  %v196 = vld [vmem:[%s15 + $0x14] sm:$0xf]
  %v197 = vld [vmem:[%s15 + $0x18] sm:$0xf]
  %v198 = vld [vmem:[%s15 + $0x1c] sm:$0xf]
  %v199 = vld [vmem:[%s15 + $0x20] sm:$0xf]
  %v200 = vld [vmem:[%s15 + $0x24] sm:$0xf]
  %v201 = vld [vmem:[%s15 + $0x28] sm:$0xf]
  %v202 = vld [vmem:[%s15 + $0x2c] sm:$0xf]
  %v203 = vld [vmem:[%s15 + $0x30] sm:$0xf]
  %v204 = vld [vmem:[%s15 + $0x34] sm:$0xf]
  %v205 = vld [vmem:[%s15 + $0x38] sm:$0xf]
  %v206 = vld [vmem:[%s15 + $0x3c] sm:$0xf]
  %v207 = vld [vmem:[%s15 + $0x40] sm:$0xf]
  %v208 = vld [vmem:[%s15 + $0x44] sm:$0xf]
  %v209 = vld [vmem:[%s15 + $0x48] sm:$0xf]
  %v210 = vld [vmem:[%s15 + $0x4c] sm:$0xf]
  %v211 = vld [vmem:[%s15 + $0x50] sm:$0xf]
  %v212 = vld [vmem:[%s15 + $0x54] sm:$0xf]
  %v213 = vld [vmem:[%s15 + $0x58] sm:$0xf]
  %v214 = vld [vmem:[%s15 + $0x5c] sm:$0xf]
  %v215 = vld [vmem:[%s15 + $0x60] sm:$0xf]
  %v216 = vld [vmem:[%s15 + $0x64] sm:$0xf]
  %v217 = vld [vmem:[%s15 + $0x68] sm:$0xf]
  %v218 = vld [vmem:[%s15 + $0x6c] sm:$0xf]
  %v219 = vld [vmem:[%s15 + $0x70] sm:$0xf]
  %v220 = vld [vmem:[%s15 + $0x74] sm:$0xf]
  %v221 = vld [vmem:[%s15 + $0x78] sm:$0xf]
  %v222 = vld [vmem:[%s15 + $0x7c] sm:$0xf]
  %v223 = vld [vmem:[%s15 + $0x80] sm:$0xf]
  %v224 = vld [vmem:[%s15 + $0x84] sm:$0xf]
  %v225 = vld [vmem:[%s15 + $0x88] sm:$0xf]
  %v226 = vld [vmem:[%s15 + $0x8c] sm:$0xf]
  %v227 = vld [vmem:[%s15 + $0x90] sm:$0xf]
  %v228 = vld [vmem:[%s15 + $0x94] sm:$0xf]
  %v229 = vld [vmem:[%s15 + $0x98] sm:$0xf]
  %v230 = vld [vmem:[%s15 + $0x9c] sm:$0xf]
  %v231 = vld [vmem:[%s15 + $0xa0] sm:$0xf]
  %v232 = vld [vmem:[%s15 + $0xa4] sm:$0xf]
  %v233 = vld [vmem:[%s15 + $0xa8] sm:$0xf]
  %v234 = vld [vmem:[%s15 + $0xac] sm:$0xf]
  %v235 = vld [vmem:[%s15 + $0xb0] sm:$0xf]
  %v236 = vld [vmem:[%s15 + $0xb4] sm:$0xf]
  %v237 = vld [vmem:[%s15 + $0xb8] sm:$0xf]
  %v238 = vld [vmem:[%s15 + $0xbc] sm:$0xf]
  %v239 = vld [vmem:[%s15 + $0xc0] sm:$0xf]
  %v240 = vld [vmem:[%s15 + $0xc4] sm:$0xf]
  %v241 = vld [vmem:[%s15 + $0xc8] sm:$0xf]
  %v242 = vld [vmem:[%s15 + $0xcc] sm:$0xf]
  %v243 = vld [vmem:[%s15 + $0xd0] sm:$0xf]
  %v244 = vld [vmem:[%s15 + $0xd4] sm:$0xf]
  %v245 = vld [vmem:[%s15 + $0xd8] sm:$0xf]
  %v246 = vld [vmem:[%s15 + $0xdc] sm:$0xf]
  %v247 = vld [vmem:[%s15 + $0xe0] sm:$0xf]
  %v248 = vld [vmem:[%s15 + $0xe4] sm:$0xf]
  %v249 = vld [vmem:[%s15 + $0xe8] sm:$0xf]
  %v250 = vld [vmem:[%s15 + $0xec] sm:$0xf]
  %v251 = vld [vmem:[%s15 + $0xf0] sm:$0xf]
  %v252 = vld [vmem:[%s15 + $0xf4] sm:$0xf]
  %v253 = vld [vmem:[%s15 + $0xf8] sm:$0xf]
  %v254 = vld [vmem:[%s15 + $0xfc] sm:$0xf]
  %v255 = vld [vmem:[%s17] sm:$0xf]
  %v256 = vld [vmem:[%s17 + $0x4] sm:$0xf]
  %v257 = vld [vmem:[%s17 + $0x8] sm:$0xf]
  %v258 = vld [vmem:[%s17 + $0xc] sm:$0xf]
  %v259 = vld [vmem:[%s17 + $0x10] sm:$0xf]
  %v260 = vld [vmem:[%s17 + $0x14] sm:$0xf]
  %v261 = vld [vmem:[%s17 + $0x18] sm:$0xf]
  %v262 = vld [vmem:[%s17 + $0x1c] sm:$0xf]
  %v263 = vld [vmem:[%s17 + $0x20] sm:$0xf]
  %v264 = vld [vmem:[%s17 + $0x24] sm:$0xf]
  %v265 = vld [vmem:[%s17 + $0x28] sm:$0xf]
  %v266 = vld [vmem:[%s17 + $0x2c] sm:$0xf]
  %v267 = vld [vmem:[%s17 + $0x30] sm:$0xf]
  %v268 = vld [vmem:[%s17 + $0x34] sm:$0xf]
  %v269 = vld [vmem:[%s17 + $0x38] sm:$0xf]
  %v270 = vld [vmem:[%s17 + $0x3c] sm:$0xf]
  %v271 = vld [vmem:[%s19] sm:$0xf]
  %v272 = vld [vmem:[%s19 + $0x4] sm:$0xf]
  %v273 = vld [vmem:[%s19 + $0x8] sm:$0xf]
  %v274 = vld [vmem:[%s19 + $0xc] sm:$0xf]
  %v275 = vld [vmem:[%s19 + $0x10] sm:$0xf]
  %v276 = vld [vmem:[%s19 + $0x14] sm:$0xf]
  %v277 = vld [vmem:[%s19 + $0x18] sm:$0xf]
  %v278 = vld [vmem:[%s19 + $0x1c] sm:$0xf]
  %v279 = vld [vmem:[%s19 + $0x20] sm:$0xf]
  %v280 = vld [vmem:[%s19 + $0x24] sm:$0xf]
  %v281 = vld [vmem:[%s19 + $0x28] sm:$0xf]
  %v282 = vld [vmem:[%s19 + $0x2c] sm:$0xf]
  %v283 = vld [vmem:[%s19 + $0x30] sm:$0xf]
  %v284 = vld [vmem:[%s19 + $0x34] sm:$0xf]
  %v285 = vld [vmem:[%s19 + $0x38] sm:$0xf]
  %v286 = vld [vmem:[%s19 + $0x3c] sm:$0xf]
  %v287 = vld [vmem:[%s21] sm:$0xff]
  %v288 = vld [vmem:[%s21 + $0x8] sm:$0xff]
  %v289 = vld [vmem:[%s21 + $0x10] sm:$0xff]
  %v290 = vld [vmem:[%s21 + $0x18] sm:$0xff]
  %v291 = vld [vmem:[%s21 + $0x20] sm:$0xff]
  %v292 = vld [vmem:[%s21 + $0x28] sm:$0xff]
  %v293 = vld [vmem:[%s21 + $0x30] sm:$0xff]
  %v294 = vld [vmem:[%s21 + $0x38] sm:$0xff]
  %v295 = vld [vmem:[%s21 + $0x40] sm:$0xff]
  %v296 = vld [vmem:[%s21 + $0x48] sm:$0xff]
  %v297 = vld [vmem:[%s21 + $0x50] sm:$0xff]
  %v298 = vld [vmem:[%s21 + $0x58] sm:$0xff]
  %v299 = vld [vmem:[%s21 + $0x60] sm:$0xff]
  %v300 = vld [vmem:[%s21 + $0x68] sm:$0xff]
  %v301 = vld [vmem:[%s21 + $0x70] sm:$0xff]
  %v302 = vld [vmem:[%s21 + $0x78] sm:$0xff]
  %v303 = vld [vmem:[%s21 + $0x80] sm:$0xff]
  %v304 = vld [vmem:[%s21 + $0x88] sm:$0xff]
  %v305 = vld [vmem:[%s21 + $0x90] sm:$0xff]
  %v306 = vld [vmem:[%s21 + $0x98] sm:$0xff]
  %v307 = vld [vmem:[%s21 + $0xa0] sm:$0xff]
  %v308 = vld [vmem:[%s21 + $0xa8] sm:$0xff]
  %v309 = vld [vmem:[%s21 + $0xb0] sm:$0xff]
  %v310 = vld [vmem:[%s21 + $0xb8] sm:$0xff]
  %v311 = vld [vmem:[%s21 + $0xc0] sm:$0xff]
  %v312 = vld [vmem:[%s21 + $0xc8] sm:$0xff]
  %v313 = vld [vmem:[%s21 + $0xd0] sm:$0xff]
  %v314 = vld [vmem:[%s21 + $0xd8] sm:$0xff]
  %v315 = vld [vmem:[%s21 + $0xe0] sm:$0xff]
  %v316 = vld [vmem:[%s21 + $0xe8] sm:$0xff]
  %v317 = vld [vmem:[%s21 + $0xf0] sm:$0xff]
  %v318 = vld [vmem:[%s21 + $0xf8] sm:$0xff]
  %v319 = vld [vmem:[%s1] sm:$0xff]
  %v320 = vld [vmem:[%s1 + $0x8] sm:$0xff]
  %323 = vst [vmem:[#allocation1] ss:$2 sm:$0xff] %v319
  %s324 = scalar_lea.vmem [#allocation1], 16
  %325 = vst [vmem:[%s324] ss:$2 sm:$0xff] %v320
  %v326 = vld.sshfl [vmem:[#allocation1] sm:$0xff pattern:$0x75316420]
  %v327 = vld.sshfl [vmem:[#allocation1 + $0x8] sm:$0xff pattern:$0x75316420]
  %v328 = vld.sshfl [vmem:[#allocation1 + $0x10] sm:$0xff pattern:$0x75316420]
  %v329 = vld.sshfl [vmem:[#allocation1 + $0x18] sm:$0xff pattern:$0x75316420]
  %v334 = vpack.c.bf16 %v326, %v326
  %v335 = vpack.c.bf16 %v327, %v327
  %v336 = vpack.c.bf16 %v328, %v328
  %v337 = vpack.c.bf16 %v329, %v329
  %v402 = vunpack.c.l.b16 %v191
  %v403 = vunpack.c.l.b16 %v192
  %v404 = vunpack.c.l.b16 %v193
  %v405 = vunpack.c.l.b16 %v194
  %v406 = vunpack.c.l.b16 %v195
  %v407 = vunpack.c.l.b16 %v196
  %v408 = vunpack.c.l.b16 %v197
  %v409 = vunpack.c.l.b16 %v198
  %v410 = vunpack.c.l.b16 %v199
  %v411 = vunpack.c.l.b16 %v200
  %v412 = vunpack.c.l.b16 %v201
  %v413 = vunpack.c.l.b16 %v202
  %v414 = vunpack.c.l.b16 %v203
  %v415 = vunpack.c.l.b16 %v204
  %v416 = vunpack.c.l.b16 %v205
  %v417 = vunpack.c.l.b16 %v206
  %v418 = vunpack.c.l.b16 %v207
  %v419 = vunpack.c.l.b16 %v208
  %v420 = vunpack.c.l.b16 %v209
  %v421 = vunpack.c.l.b16 %v210
  %v422 = vunpack.c.l.b16 %v211
  %v423 = vunpack.c.l.b16 %v212
  %v424 = vunpack.c.l.b16 %v213
  %v425 = vunpack.c.l.b16 %v214
  %v426 = vunpack.c.l.b16 %v215
  %v427 = vunpack.c.l.b16 %v216
  %v428 = vunpack.c.l.b16 %v217
  %v429 = vunpack.c.l.b16 %v218
  %v430 = vunpack.c.l.b16 %v219
  %v431 = vunpack.c.l.b16 %v220
  %v432 = vunpack.c.l.b16 %v221
  %v433 = vunpack.c.l.b16 %v222
  %v434 = vunpack.c.l.b16 %v223
  %v435 = vunpack.c.l.b16 %v224
  %v436 = vunpack.c.l.b16 %v225
  %v437 = vunpack.c.l.b16 %v226
  %v438 = vunpack.c.l.b16 %v227
  %v439 = vunpack.c.l.b16 %v228
  %v440 = vunpack.c.l.b16 %v229
  %v441 = vunpack.c.l.b16 %v230
  %v442 = vunpack.c.l.b16 %v231
  %v443 = vunpack.c.l.b16 %v232
  %v444 = vunpack.c.l.b16 %v233
  %v445 = vunpack.c.l.b16 %v234
  %v446 = vunpack.c.l.b16 %v235
  %v447 = vunpack.c.l.b16 %v236
  %v448 = vunpack.c.l.b16 %v237
  %v449 = vunpack.c.l.b16 %v238
  %v450 = vunpack.c.l.b16 %v239
  %v451 = vunpack.c.l.b16 %v240
  %v452 = vunpack.c.l.b16 %v241
  %v453 = vunpack.c.l.b16 %v242
  %v454 = vunpack.c.l.b16 %v243
  %v455 = vunpack.c.l.b16 %v244
  %v456 = vunpack.c.l.b16 %v245
  %v457 = vunpack.c.l.b16 %v246
  %v458 = vunpack.c.l.b16 %v247
  %v459 = vunpack.c.l.b16 %v248
  %v460 = vunpack.c.l.b16 %v249
  %v461 = vunpack.c.l.b16 %v250
  %v462 = vunpack.c.l.b16 %v251
  %v463 = vunpack.c.l.b16 %v252
  %v464 = vunpack.c.l.b16 %v253
  %v465 = vunpack.c.l.b16 %v254
  %v466 = vpack.c.b16 %v403, %v402
  %v467 = vpack.c.b16 %v405, %v404
  %v468 = vpack.c.b16 %v407, %v406
  %v469 = vpack.c.b16 %v409, %v408
  %v470 = vpack.c.b16 %v411, %v410
  %v471 = vpack.c.b16 %v413, %v412
  %v472 = vpack.c.b16 %v415, %v414
  %v473 = vpack.c.b16 %v417, %v416
  %v474 = vpack.c.b16 %v419, %v418
  %v475 = vpack.c.b16 %v421, %v420
  %v476 = vpack.c.b16 %v423, %v422
  %v477 = vpack.c.b16 %v425, %v424
  %v478 = vpack.c.b16 %v427, %v426
  %v479 = vpack.c.b16 %v429, %v428
  %v480 = vpack.c.b16 %v431, %v430
  %v481 = vpack.c.b16 %v433, %v432
  %v482 = vpack.c.b16 %v435, %v434
  %v483 = vpack.c.b16 %v437, %v436
  %v484 = vpack.c.b16 %v439, %v438
  %v485 = vpack.c.b16 %v441, %v440
  %v486 = vpack.c.b16 %v443, %v442
  %v487 = vpack.c.b16 %v445, %v444
  %v488 = vpack.c.b16 %v447, %v446
  %v489 = vpack.c.b16 %v449, %v448
  %v490 = vpack.c.b16 %v451, %v450
  %v491 = vpack.c.b16 %v453, %v452
  %v492 = vpack.c.b16 %v455, %v454
  %v493 = vpack.c.b16 %v457, %v456
  %v494 = vpack.c.b16 %v459, %v458
  %v495 = vpack.c.b16 %v461, %v460
  %v496 = vpack.c.b16 %v463, %v462
  %v497 = vpack.c.b16 %v465, %v464
  %530 = vmatpush.bf16.msra.mxu0 %v473
  %531 = vmatpush.bf16.msra.mxu0 %v472
  %532 = vmatpush.bf16.msra.mxu0 %v471
  %533 = vmatpush.bf16.msra.mxu0 %v470
  %534 = vmatpush.bf16.msra.mxu0 %v469
  %535 = vmatpush.bf16.msra.mxu0 %v468
  %536 = vmatpush.bf16.msra.mxu0 %v467
  %537 = vmatpush.bf16.msra.mxu0 %v466
  %538 = vmatmul.bf16.gmra.mxu0 %v334
  %v539 = vpop.f32.mrf.mxu0
  %v540 = vadd.f32 0.0, %v539
  %v541 = vpop.f32.mrf.mxu0
  %542 = vdwg.mxu0
  %543 = vmatpush.bf16.msra.mxu0 %v481
  %544 = vmatpush.bf16.msra.mxu0 %v480
  %545 = vmatpush.bf16.msra.mxu0 %v479
  %546 = vmatpush.bf16.msra.mxu0 %v478
  %547 = vmatpush.bf16.msra.mxu0 %v477
  %548 = vmatpush.bf16.msra.mxu0 %v476
  %549 = vmatpush.bf16.msra.mxu0 %v475
  %550 = vmatpush.bf16.msra.mxu0 %v474
  %551 = vmatmul.bf16.gmra.mxu0 %v335
  %v552 = vpop.f32.mrf.mxu0
  %v553 = vadd.f32 %v540, %v552
  %v554 = vpop.f32.mrf.mxu0
  %555 = vdwg.mxu0
  %556 = vmatpush.bf16.msra.mxu0 %v489
  %557 = vmatpush.bf16.msra.mxu0 %v488
  %558 = vmatpush.bf16.msra.mxu0 %v487
  %559 = vmatpush.bf16.msra.mxu0 %v486
  %560 = vmatpush.bf16.msra.mxu0 %v485
  %561 = vmatpush.bf16.msra.mxu0 %v484
  %562 = vmatpush.bf16.msra.mxu0 %v483
  %563 = vmatpush.bf16.msra.mxu0 %v482
  %564 = vmatmul.bf16.gmra.mxu0 %v336
  %v565 = vpop.f32.mrf.mxu0
  %v566 = vadd.f32 %v553, %v565
  %v567 = vpop.f32.mrf.mxu0
  %568 = vdwg.mxu0
  %569 = vmatpush.bf16.msra.mxu0 %v497
  %570 = vmatpush.bf16.msra.mxu0 %v496
  %571 = vmatpush.bf16.msra.mxu0 %v495
  %572 = vmatpush.bf16.msra.mxu0 %v494
  %573 = vmatpush.bf16.msra.mxu0 %v493
  %574 = vmatpush.bf16.msra.mxu0 %v492
  %575 = vmatpush.bf16.msra.mxu0 %v491
  %576 = vmatpush.bf16.msra.mxu0 %v490
  %577 = vmatmul.bf16.gmra.mxu0 %v337
  %v578 = vpop.f32.mrf.mxu0
  %v579 = vadd.f32 %v566, %v578
  %v580 = vpop.f32.mrf.mxu0
  %581 = vdwg.mxu0
  %v582 = vld [vmem:[%s23] sm:$0xf]
  %v583 = vpack.c.bf16 %v579, %v579
  %vm584 = vcmask 31744
  %v586 = vsel %vm584, %v582, 0
  %vm588 = vcmask 1041408
  %v590 = vsel %vm588, %v583, 0
  %592 = vmatpush.bf16.msra.mxu0 0
  %593 = vmatpush.bf16.msra.mxu0 0
  %594 = vmatpush.bf16.msra.mxu0 0
  %595 = vmatpush.bf16.msra.mxu0 0
  %596 = vmatpush.bf16.msra.mxu0 0
  %597 = vmatpush.bf16.msra.mxu0 0
  %598 = vmatpush.bf16.msra.mxu0 0
  %599 = vmatpush.bf16.msra.mxu0 %v590
  %600 = vmatmul.bf16.gmra.mxu0 %v586
  %v601 = vpop.f32.mrf.mxu0
  %v602 = vadd.f32 0.0, %v601
  %v603 = vpop.f32.mrf.mxu0
  %604 = vdwg.mxu0
  %v605 = vld [vmem:[%s27] sm:$0xf]
  %v606 = vld [vmem:[%s27 + $0x4] sm:$0xf]
  %v607 = vld [vmem:[%s25] sm:$0xf]
  %v609 = vsel %vm584, %v607, 0
  %611 = vmatpush.bf16.msra.mxu0 0
  %612 = vmatpush.bf16.msra.mxu0 0
  %613 = vmatpush.bf16.msra.mxu0 0
  %614 = vmatpush.bf16.msra.mxu0 0
  %615 = vmatpush.bf16.msra.mxu0 0
  %616 = vmatpush.bf16.msra.mxu0 0
  %617 = vmatpush.bf16.msra.mxu0 0
  %618 = vmatpush.bf16.msra.mxu0 %v590
  %619 = vmatmul.bf16.gmra.mxu0 %v609
  %v620 = vpop.f32.mrf.mxu0
  %v621 = vadd.f32 0.0, %v620
  %v622 = vpop.f32.mrf.mxu0
  %623 = vdwg.mxu0
  %v624 = vpack.c.bf16 %v621, %v621
  %v641 = vunpack.c.l.b16 %v255
  %v642 = vunpack.c.l.b16 %v256
  %v643 = vunpack.c.l.b16 %v257
  %v644 = vunpack.c.l.b16 %v258
  %v645 = vunpack.c.l.b16 %v259
  %v646 = vunpack.c.l.b16 %v260
  %v647 = vunpack.c.l.b16 %v261
  %v648 = vunpack.c.l.b16 %v262
  %v649 = vunpack.c.l.b16 %v263
  %v650 = vunpack.c.l.b16 %v264
  %v651 = vunpack.c.l.b16 %v265
  %v652 = vunpack.c.l.b16 %v266
  %v653 = vunpack.c.l.b16 %v267
  %v654 = vunpack.c.l.b16 %v268
  %v655 = vunpack.c.l.b16 %v269
  %v656 = vunpack.c.l.b16 %v270
  %v657 = vpack.c.b16 %v642, %v641
  %v658 = vpack.c.b16 %v644, %v643
  %v659 = vpack.c.b16 %v646, %v645
  %v660 = vpack.c.b16 %v648, %v647
  %v661 = vpack.c.b16 %v650, %v649
  %v662 = vpack.c.b16 %v652, %v651
  %v663 = vpack.c.b16 %v654, %v653
  %v664 = vpack.c.b16 %v656, %v655
  %673 = vmatpush.bf16.msra.mxu0 %v664
  %674 = vmatpush.bf16.msra.mxu0 %v663
  %675 = vmatpush.bf16.msra.mxu0 %v662
  %676 = vmatpush.bf16.msra.mxu0 %v661
  %677 = vmatpush.bf16.msra.mxu0 %v660
  %678 = vmatpush.bf16.msra.mxu0 %v659
  %679 = vmatpush.bf16.msra.mxu0 %v658
  %680 = vmatpush.bf16.msra.mxu0 %v657
  %681 = vmatmul.bf16.gmra.mxu0 %v624
  %v682 = vpop.f32.mrf.mxu0
  %v683 = vadd.f32 0.0, %v682
  %v684 = vpop.f32.mrf.mxu0
  %685 = vdwg.mxu0
  %v686 = vpack.c.bf16 %v683, %v683
  %v689 = vunpack.c.l.b16 %v605
  %v690 = vunpack.c.l.b16 %v606
  %v691 = vpack.c.b16 %v690, %v689
  %vm692 = vcmask 64512
  %v694 = vsel %vm692, %v691, 0
  %vm696 = vcmask 1043456
  %v698 = vsel %vm696, %v686, 0
  %700 = vmatpush.bf16.msra.mxu0 0
  %701 = vmatpush.bf16.msra.mxu0 0
  %702 = vmatpush.bf16.msra.mxu0 0
  %703 = vmatpush.bf16.msra.mxu0 0
  %704 = vmatpush.bf16.msra.mxu0 0
  %705 = vmatpush.bf16.msra.mxu0 0
  %706 = vmatpush.bf16.msra.mxu0 0
  %707 = vmatpush.bf16.msra.mxu0 %v698
  %708 = vmatmul.bf16.gmra.mxu0 %v694
  %v709 = vpop.f32.mrf.mxu0
  %v710 = vadd.f32 0.0, %v709
  %v711 = vpop.f32.mrf.mxu0
  %v712 = vadd.f32 0.0, %v711
  %713 = vdwg.mxu0
  %v714 = vld [vmem:[%s39] sm:$0x3]
  %v715 = vld [vmem:[%s41] sm:$0x3]
  %v716 = vld [vmem:[%s43] sm:$0xf]
  %v717 = vld [vmem:[%s45] sm:$0xf]
  %v718 = vld [vmem:[%s47] sm:$0xf]
  %v719 = vld [vmem:[%s49] sm:$0xf]
  %v720 = vld [vmem:[%s51] sm:$0xf]
  %v721 = vld [vmem:[%s53] sm:$0xff]
  %v722 = vld [vmem:[%s55] sm:$0xff]
  %v723 = vld [vmem:[%s57] sm:$0xff]
  %v724 = vld [vmem:[%s59] sm:$0xff]
  %v725 = vld [vmem:[%s59 + $0x8] sm:$0xff]
  %v726 = vld [vmem:[%s61] sm:$0xff]
  %v727 = vld [vmem:[%s61 + $0x8] sm:$0xff]
  %v728 = vld [vmem:[%s63] sm:$0xff]
  %v729 = vld [vmem:[%s63 + $0x8] sm:$0xff]
  %v730 = vld [vmem:[%s65] sm:$0xff]
  %v731 = vld [vmem:[%s65 + $0x8] sm:$0xff]
  %v732 = vld [vmem:[%s67] sm:$0xff]
  %v733 = vld [vmem:[%s67 + $0x8] sm:$0xff]
  %v734 = vld [vmem:[%s69] sm:$0xf]
  %v735 = vld [vmem:[%s71] sm:$0xff]
  %v736 = vld [vmem:[%s73] sm:$0xff]
  %v737 = vld [vmem:[%s75] sm:$0xf]
  %v738 = vld [vmem:[%s77] sm:$0xf]
  %v739 = vld [vmem:[%s79] sm:$0xf]
  %740 = vst [vmem:[#allocation1] ss:$2 sm:$0xff] %v319
  %s741 = scalar_lea.vmem [#allocation1], 16
  %742 = vst [vmem:[%s741] ss:$2 sm:$0xff] %v320
  %v743 = vld.sshfl [vmem:[#allocation1] sm:$0xff pattern:$0x75316420]
  %v744 = vld.sshfl [vmem:[#allocation1 + $0x8] sm:$0xff pattern:$0x75316420]
  %v745 = vld.sshfl [vmem:[#allocation1 + $0x10] sm:$0xff pattern:$0x75316420]
  %v746 = vld.sshfl [vmem:[#allocation1 + $0x18] sm:$0xff pattern:$0x75316420]
  %751 = vrot.lane.b32.xlu0 %v743, 17
  %v752 = vpop.permute.xlu0 %751
  %753 = vrot.lane.b32.xlu0 %v744, 17
  %v754 = vpop.permute.xlu0 %753
  %755 = vrot.lane.b32.xlu0 %v745, 17
  %v756 = vpop.permute.xlu0 %755
  %757 = vrot.lane.b32.xlu0 %v746, 17
  %v758 = vpop.permute.xlu0 %757
  %v759 = vlaneseq
  %v760 = vand.u32 %v759, 127
  %vm761 = vcmp.lt.s32.totalorder %v760, 17
  %v762 = vsel %vm761, %v756, %v758
  %v763 = vsel %vm761, %v754, %v756
  %v764 = vsel %vm761, %v752, %v754
  %v765 = vsel %vm761, %v758, %v752
  %v766 = vperm.slane %v167, 0
  %v767 = vperm.slane %v168, 0
  %v768 = vperm.slane %v169, 0
  %v769 = vperm.slane %v170, 0
  %v770 = vmul.f32 %v765, %v766
  %v771 = vmul.f32 %v764, %v767
  %v772 = vmul.f32 %v763, %v768
  %v773 = vmul.f32 %v762, %v769
  %774 = vst [vmem:[#allocation1] ss:$2 sm:$0xff] %v319
  %s775 = scalar_lea.vmem [#allocation1], 16
  %776 = vst [vmem:[%s775] ss:$2 sm:$0xff] %v320
  %v777 = vld.sshfl [vmem:[#allocation1] sm:$0xff pattern:$0x75316420]
  %v778 = vld.sshfl [vmem:[#allocation1 + $0x8] sm:$0xff pattern:$0x75316420]
  %v779 = vld.sshfl [vmem:[#allocation1 + $0x10] sm:$0xff pattern:$0x75316420]
  %v780 = vld.sshfl [vmem:[#allocation1 + $0x18] sm:$0xff pattern:$0x75316420]
  %785 = vrot.lane.b32.xlu0 %v777, 16
  %v786 = vpop.permute.xlu0 %785
  %787 = vrot.lane.b32.xlu0 %v778, 16
  %v788 = vpop.permute.xlu0 %787
  %789 = vrot.lane.b32.xlu0 %v779, 16
  %v790 = vpop.permute.xlu0 %789
  %791 = vrot.lane.b32.xlu0 %v780, 16
  %v792 = vpop.permute.xlu0 %791
  %vm793 = vcmp.lt.s32.totalorder %v760, 16
  %v794 = vsel %vm793, %v790, %v792
  %v795 = vsel %vm793, %v788, %v790
  %v796 = vsel %vm793, %v786, %v788
  %v797 = vsel %vm793, %v792, %v786
  %v798 = vperm.slane %v167, 1
  %v799 = vperm.slane %v168, 1
  %v800 = vperm.slane %v169, 1
  %v801 = vperm.slane %v170, 1
  %v802 = vmul.f32 %v797, %v798
  %v803 = vmul.f32 %v796, %v799
  %v804 = vmul.f32 %v795, %v800
  %v805 = vmul.f32 %v794, %v801
  %806 = vst [vmem:[#allocation1] ss:$2 sm:$0xff] %v319
  %s807 = scalar_lea.vmem [#allocation1], 16
  %808 = vst [vmem:[%s807] ss:$2 sm:$0xff] %v320
  %v809 = vld.sshfl [vmem:[#allocation1] sm:$0xff pattern:$0x75316420]
  %v810 = vld.sshfl [vmem:[#allocation1 + $0x8] sm:$0xff pattern:$0x75316420]
  %v811 = vld.sshfl [vmem:[#allocation1 + $0x10] sm:$0xff pattern:$0x75316420]
  %v812 = vld.sshfl [vmem:[#allocation1 + $0x18] sm:$0xff pattern:$0x75316420]
  %817 = vrot.lane.b32.xlu0 %v809, 15
  %v818 = vpop.permute.xlu0 %817
  %819 = vrot.lane.b32.xlu0 %v810, 15
  %v820 = vpop.permute.xlu0 %819
  %821 = vrot.lane.b32.xlu0 %v811, 15
  %v822 = vpop.permute.xlu0 %821
  %823 = vrot.lane.b32.xlu0 %v812, 15
  %v824 = vpop.permute.xlu0 %823
  %vm825 = vcmp.lt.s32.totalorder %v760, 15
  %v826 = vsel %vm825, %v822, %v824
  %v827 = vsel %vm825, %v820, %v822
  %v828 = vsel %vm825, %v818, %v820
  %v829 = vsel %vm825, %v824, %v818
  %v830 = vperm.slane %v167, 2
  %v831 = vperm.slane %v168, 2
  %v832 = vperm.slane %v169, 2
  %v833 = vperm.slane %v170, 2
  %v834 = vmul.f32 %v829, %v830
  %v835 = vmul.f32 %v828, %v831
  %v836 = vmul.f32 %v827, %v832
  %v837 = vmul.f32 %v826, %v833
  %838 = vst [vmem:[#allocation1] ss:$2 sm:$0xff] %v319
  %s839 = scalar_lea.vmem [#allocation1], 16
  %840 = vst [vmem:[%s839] ss:$2 sm:$0xff] %v320
  %v841 = vld.sshfl [vmem:[#allocation1] sm:$0xff pattern:$0x75316420]
  %v842 = vld.sshfl [vmem:[#allocation1 + $0x8] sm:$0xff pattern:$0x75316420]
  %v843 = vld.sshfl [vmem:[#allocation1 + $0x10] sm:$0xff pattern:$0x75316420]
  %v844 = vld.sshfl [vmem:[#allocation1 + $0x18] sm:$0xff pattern:$0x75316420]
  %849 = vrot.lane.b32.xlu0 %v841, 1
  %v850 = vpop.permute.xlu0 %849
  %851 = vrot.lane.b32.xlu0 %v842, 1
  %v852 = vpop.permute.xlu0 %851
  %853 = vrot.lane.b32.xlu0 %v843, 1
  %v854 = vpop.permute.xlu0 %853
  %855 = vrot.lane.b32.xlu0 %v844, 1
  %v856 = vpop.permute.xlu0 %855
  %vm857 = vcmp.lt.s32.totalorder %v760, 1
  %v858 = vsel %vm857, %v854, %v856
  %v859 = vsel %vm857, %v852, %v854
  %v860 = vsel %vm857, %v850, %v852
  %v861 = vsel %vm857, %v856, %v850
  %v862 = vperm.slane %v167, 3
  %v863 = vperm.slane %v168, 3
  %v864 = vperm.slane %v169, 3
  %v865 = vperm.slane %v170, 3
  %v866 = vmul.f32 %v861, %v862
  %v867 = vmul.f32 %v860, %v863
  %v868 = vmul.f32 %v859, %v864
  %v869 = vmul.f32 %v858, %v865
  %v870 = vperm.slane %v167, 4
  %v871 = vperm.slane %v168, 4
  %v872 = vperm.slane %v169, 4
  %v873 = vperm.slane %v170, 4
  %v878 = vrot.slane %v871, 4
  %v879 = vrot.slane %v873, 4
  %v880 = vsel %vm696, %v870, %v878
  %v881 = vsel %vm696, %v872, %v879
  %v884 = vmul.f32 %v319, %v880
  %v885 = vmul.f32 %v320, %v881
  %886 = vst [vmem:[#allocation1] ss:$2 sm:$0xff] %v319
  %s887 = scalar_lea.vmem [#allocation1], 16
  %888 = vst [vmem:[%s887] ss:$2 sm:$0xff] %v320
  %v889 = vld.sshfl [vmem:[#allocation1] sm:$0xff pattern:$0x75316420]
  %v890 = vld.sshfl [vmem:[#allocation1 + $0x8] sm:$0xff pattern:$0x75316420]
  %v891 = vld.sshfl [vmem:[#allocation1 + $0x10] sm:$0xff pattern:$0x75316420]
  %v892 = vld.sshfl [vmem:[#allocation1 + $0x18] sm:$0xff pattern:$0x75316420]
  %897 = vrot.lane.b32.xlu0 %v889, 127
  %v898 = vpop.permute.xlu0 %897
  %899 = vrot.lane.b32.xlu0 %v890, 127
  %v900 = vpop.permute.xlu0 %899
  %901 = vrot.lane.b32.xlu0 %v891, 127
  %v902 = vpop.permute.xlu0 %901
  %903 = vrot.lane.b32.xlu0 %v892, 127
  %v904 = vpop.permute.xlu0 %903
  %vm905 = vcmp.lt.s32.totalorder %v760, 127
  %v906 = vsel %vm905, %v902, %v904
  %v907 = vsel %vm905, %v900, %v902
  %v908 = vsel %vm905, %v898, %v900
  %v909 = vsel %vm905, %v904, %v898
  %v910 = vperm.slane %v167, 5
  %v911 = vperm.slane %v168, 5
  %v912 = vperm.slane %v169, 5
  %v913 = vperm.slane %v170, 5
  %v914 = vmul.f32 %v908, %v910
  %v915 = vmul.f32 %v907, %v911
  %v916 = vmul.f32 %v906, %v912
  %v917 = vmul.f32 %v909, %v913
  %918 = vst [vmem:[#allocation1] ss:$2 sm:$0xff] %v319
  %s919 = scalar_lea.vmem [#allocation1], 16
  %920 = vst [vmem:[%s919] ss:$2 sm:$0xff] %v320
  %v921 = vld.sshfl [vmem:[#allocation1] sm:$0xff pattern:$0x75316420]
  %v922 = vld.sshfl [vmem:[#allocation1 + $0x8] sm:$0xff pattern:$0x75316420]
  %v923 = vld.sshfl [vmem:[#allocation1 + $0x10] sm:$0xff pattern:$0x75316420]
  %v924 = vld.sshfl [vmem:[#allocation1 + $0x18] sm:$0xff pattern:$0x75316420]
  %929 = vrot.lane.b32.xlu0 %v921, 113
  %v930 = vpop.permute.xlu0 %929
  %931 = vrot.lane.b32.xlu0 %v922, 113
  %v932 = vpop.permute.xlu0 %931
  %933 = vrot.lane.b32.xlu0 %v923, 113
  %v934 = vpop.permute.xlu0 %933
  %935 = vrot.lane.b32.xlu0 %v924, 113
  %v936 = vpop.permute.xlu0 %935
  %vm937 = vcmp.lt.s32.totalorder %v760, 113
  %v938 = vsel %vm937, %v934, %v936
  %v939 = vsel %vm937, %v932, %v934
  %v940 = vsel %vm937, %v930, %v932
  %v941 = vsel %vm937, %v936, %v930
  %v942 = vperm.slane %v167, 6
  %v943 = vperm.slane %v168, 6
  %v944 = vperm.slane %v169, 6
  %v945 = vperm.slane %v170, 6
  %v946 = vmul.f32 %v940, %v942
  %v947 = vmul.f32 %v939, %v943
  %v948 = vmul.f32 %v938, %v944
  %v949 = vmul.f32 %v941, %v945
  %950 = vst [vmem:[#allocation1] ss:$2 sm:$0xff] %v319
  %s951 = scalar_lea.vmem [#allocation1], 16
  %952 = vst [vmem:[%s951] ss:$2 sm:$0xff] %v320
  %v953 = vld.sshfl [vmem:[#allocation1] sm:$0xff pattern:$0x75316420]
  %v954 = vld.sshfl [vmem:[#allocation1 + $0x8] sm:$0xff pattern:$0x75316420]
  %v955 = vld.sshfl [vmem:[#allocation1 + $0x10] sm:$0xff pattern:$0x75316420]
  %v956 = vld.sshfl [vmem:[#allocation1 + $0x18] sm:$0xff pattern:$0x75316420]
  %961 = vrot.lane.b32.xlu0 %v953, 112
  %v962 = vpop.permute.xlu0 %961
  %963 = vrot.lane.b32.xlu0 %v954, 112
  %v964 = vpop.permute.xlu0 %963
  %965 = vrot.lane.b32.xlu0 %v955, 112
  %v966 = vpop.permute.xlu0 %965
  %967 = vrot.lane.b32.xlu0 %v956, 112
  %v968 = vpop.permute.xlu0 %967
  %vm969 = vcmp.lt.s32.totalorder %v760, 112
  %v970 = vsel %vm969, %v966, %v968
  %v971 = vsel %vm969, %v964, %v966
  %v972 = vsel %vm969, %v962, %v964
  %v973 = vsel %vm969, %v968, %v962
  %v974 = vperm.slane %v167, 7
  %v975 = vperm.slane %v168, 7
  %v976 = vperm.slane %v169, 7
  %v977 = vperm.slane %v170, 7
  %v978 = vmul.f32 %v972, %v974
  %v979 = vmul.f32 %v971, %v975
  %v980 = vmul.f32 %v970, %v976
  %v981 = vmul.f32 %v973, %v977
  %982 = vst [vmem:[#allocation1] ss:$2 sm:$0xff] %v319
  %s983 = scalar_lea.vmem [#allocation1], 16
  %984 = vst [vmem:[%s983] ss:$2 sm:$0xff] %v320
  %v985 = vld.sshfl [vmem:[#allocation1] sm:$0xff pattern:$0x75316420]
  %v986 = vld.sshfl [vmem:[#allocation1 + $0x8] sm:$0xff pattern:$0x75316420]
  %v987 = vld.sshfl [vmem:[#allocation1 + $0x10] sm:$0xff pattern:$0x75316420]
  %v988 = vld.sshfl [vmem:[#allocation1 + $0x18] sm:$0xff pattern:$0x75316420]
  %993 = vrot.lane.b32.xlu0 %v985, 111
  %v994 = vpop.permute.xlu0 %993
  %995 = vrot.lane.b32.xlu0 %v986, 111
  %v996 = vpop.permute.xlu0 %995
  %997 = vrot.lane.b32.xlu0 %v987, 111
  %v998 = vpop.permute.xlu0 %997
  %999 = vrot.lane.b32.xlu0 %v988, 111
  %v1000 = vpop.permute.xlu0 %999
  %vm1001 = vcmp.lt.s32.totalorder %v760, 111
  %v1002 = vsel %vm1001, %v998, %v1000
  %v1003 = vsel %vm1001, %v996, %v998
  %v1004 = vsel %vm1001, %v994, %v996
  %v1005 = vsel %vm1001, %v1000, %v994
  %v1006 = vperm.slane %v171, 0
  %v1007 = vperm.slane %v172, 0
  %v1008 = vperm.slane %v173, 0
  %v1009 = vperm.slane %v174, 0
  %v1010 = vmul.f32 %v1004, %v1006
  %v1011 = vmul.f32 %v1003, %v1007
  %v1012 = vmul.f32 %v1002, %v1008
  %v1013 = vmul.f32 %v1005, %v1009
  %v1018 = vrot.slane %v802, 4
  %v1019 = vrot.slane %v803, 4
  %v1020 = vrot.slane %v804, 4
  %v1021 = vrot.slane %v805, 4
  %v1030 = vrot.slane %v866, 4
  %v1031 = vrot.slane %v867, 4
  %v1032 = vrot.slane %v868, 4
  %v1033 = vrot.slane %v869, 4
  %1040 = vst [vmem:[#allocation1] ss:$2 sm:$0xff] %v884
  %s1041 = scalar_lea.vmem [#allocation1], 16
  %1042 = vst [vmem:[%s1041] ss:$2 sm:$0xff] %v885
  %v1043 = vld.sshfl [vmem:[#allocation1] sm:$0xff pattern:$0x75316420]
  %v1044 = vld.sshfl [vmem:[#allocation1 + $0x8] sm:$0xff pattern:$0x75316420]
  %v1045 = vld.sshfl [vmem:[#allocation1 + $0x10] sm:$0xff pattern:$0x75316420]
  %v1046 = vld.sshfl [vmem:[#allocation1 + $0x18] sm:$0xff pattern:$0x75316420]
  %v1055 = vrot.slane %v914, 4
  %v1056 = vrot.slane %v915, 4
  %v1057 = vrot.slane %v916, 4
  %v1058 = vrot.slane %v917, 4
  %v1067 = vrot.slane %v978, 4
  %v1068 = vrot.slane %v979, 4
  %v1069 = vrot.slane %v980, 4
  %v1070 = vrot.slane %v981, 4
  %v1075 = vsel %vm696, %v770, %v1018
  %v1076 = vsel %vm696, %v771, %v1019
  %v1077 = vsel %vm696, %v772, %v1020
  %v1078 = vsel %vm696, %v773, %v1021
  %v1079 = vsel %vm696, %v834, %v1030
  %v1080 = vsel %vm696, %v835, %v1031
  %v1081 = vsel %vm696, %v836, %v1032
  %v1082 = vsel %vm696, %v837, %v1033
  %v1083 = vsel %vm696, %v1043, %v1055
  %v1084 = vsel %vm696, %v1044, %v1056
  %v1085 = vsel %vm696, %v1045, %v1057
  %v1086 = vsel %vm696, %v1046, %v1058
  %v1087 = vsel %vm696, %v946, %v1067
  %v1088 = vsel %vm696, %v947, %v1068
  %v1089 = vsel %vm696, %v948, %v1069
  %v1090 = vsel %vm696, %v949, %v1070
  %v1091 = vpack.c.bf16 %v1079, %v1075
  %v1092 = vpack.c.bf16 %v1080, %v1076
  %v1093 = vpack.c.bf16 %v1081, %v1077
  %v1094 = vpack.c.bf16 %v1082, %v1078
  %v1095 = vpack.c.bf16 %v1087, %v1083
  %v1096 = vpack.c.bf16 %v1088, %v1084
  %v1097 = vpack.c.bf16 %v1089, %v1085
  %v1098 = vpack.c.bf16 %v1090, %v1086
  %v1099 = vpack.c.bf16 %v1010, %v1010
  %v1100 = vpack.c.bf16 %v1011, %v1011
  %v1101 = vpack.c.bf16 %v1012, %v1012
  %v1102 = vpack.c.bf16 %v1013, %v1013
  %vm1103 = vcmask 293888
  %v1105 = vsel %vm1103, %v714, 0
  %v1108 = vsel %vm588, %v1099, 0
  %v1111 = vsel %vm588, %v1100, 0
  %v1114 = vsel %vm588, %v1101, 0
  %v1117 = vsel %vm588, %v1102, 0
  %1119 = vmatpush.bf16.msra.mxu0 0
  %1120 = vmatpush.bf16.msra.mxu0 0
  %1121 = vmatpush.bf16.msra.mxu0 0
  %1122 = vmatpush.bf16.msra.mxu0 0
  %1123 = vmatpush.bf16.msra.mxu0 0
  %1124 = vmatpush.bf16.msra.mxu0 %v1108
  %1125 = vmatpush.bf16.msra.mxu0 %v1095
  %1126 = vmatpush.bf16.msra.mxu0 %v1091
  %1127 = vmatmul.bf16.gmra.mxu0 %v1105
  %v1128 = vpop.f32.mrf.mxu0
  %v1129 = vadd.f32 0.0, %v1128
  %v1130 = vpop.f32.mrf.mxu0
  %1131 = vdwg.mxu0
  %1132 = vmatpush.bf16.msra.mxu0 0
  %1133 = vmatpush.bf16.msra.mxu0 0
  %1134 = vmatpush.bf16.msra.mxu0 0
  %1135 = vmatpush.bf16.msra.mxu0 0
  %1136 = vmatpush.bf16.msra.mxu0 0
  %1137 = vmatpush.bf16.msra.mxu0 %v1111
  %1138 = vmatpush.bf16.msra.mxu0 %v1096
  %1139 = vmatpush.bf16.msra.mxu0 %v1092
  %1140 = vmatmul.bf16.gmra.mxu0 %v1105
  %v1141 = vpop.f32.mrf.mxu0
  %v1142 = vadd.f32 0.0, %v1141
  %v1143 = vpop.f32.mrf.mxu0
  %1144 = vdwg.mxu0
  %1145 = vmatpush.bf16.msra.mxu0 0
  %1146 = vmatpush.bf16.msra.mxu0 0
  %1147 = vmatpush.bf16.msra.mxu0 0
  %1148 = vmatpush.bf16.msra.mxu0 0
  %1149 = vmatpush.bf16.msra.mxu0 0
  %1150 = vmatpush.bf16.msra.mxu0 %v1114
  %1151 = vmatpush.bf16.msra.mxu0 %v1097
  %1152 = vmatpush.bf16.msra.mxu0 %v1093
  %1153 = vmatmul.bf16.gmra.mxu0 %v1105
  %v1154 = vpop.f32.mrf.mxu0
  %v1155 = vadd.f32 0.0, %v1154
  %v1156 = vpop.f32.mrf.mxu0
  %1157 = vdwg.mxu0
  %1158 = vmatpush.bf16.msra.mxu0 0
  %1159 = vmatpush.bf16.msra.mxu0 0
  %1160 = vmatpush.bf16.msra.mxu0 0
  %1161 = vmatpush.bf16.msra.mxu0 0
  %1162 = vmatpush.bf16.msra.mxu0 0
  %1163 = vmatpush.bf16.msra.mxu0 %v1117
  %1164 = vmatpush.bf16.msra.mxu0 %v1098
  %1165 = vmatpush.bf16.msra.mxu0 %v1094
  %1166 = vmatmul.bf16.gmra.mxu0 %v1105
  %v1167 = vpop.f32.mrf.mxu0
  %v1168 = vadd.f32 0.0, %v1167
  %v1169 = vpop.f32.mrf.mxu0
  %1170 = vdwg.mxu0
  %v1171 = vmul.f32 %v1129, 0.2
  %v1172 = vmul.f32 %v1142, 0.2
  %v1173 = vmul.f32 %v1155, 0.2
  %v1174 = vmul.f32 %v1168, 0.2
  %v1175 = vmax.f32 %v1129, %v1171
  %v1176 = vmax.f32 %v1142, %v1172
  %v1177 = vmax.f32 %v1155, %v1173
  %v1178 = vmax.f32 %v1168, %v1174
  %1179 = vrot.lane.b32.xlu0 %v1175, 17
  %v1180 = vpop.permute.xlu0 %1179
  %1181 = vrot.lane.b32.xlu0 %v1176, 17
  %v1182 = vpop.permute.xlu0 %1181
  %1183 = vrot.lane.b32.xlu0 %v1177, 17
  %v1184 = vpop.permute.xlu0 %1183
  %1185 = vrot.lane.b32.xlu0 %v1178, 17
  %v1186 = vpop.permute.xlu0 %1185
  %v1187 = vsel %vm761, %v1184, %v1186
  %v1188 = vsel %vm761, %v1182, %v1184
  %v1189 = vsel %vm761, %v1180, %v1182
  %v1190 = vsel %vm761, %v1186, %v1180
  %v1191 = vmul.f32 %v1190, %v766
  %v1192 = vmul.f32 %v1189, %v767
  %v1193 = vmul.f32 %v1188, %v768
  %v1194 = vmul.f32 %v1187, %v769
  %1195 = vrot.lane.b32.xlu0 %v1175, 16
  %v1196 = vpop.permute.xlu0 %1195
  %1197 = vrot.lane.b32.xlu0 %v1176, 16
  %v1198 = vpop.permute.xlu0 %1197
  %1199 = vrot.lane.b32.xlu0 %v1177, 16
  %v1200 = vpop.permute.xlu0 %1199
  %1201 = vrot.lane.b32.xlu0 %v1178, 16
  %v1202 = vpop.permute.xlu0 %1201
  %v1203 = vsel %vm793, %v1200, %v1202
  %v1204 = vsel %vm793, %v1198, %v1200
  %v1205 = vsel %vm793, %v1196, %v1198
  %v1206 = vsel %vm793, %v1202, %v1196
  %v1207 = vmul.f32 %v1206, %v798
  %v1208 = vmul.f32 %v1205, %v799
  %v1209 = vmul.f32 %v1204, %v800
  %v1210 = vmul.f32 %v1203, %v801
  %1211 = vrot.lane.b32.xlu0 %v1175, 15
  %v1212 = vpop.permute.xlu0 %1211
  %1213 = vrot.lane.b32.xlu0 %v1176, 15
  %v1214 = vpop.permute.xlu0 %1213
  %1215 = vrot.lane.b32.xlu0 %v1177, 15
  %v1216 = vpop.permute.xlu0 %1215
  %1217 = vrot.lane.b32.xlu0 %v1178, 15
  %v1218 = vpop.permute.xlu0 %1217
  %v1219 = vsel %vm825, %v1216, %v1218
  %v1220 = vsel %vm825, %v1214, %v1216
  %v1221 = vsel %vm825, %v1212, %v1214
  %v1222 = vsel %vm825, %v1218, %v1212
  %v1223 = vmul.f32 %v1222, %v830
  %v1224 = vmul.f32 %v1221, %v831
  %v1225 = vmul.f32 %v1220, %v832
  %v1226 = vmul.f32 %v1219, %v833
  %1227 = vrot.lane.b32.xlu0 %v1175, 1
  %v1228 = vpop.permute.xlu0 %1227
  %1229 = vrot.lane.b32.xlu0 %v1176, 1
  %v1230 = vpop.permute.xlu0 %1229
  %1231 = vrot.lane.b32.xlu0 %v1177, 1
  %v1232 = vpop.permute.xlu0 %1231
  %1233 = vrot.lane.b32.xlu0 %v1178, 1
  %v1234 = vpop.permute.xlu0 %1233
  %v1235 = vsel %vm857, %v1232, %v1234
  %v1236 = vsel %vm857, %v1230, %v1232
  %v1237 = vsel %vm857, %v1228, %v1230
  %v1238 = vsel %vm857, %v1234, %v1228
  %v1239 = vmul.f32 %v1238, %v862
  %v1240 = vmul.f32 %v1237, %v863
  %v1241 = vmul.f32 %v1236, %v864
  %v1242 = vmul.f32 %v1235, %v865
  %v1243 = vmul.f32 %v1175, %v870
  %v1244 = vmul.f32 %v1176, %v871
  %v1245 = vmul.f32 %v1177, %v872
  %v1246 = vmul.f32 %v1178, %v873
  %1247 = vrot.lane.b32.xlu0 %v1175, 127
  %v1248 = vpop.permute.xlu0 %1247
  %1249 = vrot.lane.b32.xlu0 %v1176, 127
  %v1250 = vpop.permute.xlu0 %1249
  %1251 = vrot.lane.b32.xlu0 %v1177, 127
  %v1252 = vpop.permute.xlu0 %1251
  %1253 = vrot.lane.b32.xlu0 %v1178, 127
  %v1254 = vpop.permute.xlu0 %1253
  %v1255 = vsel %vm905, %v1252, %v1254
  %v1256 = vsel %vm905, %v1250, %v1252
  %v1257 = vsel %vm905, %v1248, %v1250
  %v1258 = vsel %vm905, %v1254, %v1248
  %v1259 = vmul.f32 %v1257, %v910
  %v1260 = vmul.f32 %v1256, %v911
  %v1261 = vmul.f32 %v1255, %v912
  %v1262 = vmul.f32 %v1258, %v913
  %1263 = vrot.lane.b32.xlu0 %v1175, 113
  %v1264 = vpop.permute.xlu0 %1263
  %1265 = vrot.lane.b32.xlu0 %v1176, 113
  %v1266 = vpop.permute.xlu0 %1265
  %1267 = vrot.lane.b32.xlu0 %v1177, 113
  %v1268 = vpop.permute.xlu0 %1267
  %1269 = vrot.lane.b32.xlu0 %v1178, 113
  %v1270 = vpop.permute.xlu0 %1269
  %v1271 = vsel %vm937, %v1268, %v1270
  %v1272 = vsel %vm937, %v1266, %v1268
  %v1273 = vsel %vm937, %v1264, %v1266
  %v1274 = vsel %vm937, %v1270, %v1264
  %v1275 = vmul.f32 %v1273, %v942
  %v1276 = vmul.f32 %v1272, %v943
  %v1277 = vmul.f32 %v1271, %v944
  %v1278 = vmul.f32 %v1274, %v945
  %1279 = vrot.lane.b32.xlu0 %v1175, 112
  %v1280 = vpop.permute.xlu0 %1279
  %1281 = vrot.lane.b32.xlu0 %v1176, 112
  %v1282 = vpop.permute.xlu0 %1281
  %1283 = vrot.lane.b32.xlu0 %v1177, 112
  %v1284 = vpop.permute.xlu0 %1283
  %1285 = vrot.lane.b32.xlu0 %v1178, 112
  %v1286 = vpop.permute.xlu0 %1285
  %v1287 = vsel %vm969, %v1284, %v1286
  %v1288 = vsel %vm969, %v1282, %v1284
  %v1289 = vsel %vm969, %v1280, %v1282
  %v1290 = vsel %vm969, %v1286, %v1280
  %v1291 = vmul.f32 %v1289, %v974
  %v1292 = vmul.f32 %v1288, %v975
  %v1293 = vmul.f32 %v1287, %v976
  %v1294 = vmul.f32 %v1290, %v977
  %1295 = vrot.lane.b32.xlu0 %v1175, 111
  %v1296 = vpop.permute.xlu0 %1295
  %1297 = vrot.lane.b32.xlu0 %v1176, 111
  %v1298 = vpop.permute.xlu0 %1297
  %1299 = vrot.lane.b32.xlu0 %v1177, 111
  %v1300 = vpop.permute.xlu0 %1299
  %1301 = vrot.lane.b32.xlu0 %v1178, 111
  %v1302 = vpop.permute.xlu0 %1301
  %v1303 = vsel %vm1001, %v1300, %v1302
  %v1304 = vsel %vm1001, %v1298, %v1300
  %v1305 = vsel %vm1001, %v1296, %v1298
  %v1306 = vsel %vm1001, %v1302, %v1296
  %v1307 = vmul.f32 %v1305, %v1006
  %v1308 = vmul.f32 %v1304, %v1007
  %v1309 = vmul.f32 %v1303, %v1008
  %v1310 = vmul.f32 %v1306, %v1009
  %v1315 = vrot.slane %v1207, 4
  %v1316 = vrot.slane %v1208, 4
  %v1317 = vrot.slane %v1209, 4
  %v1318 = vrot.slane %v1210, 4
  %v1327 = vrot.slane %v1239, 4
  %v1328 = vrot.slane %v1240, 4
  %v1329 = vrot.slane %v1241, 4
  %v1330 = vrot.slane %v1242, 4
  %v1339 = vrot.slane %v1259, 4
  %v1340 = vrot.slane %v1260, 4
  %v1341 = vrot.slane %v1261, 4
  %v1342 = vrot.slane %v1262, 4
  %v1351 = vrot.slane %v1291, 4
  %v1352 = vrot.slane %v1292, 4
  %v1353 = vrot.slane %v1293, 4
  %v1354 = vrot.slane %v1294, 4
  %v1359 = vsel %vm696, %v1191, %v1315
  %v1360 = vsel %vm696, %v1192, %v1316
  %v1361 = vsel %vm696, %v1193, %v1317
  %v1362 = vsel %vm696, %v1194, %v1318
  %v1363 = vsel %vm696, %v1223, %v1327
  %v1364 = vsel %vm696, %v1224, %v1328
  %v1365 = vsel %vm696, %v1225, %v1329
  %v1366 = vsel %vm696, %v1226, %v1330
  %v1367 = vsel %vm696, %v1243, %v1339
  %v1368 = vsel %vm696, %v1244, %v1340
  %v1369 = vsel %vm696, %v1245, %v1341
  %v1370 = vsel %vm696, %v1246, %v1342
  %v1371 = vsel %vm696, %v1275, %v1351
  %v1372 = vsel %vm696, %v1276, %v1352
  %v1373 = vsel %vm696, %v1277, %v1353
  %v1374 = vsel %vm696, %v1278, %v1354
  %v1375 = vpack.c.bf16 %v1363, %v1359
  %v1376 = vpack.c.bf16 %v1364, %v1360
  %v1377 = vpack.c.bf16 %v1365, %v1361
  %v1378 = vpack.c.bf16 %v1366, %v1362
  %v1379 = vpack.c.bf16 %v1371, %v1367
  %v1380 = vpack.c.bf16 %v1372, %v1368
  %v1381 = vpack.c.bf16 %v1373, %v1369
  %v1382 = vpack.c.bf16 %v1374, %v1370
  %v1383 = vpack.c.bf16 %v1307, %v1307
  %v1384 = vpack.c.bf16 %v1308, %v1308
  %v1385 = vpack.c.bf16 %v1309, %v1309
  %v1386 = vpack.c.bf16 %v1310, %v1310
  %v1388 = vsel %vm1103, %v715, 0
  %v1391 = vsel %vm588, %v1383, 0
  %v1394 = vsel %vm588, %v1384, 0
  %v1397 = vsel %vm588, %v1385, 0
  %v1400 = vsel %vm588, %v1386, 0
  %1402 = vmatpush.bf16.msra.mxu0 0
  %1403 = vmatpush.bf16.msra.mxu0 0
  %1404 = vmatpush.bf16.msra.mxu0 0
  %1405 = vmatpush.bf16.msra.mxu0 0
  %1406 = vmatpush.bf16.msra.mxu0 0
  %1407 = vmatpush.bf16.msra.mxu0 %v1391
  %1408 = vmatpush.bf16.msra.mxu0 %v1379
  %1409 = vmatpush.bf16.msra.mxu0 %v1375
  %1410 = vmatmul.bf16.gmra.mxu0 %v1388
  %v1411 = vpop.f32.mrf.mxu0
  %v1412 = vadd.f32 0.0, %v1411
  %v1413 = vpop.f32.mrf.mxu0
  %1414 = vdwg.mxu0
  %1415 = vmatpush.bf16.msra.mxu0 0
  %1416 = vmatpush.bf16.msra.mxu0 0
  %1417 = vmatpush.bf16.msra.mxu0 0
  %1418 = vmatpush.bf16.msra.mxu0 0
  %1419 = vmatpush.bf16.msra.mxu0 0
  %1420 = vmatpush.bf16.msra.mxu0 %v1394
  %1421 = vmatpush.bf16.msra.mxu0 %v1380
  %1422 = vmatpush.bf16.msra.mxu0 %v1376
  %1423 = vmatmul.bf16.gmra.mxu0 %v1388
  %v1424 = vpop.f32.mrf.mxu0
  %v1425 = vadd.f32 0.0, %v1424
  %v1426 = vpop.f32.mrf.mxu0
  %1427 = vdwg.mxu0
  %1428 = vmatpush.bf16.msra.mxu0 0
  %1429 = vmatpush.bf16.msra.mxu0 0
  %1430 = vmatpush.bf16.msra.mxu0 0
  %1431 = vmatpush.bf16.msra.mxu0 0
  %1432 = vmatpush.bf16.msra.mxu0 0
  %1433 = vmatpush.bf16.msra.mxu0 %v1397
  %1434 = vmatpush.bf16.msra.mxu0 %v1381
  %1435 = vmatpush.bf16.msra.mxu0 %v1377
  %1436 = vmatmul.bf16.gmra.mxu0 %v1388
  %v1437 = vpop.f32.mrf.mxu0
  %v1438 = vadd.f32 0.0, %v1437
  %v1439 = vpop.f32.mrf.mxu0
  %1440 = vdwg.mxu0
  %1441 = vmatpush.bf16.msra.mxu0 0
  %1442 = vmatpush.bf16.msra.mxu0 0
  %1443 = vmatpush.bf16.msra.mxu0 0
  %1444 = vmatpush.bf16.msra.mxu0 0
  %1445 = vmatpush.bf16.msra.mxu0 0
  %1446 = vmatpush.bf16.msra.mxu0 %v1400
  %1447 = vmatpush.bf16.msra.mxu0 %v1382
  %1448 = vmatpush.bf16.msra.mxu0 %v1378
  %1449 = vmatmul.bf16.gmra.mxu0 %v1388
  %v1450 = vpop.f32.mrf.mxu0
  %v1451 = vadd.f32 0.0, %v1450
  %v1452 = vpop.f32.mrf.mxu0
  %1453 = vdwg.mxu0
  %1455 = vset.pattern.permute.xlu0 0
  %1456 = vperm.xlu0 %1455, %v716
  %v1457 = vpop.permute.xlu0 %1456
  %v1459 = vmul.f32 %v1457, %v1412
  %v1460 = vmul.f32 %v1457, %v1425
  %v1461 = vmul.f32 %v1457, %v1438
  %v1462 = vmul.f32 %v1457, %v1451
  %v1463 = vsel %vm696, %v1459, 0.0
  %v1464 = vrot.slane %v1463, 4
  %v1465 = vadd.f32 %v1463, %v1464
  %v1466 = vrot.slane %v1465, 2
  %v1467 = vadd.f32 %v1465, %v1466
  %v1468 = vrot.slane %v1467, 1
  %v1469 = vadd.f32 %v1467, %v1468
  %v1470 = vsel %vm696, %v1460, 0.0
  %v1471 = vrot.slane %v1470, 4
  %v1472 = vadd.f32 %v1470, %v1471
  %v1473 = vrot.slane %v1472, 2
  %v1474 = vadd.f32 %v1472, %v1473
  %v1475 = vrot.slane %v1474, 1
  %v1476 = vadd.f32 %v1474, %v1475
  %v1477 = vsel %vm696, %v1461, 0.0
  %v1478 = vrot.slane %v1477, 4
  %v1479 = vadd.f32 %v1477, %v1478
  %v1480 = vrot.slane %v1479, 2
  %v1481 = vadd.f32 %v1479, %v1480
  %v1482 = vrot.slane %v1481, 1
  %v1483 = vadd.f32 %v1481, %v1482
  %v1484 = vsel %vm696, %v1462, 0.0
  %v1485 = vrot.slane %v1484, 4
  %v1486 = vadd.f32 %v1484, %v1485
  %v1487 = vrot.slane %v1486, 2
  %v1488 = vadd.f32 %v1486, %v1487
  %v1489 = vrot.slane %v1488, 1
  %v1490 = vadd.f32 %v1488, %v1489
  %v1495 = vrot.slane %v1476, 6
  %v1496 = vrot.slane %v1483, 4
  %v1497 = vrot.slane %v1490, 2
  %v1498 = vsel %vm588, %v1469, %v1495
  %vm1499 = vcmask 1045508
  %v1500 = vsel %vm1499, %v1496, %v1497
  %v1501 = vsel %vm696, %v1498, %v1500
  %v1503 = vsel %vm180, %v1501, -1e+30
  %1505 = vst [vmem:[#allocation1] ss:$4 sm:$0xff] %v1503
  %v1506 = vld.sshfl [vmem:[#allocation1] sm:$0xff pattern:$0x73625140]
  %v1507 = vld.sshfl [vmem:[#allocation1 + $0x8] sm:$0xff pattern:$0x73625140]
  %v1508 = vld.sshfl [vmem:[#allocation1 + $0x10] sm:$0xff pattern:$0x73625140]
  %v1509 = vld.sshfl [vmem:[#allocation1 + $0x18] sm:$0xff pattern:$0x73625140]
  %v1514 = vsel %vm588, %v1506, -inf
  %v1515 = vsel %vm588, %v1507, -inf
  %v1516 = vsel %vm588, %v1508, -inf
  %v1517 = vsel %vm588, %v1509, -inf
  %v1518 = vmax.f32 %v1514, %v1515
  %v1519 = vmax.f32 %v1516, %v1517
  %v1520 = vmax.f32 %v1518, %v1519
  %1521 = vmax.xlane.f32.xlu0 %v1520
  %v1522 = vpop.xlane.xlu0 %1521
  %1524 = vst [vmem:[#allocation1] ss:$4 sm:$0xff] %v179
  %v1525 = vld.sshfl [vmem:[#allocation1] sm:$0xff pattern:$0x73625140]
  %v1526 = vld.sshfl [vmem:[#allocation1 + $0x8] sm:$0xff pattern:$0x73625140]
  %v1527 = vld.sshfl [vmem:[#allocation1 + $0x10] sm:$0xff pattern:$0x73625140]
  %v1528 = vld.sshfl [vmem:[#allocation1 + $0x18] sm:$0xff pattern:$0x73625140]
  %v1533 = vmul.f32 %v1522, %v1525
  %v1534 = vmul.f32 %v1522, %v1526
  %v1535 = vmul.f32 %v1522, %v1527
  %v1536 = vmul.f32 %v1522, %v1528
  %v1537 = vsel %vm588, %v1533, 0.0
  %v1538 = vrot.slane %v1537, 4
  %v1539 = vadd.f32 %v1537, %v1538
  %v1540 = vrot.slane %v1539, 2
  %v1541 = vadd.f32 %v1539, %v1540
  %v1542 = vrot.slane %v1541, 1
  %v1543 = vadd.f32 %v1541, %v1542
  %v1544 = vsel %vm588, %v1534, 0.0
  %v1545 = vrot.slane %v1544, 4
  %v1546 = vadd.f32 %v1544, %v1545
  %v1547 = vrot.slane %v1546, 2
  %v1548 = vadd.f32 %v1546, %v1547
  %v1549 = vrot.slane %v1548, 1
  %v1550 = vadd.f32 %v1548, %v1549
  %v1551 = vsel %vm588, %v1535, 0.0
  %v1552 = vrot.slane %v1551, 4
  %v1553 = vadd.f32 %v1551, %v1552
  %v1554 = vrot.slane %v1553, 2
  %v1555 = vadd.f32 %v1553, %v1554
  %v1556 = vrot.slane %v1555, 1
  %v1557 = vadd.f32 %v1555, %v1556
  %v1558 = vsel %vm588, %v1536, 0.0
  %v1559 = vrot.slane %v1558, 4
  %v1560 = vadd.f32 %v1558, %v1559
  %v1561 = vrot.slane %v1560, 2
  %v1562 = vadd.f32 %v1560, %v1561
  %v1563 = vrot.slane %v1562, 1
  %v1564 = vadd.f32 %v1562, %v1563
  %v1565 = vsub.f32 %v1469, %v1543
  %v1566 = vsub.f32 %v1476, %v1550
  %v1567 = vsub.f32 %v1483, %v1557
  %v1568 = vsub.f32 %v1490, %v1564
  %v1569 = vmul.f32 %v1565, 1.442695
  %v1570 = vpow.pop %v1569
  %v1571 = vmul.f32 %v1566, 1.442695
  %v1572 = vpow.pop %v1571
  %v1573 = vmul.f32 %v1567, 1.442695
  %v1574 = vpow.pop %v1573
  %v1575 = vmul.f32 %v1568, 1.442695
  %v1576 = vpow.pop %v1575
  %1577 = vst [vmem:[#allocation1] ss:$4 sm:$0xff] %v179
  %v1578 = vld.sshfl [vmem:[#allocation1] sm:$0xff pattern:$0x73625140]
  %v1579 = vld.sshfl [vmem:[#allocation1 + $0x8] sm:$0xff pattern:$0x73625140]
  %v1580 = vld.sshfl [vmem:[#allocation1 + $0x10] sm:$0xff pattern:$0x73625140]
  %v1581 = vld.sshfl [vmem:[#allocation1 + $0x18] sm:$0xff pattern:$0x73625140]
  %v1586 = vmul.f32 %v1570, %v1578
  %v1587 = vmul.f32 %v1572, %v1579
  %v1588 = vmul.f32 %v1574, %v1580
  %v1589 = vmul.f32 %v1576, %v1581
  %v1590 = vsel %vm588, %v1586, 0.0
  %v1591 = vsel %vm588, %v1587, 0.0
  %v1592 = vadd.f32 %v1590, %v1591
  %v1593 = vsel %vm588, %v1588, 0.0
  %v1594 = vadd.f32 %v1592, %v1593
  %v1595 = vsel %vm588, %v1589, 0.0
  %v1596 = vadd.f32 %v1594, %v1595
  %1597 = vadd.xlane.f32.xlu0 %v1596
  %v1598 = vpop.xlane.xlu0 %1597
  %1599 = vst [vmem:[#allocation1] ss:$4 sm:$0xff] %v179
  %v1600 = vld.sshfl [vmem:[#allocation1] sm:$0xff pattern:$0x73625140]
  %v1601 = vld.sshfl [vmem:[#allocation1 + $0x8] sm:$0xff pattern:$0x73625140]
  %v1602 = vld.sshfl [vmem:[#allocation1 + $0x10] sm:$0xff pattern:$0x73625140]
  %v1603 = vld.sshfl [vmem:[#allocation1 + $0x18] sm:$0xff pattern:$0x73625140]
  %v1608 = vmul.f32 %v1598, %v1600
  %v1609 = vmul.f32 %v1598, %v1601
  %v1610 = vmul.f32 %v1598, %v1602
  %v1611 = vmul.f32 %v1598, %v1603
  %v1612 = vsel %vm588, %v1608, 0.0
  %v1613 = vrot.slane %v1612, 4
  %v1614 = vadd.f32 %v1612, %v1613
  %v1615 = vrot.slane %v1614, 2
  %v1616 = vadd.f32 %v1614, %v1615
  %v1617 = vrot.slane %v1616, 1
  %v1618 = vadd.f32 %v1616, %v1617
  %v1619 = vsel %vm588, %v1609, 0.0
  %v1620 = vrot.slane %v1619, 4
  %v1621 = vadd.f32 %v1619, %v1620
  %v1622 = vrot.slane %v1621, 2
  %v1623 = vadd.f32 %v1621, %v1622
  %v1624 = vrot.slane %v1623, 1
  %v1625 = vadd.f32 %v1623, %v1624
  %v1626 = vsel %vm588, %v1610, 0.0
  %v1627 = vrot.slane %v1626, 4
  %v1628 = vadd.f32 %v1626, %v1627
  %v1629 = vrot.slane %v1628, 2
  %v1630 = vadd.f32 %v1628, %v1629
  %v1631 = vrot.slane %v1630, 1
  %v1632 = vadd.f32 %v1630, %v1631
  %v1633 = vsel %vm588, %v1611, 0.0
  %v1634 = vrot.slane %v1633, 4
  %v1635 = vadd.f32 %v1633, %v1634
  %v1636 = vrot.slane %v1635, 2
  %v1637 = vadd.f32 %v1635, %v1636
  %v1638 = vrot.slane %v1637, 1
  %v1639 = vadd.f32 %v1637, %v1638
  %v1640 = vadd.f32 %v1618, %v181
  %v1641 = vadd.f32 %v1625, %v182
  %v1642 = vadd.f32 %v1632, %v183
  %v1643 = vadd.f32 %v1639, %v184
  %v1644 = vrcp.pop %v1640
  %v1645 = vrcp.pop %v1641
  %v1646 = vrcp.pop %v1642
  %v1647 = vrcp.pop %v1643
  %v1648 = vmul.f32 %v1570, %v1644
  %v1649 = vmul.f32 %v1572, %v1645
  %v1650 = vmul.f32 %v1574, %v1646
  %v1651 = vmul.f32 %v1576, %v1647
  %v1652 = vperm.slane %v1648, 4
  %v1653 = vperm.slane %v1649, 4
  %v1654 = vperm.slane %v1650, 4
  %v1655 = vperm.slane %v1651, 4
  %v1656 = vmul.f32 %v1412, %v1652
  %v1657 = vmul.f32 %v1425, %v1653
  %v1658 = vmul.f32 %v1438, %v1654
  %v1659 = vmul.f32 %v1451, %v1655
  %v1660 = vpack.c.bf16 %v1656, %v1656
  %v1661 = vpack.c.bf16 %v1657, %v1657
  %v1662 = vpack.c.bf16 %v1658, %v1658
  %v1663 = vpack.c.bf16 %v1659, %v1659
  %1664 = vst [vmem:[#allocation1] ss:$4 sm:$0xff] %v179
  %v1665 = vld.sshfl [vmem:[#allocation1] sm:$0xff pattern:$0x73625140]
  %v1666 = vld.sshfl [vmem:[#allocation1 + $0x8] sm:$0xff pattern:$0x73625140]
  %v1667 = vld.sshfl [vmem:[#allocation1 + $0x10] sm:$0xff pattern:$0x73625140]
  %v1668 = vld.sshfl [vmem:[#allocation1 + $0x18] sm:$0xff pattern:$0x73625140]
  %v1673 = vpack.c.bf16 %v1665, %v1665
  %v1674 = vpack.c.bf16 %v1666, %v1666
  %v1675 = vpack.c.bf16 %v1667, %v1667
  %v1676 = vpack.c.bf16 %v1668, %v1668
  %1677 = vmatpush.bf16.xpose.msra.mxu0 0
  %1678 = vmatpush.bf16.xpose.msra.mxu0 0
  %1679 = vmatpush.bf16.xpose.msra.mxu0 0
  %1680 = vmatpush.bf16.xpose.msra.mxu0 0
  %1681 = vmatpush.bf16.xpose.msra.mxu0 0
  %1682 = vmatpush.bf16.xpose.msra.mxu0 0
  %1683 = vmatpush.bf16.xpose.msra.mxu0 0
  %1684 = vmatpush.bf16.xpose.msra.mxu0 %v1673
  %1685 = vmatmul.bf16.gmra.mxu0 %v1660
  %v1686 = vpop.f32.mrf.mxu0
  %v1687 = vadd.f32 0.0, %v1686
  %v1688 = vpop.f32.mrf.mxu0
  %1689 = vdwg.mxu0
  %1690 = vmatpush.bf16.xpose.msra.mxu0 0
  %1691 = vmatpush.bf16.xpose.msra.mxu0 0
  %1692 = vmatpush.bf16.xpose.msra.mxu0 0
  %1693 = vmatpush.bf16.xpose.msra.mxu0 0
  %1694 = vmatpush.bf16.xpose.msra.mxu0 0
  %1695 = vmatpush.bf16.xpose.msra.mxu0 0
  %1696 = vmatpush.bf16.xpose.msra.mxu0 0
  %1697 = vmatpush.bf16.xpose.msra.mxu0 %v1674
  %1698 = vmatmul.bf16.gmra.mxu0 %v1661
  %v1699 = vpop.f32.mrf.mxu0
  %v1700 = vadd.f32 %v1687, %v1699
  %v1701 = vpop.f32.mrf.mxu0
  %1702 = vdwg.mxu0
  %1703 = vmatpush.bf16.xpose.msra.mxu0 0
  %1704 = vmatpush.bf16.xpose.msra.mxu0 0
  %1705 = vmatpush.bf16.xpose.msra.mxu0 0
  %1706 = vmatpush.bf16.xpose.msra.mxu0 0
  %1707 = vmatpush.bf16.xpose.msra.mxu0 0
  %1708 = vmatpush.bf16.xpose.msra.mxu0 0
  %1709 = vmatpush.bf16.xpose.msra.mxu0 0
  %1710 = vmatpush.bf16.xpose.msra.mxu0 %v1675
  %1711 = vmatmul.bf16.gmra.mxu0 %v1662
  %v1712 = vpop.f32.mrf.mxu0
  %v1713 = vadd.f32 %v1700, %v1712
  %v1714 = vpop.f32.mrf.mxu0
  %1715 = vdwg.mxu0
  %1716 = vmatpush.bf16.xpose.msra.mxu0 0
  %1717 = vmatpush.bf16.xpose.msra.mxu0 0
  %1718 = vmatpush.bf16.xpose.msra.mxu0 0
  %1719 = vmatpush.bf16.xpose.msra.mxu0 0
  %1720 = vmatpush.bf16.xpose.msra.mxu0 0
  %1721 = vmatpush.bf16.xpose.msra.mxu0 0
  %1722 = vmatpush.bf16.xpose.msra.mxu0 0
  %1723 = vmatpush.bf16.xpose.msra.mxu0 %v1676
  %1724 = vmatmul.bf16.gmra.mxu0 %v1663
  %v1725 = vpop.f32.mrf.mxu0
  %v1726 = vadd.f32 %v1713, %v1725
  %v1727 = vpop.f32.mrf.mxu0
  %1728 = vdwg.mxu0
  %v1729 = vpack.c.bf16 %v717, %v717
  %v1730 = vpack.c.bf16 %v1726, %v1726
  %v1732 = vsel %vm584, %v1729, 0
  %v1735 = vsel %vm588, %v1730, 0
  %1737 = vmatpush.bf16.msra.mxu0 0
  %1738 = vmatpush.bf16.msra.mxu0 0
  %1739 = vmatpush.bf16.msra.mxu0 0
  %1740 = vmatpush.bf16.msra.mxu0 0
  %1741 = vmatpush.bf16.msra.mxu0 0
  %1742 = vmatpush.bf16.msra.mxu0 0
  %1743 = vmatpush.bf16.msra.mxu0 0
  %1744 = vmatpush.bf16.msra.mxu0 %v1735
  %1745 = vmatmul.bf16.gmra.mxu0 %v1732
  %v1746 = vpop.f32.mrf.mxu0
  %v1747 = vadd.f32 0.0, %v1746
  %v1748 = vpop.f32.mrf.mxu0
  %1749 = vdwg.mxu0
  %v1750 = vmul.f32 %v1747, 0.2
  %v1751 = vmax.f32 %v1747, %v1750
  %v1752 = vpack.c.bf16 %v718, %v718
  %v1753 = vpack.c.bf16 %v1751, %v1751
  %v1755 = vsel %vm584, %v1752, 0
  %v1758 = vsel %vm588, %v1753, 0
  %1760 = vmatpush.bf16.msra.mxu0 0
  %1761 = vmatpush.bf16.msra.mxu0 0
  %1762 = vmatpush.bf16.msra.mxu0 0
  %1763 = vmatpush.bf16.msra.mxu0 0
  %1764 = vmatpush.bf16.msra.mxu0 0
  %1765 = vmatpush.bf16.msra.mxu0 0
  %1766 = vmatpush.bf16.msra.mxu0 0
  %1767 = vmatpush.bf16.msra.mxu0 %v1758
  %1768 = vmatmul.bf16.gmra.mxu0 %v1755
  %v1769 = vpop.f32.mrf.mxu0
  %v1770 = vadd.f32 0.0, %v1769
  %v1771 = vpop.f32.mrf.mxu0
  %1772 = vdwg.mxu0
  %v1773 = vpack.c.bf16 %v1770, %v1770
  %vm1774 = vcmask 15360
  %v1776 = vsel %vm1774, %v1773, 0
  %vm1778 = vcmask 1040384
  %v1780 = vsel %vm1778, %v1673, 0
  %v1783 = vsel %vm1778, %v1674, 0
  %v1786 = vsel %vm1778, %v1675, 0
  %v1789 = vsel %vm1778, %v1676, 0
  %1791 = vmatpush.bf16.msra.mxu0 0
  %1792 = vmatpush.bf16.msra.mxu0 0
  %1793 = vmatpush.bf16.msra.mxu0 0
  %1794 = vmatpush.bf16.msra.mxu0 0
  %1795 = vmatpush.bf16.msra.mxu0 0
  %1796 = vmatpush.bf16.msra.mxu0 0
  %1797 = vmatpush.bf16.msra.mxu0 0
  %1798 = vmatpush.bf16.msra.mxu0 %v1780
  %1799 = vmatmul.bf16.gmra.mxu0 %v1776
  %v1800 = vpop.f32.mrf.mxu0
  %v1801 = vadd.f32 0.0, %v1800
  %v1802 = vpop.f32.mrf.mxu0
  %1803 = vdwg.mxu0
  %1804 = vmatpush.bf16.msra.mxu0 0
  %1805 = vmatpush.bf16.msra.mxu0 0
  %1806 = vmatpush.bf16.msra.mxu0 0
  %1807 = vmatpush.bf16.msra.mxu0 0
  %1808 = vmatpush.bf16.msra.mxu0 0
  %1809 = vmatpush.bf16.msra.mxu0 0
  %1810 = vmatpush.bf16.msra.mxu0 0
  %1811 = vmatpush.bf16.msra.mxu0 %v1783
  %1812 = vmatmul.bf16.gmra.mxu0 %v1776
  %v1813 = vpop.f32.mrf.mxu0
  %v1814 = vadd.f32 0.0, %v1813
  %v1815 = vpop.f32.mrf.mxu0
  %1816 = vdwg.mxu0
  %1817 = vmatpush.bf16.msra.mxu0 0
  %1818 = vmatpush.bf16.msra.mxu0 0
  %1819 = vmatpush.bf16.msra.mxu0 0
  %1820 = vmatpush.bf16.msra.mxu0 0
  %1821 = vmatpush.bf16.msra.mxu0 0
  %1822 = vmatpush.bf16.msra.mxu0 0
  %1823 = vmatpush.bf16.msra.mxu0 0
  %1824 = vmatpush.bf16.msra.mxu0 %v1786
  %1825 = vmatmul.bf16.gmra.mxu0 %v1776
  %v1826 = vpop.f32.mrf.mxu0
  %v1827 = vadd.f32 0.0, %v1826
  %v1828 = vpop.f32.mrf.mxu0
  %1829 = vdwg.mxu0
  %1830 = vmatpush.bf16.msra.mxu0 0
  %1831 = vmatpush.bf16.msra.mxu0 0
  %1832 = vmatpush.bf16.msra.mxu0 0
  %1833 = vmatpush.bf16.msra.mxu0 0
  %1834 = vmatpush.bf16.msra.mxu0 0
  %1835 = vmatpush.bf16.msra.mxu0 0
  %1836 = vmatpush.bf16.msra.mxu0 0
  %1837 = vmatpush.bf16.msra.mxu0 %v1789
  %1838 = vmatmul.bf16.gmra.mxu0 %v1776
  %v1839 = vpop.f32.mrf.mxu0
  %v1840 = vadd.f32 0.0, %v1839
  %v1841 = vpop.f32.mrf.mxu0
  %1842 = vdwg.mxu0
  %v1843 = vadd.f32 %v1412, %v1801
  %v1844 = vadd.f32 %v1425, %v1814
  %v1845 = vadd.f32 %v1438, %v1827
  %v1846 = vadd.f32 %v1451, %v1840
  %v1847 = vmul.f32 %v1843, 0.2
  %v1848 = vmul.f32 %v1844, 0.2
  %v1849 = vmul.f32 %v1845, 0.2
  %v1850 = vmul.f32 %v1846, 0.2
  %v1851 = vmax.f32 %v1843, %v1847
  %v1852 = vmax.f32 %v1844, %v1848
  %v1853 = vmax.f32 %v1845, %v1849
  %v1854 = vmax.f32 %v1846, %v1850
  %1855 = vst [vmem:[#allocation1] ss:$2 sm:$0xff] %v319
  %s1856 = scalar_lea.vmem [#allocation1], 16
  %1857 = vst [vmem:[%s1856] ss:$2 sm:$0xff] %v320
  %v1858 = vld.sshfl [vmem:[#allocation1] sm:$0xff pattern:$0x75316420]
  %v1859 = vld.sshfl [vmem:[#allocation1 + $0x8] sm:$0xff pattern:$0x75316420]
  %v1860 = vld.sshfl [vmem:[#allocation1 + $0x10] sm:$0xff pattern:$0x75316420]
  %v1861 = vld.sshfl [vmem:[#allocation1 + $0x18] sm:$0xff pattern:$0x75316420]
  %v1866 = vadd.f32 %v1851, %v1858
  %v1867 = vadd.f32 %v1852, %v1859
  %v1868 = vadd.f32 %v1853, %v1860
  %v1869 = vadd.f32 %v1854, %v1861
  %1870 = vrot.lane.b32.xlu0 %v602, 9
  %v1871 = vpop.permute.xlu0 %1870
  %v1872 = vperm.slane %v175, 0
  %v1873 = vmul.f32 %v1871, %v1872
  %1874 = vrot.lane.b32.xlu0 %v602, 8
  %v1875 = vpop.permute.xlu0 %1874
  %v1876 = vperm.slane %v175, 1
  %v1877 = vmul.f32 %v1875, %v1876
  %1878 = vrot.lane.b32.xlu0 %v602, 7
  %v1879 = vpop.permute.xlu0 %1878
  %v1880 = vperm.slane %v175, 2
  %v1881 = vmul.f32 %v1879, %v1880
  %1882 = vrot.lane.b32.xlu0 %v602, 1
  %v1883 = vpop.permute.xlu0 %1882
  %v1884 = vperm.slane %v175, 3
  %v1885 = vmul.f32 %v1883, %v1884
  %v1886 = vperm.slane %v175, 4
  %v1887 = vmul.f32 %v602, %v1886
  %1888 = vrot.lane.b32.xlu0 %v602, 127
  %v1889 = vpop.permute.xlu0 %1888
  %v1890 = vperm.slane %v175, 5
  %v1891 = vmul.f32 %v1889, %v1890
  %1892 = vrot.lane.b32.xlu0 %v602, 121
  %v1893 = vpop.permute.xlu0 %1892
  %v1894 = vperm.slane %v175, 6
  %v1895 = vmul.f32 %v1893, %v1894
  %1896 = vrot.lane.b32.xlu0 %v602, 120
  %v1897 = vpop.permute.xlu0 %1896
  %v1898 = vperm.slane %v175, 7
  %v1899 = vmul.f32 %v1897, %v1898
  %1900 = vrot.lane.b32.xlu0 %v602, 119
  %v1901 = vpop.permute.xlu0 %1900
  %v1902 = vperm.slane %v176, 0
  %v1903 = vmul.f32 %v1901, %v1902
  %v1904 = vpack.c.bf16 %v1877, %v1873
  %v1905 = vpack.c.bf16 %v1885, %v1881
  %v1906 = vpack.c.bf16 %v1891, %v1887
  %v1907 = vpack.c.bf16 %v1899, %v1895
  %v1908 = vpack.c.bf16 %v1903, %v1903
  %vm1909 = vcmask 588800
  %v1911 = vsel %vm1909, %v719, 0
  %v1914 = vsel %vm696, %v1908, 0
  %1916 = vmatpush.bf16.msra.mxu0 0
  %1917 = vmatpush.bf16.msra.mxu0 0
  %1918 = vmatpush.bf16.msra.mxu0 0
  %1919 = vmatpush.bf16.msra.mxu0 %v1914
  %1920 = vmatpush.bf16.msra.mxu0 %v1907
  %1921 = vmatpush.bf16.msra.mxu0 %v1906
  %1922 = vmatpush.bf16.msra.mxu0 %v1905
  %1923 = vmatpush.bf16.msra.mxu0 %v1904
  %1924 = vmatmul.bf16.gmra.mxu0 %v1911
  %v1925 = vpop.f32.mrf.mxu0
  %v1926 = vadd.f32 0.0, %v1925
  %v1927 = vpop.f32.mrf.mxu0
  %1928 = vdwg.mxu0
  %v1929 = vmul.f32 %v1926, 0.2
  %v1930 = vmax.f32 %v1926, %v1929
  %1931 = vrot.lane.b32.xlu0 %v1930, 9
  %v1932 = vpop.permute.xlu0 %1931
  %v1933 = vmul.f32 %v1932, %v1872
  %1934 = vrot.lane.b32.xlu0 %v1930, 8
  %v1935 = vpop.permute.xlu0 %1934
  %v1936 = vmul.f32 %v1935, %v1876
  %1937 = vrot.lane.b32.xlu0 %v1930, 7
  %v1938 = vpop.permute.xlu0 %1937
  %v1939 = vmul.f32 %v1938, %v1880
  %1940 = vrot.lane.b32.xlu0 %v1930, 1
  %v1941 = vpop.permute.xlu0 %1940
  %v1942 = vmul.f32 %v1941, %v1884
  %v1943 = vmul.f32 %v1930, %v1886
  %1944 = vrot.lane.b32.xlu0 %v1930, 127
  %v1945 = vpop.permute.xlu0 %1944
  %v1946 = vmul.f32 %v1945, %v1890
  %1947 = vrot.lane.b32.xlu0 %v1930, 121
  %v1948 = vpop.permute.xlu0 %1947
  %v1949 = vmul.f32 %v1948, %v1894
  %1950 = vrot.lane.b32.xlu0 %v1930, 120
  %v1951 = vpop.permute.xlu0 %1950
  %v1952 = vmul.f32 %v1951, %v1898
  %1953 = vrot.lane.b32.xlu0 %v1930, 119
  %v1954 = vpop.permute.xlu0 %1953
  %v1955 = vmul.f32 %v1954, %v1902
  %v1956 = vpack.c.bf16 %v1936, %v1933
  %v1957 = vpack.c.bf16 %v1942, %v1939
  %v1958 = vpack.c.bf16 %v1946, %v1943
  %v1959 = vpack.c.bf16 %v1952, %v1949
  %v1960 = vpack.c.bf16 %v1955, %v1955
  %v1962 = vsel %vm1909, %v720, 0
  %v1965 = vsel %vm696, %v1960, 0
  %1967 = vmatpush.bf16.msra.mxu0 0
  %1968 = vmatpush.bf16.msra.mxu0 0
  %1969 = vmatpush.bf16.msra.mxu0 0
  %1970 = vmatpush.bf16.msra.mxu0 %v1965
  %1971 = vmatpush.bf16.msra.mxu0 %v1959
  %1972 = vmatpush.bf16.msra.mxu0 %v1958
  %1973 = vmatpush.bf16.msra.mxu0 %v1957
  %1974 = vmatpush.bf16.msra.mxu0 %v1956
  %1975 = vmatmul.bf16.gmra.mxu0 %v1962
  %v1976 = vpop.f32.mrf.mxu0
  %v1977 = vadd.f32 0.0, %v1976
  %v1978 = vpop.f32.mrf.mxu0
  %1979 = vdwg.mxu0
  %1981 = vset.pattern.permute.xlu0 0
  %1982 = vperm.xlu0 %1981, %v721
  %v1983 = vpop.permute.xlu0 %1982
  %v1985 = vmul.f32 %v1983, %v1977
  %v1986 = vrot.slane %v1985, 4
  %v1987 = vadd.f32 %v1985, %v1986
  %v1988 = vrot.slane %v1987, 2
  %v1989 = vadd.f32 %v1987, %v1988
  %v1990 = vrot.slane %v1989, 1
  %v1991 = vadd.f32 %v1989, %v1990
  %v1992 = vsel %vm186, %v1991, -1e+30
  %v1993 = vsel %vm588, %v1992, -inf
  %1994 = vmax.xlane.f32.xlu0 %v1993
  %v1995 = vpop.xlane.xlu0 %1994
  %v1996 = vmul.f32 %v1995, %v185
  %v1997 = vsel %vm588, %v1996, 0.0
  %v1998 = vrot.slane %v1997, 4
  %v1999 = vadd.f32 %v1997, %v1998
  %v2000 = vrot.slane %v1999, 2
  %v2001 = vadd.f32 %v1999, %v2000
  %v2002 = vrot.slane %v2001, 1
  %v2003 = vadd.f32 %v2001, %v2002
  %v2004 = vsub.f32 %v1991, %v2003
  %v2005 = vmul.f32 %v2004, 1.442695
  %v2006 = vpow.pop %v2005
  %v2007 = vmul.f32 %v2006, %v185
  %v2008 = vsel %vm588, %v2007, 0.0
  %2009 = vadd.xlane.f32.xlu0 %v2008
  %v2010 = vpop.xlane.xlu0 %2009
  %v2011 = vmul.f32 %v2010, %v185
  %v2012 = vsel %vm588, %v2011, 0.0
  %v2013 = vrot.slane %v2012, 4
  %v2014 = vadd.f32 %v2012, %v2013
  %v2015 = vrot.slane %v2014, 2
  %v2016 = vadd.f32 %v2014, %v2015
  %v2017 = vrot.slane %v2016, 1
  %v2018 = vadd.f32 %v2016, %v2017
  %v2019 = vadd.f32 %v2018, %v187
  %v2020 = vrcp.pop %v2019
  %v2021 = vmul.f32 %v2006, %v2020
  %v2022 = vperm.slane %v2021, 4
  %v2023 = vmul.f32 %v1977, %v2022
  %v2024 = vpack.c.bf16 %v2023, %v2023
  %v2025 = vpack.c.bf16 %v185, %v185
  %2026 = vmatpush.bf16.xpose.msra.mxu0 0
  %2027 = vmatpush.bf16.xpose.msra.mxu0 0
  %2028 = vmatpush.bf16.xpose.msra.mxu0 0
  %2029 = vmatpush.bf16.xpose.msra.mxu0 0
  %2030 = vmatpush.bf16.xpose.msra.mxu0 0
  %2031 = vmatpush.bf16.xpose.msra.mxu0 0
  %2032 = vmatpush.bf16.xpose.msra.mxu0 0
  %2033 = vmatpush.bf16.xpose.msra.mxu0 %v2025
  %2034 = vmatmul.bf16.gmra.mxu0 %v2024
  %v2035 = vpop.f32.mrf.mxu0
  %v2036 = vadd.f32 0.0, %v2035
  %v2037 = vpop.f32.mrf.mxu0
  %2038 = vdwg.mxu0
  %v2039 = vpack.c.bf16 %v722, %v722
  %v2040 = vpack.c.bf16 %v2036, %v2036
  %v2042 = vsel %vm692, %v2039, 0
  %v2045 = vsel %vm696, %v2040, 0
  %2047 = vmatpush.bf16.msra.mxu0 0
  %2048 = vmatpush.bf16.msra.mxu0 0
  %2049 = vmatpush.bf16.msra.mxu0 0
  %2050 = vmatpush.bf16.msra.mxu0 0
  %2051 = vmatpush.bf16.msra.mxu0 0
  %2052 = vmatpush.bf16.msra.mxu0 0
  %2053 = vmatpush.bf16.msra.mxu0 0
  %2054 = vmatpush.bf16.msra.mxu0 %v2045
  %2055 = vmatmul.bf16.gmra.mxu0 %v2042
  %v2056 = vpop.f32.mrf.mxu0
  %v2057 = vadd.f32 0.0, %v2056
  %v2058 = vpop.f32.mrf.mxu0
  %2059 = vdwg.mxu0
  %v2060 = vmul.f32 %v2057, 0.2
  %v2061 = vmax.f32 %v2057, %v2060
  %v2062 = vpack.c.bf16 %v723, %v723
  %v2063 = vpack.c.bf16 %v2061, %v2061
  %v2065 = vsel %vm692, %v2062, 0
  %v2068 = vsel %vm696, %v2063, 0
  %2070 = vmatpush.bf16.msra.mxu0 0
  %2071 = vmatpush.bf16.msra.mxu0 0
  %2072 = vmatpush.bf16.msra.mxu0 0
  %2073 = vmatpush.bf16.msra.mxu0 0
  %2074 = vmatpush.bf16.msra.mxu0 0
  %2075 = vmatpush.bf16.msra.mxu0 0
  %2076 = vmatpush.bf16.msra.mxu0 0
  %2077 = vmatpush.bf16.msra.mxu0 %v2068
  %2078 = vmatmul.bf16.gmra.mxu0 %v2065
  %v2079 = vpop.f32.mrf.mxu0
  %v2080 = vadd.f32 0.0, %v2079
  %v2081 = vpop.f32.mrf.mxu0
  %2082 = vdwg.mxu0
  %v2083 = vpack.c.bf16 %v2080, %v2080
  %v2085 = vsel %vm1774, %v2083, 0
  %v2088 = vsel %vm1778, %v2025, 0
  %2090 = vmatpush.bf16.msra.mxu0 0
  %2091 = vmatpush.bf16.msra.mxu0 0
  %2092 = vmatpush.bf16.msra.mxu0 0
  %2093 = vmatpush.bf16.msra.mxu0 0
  %2094 = vmatpush.bf16.msra.mxu0 0
  %2095 = vmatpush.bf16.msra.mxu0 0
  %2096 = vmatpush.bf16.msra.mxu0 0
  %2097 = vmatpush.bf16.msra.mxu0 %v2088
  %2098 = vmatmul.bf16.gmra.mxu0 %v2085
  %v2099 = vpop.f32.mrf.mxu0
  %v2100 = vadd.f32 0.0, %v2099
  %v2101 = vpop.f32.mrf.mxu0
  %2102 = vdwg.mxu0
  %v2103 = vadd.f32 %v1977, %v2100
  %v2104 = vmul.f32 %v2103, 0.2
  %v2105 = vmax.f32 %v2103, %v2104
  %v2106 = vadd.f32 %v2105, %v602
  %2107 = vrot.lane.b32.xlu0 %v710, 5
  %v2108 = vpop.permute.xlu0 %2107
  %2109 = vrot.lane.b32.xlu0 %v712, 5
  %v2110 = vpop.permute.xlu0 %2109
  %v2111 = vperm.slane %v177, 0
  %v2112 = vmul.f32 %v2108, %v2111
  %v2113 = vmul.f32 %v2110, %v2111
  %2114 = vrot.lane.b32.xlu0 %v710, 4
  %v2115 = vpop.permute.xlu0 %2114
  %2116 = vrot.lane.b32.xlu0 %v712, 4
  %v2117 = vpop.permute.xlu0 %2116
  %v2118 = vperm.slane %v177, 1
  %v2119 = vmul.f32 %v2115, %v2118
  %v2120 = vmul.f32 %v2117, %v2118
  %2121 = vrot.lane.b32.xlu0 %v710, 3
  %v2122 = vpop.permute.xlu0 %2121
  %2123 = vrot.lane.b32.xlu0 %v712, 3
  %v2124 = vpop.permute.xlu0 %2123
  %v2125 = vperm.slane %v177, 2
  %v2126 = vmul.f32 %v2122, %v2125
  %v2127 = vmul.f32 %v2124, %v2125
  %2128 = vrot.lane.b32.xlu0 %v710, 1
  %v2129 = vpop.permute.xlu0 %2128
  %2130 = vrot.lane.b32.xlu0 %v712, 1
  %v2131 = vpop.permute.xlu0 %2130
  %v2132 = vperm.slane %v177, 3
  %v2133 = vmul.f32 %v2129, %v2132
  %v2134 = vmul.f32 %v2131, %v2132
  %v2135 = vperm.slane %v177, 4
  %v2136 = vmul.f32 %v710, %v2135
  %v2137 = vmul.f32 %v712, %v2135
  %2138 = vrot.lane.b32.xlu0 %v710, 127
  %v2139 = vpop.permute.xlu0 %2138
  %2140 = vrot.lane.b32.xlu0 %v712, 127
  %v2141 = vpop.permute.xlu0 %2140
  %v2142 = vperm.slane %v177, 5
  %v2143 = vmul.f32 %v2139, %v2142
  %v2144 = vmul.f32 %v2141, %v2142
  %2145 = vrot.lane.b32.xlu0 %v710, 125
  %v2146 = vpop.permute.xlu0 %2145
  %2147 = vrot.lane.b32.xlu0 %v712, 125
  %v2148 = vpop.permute.xlu0 %2147
  %v2149 = vperm.slane %v177, 6
  %v2150 = vmul.f32 %v2146, %v2149
  %v2151 = vmul.f32 %v2148, %v2149
  %2152 = vrot.lane.b32.xlu0 %v710, 124
  %v2153 = vpop.permute.xlu0 %2152
  %2154 = vrot.lane.b32.xlu0 %v712, 124
  %v2155 = vpop.permute.xlu0 %2154
  %v2156 = vperm.slane %v177, 7
  %v2157 = vmul.f32 %v2153, %v2156
  %v2158 = vmul.f32 %v2155, %v2156
  %2159 = vrot.lane.b32.xlu0 %v710, 123
  %v2160 = vpop.permute.xlu0 %2159
  %2161 = vrot.lane.b32.xlu0 %v712, 123
  %v2162 = vpop.permute.xlu0 %2161
  %v2163 = vperm.slane %v178, 0
  %v2164 = vmul.f32 %v2160, %v2163
  %v2165 = vmul.f32 %v2162, %v2163
  %v2166 = vpack.c.bf16 %v2113, %v2112
  %v2167 = vpack.c.bf16 %v2120, %v2119
  %v2168 = vpack.c.bf16 %v2127, %v2126
  %v2169 = vpack.c.bf16 %v2134, %v2133
  %v2170 = vpack.c.bf16 %v2137, %v2136
  %v2171 = vpack.c.bf16 %v2144, %v2143
  %v2172 = vpack.c.bf16 %v2151, %v2150
  %v2173 = vpack.c.bf16 %v2158, %v2157
  %v2174 = vpack.c.bf16 %v2165, %v2164
  %v2177 = vunpack.c.l.b16 %v724
  %v2178 = vunpack.c.h.b16 %v724
  %v2179 = vunpack.c.l.b16 %v725
  %v2180 = vunpack.c.h.b16 %v725
  %v2181 = vpack.c.b16 %v2179, %v2177
  %v2182 = vpack.c.b16 %v2180, %v2178
  %vm2184 = vcmask 130048
  %v2186 = vsel %vm2184, %v2182, 0
  %2188 = vmatpush.bf16.msra.mxu0 %v2173
  %2189 = vmatpush.bf16.msra.mxu0 %v2172
  %2190 = vmatpush.bf16.msra.mxu0 %v2171
  %2191 = vmatpush.bf16.msra.mxu0 %v2170
  %2192 = vmatpush.bf16.msra.mxu0 %v2169
  %2193 = vmatpush.bf16.msra.mxu0 %v2168
  %2194 = vmatpush.bf16.msra.mxu0 %v2167
  %2195 = vmatpush.bf16.msra.mxu0 %v2166
  %2196 = vmatmul.bf16.gmra.mxu0 %v2181
  %v2197 = vpop.f32.mrf.mxu0
  %v2198 = vadd.f32 0.0, %v2197
  %v2199 = vpop.f32.mrf.mxu0
  %v2200 = vadd.f32 0.0, %v2199
  %2201 = vdwg.mxu0
  %2202 = vmatpush.bf16.msra.mxu0 0
  %2203 = vmatpush.bf16.msra.mxu0 0
  %2204 = vmatpush.bf16.msra.mxu0 0
  %2205 = vmatpush.bf16.msra.mxu0 0
  %2206 = vmatpush.bf16.msra.mxu0 0
  %2207 = vmatpush.bf16.msra.mxu0 0
  %2208 = vmatpush.bf16.msra.mxu0 0
  %2209 = vmatpush.bf16.msra.mxu0 %v2174
  %2210 = vmatmul.bf16.gmra.mxu0 %v2186
  %v2211 = vpop.f32.mrf.mxu0
  %v2212 = vadd.f32 %v2198, %v2211
  %v2213 = vpop.f32.mrf.mxu0
  %v2214 = vadd.f32 %v2200, %v2213
  %2215 = vdwg.mxu0
  %v2216 = vmul.f32 %v2212, 0.2
  %v2217 = vmul.f32 %v2214, 0.2
  %v2218 = vmax.f32 %v2212, %v2216
  %v2219 = vmax.f32 %v2214, %v2217
  %2220 = vrot.lane.b32.xlu0 %v2218, 5
  %v2221 = vpop.permute.xlu0 %2220
  %2222 = vrot.lane.b32.xlu0 %v2219, 5
  %v2223 = vpop.permute.xlu0 %2222
  %v2224 = vmul.f32 %v2221, %v2111
  %v2225 = vmul.f32 %v2223, %v2111
  %2226 = vrot.lane.b32.xlu0 %v2218, 4
  %v2227 = vpop.permute.xlu0 %2226
  %2228 = vrot.lane.b32.xlu0 %v2219, 4
  %v2229 = vpop.permute.xlu0 %2228
  %v2230 = vmul.f32 %v2227, %v2118
  %v2231 = vmul.f32 %v2229, %v2118
  %2232 = vrot.lane.b32.xlu0 %v2218, 3
  %v2233 = vpop.permute.xlu0 %2232
  %2234 = vrot.lane.b32.xlu0 %v2219, 3
  %v2235 = vpop.permute.xlu0 %2234
  %v2236 = vmul.f32 %v2233, %v2125
  %v2237 = vmul.f32 %v2235, %v2125
  %2238 = vrot.lane.b32.xlu0 %v2218, 1
  %v2239 = vpop.permute.xlu0 %2238
  %2240 = vrot.lane.b32.xlu0 %v2219, 1
  %v2241 = vpop.permute.xlu0 %2240
  %v2242 = vmul.f32 %v2239, %v2132
  %v2243 = vmul.f32 %v2241, %v2132
  %v2244 = vmul.f32 %v2218, %v2135
  %v2245 = vmul.f32 %v2219, %v2135
  %2246 = vrot.lane.b32.xlu0 %v2218, 127
  %v2247 = vpop.permute.xlu0 %2246
  %2248 = vrot.lane.b32.xlu0 %v2219, 127
  %v2249 = vpop.permute.xlu0 %2248
  %v2250 = vmul.f32 %v2247, %v2142
  %v2251 = vmul.f32 %v2249, %v2142
  %2252 = vrot.lane.b32.xlu0 %v2218, 125
  %v2253 = vpop.permute.xlu0 %2252
  %2254 = vrot.lane.b32.xlu0 %v2219, 125
  %v2255 = vpop.permute.xlu0 %2254
  %v2256 = vmul.f32 %v2253, %v2149
  %v2257 = vmul.f32 %v2255, %v2149
  %2258 = vrot.lane.b32.xlu0 %v2218, 124
  %v2259 = vpop.permute.xlu0 %2258
  %2260 = vrot.lane.b32.xlu0 %v2219, 124
  %v2261 = vpop.permute.xlu0 %2260
  %v2262 = vmul.f32 %v2259, %v2156
  %v2263 = vmul.f32 %v2261, %v2156
  %2264 = vrot.lane.b32.xlu0 %v2218, 123
  %v2265 = vpop.permute.xlu0 %2264
  %2266 = vrot.lane.b32.xlu0 %v2219, 123
  %v2267 = vpop.permute.xlu0 %2266
  %v2268 = vmul.f32 %v2265, %v2163
  %v2269 = vmul.f32 %v2267, %v2163
  %v2270 = vpack.c.bf16 %v2225, %v2224
  %v2271 = vpack.c.bf16 %v2231, %v2230
  %v2272 = vpack.c.bf16 %v2237, %v2236
  %v2273 = vpack.c.bf16 %v2243, %v2242
  %v2274 = vpack.c.bf16 %v2245, %v2244
  %v2275 = vpack.c.bf16 %v2251, %v2250
  %v2276 = vpack.c.bf16 %v2257, %v2256
  %v2277 = vpack.c.bf16 %v2263, %v2262
  %v2278 = vpack.c.bf16 %v2269, %v2268
  %v2281 = vunpack.c.l.b16 %v726
  %v2282 = vunpack.c.h.b16 %v726
  %v2283 = vunpack.c.l.b16 %v727
  %v2284 = vunpack.c.h.b16 %v727
  %v2285 = vpack.c.b16 %v2283, %v2281
  %v2286 = vpack.c.b16 %v2284, %v2282
  %v2289 = vsel %vm2184, %v2286, 0
  %2291 = vmatpush.bf16.msra.mxu0 %v2277
  %2292 = vmatpush.bf16.msra.mxu0 %v2276
  %2293 = vmatpush.bf16.msra.mxu0 %v2275
  %2294 = vmatpush.bf16.msra.mxu0 %v2274
  %2295 = vmatpush.bf16.msra.mxu0 %v2273
  %2296 = vmatpush.bf16.msra.mxu0 %v2272
  %2297 = vmatpush.bf16.msra.mxu0 %v2271
  %2298 = vmatpush.bf16.msra.mxu0 %v2270
  %2299 = vmatmul.bf16.gmra.mxu0 %v2285
  %v2300 = vpop.f32.mrf.mxu0
  %v2301 = vadd.f32 0.0, %v2300
  %v2302 = vpop.f32.mrf.mxu0
  %v2303 = vadd.f32 0.0, %v2302
  %2304 = vdwg.mxu0
  %2305 = vmatpush.bf16.msra.mxu0 0
  %2306 = vmatpush.bf16.msra.mxu0 0
  %2307 = vmatpush.bf16.msra.mxu0 0
  %2308 = vmatpush.bf16.msra.mxu0 0
  %2309 = vmatpush.bf16.msra.mxu0 0
  %2310 = vmatpush.bf16.msra.mxu0 0
  %2311 = vmatpush.bf16.msra.mxu0 0
  %2312 = vmatpush.bf16.msra.mxu0 %v2278
  %2313 = vmatmul.bf16.gmra.mxu0 %v2289
  %v2314 = vpop.f32.mrf.mxu0
  %v2315 = vadd.f32 %v2301, %v2314
  %v2316 = vpop.f32.mrf.mxu0
  %v2317 = vadd.f32 %v2303, %v2316
  %2318 = vdwg.mxu0
  %2320 = vset.pattern.permute.xlu0 0
  %2321 = vperm.xlu0 %2320, %v728
  %v2322 = vpop.permute.xlu0 %2321
  %2325 = vset.pattern.permute.xlu0 0
  %2326 = vperm.xlu0 %2325, %v729
  %v2327 = vpop.permute.xlu0 %2326
  %v2329 = vmul.f32 %v2322, %v2315
  %v2330 = vmul.f32 %v2327, %v2317
  %v2331 = vadd.f32 %v2329, %v2330
  %v2332 = vrot.slane %v2331, 4
  %v2333 = vadd.f32 %v2331, %v2332
  %v2334 = vrot.slane %v2333, 2
  %v2335 = vadd.f32 %v2333, %v2334
  %v2336 = vrot.slane %v2335, 1
  %v2337 = vadd.f32 %v2335, %v2336
  %v2338 = vsel %vm189, %v2337, -1e+30
  %v2339 = vsel %vm588, %v2338, -inf
  %2340 = vmax.xlane.f32.xlu0 %v2339
  %v2341 = vpop.xlane.xlu0 %2340
  %v2342 = vmul.f32 %v2341, %v188
  %v2343 = vsel %vm588, %v2342, 0.0
  %v2344 = vrot.slane %v2343, 4
  %v2345 = vadd.f32 %v2343, %v2344
  %v2346 = vrot.slane %v2345, 2
  %v2347 = vadd.f32 %v2345, %v2346
  %v2348 = vrot.slane %v2347, 1
  %v2349 = vadd.f32 %v2347, %v2348
  %v2350 = vsub.f32 %v2337, %v2349
  %v2351 = vmul.f32 %v2350, 1.442695
  %v2352 = vpow.pop %v2351
  %v2353 = vmul.f32 %v2352, %v188
  %v2354 = vsel %vm588, %v2353, 0.0
  %2355 = vadd.xlane.f32.xlu0 %v2354
  %v2356 = vpop.xlane.xlu0 %2355
  %v2357 = vmul.f32 %v2356, %v188
  %v2358 = vsel %vm588, %v2357, 0.0
  %v2359 = vrot.slane %v2358, 4
  %v2360 = vadd.f32 %v2358, %v2359
  %v2361 = vrot.slane %v2360, 2
  %v2362 = vadd.f32 %v2360, %v2361
  %v2363 = vrot.slane %v2362, 1
  %v2364 = vadd.f32 %v2362, %v2363
  %v2365 = vadd.f32 %v2364, %v190
  %v2366 = vrcp.pop %v2365
  %v2367 = vmul.f32 %v2352, %v2366
  %v2368 = vperm.slane %v2367, 4
  %v2369 = vmul.f32 %v2315, %v2368
  %v2370 = vmul.f32 %v2317, %v2368
  %v2371 = vpack.c.bf16 %v2370, %v2369
  %v2372 = vpack.c.bf16 %v188, %v188
  %2373 = vmatpush.bf16.xpose.msra.mxu0 0
  %2374 = vmatpush.bf16.xpose.msra.mxu0 0
  %2375 = vmatpush.bf16.xpose.msra.mxu0 0
  %2376 = vmatpush.bf16.xpose.msra.mxu0 0
  %2377 = vmatpush.bf16.xpose.msra.mxu0 0
  %2378 = vmatpush.bf16.xpose.msra.mxu0 0
  %2379 = vmatpush.bf16.xpose.msra.mxu0 0
  %2380 = vmatpush.bf16.xpose.msra.mxu0 %v2372
  %2381 = vmatmul.bf16.gmra.mxu0 %v2371
  %v2382 = vpop.f32.mrf.mxu0
  %v2383 = vadd.f32 0.0, %v2382
  %v2384 = vpop.f32.mrf.mxu0
  %v2385 = vadd.f32 0.0, %v2384
  %2386 = vdwg.mxu0
  %v2387 = vpack.c.bf16 %v731, %v730
  %v2388 = vpack.c.bf16 %v2385, %v2383
  %v2390 = vsel %vm2184, %v2387, 0
  %2392 = vmatpush.bf16.msra.mxu0 0
  %2393 = vmatpush.bf16.msra.mxu0 0
  %2394 = vmatpush.bf16.msra.mxu0 0
  %2395 = vmatpush.bf16.msra.mxu0 0
  %2396 = vmatpush.bf16.msra.mxu0 0
  %2397 = vmatpush.bf16.msra.mxu0 0
  %2398 = vmatpush.bf16.msra.mxu0 0
  %2399 = vmatpush.bf16.msra.mxu0 %v2388
  %2400 = vmatmul.bf16.gmra.mxu0 %v2390
  %v2401 = vpop.f32.mrf.mxu0
  %v2402 = vadd.f32 0.0, %v2401
  %v2403 = vpop.f32.mrf.mxu0
  %v2404 = vadd.f32 0.0, %v2403
  %2405 = vdwg.mxu0
  %v2406 = vmul.f32 %v2402, 0.2
  %v2407 = vmul.f32 %v2404, 0.2
  %v2408 = vmax.f32 %v2402, %v2406
  %v2409 = vmax.f32 %v2404, %v2407
  %v2410 = vpack.c.bf16 %v733, %v732
  %v2411 = vpack.c.bf16 %v2409, %v2408
  %v2413 = vsel %vm2184, %v2410, 0
  %2415 = vmatpush.bf16.msra.mxu0 0
  %2416 = vmatpush.bf16.msra.mxu0 0
  %2417 = vmatpush.bf16.msra.mxu0 0
  %2418 = vmatpush.bf16.msra.mxu0 0
  %2419 = vmatpush.bf16.msra.mxu0 0
  %2420 = vmatpush.bf16.msra.mxu0 0
  %2421 = vmatpush.bf16.msra.mxu0 0
  %2422 = vmatpush.bf16.msra.mxu0 %v2411
  %2423 = vmatmul.bf16.gmra.mxu0 %v2413
  %v2424 = vpop.f32.mrf.mxu0
  %v2425 = vadd.f32 0.0, %v2424
  %v2426 = vpop.f32.mrf.mxu0
  %v2427 = vadd.f32 0.0, %v2426
  %2428 = vdwg.mxu0
  %v2429 = vpack.c.bf16 %v2427, %v2425
  %v2431 = vsel %vm1774, %v2429, 0
  %v2434 = vsel %vm1778, %v2372, 0
  %2436 = vmatpush.bf16.msra.mxu0 0
  %2437 = vmatpush.bf16.msra.mxu0 0
  %2438 = vmatpush.bf16.msra.mxu0 0
  %2439 = vmatpush.bf16.msra.mxu0 0
  %2440 = vmatpush.bf16.msra.mxu0 0
  %2441 = vmatpush.bf16.msra.mxu0 0
  %2442 = vmatpush.bf16.msra.mxu0 0
  %2443 = vmatpush.bf16.msra.mxu0 %v2434
  %2444 = vmatmul.bf16.gmra.mxu0 %v2431
  %v2445 = vpop.f32.mrf.mxu0
  %v2446 = vadd.f32 0.0, %v2445
  %v2447 = vpop.f32.mrf.mxu0
  %v2448 = vadd.f32 0.0, %v2447
  %2449 = vdwg.mxu0
  %v2450 = vadd.f32 %v2315, %v2446
  %v2451 = vadd.f32 %v2317, %v2448
  %v2452 = vmul.f32 %v2450, 0.2
  %v2453 = vmul.f32 %v2451, 0.2
  %v2454 = vmax.f32 %v2450, %v2452
  %v2455 = vmax.f32 %v2451, %v2453
  %v2456 = vadd.f32 %v2454, %v710
  %v2457 = vadd.f32 %v2455, %v712
  %v2458 = vld [vmem:[%s29] sm:$0xf]
  %v2459 = vpack.c.bf16 %v2457, %v2456
  %v2461 = vsel %vm2184, %v2458, 0
  %2463 = vmatpush.bf16.msra.mxu0 0
  %2464 = vmatpush.bf16.msra.mxu0 0
  %2465 = vmatpush.bf16.msra.mxu0 0
  %2466 = vmatpush.bf16.msra.mxu0 0
  %2467 = vmatpush.bf16.msra.mxu0 0
  %2468 = vmatpush.bf16.msra.mxu0 0
  %2469 = vmatpush.bf16.msra.mxu0 0
  %2470 = vmatpush.bf16.msra.mxu0 %v2459
  %2471 = vmatmul.bf16.gmra.mxu0 %v2461
  %v2472 = vpop.f32.mrf.mxu0
  %v2473 = vadd.f32 0.0, %v2472
  %v2474 = vpop.f32.mrf.mxu0
  %2475 = vdwg.mxu0
  %v2476 = vpack.c.bf16 %v2473, %v2473
  %v2493 = vunpack.c.l.b16 %v271
  %v2494 = vunpack.c.l.b16 %v272
  %v2495 = vunpack.c.l.b16 %v273
  %v2496 = vunpack.c.l.b16 %v274
  %v2497 = vunpack.c.l.b16 %v275
  %v2498 = vunpack.c.l.b16 %v276
  %v2499 = vunpack.c.l.b16 %v277
  %v2500 = vunpack.c.l.b16 %v278
  %v2501 = vunpack.c.l.b16 %v279
  %v2502 = vunpack.c.l.b16 %v280
  %v2503 = vunpack.c.l.b16 %v281
  %v2504 = vunpack.c.l.b16 %v282
  %v2505 = vunpack.c.l.b16 %v283
  %v2506 = vunpack.c.l.b16 %v284
  %v2507 = vunpack.c.l.b16 %v285
  %v2508 = vunpack.c.l.b16 %v286
  %v2509 = vpack.c.b16 %v2494, %v2493
  %v2510 = vpack.c.b16 %v2496, %v2495
  %v2511 = vpack.c.b16 %v2498, %v2497
  %v2512 = vpack.c.b16 %v2500, %v2499
  %v2513 = vpack.c.b16 %v2502, %v2501
  %v2514 = vpack.c.b16 %v2504, %v2503
  %v2515 = vpack.c.b16 %v2506, %v2505
  %v2516 = vpack.c.b16 %v2508, %v2507
  %2525 = vmatpush.bf16.msra.mxu0 %v2516
  %2526 = vmatpush.bf16.msra.mxu0 %v2515
  %2527 = vmatpush.bf16.msra.mxu0 %v2514
  %2528 = vmatpush.bf16.msra.mxu0 %v2513
  %2529 = vmatpush.bf16.msra.mxu0 %v2512
  %2530 = vmatpush.bf16.msra.mxu0 %v2511
  %2531 = vmatpush.bf16.msra.mxu0 %v2510
  %2532 = vmatpush.bf16.msra.mxu0 %v2509
  %2533 = vmatmul.bf16.gmra.mxu0 %v2476
  %v2534 = vpop.f32.mrf.mxu0
  %v2535 = vadd.f32 0.0, %v2534
  %v2536 = vpop.f32.mrf.mxu0
  %2537 = vdwg.mxu0
  %v2538 = vadd.f32 %v2106, %v2535
  %v2539 = vpack.c.bf16 %v2538, %v2538
  %2540 = vmatpush.bf16.xpose.msra.mxu0 0
  %2541 = vmatpush.bf16.xpose.msra.mxu0 0
  %2542 = vmatpush.bf16.xpose.msra.mxu0 0
  %2543 = vmatpush.bf16.xpose.msra.mxu0 0
  %2544 = vmatpush.bf16.xpose.msra.mxu0 0
  %2545 = vmatpush.bf16.xpose.msra.mxu0 0
  %2546 = vmatpush.bf16.xpose.msra.mxu0 0
  %2547 = vmatpush.bf16.xpose.msra.mxu0 %v2025
  %2548 = vmatmul.bf16.gmra.mxu0 %v2539
  %v2549 = vpop.f32.mrf.mxu0
  %v2550 = vadd.f32 0.0, %v2549
  %v2551 = vpop.f32.mrf.mxu0
  %2552 = vdwg.mxu0
  %v2553 = vmul.f32 %v2550, 0.015625
  %v2554 = vpack.c.bf16 %v734, %v734
  %v2555 = vpack.c.bf16 %v2553, %v2553
  %v2557 = vsel %vm692, %v2554, 0
  %v2560 = vsel %vm696, %v2555, 0
  %2562 = vmatpush.bf16.msra.mxu0 0
  %2563 = vmatpush.bf16.msra.mxu0 0
  %2564 = vmatpush.bf16.msra.mxu0 0
  %2565 = vmatpush.bf16.msra.mxu0 0
  %2566 = vmatpush.bf16.msra.mxu0 0
  %2567 = vmatpush.bf16.msra.mxu0 0
  %2568 = vmatpush.bf16.msra.mxu0 0
  %2569 = vmatpush.bf16.msra.mxu0 %v2560
  %2570 = vmatmul.bf16.gmra.mxu0 %v2557
  %v2571 = vpop.f32.mrf.mxu0
  %v2572 = vadd.f32 0.0, %v2571
  %v2573 = vpop.f32.mrf.mxu0
  %2574 = vdwg.mxu0
  %v2575 = vmul.f32 %v2572, 0.2
  %v2576 = vmax.f32 %v2572, %v2575
  %v2577 = vpack.c.bf16 %v735, %v735
  %v2578 = vpack.c.bf16 %v2576, %v2576
  %v2580 = vsel %vm584, %v2577, 0
  %v2583 = vsel %vm588, %v2578, 0
  %2585 = vmatpush.bf16.msra.mxu0 0
  %2586 = vmatpush.bf16.msra.mxu0 0
  %2587 = vmatpush.bf16.msra.mxu0 0
  %2588 = vmatpush.bf16.msra.mxu0 0
  %2589 = vmatpush.bf16.msra.mxu0 0
  %2590 = vmatpush.bf16.msra.mxu0 0
  %2591 = vmatpush.bf16.msra.mxu0 0
  %2592 = vmatpush.bf16.msra.mxu0 %v2583
  %2593 = vmatmul.bf16.gmra.mxu0 %v2580
  %v2594 = vpop.f32.mrf.mxu0
  %v2595 = vadd.f32 0.0, %v2594
  %v2596 = vpop.f32.mrf.mxu0
  %2597 = vdwg.mxu0
  %v2598 = vpack.c.bf16 %v736, %v736
  %v2600 = vsel %vm584, %v2598, 0
  %2602 = vmatpush.bf16.msra.mxu0 0
  %2603 = vmatpush.bf16.msra.mxu0 0
  %2604 = vmatpush.bf16.msra.mxu0 0
  %2605 = vmatpush.bf16.msra.mxu0 0
  %2606 = vmatpush.bf16.msra.mxu0 0
  %2607 = vmatpush.bf16.msra.mxu0 0
  %2608 = vmatpush.bf16.msra.mxu0 0
  %2609 = vmatpush.bf16.msra.mxu0 %v2583
  %2610 = vmatmul.bf16.gmra.mxu0 %v2600
  %v2611 = vpop.f32.mrf.mxu0
  %v2612 = vadd.f32 0.0, %v2611
  %v2613 = vpop.f32.mrf.mxu0
  %2614 = vdwg.mxu0
  %v2615 = vmax.f32 %v2595, %v2612
  %v2616 = vsub.f32 %v2595, %v2615
  %v2617 = vmul.f32 %v2616, 1.442695
  %v2618 = vpow.pop %v2617
  %v2619 = vsub.f32 %v2612, %v2615
  %v2620 = vmul.f32 %v2619, 1.442695
  %v2621 = vpow.pop %v2620
  %v2622 = vadd.f32 %v2618, %v2621
  %v2623 = vrcp.pop %v2622
  %v2624 = vmul.f32 %v2618, %v2623
  %v2625 = vpack.c.bf16 %v2624, %v2624
  %v2627 = vsel %vm1774, %v2625, 0
  %2629 = vmatpush.bf16.msra.mxu0 0
  %2630 = vmatpush.bf16.msra.mxu0 0
  %2631 = vmatpush.bf16.msra.mxu0 0
  %2632 = vmatpush.bf16.msra.mxu0 0
  %2633 = vmatpush.bf16.msra.mxu0 0
  %2634 = vmatpush.bf16.msra.mxu0 0
  %2635 = vmatpush.bf16.msra.mxu0 0
  %2636 = vmatpush.bf16.msra.mxu0 %v2088
  %2637 = vmatmul.bf16.gmra.mxu0 %v2627
  %v2638 = vpop.f32.mrf.mxu0
  %v2639 = vadd.f32 0.0, %v2638
  %v2640 = vpop.f32.mrf.mxu0
  %2641 = vdwg.mxu0
  %v2642 = vmul.f32 %v2106, %v2639
  %v2643 = vmul.f32 %v2621, %v2623
  %v2644 = vpack.c.bf16 %v2643, %v2643
  %v2646 = vsel %vm1774, %v2644, 0
  %2648 = vmatpush.bf16.msra.mxu0 0
  %2649 = vmatpush.bf16.msra.mxu0 0
  %2650 = vmatpush.bf16.msra.mxu0 0
  %2651 = vmatpush.bf16.msra.mxu0 0
  %2652 = vmatpush.bf16.msra.mxu0 0
  %2653 = vmatpush.bf16.msra.mxu0 0
  %2654 = vmatpush.bf16.msra.mxu0 0
  %2655 = vmatpush.bf16.msra.mxu0 %v2088
  %2656 = vmatmul.bf16.gmra.mxu0 %v2646
  %v2657 = vpop.f32.mrf.mxu0
  %v2658 = vadd.f32 0.0, %v2657
  %v2659 = vpop.f32.mrf.mxu0
  %2660 = vdwg.mxu0
  %v2661 = vmul.f32 %v2535, %v2658
  %v2662 = vadd.f32 %v2642, %v2661
  %v2663 = vld [vmem:[%s33] sm:$0x3]
  %v2664 = vpack.c.bf16 %v2662, %v2662
  %v2666 = vsel %vm692, %v2663, 0
  %v2669 = vsel %vm696, %v2664, 0
  %2671 = vmatpush.bf16.msra.mxu0 0
  %2672 = vmatpush.bf16.msra.mxu0 0
  %2673 = vmatpush.bf16.msra.mxu0 0
  %2674 = vmatpush.bf16.msra.mxu0 0
  %2675 = vmatpush.bf16.msra.mxu0 0
  %2676 = vmatpush.bf16.msra.mxu0 0
  %2677 = vmatpush.bf16.msra.mxu0 0
  %2678 = vmatpush.bf16.msra.mxu0 %v2669
  %2679 = vmatmul.bf16.gmra.mxu0 %v2666
  %v2680 = vpop.f32.mrf.mxu0
  %v2681 = vadd.f32 0.0, %v2680
  %v2682 = vpop.f32.mrf.mxu0
  %2683 = vdwg.mxu0
  %v2684 = vpack.c.bf16 %v2681, %v2681
  %v2717 = vunpack.c.l.b16 %v287
  %v2718 = vunpack.c.h.b16 %v287
  %v2719 = vunpack.c.l.b16 %v288
  %v2720 = vunpack.c.h.b16 %v288
  %v2721 = vunpack.c.l.b16 %v289
  %v2722 = vunpack.c.h.b16 %v289
  %v2723 = vunpack.c.l.b16 %v290
  %v2724 = vunpack.c.h.b16 %v290
  %v2725 = vunpack.c.l.b16 %v291
  %v2726 = vunpack.c.h.b16 %v291
  %v2727 = vunpack.c.l.b16 %v292
  %v2728 = vunpack.c.h.b16 %v292
  %v2729 = vunpack.c.l.b16 %v293
  %v2730 = vunpack.c.h.b16 %v293
  %v2731 = vunpack.c.l.b16 %v294
  %v2732 = vunpack.c.h.b16 %v294
  %v2733 = vunpack.c.l.b16 %v295
  %v2734 = vunpack.c.h.b16 %v295
  %v2735 = vunpack.c.l.b16 %v296
  %v2736 = vunpack.c.h.b16 %v296
  %v2737 = vunpack.c.l.b16 %v297
  %v2738 = vunpack.c.h.b16 %v297
  %v2739 = vunpack.c.l.b16 %v298
  %v2740 = vunpack.c.h.b16 %v298
  %v2741 = vunpack.c.l.b16 %v299
  %v2742 = vunpack.c.h.b16 %v299
  %v2743 = vunpack.c.l.b16 %v300
  %v2744 = vunpack.c.h.b16 %v300
  %v2745 = vunpack.c.l.b16 %v301
  %v2746 = vunpack.c.h.b16 %v301
  %v2747 = vunpack.c.l.b16 %v302
  %v2748 = vunpack.c.h.b16 %v302
  %v2749 = vunpack.c.l.b16 %v303
  %v2750 = vunpack.c.h.b16 %v303
  %v2751 = vunpack.c.l.b16 %v304
  %v2752 = vunpack.c.h.b16 %v304
  %v2753 = vunpack.c.l.b16 %v305
  %v2754 = vunpack.c.h.b16 %v305
  %v2755 = vunpack.c.l.b16 %v306
  %v2756 = vunpack.c.h.b16 %v306
  %v2757 = vunpack.c.l.b16 %v307
  %v2758 = vunpack.c.h.b16 %v307
  %v2759 = vunpack.c.l.b16 %v308
  %v2760 = vunpack.c.h.b16 %v308
  %v2761 = vunpack.c.l.b16 %v309
  %v2762 = vunpack.c.h.b16 %v309
  %v2763 = vunpack.c.l.b16 %v310
  %v2764 = vunpack.c.h.b16 %v310
  %v2765 = vunpack.c.l.b16 %v311
  %v2766 = vunpack.c.h.b16 %v311
  %v2767 = vunpack.c.l.b16 %v312
  %v2768 = vunpack.c.h.b16 %v312
  %v2769 = vunpack.c.l.b16 %v313
  %v2770 = vunpack.c.h.b16 %v313
  %v2771 = vunpack.c.l.b16 %v314
  %v2772 = vunpack.c.h.b16 %v314
  %v2773 = vunpack.c.l.b16 %v315
  %v2774 = vunpack.c.h.b16 %v315
  %v2775 = vunpack.c.l.b16 %v316
  %v2776 = vunpack.c.h.b16 %v316
  %v2777 = vunpack.c.l.b16 %v317
  %v2778 = vunpack.c.h.b16 %v317
  %v2779 = vunpack.c.l.b16 %v318
  %v2780 = vunpack.c.h.b16 %v318
  %v2781 = vpack.c.b16 %v2721, %v2717
  %v2782 = vpack.c.b16 %v2722, %v2718
  %v2783 = vpack.c.b16 %v2723, %v2719
  %v2784 = vpack.c.b16 %v2724, %v2720
  %v2785 = vpack.c.b16 %v2729, %v2725
  %v2786 = vpack.c.b16 %v2730, %v2726
  %v2787 = vpack.c.b16 %v2731, %v2727
  %v2788 = vpack.c.b16 %v2732, %v2728
  %v2789 = vpack.c.b16 %v2737, %v2733
  %v2790 = vpack.c.b16 %v2738, %v2734
  %v2791 = vpack.c.b16 %v2739, %v2735
  %v2792 = vpack.c.b16 %v2740, %v2736
  %v2793 = vpack.c.b16 %v2745, %v2741
  %v2794 = vpack.c.b16 %v2746, %v2742
  %v2795 = vpack.c.b16 %v2747, %v2743
  %v2796 = vpack.c.b16 %v2748, %v2744
  %v2797 = vpack.c.b16 %v2753, %v2749
  %v2798 = vpack.c.b16 %v2754, %v2750
  %v2799 = vpack.c.b16 %v2755, %v2751
  %v2800 = vpack.c.b16 %v2756, %v2752
  %v2801 = vpack.c.b16 %v2761, %v2757
  %v2802 = vpack.c.b16 %v2762, %v2758
  %v2803 = vpack.c.b16 %v2763, %v2759
  %v2804 = vpack.c.b16 %v2764, %v2760
  %v2805 = vpack.c.b16 %v2769, %v2765
  %v2806 = vpack.c.b16 %v2770, %v2766
  %v2807 = vpack.c.b16 %v2771, %v2767
  %v2808 = vpack.c.b16 %v2772, %v2768
  %v2809 = vpack.c.b16 %v2777, %v2773
  %v2810 = vpack.c.b16 %v2778, %v2774
  %v2811 = vpack.c.b16 %v2779, %v2775
  %v2812 = vpack.c.b16 %v2780, %v2776
  %2845 = vmatpush.bf16.msra.mxu0 %v2809
  %2846 = vmatpush.bf16.msra.mxu0 %v2805
  %2847 = vmatpush.bf16.msra.mxu0 %v2801
  %2848 = vmatpush.bf16.msra.mxu0 %v2797
  %2849 = vmatpush.bf16.msra.mxu0 %v2793
  %2850 = vmatpush.bf16.msra.mxu0 %v2789
  %2851 = vmatpush.bf16.msra.mxu0 %v2785
  %2852 = vmatpush.bf16.msra.mxu0 %v2781
  %2853 = vmatmul.bf16.gmra.mxu0 %v2684
  %v2854 = vpop.f32.mrf.mxu0
  %v2855 = vadd.f32 0.0, %v2854
  %v2856 = vpop.f32.mrf.mxu0
  %2857 = vdwg.mxu0
  %2858 = vmatpush.bf16.msra.mxu0 %v2810
  %2859 = vmatpush.bf16.msra.mxu0 %v2806
  %2860 = vmatpush.bf16.msra.mxu0 %v2802
  %2861 = vmatpush.bf16.msra.mxu0 %v2798
  %2862 = vmatpush.bf16.msra.mxu0 %v2794
  %2863 = vmatpush.bf16.msra.mxu0 %v2790
  %2864 = vmatpush.bf16.msra.mxu0 %v2786
  %2865 = vmatpush.bf16.msra.mxu0 %v2782
  %2866 = vmatmul.bf16.gmra.mxu0 %v2684
  %v2867 = vpop.f32.mrf.mxu0
  %v2868 = vadd.f32 0.0, %v2867
  %v2869 = vpop.f32.mrf.mxu0
  %2870 = vdwg.mxu0
  %2871 = vmatpush.bf16.msra.mxu0 %v2811
  %2872 = vmatpush.bf16.msra.mxu0 %v2807
  %2873 = vmatpush.bf16.msra.mxu0 %v2803
  %2874 = vmatpush.bf16.msra.mxu0 %v2799
  %2875 = vmatpush.bf16.msra.mxu0 %v2795
  %2876 = vmatpush.bf16.msra.mxu0 %v2791
  %2877 = vmatpush.bf16.msra.mxu0 %v2787
  %2878 = vmatpush.bf16.msra.mxu0 %v2783
  %2879 = vmatmul.bf16.gmra.mxu0 %v2684
  %v2880 = vpop.f32.mrf.mxu0
  %v2881 = vadd.f32 0.0, %v2880
  %v2882 = vpop.f32.mrf.mxu0
  %2883 = vdwg.mxu0
  %2884 = vmatpush.bf16.msra.mxu0 %v2812
  %2885 = vmatpush.bf16.msra.mxu0 %v2808
  %2886 = vmatpush.bf16.msra.mxu0 %v2804
  %2887 = vmatpush.bf16.msra.mxu0 %v2800
  %2888 = vmatpush.bf16.msra.mxu0 %v2796
  %2889 = vmatpush.bf16.msra.mxu0 %v2792
  %2890 = vmatpush.bf16.msra.mxu0 %v2788
  %2891 = vmatpush.bf16.msra.mxu0 %v2784
  %2892 = vmatmul.bf16.gmra.mxu0 %v2684
  %v2893 = vpop.f32.mrf.mxu0
  %v2894 = vadd.f32 0.0, %v2893
  %v2895 = vpop.f32.mrf.mxu0
  %2896 = vdwg.mxu0
  %v2897 = vadd.f32 %v1866, %v2855
  %v2898 = vadd.f32 %v1867, %v2868
  %v2899 = vadd.f32 %v1868, %v2881
  %v2900 = vadd.f32 %v1869, %v2894
  %v2901 = vpack.c.bf16 %v2897, %v2897
  %v2902 = vpack.c.bf16 %v2898, %v2898
  %v2903 = vpack.c.bf16 %v2899, %v2899
  %v2904 = vpack.c.bf16 %v2900, %v2900
  %2905 = vmatpush.bf16.xpose.msra.mxu0 0
  %2906 = vmatpush.bf16.xpose.msra.mxu0 0
  %2907 = vmatpush.bf16.xpose.msra.mxu0 0
  %2908 = vmatpush.bf16.xpose.msra.mxu0 0
  %2909 = vmatpush.bf16.xpose.msra.mxu0 0
  %2910 = vmatpush.bf16.xpose.msra.mxu0 0
  %2911 = vmatpush.bf16.xpose.msra.mxu0 0
  %2912 = vmatpush.bf16.xpose.msra.mxu0 %v1673
  %2913 = vmatmul.bf16.gmra.mxu0 %v2901
  %v2914 = vpop.f32.mrf.mxu0
  %v2915 = vadd.f32 0.0, %v2914
  %v2916 = vpop.f32.mrf.mxu0
  %2917 = vdwg.mxu0
  %2918 = vmatpush.bf16.xpose.msra.mxu0 0
  %2919 = vmatpush.bf16.xpose.msra.mxu0 0
  %2920 = vmatpush.bf16.xpose.msra.mxu0 0
  %2921 = vmatpush.bf16.xpose.msra.mxu0 0
  %2922 = vmatpush.bf16.xpose.msra.mxu0 0
  %2923 = vmatpush.bf16.xpose.msra.mxu0 0
  %2924 = vmatpush.bf16.xpose.msra.mxu0 0
  %2925 = vmatpush.bf16.xpose.msra.mxu0 %v1674
  %2926 = vmatmul.bf16.gmra.mxu0 %v2902
  %v2927 = vpop.f32.mrf.mxu0
  %v2928 = vadd.f32 %v2915, %v2927
  %v2929 = vpop.f32.mrf.mxu0
  %2930 = vdwg.mxu0
  %2931 = vmatpush.bf16.xpose.msra.mxu0 0
  %2932 = vmatpush.bf16.xpose.msra.mxu0 0
  %2933 = vmatpush.bf16.xpose.msra.mxu0 0
  %2934 = vmatpush.bf16.xpose.msra.mxu0 0
  %2935 = vmatpush.bf16.xpose.msra.mxu0 0
  %2936 = vmatpush.bf16.xpose.msra.mxu0 0
  %2937 = vmatpush.bf16.xpose.msra.mxu0 0
  %2938 = vmatpush.bf16.xpose.msra.mxu0 %v1675
  %2939 = vmatmul.bf16.gmra.mxu0 %v2903
  %v2940 = vpop.f32.mrf.mxu0
  %v2941 = vadd.f32 %v2928, %v2940
  %v2942 = vpop.f32.mrf.mxu0
  %2943 = vdwg.mxu0
  %2944 = vmatpush.bf16.xpose.msra.mxu0 0
  %2945 = vmatpush.bf16.xpose.msra.mxu0 0
  %2946 = vmatpush.bf16.xpose.msra.mxu0 0
  %2947 = vmatpush.bf16.xpose.msra.mxu0 0
  %2948 = vmatpush.bf16.xpose.msra.mxu0 0
  %2949 = vmatpush.bf16.xpose.msra.mxu0 0
  %2950 = vmatpush.bf16.xpose.msra.mxu0 0
  %2951 = vmatpush.bf16.xpose.msra.mxu0 %v1676
  %2952 = vmatmul.bf16.gmra.mxu0 %v2904
  %v2953 = vpop.f32.mrf.mxu0
  %v2954 = vadd.f32 %v2941, %v2953
  %v2955 = vpop.f32.mrf.mxu0
  %2956 = vdwg.mxu0
  %v2957 = vmul.f32 %v2954, 0.00390625
  %v2958 = vpack.c.bf16 %v737, %v737
  %v2959 = vpack.c.bf16 %v2957, %v2957
  %v2961 = vsel %vm584, %v2958, 0
  %v2964 = vsel %vm588, %v2959, 0
  %2966 = vmatpush.bf16.msra.mxu0 0
  %2967 = vmatpush.bf16.msra.mxu0 0
  %2968 = vmatpush.bf16.msra.mxu0 0
  %2969 = vmatpush.bf16.msra.mxu0 0
  %2970 = vmatpush.bf16.msra.mxu0 0
  %2971 = vmatpush.bf16.msra.mxu0 0
  %2972 = vmatpush.bf16.msra.mxu0 0
  %2973 = vmatpush.bf16.msra.mxu0 %v2964
  %2974 = vmatmul.bf16.gmra.mxu0 %v2961
  %v2975 = vpop.f32.mrf.mxu0
  %v2976 = vadd.f32 0.0, %v2975
  %v2977 = vpop.f32.mrf.mxu0
  %2978 = vdwg.mxu0
  %v2979 = vmul.f32 %v2976, 0.2
  %v2980 = vmax.f32 %v2976, %v2979
  %v2981 = vpack.c.bf16 %v738, %v738
  %v2982 = vpack.c.bf16 %v2980, %v2980
  %v2984 = vsel %vm584, %v2981, 0
  %v2987 = vsel %vm588, %v2982, 0
  %2989 = vmatpush.bf16.msra.mxu0 0
  %2990 = vmatpush.bf16.msra.mxu0 0
  %2991 = vmatpush.bf16.msra.mxu0 0
  %2992 = vmatpush.bf16.msra.mxu0 0
  %2993 = vmatpush.bf16.msra.mxu0 0
  %2994 = vmatpush.bf16.msra.mxu0 0
  %2995 = vmatpush.bf16.msra.mxu0 0
  %2996 = vmatpush.bf16.msra.mxu0 %v2987
  %2997 = vmatmul.bf16.gmra.mxu0 %v2984
  %v2998 = vpop.f32.mrf.mxu0
  %v2999 = vadd.f32 0.0, %v2998
  %v3000 = vpop.f32.mrf.mxu0
  %3001 = vdwg.mxu0
  %v3002 = vpack.c.bf16 %v739, %v739
  %v3004 = vsel %vm584, %v3002, 0
  %3006 = vmatpush.bf16.msra.mxu0 0
  %3007 = vmatpush.bf16.msra.mxu0 0
  %3008 = vmatpush.bf16.msra.mxu0 0
  %3009 = vmatpush.bf16.msra.mxu0 0
  %3010 = vmatpush.bf16.msra.mxu0 0
  %3011 = vmatpush.bf16.msra.mxu0 0
  %3012 = vmatpush.bf16.msra.mxu0 0
  %3013 = vmatpush.bf16.msra.mxu0 %v2987
  %3014 = vmatmul.bf16.gmra.mxu0 %v3004
  %v3015 = vpop.f32.mrf.mxu0
  %v3016 = vadd.f32 0.0, %v3015
  %v3017 = vpop.f32.mrf.mxu0
  %3018 = vdwg.mxu0
  %v3019 = vmax.f32 %v2999, %v3016
  %v3020 = vsub.f32 %v2999, %v3019
  %v3021 = vmul.f32 %v3020, 1.442695
  %v3022 = vpow.pop %v3021
  %v3023 = vsub.f32 %v3016, %v3019
  %v3024 = vmul.f32 %v3023, 1.442695
  %v3025 = vpow.pop %v3024
  %v3026 = vadd.f32 %v3022, %v3025
  %v3027 = vrcp.pop %v3026
  %v3028 = vmul.f32 %v3022, %v3027
  %v3029 = vpack.c.bf16 %v3028, %v3028
  %v3031 = vsel %vm1774, %v3029, 0
  %3033 = vmatpush.bf16.msra.mxu0 0
  %3034 = vmatpush.bf16.msra.mxu0 0
  %3035 = vmatpush.bf16.msra.mxu0 0
  %3036 = vmatpush.bf16.msra.mxu0 0
  %3037 = vmatpush.bf16.msra.mxu0 0
  %3038 = vmatpush.bf16.msra.mxu0 0
  %3039 = vmatpush.bf16.msra.mxu0 0
  %3040 = vmatpush.bf16.msra.mxu0 %v1780
  %3041 = vmatmul.bf16.gmra.mxu0 %v3031
  %v3042 = vpop.f32.mrf.mxu0
  %v3043 = vadd.f32 0.0, %v3042
  %v3044 = vpop.f32.mrf.mxu0
  %3045 = vdwg.mxu0
  %3046 = vmatpush.bf16.msra.mxu0 0
  %3047 = vmatpush.bf16.msra.mxu0 0
  %3048 = vmatpush.bf16.msra.mxu0 0
  %3049 = vmatpush.bf16.msra.mxu0 0
  %3050 = vmatpush.bf16.msra.mxu0 0
  %3051 = vmatpush.bf16.msra.mxu0 0
  %3052 = vmatpush.bf16.msra.mxu0 0
  %3053 = vmatpush.bf16.msra.mxu0 %v1783
  %3054 = vmatmul.bf16.gmra.mxu0 %v3031
  %v3055 = vpop.f32.mrf.mxu0
  %v3056 = vadd.f32 0.0, %v3055
  %v3057 = vpop.f32.mrf.mxu0
  %3058 = vdwg.mxu0
  %3059 = vmatpush.bf16.msra.mxu0 0
  %3060 = vmatpush.bf16.msra.mxu0 0
  %3061 = vmatpush.bf16.msra.mxu0 0
  %3062 = vmatpush.bf16.msra.mxu0 0
  %3063 = vmatpush.bf16.msra.mxu0 0
  %3064 = vmatpush.bf16.msra.mxu0 0
  %3065 = vmatpush.bf16.msra.mxu0 0
  %3066 = vmatpush.bf16.msra.mxu0 %v1786
  %3067 = vmatmul.bf16.gmra.mxu0 %v3031
  %v3068 = vpop.f32.mrf.mxu0
  %v3069 = vadd.f32 0.0, %v3068
  %v3070 = vpop.f32.mrf.mxu0
  %3071 = vdwg.mxu0
  %3072 = vmatpush.bf16.msra.mxu0 0
  %3073 = vmatpush.bf16.msra.mxu0 0
  %3074 = vmatpush.bf16.msra.mxu0 0
  %3075 = vmatpush.bf16.msra.mxu0 0
  %3076 = vmatpush.bf16.msra.mxu0 0
  %3077 = vmatpush.bf16.msra.mxu0 0
  %3078 = vmatpush.bf16.msra.mxu0 0
  %3079 = vmatpush.bf16.msra.mxu0 %v1789
  %3080 = vmatmul.bf16.gmra.mxu0 %v3031
  %v3081 = vpop.f32.mrf.mxu0
  %v3082 = vadd.f32 0.0, %v3081
  %v3083 = vpop.f32.mrf.mxu0
  %3084 = vdwg.mxu0
  %v3085 = vmul.f32 %v1866, %v3043
  %v3086 = vmul.f32 %v1867, %v3056
  %v3087 = vmul.f32 %v1868, %v3069
  %v3088 = vmul.f32 %v1869, %v3082
  %v3089 = vmul.f32 %v3025, %v3027
  %v3090 = vpack.c.bf16 %v3089, %v3089
  %v3092 = vsel %vm1774, %v3090, 0
  %3094 = vmatpush.bf16.msra.mxu0 0
  %3095 = vmatpush.bf16.msra.mxu0 0
  %3096 = vmatpush.bf16.msra.mxu0 0
  %3097 = vmatpush.bf16.msra.mxu0 0
  %3098 = vmatpush.bf16.msra.mxu0 0
  %3099 = vmatpush.bf16.msra.mxu0 0
  %3100 = vmatpush.bf16.msra.mxu0 0
  %3101 = vmatpush.bf16.msra.mxu0 %v1780
  %3102 = vmatmul.bf16.gmra.mxu0 %v3092
  %v3103 = vpop.f32.mrf.mxu0
  %v3104 = vadd.f32 0.0, %v3103
  %v3105 = vpop.f32.mrf.mxu0
  %3106 = vdwg.mxu0
  %3107 = vmatpush.bf16.msra.mxu0 0
  %3108 = vmatpush.bf16.msra.mxu0 0
  %3109 = vmatpush.bf16.msra.mxu0 0
  %3110 = vmatpush.bf16.msra.mxu0 0
  %3111 = vmatpush.bf16.msra.mxu0 0
  %3112 = vmatpush.bf16.msra.mxu0 0
  %3113 = vmatpush.bf16.msra.mxu0 0
  %3114 = vmatpush.bf16.msra.mxu0 %v1783
  %3115 = vmatmul.bf16.gmra.mxu0 %v3092
  %v3116 = vpop.f32.mrf.mxu0
  %v3117 = vadd.f32 0.0, %v3116
  %v3118 = vpop.f32.mrf.mxu0
  %3119 = vdwg.mxu0
  %3120 = vmatpush.bf16.msra.mxu0 0
  %3121 = vmatpush.bf16.msra.mxu0 0
  %3122 = vmatpush.bf16.msra.mxu0 0
  %3123 = vmatpush.bf16.msra.mxu0 0
  %3124 = vmatpush.bf16.msra.mxu0 0
  %3125 = vmatpush.bf16.msra.mxu0 0
  %3126 = vmatpush.bf16.msra.mxu0 0
  %3127 = vmatpush.bf16.msra.mxu0 %v1786
  %3128 = vmatmul.bf16.gmra.mxu0 %v3092
  %v3129 = vpop.f32.mrf.mxu0
  %v3130 = vadd.f32 0.0, %v3129
  %v3131 = vpop.f32.mrf.mxu0
  %3132 = vdwg.mxu0
  %3133 = vmatpush.bf16.msra.mxu0 0
  %3134 = vmatpush.bf16.msra.mxu0 0
  %3135 = vmatpush.bf16.msra.mxu0 0
  %3136 = vmatpush.bf16.msra.mxu0 0
  %3137 = vmatpush.bf16.msra.mxu0 0
  %3138 = vmatpush.bf16.msra.mxu0 0
  %3139 = vmatpush.bf16.msra.mxu0 0
  %3140 = vmatpush.bf16.msra.mxu0 %v1789
  %3141 = vmatmul.bf16.gmra.mxu0 %v3092
  %v3142 = vpop.f32.mrf.mxu0
  %v3143 = vadd.f32 0.0, %v3142
  %v3144 = vpop.f32.mrf.mxu0
  %3145 = vdwg.mxu0
  %v3146 = vmul.f32 %v2855, %v3104
  %v3147 = vmul.f32 %v2868, %v3117
  %v3148 = vmul.f32 %v2881, %v3130
  %v3149 = vmul.f32 %v2894, %v3143
  %v3150 = vadd.f32 %v3085, %v3146
  %v3151 = vadd.f32 %v3086, %v3147
  %v3152 = vadd.f32 %v3087, %v3148
  %v3153 = vadd.f32 %v3088, %v3149
  %3154 = vrot.lane.b32.xlu0 %v3150, 17
  %v3155 = vpop.permute.xlu0 %3154
  %3156 = vrot.lane.b32.xlu0 %v3151, 17
  %v3157 = vpop.permute.xlu0 %3156
  %3158 = vrot.lane.b32.xlu0 %v3152, 17
  %v3159 = vpop.permute.xlu0 %3158
  %3160 = vrot.lane.b32.xlu0 %v3153, 17
  %v3161 = vpop.permute.xlu0 %3160
  %v3162 = vsel %vm761, %v3159, %v3161
  %v3163 = vsel %vm761, %v3157, %v3159
  %v3164 = vsel %vm761, %v3155, %v3157
  %v3165 = vsel %vm761, %v3161, %v3155
  %v3166 = vmul.f32 %v3165, %v766
  %v3167 = vmul.f32 %v3164, %v767
  %v3168 = vmul.f32 %v3163, %v768
  %v3169 = vmul.f32 %v3162, %v769
  %3170 = vrot.lane.b32.xlu0 %v3150, 16
  %v3171 = vpop.permute.xlu0 %3170
  %3172 = vrot.lane.b32.xlu0 %v3151, 16
  %v3173 = vpop.permute.xlu0 %3172
  %3174 = vrot.lane.b32.xlu0 %v3152, 16
  %v3175 = vpop.permute.xlu0 %3174
  %3176 = vrot.lane.b32.xlu0 %v3153, 16
  %v3177 = vpop.permute.xlu0 %3176
  %v3178 = vsel %vm793, %v3175, %v3177
  %v3179 = vsel %vm793, %v3173, %v3175
  %v3180 = vsel %vm793, %v3171, %v3173
  %v3181 = vsel %vm793, %v3177, %v3171
  %v3182 = vmul.f32 %v3181, %v798
  %v3183 = vmul.f32 %v3180, %v799
  %v3184 = vmul.f32 %v3179, %v800
  %v3185 = vmul.f32 %v3178, %v801
  %3186 = vrot.lane.b32.xlu0 %v3150, 15
  %v3187 = vpop.permute.xlu0 %3186
  %3188 = vrot.lane.b32.xlu0 %v3151, 15
  %v3189 = vpop.permute.xlu0 %3188
  %3190 = vrot.lane.b32.xlu0 %v3152, 15
  %v3191 = vpop.permute.xlu0 %3190
  %3192 = vrot.lane.b32.xlu0 %v3153, 15
  %v3193 = vpop.permute.xlu0 %3192
  %v3194 = vsel %vm825, %v3191, %v3193
  %v3195 = vsel %vm825, %v3189, %v3191
  %v3196 = vsel %vm825, %v3187, %v3189
  %v3197 = vsel %vm825, %v3193, %v3187
  %v3198 = vmul.f32 %v3197, %v830
  %v3199 = vmul.f32 %v3196, %v831
  %v3200 = vmul.f32 %v3195, %v832
  %v3201 = vmul.f32 %v3194, %v833
  %3202 = vrot.lane.b32.xlu0 %v3150, 1
  %v3203 = vpop.permute.xlu0 %3202
  %3204 = vrot.lane.b32.xlu0 %v3151, 1
  %v3205 = vpop.permute.xlu0 %3204
  %3206 = vrot.lane.b32.xlu0 %v3152, 1
  %v3207 = vpop.permute.xlu0 %3206
  %3208 = vrot.lane.b32.xlu0 %v3153, 1
  %v3209 = vpop.permute.xlu0 %3208
  %v3210 = vsel %vm857, %v3207, %v3209
  %v3211 = vsel %vm857, %v3205, %v3207
  %v3212 = vsel %vm857, %v3203, %v3205
  %v3213 = vsel %vm857, %v3209, %v3203
  %v3214 = vmul.f32 %v3213, %v862
  %v3215 = vmul.f32 %v3212, %v863
  %v3216 = vmul.f32 %v3211, %v864
  %v3217 = vmul.f32 %v3210, %v865
  %v3218 = vmul.f32 %v3150, %v870
  %v3219 = vmul.f32 %v3151, %v871
  %v3220 = vmul.f32 %v3152, %v872
  %v3221 = vmul.f32 %v3153, %v873
  %3222 = vrot.lane.b32.xlu0 %v3150, 127
  %v3223 = vpop.permute.xlu0 %3222
  %3224 = vrot.lane.b32.xlu0 %v3151, 127
  %v3225 = vpop.permute.xlu0 %3224
  %3226 = vrot.lane.b32.xlu0 %v3152, 127
  %v3227 = vpop.permute.xlu0 %3226
  %3228 = vrot.lane.b32.xlu0 %v3153, 127
  %v3229 = vpop.permute.xlu0 %3228
  %v3230 = vsel %vm905, %v3227, %v3229
  %v3231 = vsel %vm905, %v3225, %v3227
  %v3232 = vsel %vm905, %v3223, %v3225
  %v3233 = vsel %vm905, %v3229, %v3223
  %v3234 = vmul.f32 %v3232, %v910
  %v3235 = vmul.f32 %v3231, %v911
  %v3236 = vmul.f32 %v3230, %v912
  %v3237 = vmul.f32 %v3233, %v913
  %3238 = vrot.lane.b32.xlu0 %v3150, 113
  %v3239 = vpop.permute.xlu0 %3238
  %3240 = vrot.lane.b32.xlu0 %v3151, 113
  %v3241 = vpop.permute.xlu0 %3240
  %3242 = vrot.lane.b32.xlu0 %v3152, 113
  %v3243 = vpop.permute.xlu0 %3242
  %3244 = vrot.lane.b32.xlu0 %v3153, 113
  %v3245 = vpop.permute.xlu0 %3244
  %v3246 = vsel %vm937, %v3243, %v3245
  %v3247 = vsel %vm937, %v3241, %v3243
  %v3248 = vsel %vm937, %v3239, %v3241
  %v3249 = vsel %vm937, %v3245, %v3239
  %v3250 = vmul.f32 %v3248, %v942
  %v3251 = vmul.f32 %v3247, %v943
  %v3252 = vmul.f32 %v3246, %v944
  %v3253 = vmul.f32 %v3249, %v945
  %3254 = vrot.lane.b32.xlu0 %v3150, 112
  %v3255 = vpop.permute.xlu0 %3254
  %3256 = vrot.lane.b32.xlu0 %v3151, 112
  %v3257 = vpop.permute.xlu0 %3256
  %3258 = vrot.lane.b32.xlu0 %v3152, 112
  %v3259 = vpop.permute.xlu0 %3258
  %3260 = vrot.lane.b32.xlu0 %v3153, 112
  %v3261 = vpop.permute.xlu0 %3260
  %v3262 = vsel %vm969, %v3259, %v3261
  %v3263 = vsel %vm969, %v3257, %v3259
  %v3264 = vsel %vm969, %v3255, %v3257
  %v3265 = vsel %vm969, %v3261, %v3255
  %v3266 = vmul.f32 %v3264, %v974
  %v3267 = vmul.f32 %v3263, %v975
  %v3268 = vmul.f32 %v3262, %v976
  %v3269 = vmul.f32 %v3265, %v977
  %3270 = vrot.lane.b32.xlu0 %v3150, 111
  %v3271 = vpop.permute.xlu0 %3270
  %3272 = vrot.lane.b32.xlu0 %v3151, 111
  %v3273 = vpop.permute.xlu0 %3272
  %3274 = vrot.lane.b32.xlu0 %v3152, 111
  %v3275 = vpop.permute.xlu0 %3274
  %3276 = vrot.lane.b32.xlu0 %v3153, 111
  %v3277 = vpop.permute.xlu0 %3276
  %v3278 = vsel %vm1001, %v3275, %v3277
  %v3279 = vsel %vm1001, %v3273, %v3275
  %v3280 = vsel %vm1001, %v3271, %v3273
  %v3281 = vsel %vm1001, %v3277, %v3271
  %v3282 = vmul.f32 %v3280, %v1006
  %v3283 = vmul.f32 %v3279, %v1007
  %v3284 = vmul.f32 %v3278, %v1008
  %v3285 = vmul.f32 %v3281, %v1009
  %v3290 = vrot.slane %v3182, 4
  %v3291 = vrot.slane %v3183, 4
  %v3292 = vrot.slane %v3184, 4
  %v3293 = vrot.slane %v3185, 4
  %v3302 = vrot.slane %v3214, 4
  %v3303 = vrot.slane %v3215, 4
  %v3304 = vrot.slane %v3216, 4
  %v3305 = vrot.slane %v3217, 4
  %v3314 = vrot.slane %v3234, 4
  %v3315 = vrot.slane %v3235, 4
  %v3316 = vrot.slane %v3236, 4
  %v3317 = vrot.slane %v3237, 4
  %v3326 = vrot.slane %v3266, 4
  %v3327 = vrot.slane %v3267, 4
  %v3328 = vrot.slane %v3268, 4
  %v3329 = vrot.slane %v3269, 4
  %v3334 = vsel %vm696, %v3166, %v3290
  %v3335 = vsel %vm696, %v3167, %v3291
  %v3336 = vsel %vm696, %v3168, %v3292
  %v3337 = vsel %vm696, %v3169, %v3293
  %v3338 = vsel %vm696, %v3198, %v3302
  %v3339 = vsel %vm696, %v3199, %v3303
  %v3340 = vsel %vm696, %v3200, %v3304
  %v3341 = vsel %vm696, %v3201, %v3305
  %v3342 = vsel %vm696, %v3218, %v3314
  %v3343 = vsel %vm696, %v3219, %v3315
  %v3344 = vsel %vm696, %v3220, %v3316
  %v3345 = vsel %vm696, %v3221, %v3317
  %v3346 = vsel %vm696, %v3250, %v3326
  %v3347 = vsel %vm696, %v3251, %v3327
  %v3348 = vsel %vm696, %v3252, %v3328
  %v3349 = vsel %vm696, %v3253, %v3329
  %v3350 = vpack.c.bf16 %v3338, %v3334
  %v3351 = vpack.c.bf16 %v3339, %v3335
  %v3352 = vpack.c.bf16 %v3340, %v3336
  %v3353 = vpack.c.bf16 %v3341, %v3337
  %v3354 = vpack.c.bf16 %v3346, %v3342
  %v3355 = vpack.c.bf16 %v3347, %v3343
  %v3356 = vpack.c.bf16 %v3348, %v3344
  %v3357 = vpack.c.bf16 %v3349, %v3345
  %v3358 = vpack.c.bf16 %v3282, %v3282
  %v3359 = vpack.c.bf16 %v3283, %v3283
  %v3360 = vpack.c.bf16 %v3284, %v3284
  %v3361 = vpack.c.bf16 %v3285, %v3285
  %v3363 = vsel %vm588, %v3358, 0
  %v3366 = vsel %vm588, %v3359, 0
  %v3369 = vsel %vm588, %v3360, 0
  %v3372 = vsel %vm588, %v3361, 0
  %3374 = vmatpush.bf16.msra.mxu0 0
  %3375 = vmatpush.bf16.msra.mxu0 0
  %3376 = vmatpush.bf16.msra.mxu0 0
  %3377 = vmatpush.bf16.msra.mxu0 0
  %3378 = vmatpush.bf16.msra.mxu0 0
  %3379 = vmatpush.bf16.msra.mxu0 %v3363
  %3380 = vmatpush.bf16.msra.mxu0 %v3354
  %3381 = vmatpush.bf16.msra.mxu0 %v3350
  %3382 = vmatmul.bf16.gmra.mxu0 %v1105
  %v3383 = vpop.f32.mrf.mxu0
  %v3384 = vadd.f32 0.0, %v3383
  %v3385 = vpop.f32.mrf.mxu0
  %3386 = vdwg.mxu0
  %3387 = vmatpush.bf16.msra.mxu0 0
  %3388 = vmatpush.bf16.msra.mxu0 0
  %3389 = vmatpush.bf16.msra.mxu0 0
  %3390 = vmatpush.bf16.msra.mxu0 0
  %3391 = vmatpush.bf16.msra.mxu0 0
  %3392 = vmatpush.bf16.msra.mxu0 %v3366
  %3393 = vmatpush.bf16.msra.mxu0 %v3355
  %3394 = vmatpush.bf16.msra.mxu0 %v3351
  %3395 = vmatmul.bf16.gmra.mxu0 %v1105
  %v3396 = vpop.f32.mrf.mxu0
  %v3397 = vadd.f32 0.0, %v3396
  %v3398 = vpop.f32.mrf.mxu0
  %3399 = vdwg.mxu0
  %3400 = vmatpush.bf16.msra.mxu0 0
  %3401 = vmatpush.bf16.msra.mxu0 0
  %3402 = vmatpush.bf16.msra.mxu0 0
  %3403 = vmatpush.bf16.msra.mxu0 0
  %3404 = vmatpush.bf16.msra.mxu0 0
  %3405 = vmatpush.bf16.msra.mxu0 %v3369
  %3406 = vmatpush.bf16.msra.mxu0 %v3356
  %3407 = vmatpush.bf16.msra.mxu0 %v3352
  %3408 = vmatmul.bf16.gmra.mxu0 %v1105
  %v3409 = vpop.f32.mrf.mxu0
  %v3410 = vadd.f32 0.0, %v3409
  %v3411 = vpop.f32.mrf.mxu0
  %3412 = vdwg.mxu0
  %3413 = vmatpush.bf16.msra.mxu0 0
  %3414 = vmatpush.bf16.msra.mxu0 0
  %3415 = vmatpush.bf16.msra.mxu0 0
  %3416 = vmatpush.bf16.msra.mxu0 0
  %3417 = vmatpush.bf16.msra.mxu0 0
  %3418 = vmatpush.bf16.msra.mxu0 %v3372
  %3419 = vmatpush.bf16.msra.mxu0 %v3357
  %3420 = vmatpush.bf16.msra.mxu0 %v3353
  %3421 = vmatmul.bf16.gmra.mxu0 %v1105
  %v3422 = vpop.f32.mrf.mxu0
  %v3423 = vadd.f32 0.0, %v3422
  %v3424 = vpop.f32.mrf.mxu0
  %3425 = vdwg.mxu0
  %v3426 = vmul.f32 %v3384, 0.2
  %v3427 = vmul.f32 %v3397, 0.2
  %v3428 = vmul.f32 %v3410, 0.2
  %v3429 = vmul.f32 %v3423, 0.2
  %v3430 = vmax.f32 %v3384, %v3426
  %v3431 = vmax.f32 %v3397, %v3427
  %v3432 = vmax.f32 %v3410, %v3428
  %v3433 = vmax.f32 %v3423, %v3429
  %3434 = vrot.lane.b32.xlu0 %v3430, 17
  %v3435 = vpop.permute.xlu0 %3434
  %3436 = vrot.lane.b32.xlu0 %v3431, 17
  %v3437 = vpop.permute.xlu0 %3436
  %3438 = vrot.lane.b32.xlu0 %v3432, 17
  %v3439 = vpop.permute.xlu0 %3438
  %3440 = vrot.lane.b32.xlu0 %v3433, 17
  %v3441 = vpop.permute.xlu0 %3440
  %v3442 = vsel %vm761, %v3439, %v3441
  %v3443 = vsel %vm761, %v3437, %v3439
  %v3444 = vsel %vm761, %v3435, %v3437
  %v3445 = vsel %vm761, %v3441, %v3435
  %v3446 = vmul.f32 %v3445, %v766
  %v3447 = vmul.f32 %v3444, %v767
  %v3448 = vmul.f32 %v3443, %v768
  %v3449 = vmul.f32 %v3442, %v769
  %3450 = vrot.lane.b32.xlu0 %v3430, 16
  %v3451 = vpop.permute.xlu0 %3450
  %3452 = vrot.lane.b32.xlu0 %v3431, 16
  %v3453 = vpop.permute.xlu0 %3452
  %3454 = vrot.lane.b32.xlu0 %v3432, 16
  %v3455 = vpop.permute.xlu0 %3454
  %3456 = vrot.lane.b32.xlu0 %v3433, 16
  %v3457 = vpop.permute.xlu0 %3456
  %v3458 = vsel %vm793, %v3455, %v3457
  %v3459 = vsel %vm793, %v3453, %v3455
  %v3460 = vsel %vm793, %v3451, %v3453
  %v3461 = vsel %vm793, %v3457, %v3451
  %v3462 = vmul.f32 %v3461, %v798
  %v3463 = vmul.f32 %v3460, %v799
  %v3464 = vmul.f32 %v3459, %v800
  %v3465 = vmul.f32 %v3458, %v801
  %3466 = vrot.lane.b32.xlu0 %v3430, 15
  %v3467 = vpop.permute.xlu0 %3466
  %3468 = vrot.lane.b32.xlu0 %v3431, 15
  %v3469 = vpop.permute.xlu0 %3468
  %3470 = vrot.lane.b32.xlu0 %v3432, 15
  %v3471 = vpop.permute.xlu0 %3470
  %3472 = vrot.lane.b32.xlu0 %v3433, 15
  %v3473 = vpop.permute.xlu0 %3472
  %v3474 = vsel %vm825, %v3471, %v3473
  %v3475 = vsel %vm825, %v3469, %v3471
  %v3476 = vsel %vm825, %v3467, %v3469
  %v3477 = vsel %vm825, %v3473, %v3467
  %v3478 = vmul.f32 %v3477, %v830
  %v3479 = vmul.f32 %v3476, %v831
  %v3480 = vmul.f32 %v3475, %v832
  %v3481 = vmul.f32 %v3474, %v833
  %3482 = vrot.lane.b32.xlu0 %v3430, 1
  %v3483 = vpop.permute.xlu0 %3482
  %3484 = vrot.lane.b32.xlu0 %v3431, 1
  %v3485 = vpop.permute.xlu0 %3484
  %3486 = vrot.lane.b32.xlu0 %v3432, 1
  %v3487 = vpop.permute.xlu0 %3486
  %3488 = vrot.lane.b32.xlu0 %v3433, 1
  %v3489 = vpop.permute.xlu0 %3488
  %v3490 = vsel %vm857, %v3487, %v3489
  %v3491 = vsel %vm857, %v3485, %v3487
  %v3492 = vsel %vm857, %v3483, %v3485
  %v3493 = vsel %vm857, %v3489, %v3483
  %v3494 = vmul.f32 %v3493, %v862
  %v3495 = vmul.f32 %v3492, %v863
  %v3496 = vmul.f32 %v3491, %v864
  %v3497 = vmul.f32 %v3490, %v865
  %v3498 = vmul.f32 %v3430, %v870
  %v3499 = vmul.f32 %v3431, %v871
  %v3500 = vmul.f32 %v3432, %v872
  %v3501 = vmul.f32 %v3433, %v873
  %3502 = vrot.lane.b32.xlu0 %v3430, 127
  %v3503 = vpop.permute.xlu0 %3502
  %3504 = vrot.lane.b32.xlu0 %v3431, 127
  %v3505 = vpop.permute.xlu0 %3504
  %3506 = vrot.lane.b32.xlu0 %v3432, 127
  %v3507 = vpop.permute.xlu0 %3506
  %3508 = vrot.lane.b32.xlu0 %v3433, 127
  %v3509 = vpop.permute.xlu0 %3508
  %v3510 = vsel %vm905, %v3507, %v3509
  %v3511 = vsel %vm905, %v3505, %v3507
  %v3512 = vsel %vm905, %v3503, %v3505
  %v3513 = vsel %vm905, %v3509, %v3503
  %v3514 = vmul.f32 %v3512, %v910
  %v3515 = vmul.f32 %v3511, %v911
  %v3516 = vmul.f32 %v3510, %v912
  %v3517 = vmul.f32 %v3513, %v913
  %3518 = vrot.lane.b32.xlu0 %v3430, 113
  %v3519 = vpop.permute.xlu0 %3518
  %3520 = vrot.lane.b32.xlu0 %v3431, 113
  %v3521 = vpop.permute.xlu0 %3520
  %3522 = vrot.lane.b32.xlu0 %v3432, 113
  %v3523 = vpop.permute.xlu0 %3522
  %3524 = vrot.lane.b32.xlu0 %v3433, 113
  %v3525 = vpop.permute.xlu0 %3524
  %v3526 = vsel %vm937, %v3523, %v3525
  %v3527 = vsel %vm937, %v3521, %v3523
  %v3528 = vsel %vm937, %v3519, %v3521
  %v3529 = vsel %vm937, %v3525, %v3519
  %v3530 = vmul.f32 %v3528, %v942
  %v3531 = vmul.f32 %v3527, %v943
  %v3532 = vmul.f32 %v3526, %v944
  %v3533 = vmul.f32 %v3529, %v945
  %3534 = vrot.lane.b32.xlu0 %v3430, 112
  %v3535 = vpop.permute.xlu0 %3534
  %3536 = vrot.lane.b32.xlu0 %v3431, 112
  %v3537 = vpop.permute.xlu0 %3536
  %3538 = vrot.lane.b32.xlu0 %v3432, 112
  %v3539 = vpop.permute.xlu0 %3538
  %3540 = vrot.lane.b32.xlu0 %v3433, 112
  %v3541 = vpop.permute.xlu0 %3540
  %v3542 = vsel %vm969, %v3539, %v3541
  %v3543 = vsel %vm969, %v3537, %v3539
  %v3544 = vsel %vm969, %v3535, %v3537
  %v3545 = vsel %vm969, %v3541, %v3535
  %v3546 = vmul.f32 %v3544, %v974
  %v3547 = vmul.f32 %v3543, %v975
  %v3548 = vmul.f32 %v3542, %v976
  %v3549 = vmul.f32 %v3545, %v977
  %3550 = vrot.lane.b32.xlu0 %v3430, 111
  %v3551 = vpop.permute.xlu0 %3550
  %3552 = vrot.lane.b32.xlu0 %v3431, 111
  %v3553 = vpop.permute.xlu0 %3552
  %3554 = vrot.lane.b32.xlu0 %v3432, 111
  %v3555 = vpop.permute.xlu0 %3554
  %3556 = vrot.lane.b32.xlu0 %v3433, 111
  %v3557 = vpop.permute.xlu0 %3556
  %v3558 = vsel %vm1001, %v3555, %v3557
  %v3559 = vsel %vm1001, %v3553, %v3555
  %v3560 = vsel %vm1001, %v3551, %v3553
  %v3561 = vsel %vm1001, %v3557, %v3551
  %v3562 = vmul.f32 %v3560, %v1006
  %v3563 = vmul.f32 %v3559, %v1007
  %v3564 = vmul.f32 %v3558, %v1008
  %v3565 = vmul.f32 %v3561, %v1009
  %v3570 = vrot.slane %v3462, 4
  %v3571 = vrot.slane %v3463, 4
  %v3572 = vrot.slane %v3464, 4
  %v3573 = vrot.slane %v3465, 4
  %v3582 = vrot.slane %v3494, 4
  %v3583 = vrot.slane %v3495, 4
  %v3584 = vrot.slane %v3496, 4
  %v3585 = vrot.slane %v3497, 4
  %v3594 = vrot.slane %v3514, 4
  %v3595 = vrot.slane %v3515, 4
  %v3596 = vrot.slane %v3516, 4
  %v3597 = vrot.slane %v3517, 4
  %v3606 = vrot.slane %v3546, 4
  %v3607 = vrot.slane %v3547, 4
  %v3608 = vrot.slane %v3548, 4
  %v3609 = vrot.slane %v3549, 4
  %v3614 = vsel %vm696, %v3446, %v3570
  %v3615 = vsel %vm696, %v3447, %v3571
  %v3616 = vsel %vm696, %v3448, %v3572
  %v3617 = vsel %vm696, %v3449, %v3573
  %v3618 = vsel %vm696, %v3478, %v3582
  %v3619 = vsel %vm696, %v3479, %v3583
  %v3620 = vsel %vm696, %v3480, %v3584
  %v3621 = vsel %vm696, %v3481, %v3585
  %v3622 = vsel %vm696, %v3498, %v3594
  %v3623 = vsel %vm696, %v3499, %v3595
  %v3624 = vsel %vm696, %v3500, %v3596
  %v3625 = vsel %vm696, %v3501, %v3597
  %v3626 = vsel %vm696, %v3530, %v3606
  %v3627 = vsel %vm696, %v3531, %v3607
  %v3628 = vsel %vm696, %v3532, %v3608
  %v3629 = vsel %vm696, %v3533, %v3609
  %v3630 = vpack.c.bf16 %v3618, %v3614
  %v3631 = vpack.c.bf16 %v3619, %v3615
  %v3632 = vpack.c.bf16 %v3620, %v3616
  %v3633 = vpack.c.bf16 %v3621, %v3617
  %v3634 = vpack.c.bf16 %v3626, %v3622
  %v3635 = vpack.c.bf16 %v3627, %v3623
  %v3636 = vpack.c.bf16 %v3628, %v3624
  %v3637 = vpack.c.bf16 %v3629, %v3625
  %v3638 = vpack.c.bf16 %v3562, %v3562
  %v3639 = vpack.c.bf16 %v3563, %v3563
  %v3640 = vpack.c.bf16 %v3564, %v3564
  %v3641 = vpack.c.bf16 %v3565, %v3565
  %v3643 = vsel %vm588, %v3638, 0
  %v3646 = vsel %vm588, %v3639, 0
  %v3649 = vsel %vm588, %v3640, 0
  %v3652 = vsel %vm588, %v3641, 0
  %3654 = vmatpush.bf16.msra.mxu0 0
  %3655 = vmatpush.bf16.msra.mxu0 0
  %3656 = vmatpush.bf16.msra.mxu0 0
  %3657 = vmatpush.bf16.msra.mxu0 0
  %3658 = vmatpush.bf16.msra.mxu0 0
  %3659 = vmatpush.bf16.msra.mxu0 %v3643
  %3660 = vmatpush.bf16.msra.mxu0 %v3634
  %3661 = vmatpush.bf16.msra.mxu0 %v3630
  %3662 = vmatmul.bf16.gmra.mxu0 %v1388
  %v3663 = vpop.f32.mrf.mxu0
  %v3664 = vadd.f32 0.0, %v3663
  %v3665 = vpop.f32.mrf.mxu0
  %3666 = vdwg.mxu0
  %3667 = vmatpush.bf16.msra.mxu0 0
  %3668 = vmatpush.bf16.msra.mxu0 0
  %3669 = vmatpush.bf16.msra.mxu0 0
  %3670 = vmatpush.bf16.msra.mxu0 0
  %3671 = vmatpush.bf16.msra.mxu0 0
  %3672 = vmatpush.bf16.msra.mxu0 %v3646
  %3673 = vmatpush.bf16.msra.mxu0 %v3635
  %3674 = vmatpush.bf16.msra.mxu0 %v3631
  %3675 = vmatmul.bf16.gmra.mxu0 %v1388
  %v3676 = vpop.f32.mrf.mxu0
  %v3677 = vadd.f32 0.0, %v3676
  %v3678 = vpop.f32.mrf.mxu0
  %3679 = vdwg.mxu0
  %3680 = vmatpush.bf16.msra.mxu0 0
  %3681 = vmatpush.bf16.msra.mxu0 0
  %3682 = vmatpush.bf16.msra.mxu0 0
  %3683 = vmatpush.bf16.msra.mxu0 0
  %3684 = vmatpush.bf16.msra.mxu0 0
  %3685 = vmatpush.bf16.msra.mxu0 %v3649
  %3686 = vmatpush.bf16.msra.mxu0 %v3636
  %3687 = vmatpush.bf16.msra.mxu0 %v3632
  %3688 = vmatmul.bf16.gmra.mxu0 %v1388
  %v3689 = vpop.f32.mrf.mxu0
  %v3690 = vadd.f32 0.0, %v3689
  %v3691 = vpop.f32.mrf.mxu0
  %3692 = vdwg.mxu0
  %3693 = vmatpush.bf16.msra.mxu0 0
  %3694 = vmatpush.bf16.msra.mxu0 0
  %3695 = vmatpush.bf16.msra.mxu0 0
  %3696 = vmatpush.bf16.msra.mxu0 0
  %3697 = vmatpush.bf16.msra.mxu0 0
  %3698 = vmatpush.bf16.msra.mxu0 %v3652
  %3699 = vmatpush.bf16.msra.mxu0 %v3637
  %3700 = vmatpush.bf16.msra.mxu0 %v3633
  %3701 = vmatmul.bf16.gmra.mxu0 %v1388
  %v3702 = vpop.f32.mrf.mxu0
  %v3703 = vadd.f32 0.0, %v3702
  %v3704 = vpop.f32.mrf.mxu0
  %3705 = vdwg.mxu0
  %v3706 = vmul.f32 %v1457, %v3664
  %v3707 = vmul.f32 %v1457, %v3677
  %v3708 = vmul.f32 %v1457, %v3690
  %v3709 = vmul.f32 %v1457, %v3703
  %v3710 = vsel %vm696, %v3706, 0.0
  %v3711 = vrot.slane %v3710, 4
  %v3712 = vadd.f32 %v3710, %v3711
  %v3713 = vrot.slane %v3712, 2
  %v3714 = vadd.f32 %v3712, %v3713
  %v3715 = vrot.slane %v3714, 1
  %v3716 = vadd.f32 %v3714, %v3715
  %v3717 = vsel %vm696, %v3707, 0.0
  %v3718 = vrot.slane %v3717, 4
  %v3719 = vadd.f32 %v3717, %v3718
  %v3720 = vrot.slane %v3719, 2
  %v3721 = vadd.f32 %v3719, %v3720
  %v3722 = vrot.slane %v3721, 1
  %v3723 = vadd.f32 %v3721, %v3722
  %v3724 = vsel %vm696, %v3708, 0.0
  %v3725 = vrot.slane %v3724, 4
  %v3726 = vadd.f32 %v3724, %v3725
  %v3727 = vrot.slane %v3726, 2
  %v3728 = vadd.f32 %v3726, %v3727
  %v3729 = vrot.slane %v3728, 1
  %v3730 = vadd.f32 %v3728, %v3729
  %v3731 = vsel %vm696, %v3709, 0.0
  %v3732 = vrot.slane %v3731, 4
  %v3733 = vadd.f32 %v3731, %v3732
  %v3734 = vrot.slane %v3733, 2
  %v3735 = vadd.f32 %v3733, %v3734
  %v3736 = vrot.slane %v3735, 1
  %v3737 = vadd.f32 %v3735, %v3736
  %v3742 = vrot.slane %v3723, 6
  %v3743 = vrot.slane %v3730, 4
  %v3744 = vrot.slane %v3737, 2
  %v3745 = vsel %vm588, %v3716, %v3742
  %v3746 = vsel %vm1499, %v3743, %v3744
  %v3747 = vsel %vm696, %v3745, %v3746
  %v3749 = vsel %vm180, %v3747, -1e+30
  %3751 = vst [vmem:[#allocation1] ss:$4 sm:$0xff] %v3749
  %v3752 = vld.sshfl [vmem:[#allocation1] sm:$0xff pattern:$0x73625140]
  %v3753 = vld.sshfl [vmem:[#allocation1 + $0x8] sm:$0xff pattern:$0x73625140]
  %v3754 = vld.sshfl [vmem:[#allocation1 + $0x10] sm:$0xff pattern:$0x73625140]
  %v3755 = vld.sshfl [vmem:[#allocation1 + $0x18] sm:$0xff pattern:$0x73625140]
  %v3760 = vsel %vm588, %v3752, -inf
  %v3761 = vsel %vm588, %v3753, -inf
  %v3762 = vsel %vm588, %v3754, -inf
  %v3763 = vsel %vm588, %v3755, -inf
  %v3764 = vmax.f32 %v3760, %v3761
  %v3765 = vmax.f32 %v3762, %v3763
  %v3766 = vmax.f32 %v3764, %v3765
  %3767 = vmax.xlane.f32.xlu0 %v3766
  %v3768 = vpop.xlane.xlu0 %3767
  %3769 = vst [vmem:[#allocation1] ss:$4 sm:$0xff] %v179
  %v3770 = vld.sshfl [vmem:[#allocation1] sm:$0xff pattern:$0x73625140]
  %v3771 = vld.sshfl [vmem:[#allocation1 + $0x8] sm:$0xff pattern:$0x73625140]
  %v3772 = vld.sshfl [vmem:[#allocation1 + $0x10] sm:$0xff pattern:$0x73625140]
  %v3773 = vld.sshfl [vmem:[#allocation1 + $0x18] sm:$0xff pattern:$0x73625140]
  %v3778 = vmul.f32 %v3768, %v3770
  %v3779 = vmul.f32 %v3768, %v3771
  %v3780 = vmul.f32 %v3768, %v3772
  %v3781 = vmul.f32 %v3768, %v3773
  %v3782 = vsel %vm588, %v3778, 0.0
  %v3783 = vrot.slane %v3782, 4
  %v3784 = vadd.f32 %v3782, %v3783
  %v3785 = vrot.slane %v3784, 2
  %v3786 = vadd.f32 %v3784, %v3785
  %v3787 = vrot.slane %v3786, 1
  %v3788 = vadd.f32 %v3786, %v3787
  %v3789 = vsel %vm588, %v3779, 0.0
  %v3790 = vrot.slane %v3789, 4
  %v3791 = vadd.f32 %v3789, %v3790
  %v3792 = vrot.slane %v3791, 2
  %v3793 = vadd.f32 %v3791, %v3792
  %v3794 = vrot.slane %v3793, 1
  %v3795 = vadd.f32 %v3793, %v3794
  %v3796 = vsel %vm588, %v3780, 0.0
  %v3797 = vrot.slane %v3796, 4
  %v3798 = vadd.f32 %v3796, %v3797
  %v3799 = vrot.slane %v3798, 2
  %v3800 = vadd.f32 %v3798, %v3799
  %v3801 = vrot.slane %v3800, 1
  %v3802 = vadd.f32 %v3800, %v3801
  %v3803 = vsel %vm588, %v3781, 0.0
  %v3804 = vrot.slane %v3803, 4
  %v3805 = vadd.f32 %v3803, %v3804
  %v3806 = vrot.slane %v3805, 2
  %v3807 = vadd.f32 %v3805, %v3806
  %v3808 = vrot.slane %v3807, 1
  %v3809 = vadd.f32 %v3807, %v3808
  %v3810 = vsub.f32 %v3716, %v3788
  %v3811 = vsub.f32 %v3723, %v3795
  %v3812 = vsub.f32 %v3730, %v3802
  %v3813 = vsub.f32 %v3737, %v3809
  %v3814 = vmul.f32 %v3810, 1.442695
  %v3815 = vpow.pop %v3814
  %v3816 = vmul.f32 %v3811, 1.442695
  %v3817 = vpow.pop %v3816
  %v3818 = vmul.f32 %v3812, 1.442695
  %v3819 = vpow.pop %v3818
  %v3820 = vmul.f32 %v3813, 1.442695
  %v3821 = vpow.pop %v3820
  %3822 = vst [vmem:[#allocation1] ss:$4 sm:$0xff] %v179
  %v3823 = vld.sshfl [vmem:[#allocation1] sm:$0xff pattern:$0x73625140]
  %v3824 = vld.sshfl [vmem:[#allocation1 + $0x8] sm:$0xff pattern:$0x73625140]
  %v3825 = vld.sshfl [vmem:[#allocation1 + $0x10] sm:$0xff pattern:$0x73625140]
  %v3826 = vld.sshfl [vmem:[#allocation1 + $0x18] sm:$0xff pattern:$0x73625140]
  %v3831 = vmul.f32 %v3815, %v3823
  %v3832 = vmul.f32 %v3817, %v3824
  %v3833 = vmul.f32 %v3819, %v3825
  %v3834 = vmul.f32 %v3821, %v3826
  %v3835 = vsel %vm588, %v3831, 0.0
  %v3836 = vsel %vm588, %v3832, 0.0
  %v3837 = vadd.f32 %v3835, %v3836
  %v3838 = vsel %vm588, %v3833, 0.0
  %v3839 = vadd.f32 %v3837, %v3838
  %v3840 = vsel %vm588, %v3834, 0.0
  %v3841 = vadd.f32 %v3839, %v3840
  %3842 = vadd.xlane.f32.xlu0 %v3841
  %v3843 = vpop.xlane.xlu0 %3842
  %3844 = vst [vmem:[#allocation1] ss:$4 sm:$0xff] %v179
  %v3845 = vld.sshfl [vmem:[#allocation1] sm:$0xff pattern:$0x73625140]
  %v3846 = vld.sshfl [vmem:[#allocation1 + $0x8] sm:$0xff pattern:$0x73625140]
  %v3847 = vld.sshfl [vmem:[#allocation1 + $0x10] sm:$0xff pattern:$0x73625140]
  %v3848 = vld.sshfl [vmem:[#allocation1 + $0x18] sm:$0xff pattern:$0x73625140]
  %v3853 = vmul.f32 %v3843, %v3845
  %v3854 = vmul.f32 %v3843, %v3846
  %v3855 = vmul.f32 %v3843, %v3847
  %v3856 = vmul.f32 %v3843, %v3848
  %v3857 = vsel %vm588, %v3853, 0.0
  %v3858 = vrot.slane %v3857, 4
  %v3859 = vadd.f32 %v3857, %v3858
  %v3860 = vrot.slane %v3859, 2
  %v3861 = vadd.f32 %v3859, %v3860
  %v3862 = vrot.slane %v3861, 1
  %v3863 = vadd.f32 %v3861, %v3862
  %v3864 = vsel %vm588, %v3854, 0.0
  %v3865 = vrot.slane %v3864, 4
  %v3866 = vadd.f32 %v3864, %v3865
  %v3867 = vrot.slane %v3866, 2
  %v3868 = vadd.f32 %v3866, %v3867
  %v3869 = vrot.slane %v3868, 1
  %v3870 = vadd.f32 %v3868, %v3869
  %v3871 = vsel %vm588, %v3855, 0.0
  %v3872 = vrot.slane %v3871, 4
  %v3873 = vadd.f32 %v3871, %v3872
  %v3874 = vrot.slane %v3873, 2
  %v3875 = vadd.f32 %v3873, %v3874
  %v3876 = vrot.slane %v3875, 1
  %v3877 = vadd.f32 %v3875, %v3876
  %v3878 = vsel %vm588, %v3856, 0.0
  %v3879 = vrot.slane %v3878, 4
  %v3880 = vadd.f32 %v3878, %v3879
  %v3881 = vrot.slane %v3880, 2
  %v3882 = vadd.f32 %v3880, %v3881
  %v3883 = vrot.slane %v3882, 1
  %v3884 = vadd.f32 %v3882, %v3883
  %v3885 = vadd.f32 %v3863, %v181
  %v3886 = vadd.f32 %v3870, %v182
  %v3887 = vadd.f32 %v3877, %v183
  %v3888 = vadd.f32 %v3884, %v184
  %v3889 = vrcp.pop %v3885
  %v3890 = vrcp.pop %v3886
  %v3891 = vrcp.pop %v3887
  %v3892 = vrcp.pop %v3888
  %v3893 = vmul.f32 %v3815, %v3889
  %v3894 = vmul.f32 %v3817, %v3890
  %v3895 = vmul.f32 %v3819, %v3891
  %v3896 = vmul.f32 %v3821, %v3892
  %v3897 = vperm.slane %v3893, 4
  %v3898 = vperm.slane %v3894, 4
  %v3899 = vperm.slane %v3895, 4
  %v3900 = vperm.slane %v3896, 4
  %v3901 = vmul.f32 %v3664, %v3897
  %v3902 = vmul.f32 %v3677, %v3898
  %v3903 = vmul.f32 %v3690, %v3899
  %v3904 = vmul.f32 %v3703, %v3900
  %v3905 = vpack.c.bf16 %v3901, %v3901
  %v3906 = vpack.c.bf16 %v3902, %v3902
  %v3907 = vpack.c.bf16 %v3903, %v3903
  %v3908 = vpack.c.bf16 %v3904, %v3904
  %3909 = vmatpush.bf16.xpose.msra.mxu0 0
  %3910 = vmatpush.bf16.xpose.msra.mxu0 0
  %3911 = vmatpush.bf16.xpose.msra.mxu0 0
  %3912 = vmatpush.bf16.xpose.msra.mxu0 0
  %3913 = vmatpush.bf16.xpose.msra.mxu0 0
  %3914 = vmatpush.bf16.xpose.msra.mxu0 0
  %3915 = vmatpush.bf16.xpose.msra.mxu0 0
  %3916 = vmatpush.bf16.xpose.msra.mxu0 %v1673
  %3917 = vmatmul.bf16.gmra.mxu0 %v3905
  %v3918 = vpop.f32.mrf.mxu0
  %v3919 = vadd.f32 0.0, %v3918
  %v3920 = vpop.f32.mrf.mxu0
  %3921 = vdwg.mxu0
  %3922 = vmatpush.bf16.xpose.msra.mxu0 0
  %3923 = vmatpush.bf16.xpose.msra.mxu0 0
  %3924 = vmatpush.bf16.xpose.msra.mxu0 0
  %3925 = vmatpush.bf16.xpose.msra.mxu0 0
  %3926 = vmatpush.bf16.xpose.msra.mxu0 0
  %3927 = vmatpush.bf16.xpose.msra.mxu0 0
  %3928 = vmatpush.bf16.xpose.msra.mxu0 0
  %3929 = vmatpush.bf16.xpose.msra.mxu0 %v1674
  %3930 = vmatmul.bf16.gmra.mxu0 %v3906
  %v3931 = vpop.f32.mrf.mxu0
  %v3932 = vadd.f32 %v3919, %v3931
  %v3933 = vpop.f32.mrf.mxu0
  %3934 = vdwg.mxu0
  %3935 = vmatpush.bf16.xpose.msra.mxu0 0
  %3936 = vmatpush.bf16.xpose.msra.mxu0 0
  %3937 = vmatpush.bf16.xpose.msra.mxu0 0
  %3938 = vmatpush.bf16.xpose.msra.mxu0 0
  %3939 = vmatpush.bf16.xpose.msra.mxu0 0
  %3940 = vmatpush.bf16.xpose.msra.mxu0 0
  %3941 = vmatpush.bf16.xpose.msra.mxu0 0
  %3942 = vmatpush.bf16.xpose.msra.mxu0 %v1675
  %3943 = vmatmul.bf16.gmra.mxu0 %v3907
  %v3944 = vpop.f32.mrf.mxu0
  %v3945 = vadd.f32 %v3932, %v3944
  %v3946 = vpop.f32.mrf.mxu0
  %3947 = vdwg.mxu0
  %3948 = vmatpush.bf16.xpose.msra.mxu0 0
  %3949 = vmatpush.bf16.xpose.msra.mxu0 0
  %3950 = vmatpush.bf16.xpose.msra.mxu0 0
  %3951 = vmatpush.bf16.xpose.msra.mxu0 0
  %3952 = vmatpush.bf16.xpose.msra.mxu0 0
  %3953 = vmatpush.bf16.xpose.msra.mxu0 0
  %3954 = vmatpush.bf16.xpose.msra.mxu0 0
  %3955 = vmatpush.bf16.xpose.msra.mxu0 %v1676
  %3956 = vmatmul.bf16.gmra.mxu0 %v3908
  %v3957 = vpop.f32.mrf.mxu0
  %v3958 = vadd.f32 %v3945, %v3957
  %v3959 = vpop.f32.mrf.mxu0
  %3960 = vdwg.mxu0
  %v3961 = vpack.c.bf16 %v3958, %v3958
  %v3963 = vsel %vm588, %v3961, 0
  %3965 = vmatpush.bf16.msra.mxu0 0
  %3966 = vmatpush.bf16.msra.mxu0 0
  %3967 = vmatpush.bf16.msra.mxu0 0
  %3968 = vmatpush.bf16.msra.mxu0 0
  %3969 = vmatpush.bf16.msra.mxu0 0
  %3970 = vmatpush.bf16.msra.mxu0 0
  %3971 = vmatpush.bf16.msra.mxu0 0
  %3972 = vmatpush.bf16.msra.mxu0 %v3963
  %3973 = vmatmul.bf16.gmra.mxu0 %v1732
  %v3974 = vpop.f32.mrf.mxu0
  %v3975 = vadd.f32 0.0, %v3974
  %v3976 = vpop.f32.mrf.mxu0
  %3977 = vdwg.mxu0
  %v3978 = vmul.f32 %v3975, 0.2
  %v3979 = vmax.f32 %v3975, %v3978
  %v3980 = vpack.c.bf16 %v3979, %v3979
  %v3982 = vsel %vm588, %v3980, 0
  %3984 = vmatpush.bf16.msra.mxu0 0
  %3985 = vmatpush.bf16.msra.mxu0 0
  %3986 = vmatpush.bf16.msra.mxu0 0
  %3987 = vmatpush.bf16.msra.mxu0 0
  %3988 = vmatpush.bf16.msra.mxu0 0
  %3989 = vmatpush.bf16.msra.mxu0 0
  %3990 = vmatpush.bf16.msra.mxu0 0
  %3991 = vmatpush.bf16.msra.mxu0 %v3982
  %3992 = vmatmul.bf16.gmra.mxu0 %v1755
  %v3993 = vpop.f32.mrf.mxu0
  %v3994 = vadd.f32 0.0, %v3993
  %v3995 = vpop.f32.mrf.mxu0
  %3996 = vdwg.mxu0
  %v3997 = vpack.c.bf16 %v3994, %v3994
  %v3999 = vsel %vm1774, %v3997, 0
  %4001 = vmatpush.bf16.msra.mxu0 0
  %4002 = vmatpush.bf16.msra.mxu0 0
  %4003 = vmatpush.bf16.msra.mxu0 0
  %4004 = vmatpush.bf16.msra.mxu0 0
  %4005 = vmatpush.bf16.msra.mxu0 0
  %4006 = vmatpush.bf16.msra.mxu0 0
  %4007 = vmatpush.bf16.msra.mxu0 0
  %4008 = vmatpush.bf16.msra.mxu0 %v1780
  %4009 = vmatmul.bf16.gmra.mxu0 %v3999
  %v4010 = vpop.f32.mrf.mxu0
  %v4011 = vadd.f32 0.0, %v4010
  %v4012 = vpop.f32.mrf.mxu0
  %4013 = vdwg.mxu0
  %4014 = vmatpush.bf16.msra.mxu0 0
  %4015 = vmatpush.bf16.msra.mxu0 0
  %4016 = vmatpush.bf16.msra.mxu0 0
  %4017 = vmatpush.bf16.msra.mxu0 0
  %4018 = vmatpush.bf16.msra.mxu0 0
  %4019 = vmatpush.bf16.msra.mxu0 0
  %4020 = vmatpush.bf16.msra.mxu0 0
  %4021 = vmatpush.bf16.msra.mxu0 %v1783
  %4022 = vmatmul.bf16.gmra.mxu0 %v3999
  %v4023 = vpop.f32.mrf.mxu0
  %v4024 = vadd.f32 0.0, %v4023
  %v4025 = vpop.f32.mrf.mxu0
  %4026 = vdwg.mxu0
  %4027 = vmatpush.bf16.msra.mxu0 0
  %4028 = vmatpush.bf16.msra.mxu0 0
  %4029 = vmatpush.bf16.msra.mxu0 0
  %4030 = vmatpush.bf16.msra.mxu0 0
  %4031 = vmatpush.bf16.msra.mxu0 0
  %4032 = vmatpush.bf16.msra.mxu0 0
  %4033 = vmatpush.bf16.msra.mxu0 0
  %4034 = vmatpush.bf16.msra.mxu0 %v1786
  %4035 = vmatmul.bf16.gmra.mxu0 %v3999
  %v4036 = vpop.f32.mrf.mxu0
  %v4037 = vadd.f32 0.0, %v4036
  %v4038 = vpop.f32.mrf.mxu0
  %4039 = vdwg.mxu0
  %4040 = vmatpush.bf16.msra.mxu0 0
  %4041 = vmatpush.bf16.msra.mxu0 0
  %4042 = vmatpush.bf16.msra.mxu0 0
  %4043 = vmatpush.bf16.msra.mxu0 0
  %4044 = vmatpush.bf16.msra.mxu0 0
  %4045 = vmatpush.bf16.msra.mxu0 0
  %4046 = vmatpush.bf16.msra.mxu0 0
  %4047 = vmatpush.bf16.msra.mxu0 %v1789
  %4048 = vmatmul.bf16.gmra.mxu0 %v3999
  %v4049 = vpop.f32.mrf.mxu0
  %v4050 = vadd.f32 0.0, %v4049
  %v4051 = vpop.f32.mrf.mxu0
  %4052 = vdwg.mxu0
  %v4053 = vadd.f32 %v3664, %v4011
  %v4054 = vadd.f32 %v3677, %v4024
  %v4055 = vadd.f32 %v3690, %v4037
  %v4056 = vadd.f32 %v3703, %v4050
  %v4057 = vmul.f32 %v4053, 0.2
  %v4058 = vmul.f32 %v4054, 0.2
  %v4059 = vmul.f32 %v4055, 0.2
  %v4060 = vmul.f32 %v4056, 0.2
  %v4061 = vmax.f32 %v4053, %v4057
  %v4062 = vmax.f32 %v4054, %v4058
  %v4063 = vmax.f32 %v4055, %v4059
  %v4064 = vmax.f32 %v4056, %v4060
  %v4065 = vadd.f32 %v4061, %v3150
  %v4066 = vadd.f32 %v4062, %v3151
  %v4067 = vadd.f32 %v4063, %v3152
  %v4068 = vadd.f32 %v4064, %v3153
  %4069 = vrot.lane.b32.xlu0 %v2662, 9
  %v4070 = vpop.permute.xlu0 %4069
  %v4071 = vmul.f32 %v4070, %v1872
  %4072 = vrot.lane.b32.xlu0 %v2662, 8
  %v4073 = vpop.permute.xlu0 %4072
  %v4074 = vmul.f32 %v4073, %v1876
  %4075 = vrot.lane.b32.xlu0 %v2662, 7
  %v4076 = vpop.permute.xlu0 %4075
  %v4077 = vmul.f32 %v4076, %v1880
  %4078 = vrot.lane.b32.xlu0 %v2662, 1
  %v4079 = vpop.permute.xlu0 %4078
  %v4080 = vmul.f32 %v4079, %v1884
  %v4081 = vmul.f32 %v2662, %v1886
  %4082 = vrot.lane.b32.xlu0 %v2662, 127
  %v4083 = vpop.permute.xlu0 %4082
  %v4084 = vmul.f32 %v4083, %v1890
  %4085 = vrot.lane.b32.xlu0 %v2662, 121
  %v4086 = vpop.permute.xlu0 %4085
  %v4087 = vmul.f32 %v4086, %v1894
  %4088 = vrot.lane.b32.xlu0 %v2662, 120
  %v4089 = vpop.permute.xlu0 %4088
  %v4090 = vmul.f32 %v4089, %v1898
  %4091 = vrot.lane.b32.xlu0 %v2662, 119
  %v4092 = vpop.permute.xlu0 %4091
  %v4093 = vmul.f32 %v4092, %v1902
  %v4094 = vpack.c.bf16 %v4074, %v4071
  %v4095 = vpack.c.bf16 %v4080, %v4077
  %v4096 = vpack.c.bf16 %v4084, %v4081
  %v4097 = vpack.c.bf16 %v4090, %v4087
  %v4098 = vpack.c.bf16 %v4093, %v4093
  %v4100 = vsel %vm696, %v4098, 0
  %4102 = vmatpush.bf16.msra.mxu0 0
  %4103 = vmatpush.bf16.msra.mxu0 0
  %4104 = vmatpush.bf16.msra.mxu0 0
  %4105 = vmatpush.bf16.msra.mxu0 %v4100
  %4106 = vmatpush.bf16.msra.mxu0 %v4097
  %4107 = vmatpush.bf16.msra.mxu0 %v4096
  %4108 = vmatpush.bf16.msra.mxu0 %v4095
  %4109 = vmatpush.bf16.msra.mxu0 %v4094
  %4110 = vmatmul.bf16.gmra.mxu0 %v1911
  %v4111 = vpop.f32.mrf.mxu0
  %v4112 = vadd.f32 0.0, %v4111
  %v4113 = vpop.f32.mrf.mxu0
  %4114 = vdwg.mxu0
  %v4115 = vmul.f32 %v4112, 0.2
  %v4116 = vmax.f32 %v4112, %v4115
  %4117 = vrot.lane.b32.xlu0 %v4116, 9
  %v4118 = vpop.permute.xlu0 %4117
  %v4119 = vmul.f32 %v4118, %v1872
  %4120 = vrot.lane.b32.xlu0 %v4116, 8
  %v4121 = vpop.permute.xlu0 %4120
  %v4122 = vmul.f32 %v4121, %v1876
  %4123 = vrot.lane.b32.xlu0 %v4116, 7
  %v4124 = vpop.permute.xlu0 %4123
  %v4125 = vmul.f32 %v4124, %v1880
  %4126 = vrot.lane.b32.xlu0 %v4116, 1
  %v4127 = vpop.permute.xlu0 %4126
  %v4128 = vmul.f32 %v4127, %v1884
  %v4129 = vmul.f32 %v4116, %v1886
  %4130 = vrot.lane.b32.xlu0 %v4116, 127
  %v4131 = vpop.permute.xlu0 %4130
  %v4132 = vmul.f32 %v4131, %v1890
  %4133 = vrot.lane.b32.xlu0 %v4116, 121
  %v4134 = vpop.permute.xlu0 %4133
  %v4135 = vmul.f32 %v4134, %v1894
  %4136 = vrot.lane.b32.xlu0 %v4116, 120
  %v4137 = vpop.permute.xlu0 %4136
  %v4138 = vmul.f32 %v4137, %v1898
  %4139 = vrot.lane.b32.xlu0 %v4116, 119
  %v4140 = vpop.permute.xlu0 %4139
  %v4141 = vmul.f32 %v4140, %v1902
  %v4142 = vpack.c.bf16 %v4122, %v4119
  %v4143 = vpack.c.bf16 %v4128, %v4125
  %v4144 = vpack.c.bf16 %v4132, %v4129
  %v4145 = vpack.c.bf16 %v4138, %v4135
  %v4146 = vpack.c.bf16 %v4141, %v4141
  %v4148 = vsel %vm696, %v4146, 0
  %4150 = vmatpush.bf16.msra.mxu0 0
  %4151 = vmatpush.bf16.msra.mxu0 0
  %4152 = vmatpush.bf16.msra.mxu0 0
  %4153 = vmatpush.bf16.msra.mxu0 %v4148
  %4154 = vmatpush.bf16.msra.mxu0 %v4145
  %4155 = vmatpush.bf16.msra.mxu0 %v4144
  %4156 = vmatpush.bf16.msra.mxu0 %v4143
  %4157 = vmatpush.bf16.msra.mxu0 %v4142
  %4158 = vmatmul.bf16.gmra.mxu0 %v1962
  %v4159 = vpop.f32.mrf.mxu0
  %v4160 = vadd.f32 0.0, %v4159
  %v4161 = vpop.f32.mrf.mxu0
  %4162 = vdwg.mxu0
  %v4163 = vmul.f32 %v1983, %v4160
  %v4164 = vrot.slane %v4163, 4
  %v4165 = vadd.f32 %v4163, %v4164
  %v4166 = vrot.slane %v4165, 2
  %v4167 = vadd.f32 %v4165, %v4166
  %v4168 = vrot.slane %v4167, 1
  %v4169 = vadd.f32 %v4167, %v4168
  %v4170 = vsel %vm186, %v4169, -1e+30
  %v4171 = vsel %vm588, %v4170, -inf
  %4172 = vmax.xlane.f32.xlu0 %v4171
  %v4173 = vpop.xlane.xlu0 %4172
  %v4174 = vmul.f32 %v4173, %v185
  %v4175 = vsel %vm588, %v4174, 0.0
  %v4176 = vrot.slane %v4175, 4
  %v4177 = vadd.f32 %v4175, %v4176
  %v4178 = vrot.slane %v4177, 2
  %v4179 = vadd.f32 %v4177, %v4178
  %v4180 = vrot.slane %v4179, 1
  %v4181 = vadd.f32 %v4179, %v4180
  %v4182 = vsub.f32 %v4169, %v4181
  %v4183 = vmul.f32 %v4182, 1.442695
  %v4184 = vpow.pop %v4183
  %v4185 = vmul.f32 %v4184, %v185
  %v4186 = vsel %vm588, %v4185, 0.0
  %4187 = vadd.xlane.f32.xlu0 %v4186
  %v4188 = vpop.xlane.xlu0 %4187
  %v4189 = vmul.f32 %v4188, %v185
  %v4190 = vsel %vm588, %v4189, 0.0
  %v4191 = vrot.slane %v4190, 4
  %v4192 = vadd.f32 %v4190, %v4191
  %v4193 = vrot.slane %v4192, 2
  %v4194 = vadd.f32 %v4192, %v4193
  %v4195 = vrot.slane %v4194, 1
  %v4196 = vadd.f32 %v4194, %v4195
  %v4197 = vadd.f32 %v4196, %v187
  %v4198 = vrcp.pop %v4197
  %v4199 = vmul.f32 %v4184, %v4198
  %v4200 = vperm.slane %v4199, 4
  %v4201 = vmul.f32 %v4160, %v4200
  %v4202 = vpack.c.bf16 %v4201, %v4201
  %4203 = vmatpush.bf16.xpose.msra.mxu0 0
  %4204 = vmatpush.bf16.xpose.msra.mxu0 0
  %4205 = vmatpush.bf16.xpose.msra.mxu0 0
  %4206 = vmatpush.bf16.xpose.msra.mxu0 0
  %4207 = vmatpush.bf16.xpose.msra.mxu0 0
  %4208 = vmatpush.bf16.xpose.msra.mxu0 0
  %4209 = vmatpush.bf16.xpose.msra.mxu0 0
  %4210 = vmatpush.bf16.xpose.msra.mxu0 %v2025
  %4211 = vmatmul.bf16.gmra.mxu0 %v4202
  %v4212 = vpop.f32.mrf.mxu0
  %v4213 = vadd.f32 0.0, %v4212
  %v4214 = vpop.f32.mrf.mxu0
  %4215 = vdwg.mxu0
  %v4216 = vpack.c.bf16 %v4213, %v4213
  %v4218 = vsel %vm696, %v4216, 0
  %4220 = vmatpush.bf16.msra.mxu0 0
  %4221 = vmatpush.bf16.msra.mxu0 0
  %4222 = vmatpush.bf16.msra.mxu0 0
  %4223 = vmatpush.bf16.msra.mxu0 0
  %4224 = vmatpush.bf16.msra.mxu0 0
  %4225 = vmatpush.bf16.msra.mxu0 0
  %4226 = vmatpush.bf16.msra.mxu0 0
  %4227 = vmatpush.bf16.msra.mxu0 %v4218
  %4228 = vmatmul.bf16.gmra.mxu0 %v2042
  %v4229 = vpop.f32.mrf.mxu0
  %v4230 = vadd.f32 0.0, %v4229
  %v4231 = vpop.f32.mrf.mxu0
  %4232 = vdwg.mxu0
  %v4233 = vmul.f32 %v4230, 0.2
  %v4234 = vmax.f32 %v4230, %v4233
  %v4235 = vpack.c.bf16 %v4234, %v4234
  %v4237 = vsel %vm696, %v4235, 0
  %4239 = vmatpush.bf16.msra.mxu0 0
  %4240 = vmatpush.bf16.msra.mxu0 0
  %4241 = vmatpush.bf16.msra.mxu0 0
  %4242 = vmatpush.bf16.msra.mxu0 0
  %4243 = vmatpush.bf16.msra.mxu0 0
  %4244 = vmatpush.bf16.msra.mxu0 0
  %4245 = vmatpush.bf16.msra.mxu0 0
  %4246 = vmatpush.bf16.msra.mxu0 %v4237
  %4247 = vmatmul.bf16.gmra.mxu0 %v2065
  %v4248 = vpop.f32.mrf.mxu0
  %v4249 = vadd.f32 0.0, %v4248
  %v4250 = vpop.f32.mrf.mxu0
  %4251 = vdwg.mxu0
  %v4252 = vpack.c.bf16 %v4249, %v4249
  %v4254 = vsel %vm1774, %v4252, 0
  %4256 = vmatpush.bf16.msra.mxu0 0
  %4257 = vmatpush.bf16.msra.mxu0 0
  %4258 = vmatpush.bf16.msra.mxu0 0
  %4259 = vmatpush.bf16.msra.mxu0 0
  %4260 = vmatpush.bf16.msra.mxu0 0
  %4261 = vmatpush.bf16.msra.mxu0 0
  %4262 = vmatpush.bf16.msra.mxu0 0
  %4263 = vmatpush.bf16.msra.mxu0 %v2088
  %4264 = vmatmul.bf16.gmra.mxu0 %v4254
  %v4265 = vpop.f32.mrf.mxu0
  %v4266 = vadd.f32 0.0, %v4265
  %v4267 = vpop.f32.mrf.mxu0
  %4268 = vdwg.mxu0
  %v4269 = vadd.f32 %v4160, %v4266
  %v4270 = vmul.f32 %v4269, 0.2
  %v4271 = vmax.f32 %v4269, %v4270
  %v4272 = vadd.f32 %v4271, %v2662
  %4273 = vrot.lane.b32.xlu0 %v2456, 5
  %v4274 = vpop.permute.xlu0 %4273
  %4275 = vrot.lane.b32.xlu0 %v2457, 5
  %v4276 = vpop.permute.xlu0 %4275
  %v4277 = vmul.f32 %v4274, %v2111
  %v4278 = vmul.f32 %v4276, %v2111
  %4279 = vrot.lane.b32.xlu0 %v2456, 4
  %v4280 = vpop.permute.xlu0 %4279
  %4281 = vrot.lane.b32.xlu0 %v2457, 4
  %v4282 = vpop.permute.xlu0 %4281
  %v4283 = vmul.f32 %v4280, %v2118
  %v4284 = vmul.f32 %v4282, %v2118
  %4285 = vrot.lane.b32.xlu0 %v2456, 3
  %v4286 = vpop.permute.xlu0 %4285
  %4287 = vrot.lane.b32.xlu0 %v2457, 3
  %v4288 = vpop.permute.xlu0 %4287
  %v4289 = vmul.f32 %v4286, %v2125
  %v4290 = vmul.f32 %v4288, %v2125
  %4291 = vrot.lane.b32.xlu0 %v2456, 1
  %v4292 = vpop.permute.xlu0 %4291
  %4293 = vrot.lane.b32.xlu0 %v2457, 1
  %v4294 = vpop.permute.xlu0 %4293
  %v4295 = vmul.f32 %v4292, %v2132
  %v4296 = vmul.f32 %v4294, %v2132
  %v4297 = vmul.f32 %v2456, %v2135
  %v4298 = vmul.f32 %v2457, %v2135
  %4299 = vrot.lane.b32.xlu0 %v2456, 127
  %v4300 = vpop.permute.xlu0 %4299
  %4301 = vrot.lane.b32.xlu0 %v2457, 127
  %v4302 = vpop.permute.xlu0 %4301
  %v4303 = vmul.f32 %v4300, %v2142
  %v4304 = vmul.f32 %v4302, %v2142
  %4305 = vrot.lane.b32.xlu0 %v2456, 125
  %v4306 = vpop.permute.xlu0 %4305
  %4307 = vrot.lane.b32.xlu0 %v2457, 125
  %v4308 = vpop.permute.xlu0 %4307
  %v4309 = vmul.f32 %v4306, %v2149
  %v4310 = vmul.f32 %v4308, %v2149
  %4311 = vrot.lane.b32.xlu0 %v2456, 124
  %v4312 = vpop.permute.xlu0 %4311
  %4313 = vrot.lane.b32.xlu0 %v2457, 124
  %v4314 = vpop.permute.xlu0 %4313
  %v4315 = vmul.f32 %v4312, %v2156
  %v4316 = vmul.f32 %v4314, %v2156
  %4317 = vrot.lane.b32.xlu0 %v2456, 123
  %v4318 = vpop.permute.xlu0 %4317
  %4319 = vrot.lane.b32.xlu0 %v2457, 123
  %v4320 = vpop.permute.xlu0 %4319
  %v4321 = vmul.f32 %v4318, %v2163
  %v4322 = vmul.f32 %v4320, %v2163
  %v4323 = vpack.c.bf16 %v4278, %v4277
  %v4324 = vpack.c.bf16 %v4284, %v4283
  %v4325 = vpack.c.bf16 %v4290, %v4289
  %v4326 = vpack.c.bf16 %v4296, %v4295
  %v4327 = vpack.c.bf16 %v4298, %v4297
  %v4328 = vpack.c.bf16 %v4304, %v4303
  %v4329 = vpack.c.bf16 %v4310, %v4309
  %v4330 = vpack.c.bf16 %v4316, %v4315
  %v4331 = vpack.c.bf16 %v4322, %v4321
  %4332 = vmatpush.bf16.msra.mxu0 %v4330
  %4333 = vmatpush.bf16.msra.mxu0 %v4329
  %4334 = vmatpush.bf16.msra.mxu0 %v4328
  %4335 = vmatpush.bf16.msra.mxu0 %v4327
  %4336 = vmatpush.bf16.msra.mxu0 %v4326
  %4337 = vmatpush.bf16.msra.mxu0 %v4325
  %4338 = vmatpush.bf16.msra.mxu0 %v4324
  %4339 = vmatpush.bf16.msra.mxu0 %v4323
  %4340 = vmatmul.bf16.gmra.mxu0 %v2181
  %v4341 = vpop.f32.mrf.mxu0
  %v4342 = vadd.f32 0.0, %v4341
  %v4343 = vpop.f32.mrf.mxu0
  %v4344 = vadd.f32 0.0, %v4343
  %4345 = vdwg.mxu0
  %4346 = vmatpush.bf16.msra.mxu0 0
  %4347 = vmatpush.bf16.msra.mxu0 0
  %4348 = vmatpush.bf16.msra.mxu0 0
  %4349 = vmatpush.bf16.msra.mxu0 0
  %4350 = vmatpush.bf16.msra.mxu0 0
  %4351 = vmatpush.bf16.msra.mxu0 0
  %4352 = vmatpush.bf16.msra.mxu0 0
  %4353 = vmatpush.bf16.msra.mxu0 %v4331
  %4354 = vmatmul.bf16.gmra.mxu0 %v2186
  %v4355 = vpop.f32.mrf.mxu0
  %v4356 = vadd.f32 %v4342, %v4355
  %v4357 = vpop.f32.mrf.mxu0
  %v4358 = vadd.f32 %v4344, %v4357
  %4359 = vdwg.mxu0
  %v4360 = vmul.f32 %v4356, 0.2
  %v4361 = vmul.f32 %v4358, 0.2
  %v4362 = vmax.f32 %v4356, %v4360
  %v4363 = vmax.f32 %v4358, %v4361
  %4364 = vrot.lane.b32.xlu0 %v4362, 5
  %v4365 = vpop.permute.xlu0 %4364
  %4366 = vrot.lane.b32.xlu0 %v4363, 5
  %v4367 = vpop.permute.xlu0 %4366
  %v4368 = vmul.f32 %v4365, %v2111
  %v4369 = vmul.f32 %v4367, %v2111
  %4370 = vrot.lane.b32.xlu0 %v4362, 4
  %v4371 = vpop.permute.xlu0 %4370
  %4372 = vrot.lane.b32.xlu0 %v4363, 4
  %v4373 = vpop.permute.xlu0 %4372
  %v4374 = vmul.f32 %v4371, %v2118
  %v4375 = vmul.f32 %v4373, %v2118
  %4376 = vrot.lane.b32.xlu0 %v4362, 3
  %v4377 = vpop.permute.xlu0 %4376
  %4378 = vrot.lane.b32.xlu0 %v4363, 3
  %v4379 = vpop.permute.xlu0 %4378
  %v4380 = vmul.f32 %v4377, %v2125
  %v4381 = vmul.f32 %v4379, %v2125
  %4382 = vrot.lane.b32.xlu0 %v4362, 1
  %v4383 = vpop.permute.xlu0 %4382
  %4384 = vrot.lane.b32.xlu0 %v4363, 1
  %v4385 = vpop.permute.xlu0 %4384
  %v4386 = vmul.f32 %v4383, %v2132
  %v4387 = vmul.f32 %v4385, %v2132
  %v4388 = vmul.f32 %v4362, %v2135
  %v4389 = vmul.f32 %v4363, %v2135
  %4390 = vrot.lane.b32.xlu0 %v4362, 127
  %v4391 = vpop.permute.xlu0 %4390
  %4392 = vrot.lane.b32.xlu0 %v4363, 127
  %v4393 = vpop.permute.xlu0 %4392
  %v4394 = vmul.f32 %v4391, %v2142
  %v4395 = vmul.f32 %v4393, %v2142
  %4396 = vrot.lane.b32.xlu0 %v4362, 125
  %v4397 = vpop.permute.xlu0 %4396
  %4398 = vrot.lane.b32.xlu0 %v4363, 125
  %v4399 = vpop.permute.xlu0 %4398
  %v4400 = vmul.f32 %v4397, %v2149
  %v4401 = vmul.f32 %v4399, %v2149
  %4402 = vrot.lane.b32.xlu0 %v4362, 124
  %v4403 = vpop.permute.xlu0 %4402
  %4404 = vrot.lane.b32.xlu0 %v4363, 124
  %v4405 = vpop.permute.xlu0 %4404
  %v4406 = vmul.f32 %v4403, %v2156
  %v4407 = vmul.f32 %v4405, %v2156
  %4408 = vrot.lane.b32.xlu0 %v4362, 123
  %v4409 = vpop.permute.xlu0 %4408
  %4410 = vrot.lane.b32.xlu0 %v4363, 123
  %v4411 = vpop.permute.xlu0 %4410
  %v4412 = vmul.f32 %v4409, %v2163
  %v4413 = vmul.f32 %v4411, %v2163
  %v4414 = vpack.c.bf16 %v4369, %v4368
  %v4415 = vpack.c.bf16 %v4375, %v4374
  %v4416 = vpack.c.bf16 %v4381, %v4380
  %v4417 = vpack.c.bf16 %v4387, %v4386
  %v4418 = vpack.c.bf16 %v4389, %v4388
  %v4419 = vpack.c.bf16 %v4395, %v4394
  %v4420 = vpack.c.bf16 %v4401, %v4400
  %v4421 = vpack.c.bf16 %v4407, %v4406
  %v4422 = vpack.c.bf16 %v4413, %v4412
  %4423 = vmatpush.bf16.msra.mxu0 %v4421
  %4424 = vmatpush.bf16.msra.mxu0 %v4420
  %4425 = vmatpush.bf16.msra.mxu0 %v4419
  %4426 = vmatpush.bf16.msra.mxu0 %v4418
  %4427 = vmatpush.bf16.msra.mxu0 %v4417
  %4428 = vmatpush.bf16.msra.mxu0 %v4416
  %4429 = vmatpush.bf16.msra.mxu0 %v4415
  %4430 = vmatpush.bf16.msra.mxu0 %v4414
  %4431 = vmatmul.bf16.gmra.mxu0 %v2285
  %v4432 = vpop.f32.mrf.mxu0
  %v4433 = vadd.f32 0.0, %v4432
  %v4434 = vpop.f32.mrf.mxu0
  %v4435 = vadd.f32 0.0, %v4434
  %4436 = vdwg.mxu0
  %4437 = vmatpush.bf16.msra.mxu0 0
  %4438 = vmatpush.bf16.msra.mxu0 0
  %4439 = vmatpush.bf16.msra.mxu0 0
  %4440 = vmatpush.bf16.msra.mxu0 0
  %4441 = vmatpush.bf16.msra.mxu0 0
  %4442 = vmatpush.bf16.msra.mxu0 0
  %4443 = vmatpush.bf16.msra.mxu0 0
  %4444 = vmatpush.bf16.msra.mxu0 %v4422
  %4445 = vmatmul.bf16.gmra.mxu0 %v2289
  %v4446 = vpop.f32.mrf.mxu0
  %v4447 = vadd.f32 %v4433, %v4446
  %v4448 = vpop.f32.mrf.mxu0
  %v4449 = vadd.f32 %v4435, %v4448
  %4450 = vdwg.mxu0
  %v4451 = vmul.f32 %v2322, %v4447
  %v4452 = vmul.f32 %v2327, %v4449
  %v4453 = vadd.f32 %v4451, %v4452
  %v4454 = vrot.slane %v4453, 4
  %v4455 = vadd.f32 %v4453, %v4454
  %v4456 = vrot.slane %v4455, 2
  %v4457 = vadd.f32 %v4455, %v4456
  %v4458 = vrot.slane %v4457, 1
  %v4459 = vadd.f32 %v4457, %v4458
  %v4460 = vsel %vm189, %v4459, -1e+30
  %v4461 = vsel %vm588, %v4460, -inf
  %4462 = vmax.xlane.f32.xlu0 %v4461
  %v4463 = vpop.xlane.xlu0 %4462
  %v4464 = vmul.f32 %v4463, %v188
  %v4465 = vsel %vm588, %v4464, 0.0
  %v4466 = vrot.slane %v4465, 4
  %v4467 = vadd.f32 %v4465, %v4466
  %v4468 = vrot.slane %v4467, 2
  %v4469 = vadd.f32 %v4467, %v4468
  %v4470 = vrot.slane %v4469, 1
  %v4471 = vadd.f32 %v4469, %v4470
  %v4472 = vsub.f32 %v4459, %v4471
  %v4473 = vmul.f32 %v4472, 1.442695
  %v4474 = vpow.pop %v4473
  %v4475 = vmul.f32 %v4474, %v188
  %v4476 = vsel %vm588, %v4475, 0.0
  %4477 = vadd.xlane.f32.xlu0 %v4476
  %v4478 = vpop.xlane.xlu0 %4477
  %v4479 = vmul.f32 %v4478, %v188
  %v4480 = vsel %vm588, %v4479, 0.0
  %v4481 = vrot.slane %v4480, 4
  %v4482 = vadd.f32 %v4480, %v4481
  %v4483 = vrot.slane %v4482, 2
  %v4484 = vadd.f32 %v4482, %v4483
  %v4485 = vrot.slane %v4484, 1
  %v4486 = vadd.f32 %v4484, %v4485
  %v4487 = vadd.f32 %v4486, %v190
  %v4488 = vrcp.pop %v4487
  %v4489 = vmul.f32 %v4474, %v4488
  %v4490 = vperm.slane %v4489, 4
  %v4491 = vmul.f32 %v4447, %v4490
  %v4492 = vmul.f32 %v4449, %v4490
  %v4493 = vpack.c.bf16 %v4492, %v4491
  %4494 = vmatpush.bf16.xpose.msra.mxu0 0
  %4495 = vmatpush.bf16.xpose.msra.mxu0 0
  %4496 = vmatpush.bf16.xpose.msra.mxu0 0
  %4497 = vmatpush.bf16.xpose.msra.mxu0 0
  %4498 = vmatpush.bf16.xpose.msra.mxu0 0
  %4499 = vmatpush.bf16.xpose.msra.mxu0 0
  %4500 = vmatpush.bf16.xpose.msra.mxu0 0
  %4501 = vmatpush.bf16.xpose.msra.mxu0 %v2372
  %4502 = vmatmul.bf16.gmra.mxu0 %v4493
  %v4503 = vpop.f32.mrf.mxu0
  %v4504 = vadd.f32 0.0, %v4503
  %v4505 = vpop.f32.mrf.mxu0
  %v4506 = vadd.f32 0.0, %v4505
  %4507 = vdwg.mxu0
  %v4508 = vpack.c.bf16 %v4506, %v4504
  %4509 = vmatpush.bf16.msra.mxu0 0
  %4510 = vmatpush.bf16.msra.mxu0 0
  %4511 = vmatpush.bf16.msra.mxu0 0
  %4512 = vmatpush.bf16.msra.mxu0 0
  %4513 = vmatpush.bf16.msra.mxu0 0
  %4514 = vmatpush.bf16.msra.mxu0 0
  %4515 = vmatpush.bf16.msra.mxu0 0
  %4516 = vmatpush.bf16.msra.mxu0 %v4508
  %4517 = vmatmul.bf16.gmra.mxu0 %v2390
  %v4518 = vpop.f32.mrf.mxu0
  %v4519 = vadd.f32 0.0, %v4518
  %v4520 = vpop.f32.mrf.mxu0
  %v4521 = vadd.f32 0.0, %v4520
  %4522 = vdwg.mxu0
  %v4523 = vmul.f32 %v4519, 0.2
  %v4524 = vmul.f32 %v4521, 0.2
  %v4525 = vmax.f32 %v4519, %v4523
  %v4526 = vmax.f32 %v4521, %v4524
  %v4527 = vpack.c.bf16 %v4526, %v4525
  %4528 = vmatpush.bf16.msra.mxu0 0
  %4529 = vmatpush.bf16.msra.mxu0 0
  %4530 = vmatpush.bf16.msra.mxu0 0
  %4531 = vmatpush.bf16.msra.mxu0 0
  %4532 = vmatpush.bf16.msra.mxu0 0
  %4533 = vmatpush.bf16.msra.mxu0 0
  %4534 = vmatpush.bf16.msra.mxu0 0
  %4535 = vmatpush.bf16.msra.mxu0 %v4527
  %4536 = vmatmul.bf16.gmra.mxu0 %v2413
  %v4537 = vpop.f32.mrf.mxu0
  %v4538 = vadd.f32 0.0, %v4537
  %v4539 = vpop.f32.mrf.mxu0
  %v4540 = vadd.f32 0.0, %v4539
  %4541 = vdwg.mxu0
  %v4542 = vpack.c.bf16 %v4540, %v4538
  %v4544 = vsel %vm1774, %v4542, 0
  %4546 = vmatpush.bf16.msra.mxu0 0
  %4547 = vmatpush.bf16.msra.mxu0 0
  %4548 = vmatpush.bf16.msra.mxu0 0
  %4549 = vmatpush.bf16.msra.mxu0 0
  %4550 = vmatpush.bf16.msra.mxu0 0
  %4551 = vmatpush.bf16.msra.mxu0 0
  %4552 = vmatpush.bf16.msra.mxu0 0
  %4553 = vmatpush.bf16.msra.mxu0 %v2434
  %4554 = vmatmul.bf16.gmra.mxu0 %v4544
  %v4555 = vpop.f32.mrf.mxu0
  %v4556 = vadd.f32 0.0, %v4555
  %v4557 = vpop.f32.mrf.mxu0
  %v4558 = vadd.f32 0.0, %v4557
  %4559 = vdwg.mxu0
  %v4560 = vadd.f32 %v4447, %v4556
  %v4561 = vadd.f32 %v4449, %v4558
  %v4562 = vmul.f32 %v4560, 0.2
  %v4563 = vmul.f32 %v4561, 0.2
  %v4564 = vmax.f32 %v4560, %v4562
  %v4565 = vmax.f32 %v4561, %v4563
  %v4566 = vadd.f32 %v4564, %v2456
  %v4567 = vadd.f32 %v4565, %v2457
  %v4568 = vld [vmem:[%s31] sm:$0xf]
  %v4569 = vpack.c.bf16 %v4567, %v4566
  %v4571 = vsel %vm2184, %v4568, 0
  %4573 = vmatpush.bf16.msra.mxu0 0
  %4574 = vmatpush.bf16.msra.mxu0 0
  %4575 = vmatpush.bf16.msra.mxu0 0
  %4576 = vmatpush.bf16.msra.mxu0 0
  %4577 = vmatpush.bf16.msra.mxu0 0
  %4578 = vmatpush.bf16.msra.mxu0 0
  %4579 = vmatpush.bf16.msra.mxu0 0
  %4580 = vmatpush.bf16.msra.mxu0 %v4569
  %4581 = vmatmul.bf16.gmra.mxu0 %v4571
  %v4582 = vpop.f32.mrf.mxu0
  %v4583 = vadd.f32 0.0, %v4582
  %v4584 = vpop.f32.mrf.mxu0
  %4585 = vdwg.mxu0
  %v4586 = vpack.c.bf16 %v4583, %v4583
  %4587 = vmatpush.bf16.msra.mxu0 %v2516
  %4588 = vmatpush.bf16.msra.mxu0 %v2515
  %4589 = vmatpush.bf16.msra.mxu0 %v2514
  %4590 = vmatpush.bf16.msra.mxu0 %v2513
  %4591 = vmatpush.bf16.msra.mxu0 %v2512
  %4592 = vmatpush.bf16.msra.mxu0 %v2511
  %4593 = vmatpush.bf16.msra.mxu0 %v2510
  %4594 = vmatpush.bf16.msra.mxu0 %v2509
  %4595 = vmatmul.bf16.gmra.mxu0 %v4586
  %v4596 = vpop.f32.mrf.mxu0
  %v4597 = vadd.f32 0.0, %v4596
  %v4598 = vpop.f32.mrf.mxu0
  %4599 = vdwg.mxu0
  %v4600 = vadd.f32 %v4272, %v4597
  %v4601 = vpack.c.bf16 %v4600, %v4600
  %4602 = vmatpush.bf16.xpose.msra.mxu0 0
  %4603 = vmatpush.bf16.xpose.msra.mxu0 0
  %4604 = vmatpush.bf16.xpose.msra.mxu0 0
  %4605 = vmatpush.bf16.xpose.msra.mxu0 0
  %4606 = vmatpush.bf16.xpose.msra.mxu0 0
  %4607 = vmatpush.bf16.xpose.msra.mxu0 0
  %4608 = vmatpush.bf16.xpose.msra.mxu0 0
  %4609 = vmatpush.bf16.xpose.msra.mxu0 %v2025
  %4610 = vmatmul.bf16.gmra.mxu0 %v4601
  %v4611 = vpop.f32.mrf.mxu0
  %v4612 = vadd.f32 0.0, %v4611
  %v4613 = vpop.f32.mrf.mxu0
  %4614 = vdwg.mxu0
  %v4615 = vmul.f32 %v4612, 0.015625
  %v4616 = vpack.c.bf16 %v4615, %v4615
  %v4618 = vsel %vm696, %v4616, 0
  %4620 = vmatpush.bf16.msra.mxu0 0
  %4621 = vmatpush.bf16.msra.mxu0 0
  %4622 = vmatpush.bf16.msra.mxu0 0
  %4623 = vmatpush.bf16.msra.mxu0 0
  %4624 = vmatpush.bf16.msra.mxu0 0
  %4625 = vmatpush.bf16.msra.mxu0 0
  %4626 = vmatpush.bf16.msra.mxu0 0
  %4627 = vmatpush.bf16.msra.mxu0 %v4618
  %4628 = vmatmul.bf16.gmra.mxu0 %v2557
  %v4629 = vpop.f32.mrf.mxu0
  %v4630 = vadd.f32 0.0, %v4629
  %v4631 = vpop.f32.mrf.mxu0
  %4632 = vdwg.mxu0
  %v4633 = vmul.f32 %v4630, 0.2
  %v4634 = vmax.f32 %v4630, %v4633
  %v4635 = vpack.c.bf16 %v4634, %v4634
  %v4637 = vsel %vm588, %v4635, 0
  %4639 = vmatpush.bf16.msra.mxu0 0
  %4640 = vmatpush.bf16.msra.mxu0 0
  %4641 = vmatpush.bf16.msra.mxu0 0
  %4642 = vmatpush.bf16.msra.mxu0 0
  %4643 = vmatpush.bf16.msra.mxu0 0
  %4644 = vmatpush.bf16.msra.mxu0 0
  %4645 = vmatpush.bf16.msra.mxu0 0
  %4646 = vmatpush.bf16.msra.mxu0 %v4637
  %4647 = vmatmul.bf16.gmra.mxu0 %v2580
  %v4648 = vpop.f32.mrf.mxu0
  %v4649 = vadd.f32 0.0, %v4648
  %v4650 = vpop.f32.mrf.mxu0
  %4651 = vdwg.mxu0
  %4652 = vmatpush.bf16.msra.mxu0 0
  %4653 = vmatpush.bf16.msra.mxu0 0
  %4654 = vmatpush.bf16.msra.mxu0 0
  %4655 = vmatpush.bf16.msra.mxu0 0
  %4656 = vmatpush.bf16.msra.mxu0 0
  %4657 = vmatpush.bf16.msra.mxu0 0
  %4658 = vmatpush.bf16.msra.mxu0 0
  %4659 = vmatpush.bf16.msra.mxu0 %v4637
  %4660 = vmatmul.bf16.gmra.mxu0 %v2600
  %v4661 = vpop.f32.mrf.mxu0
  %v4662 = vadd.f32 0.0, %v4661
  %v4663 = vpop.f32.mrf.mxu0
  %4664 = vdwg.mxu0
  %v4665 = vmax.f32 %v4649, %v4662
  %v4666 = vsub.f32 %v4649, %v4665
  %v4667 = vmul.f32 %v4666, 1.442695
  %v4668 = vpow.pop %v4667
  %v4669 = vsub.f32 %v4662, %v4665
  %v4670 = vmul.f32 %v4669, 1.442695
  %v4671 = vpow.pop %v4670
  %v4672 = vadd.f32 %v4668, %v4671
  %v4673 = vrcp.pop %v4672
  %v4674 = vmul.f32 %v4668, %v4673
  %v4675 = vpack.c.bf16 %v4674, %v4674
  %v4677 = vsel %vm1774, %v4675, 0
  %4679 = vmatpush.bf16.msra.mxu0 0
  %4680 = vmatpush.bf16.msra.mxu0 0
  %4681 = vmatpush.bf16.msra.mxu0 0
  %4682 = vmatpush.bf16.msra.mxu0 0
  %4683 = vmatpush.bf16.msra.mxu0 0
  %4684 = vmatpush.bf16.msra.mxu0 0
  %4685 = vmatpush.bf16.msra.mxu0 0
  %4686 = vmatpush.bf16.msra.mxu0 %v2088
  %4687 = vmatmul.bf16.gmra.mxu0 %v4677
  %v4688 = vpop.f32.mrf.mxu0
  %v4689 = vadd.f32 0.0, %v4688
  %v4690 = vpop.f32.mrf.mxu0
  %4691 = vdwg.mxu0
  %v4692 = vmul.f32 %v4272, %v4689
  %v4693 = vmul.f32 %v4671, %v4673
  %v4694 = vpack.c.bf16 %v4693, %v4693
  %v4696 = vsel %vm1774, %v4694, 0
  %4698 = vmatpush.bf16.msra.mxu0 0
  %4699 = vmatpush.bf16.msra.mxu0 0
  %4700 = vmatpush.bf16.msra.mxu0 0
  %4701 = vmatpush.bf16.msra.mxu0 0
  %4702 = vmatpush.bf16.msra.mxu0 0
  %4703 = vmatpush.bf16.msra.mxu0 0
  %4704 = vmatpush.bf16.msra.mxu0 0
  %4705 = vmatpush.bf16.msra.mxu0 %v2088
  %4706 = vmatmul.bf16.gmra.mxu0 %v4696
  %v4707 = vpop.f32.mrf.mxu0
  %v4708 = vadd.f32 0.0, %v4707
  %v4709 = vpop.f32.mrf.mxu0
  %4710 = vdwg.mxu0
  %v4711 = vmul.f32 %v4597, %v4708
  %v4712 = vadd.f32 %v4692, %v4711
  %v4713 = vld [vmem:[%s35] sm:$0x3]
  %v4714 = vpack.c.bf16 %v4712, %v4712
  %v4716 = vsel %vm692, %v4713, 0
  %v4719 = vsel %vm696, %v4714, 0
  %4721 = vmatpush.bf16.msra.mxu0 0
  %4722 = vmatpush.bf16.msra.mxu0 0
  %4723 = vmatpush.bf16.msra.mxu0 0
  %4724 = vmatpush.bf16.msra.mxu0 0
  %4725 = vmatpush.bf16.msra.mxu0 0
  %4726 = vmatpush.bf16.msra.mxu0 0
  %4727 = vmatpush.bf16.msra.mxu0 0
  %4728 = vmatpush.bf16.msra.mxu0 %v4719
  %4729 = vmatmul.bf16.gmra.mxu0 %v4716
  %v4730 = vpop.f32.mrf.mxu0
  %v4731 = vadd.f32 0.0, %v4730
  %v4732 = vpop.f32.mrf.mxu0
  %4733 = vdwg.mxu0
  %v4734 = vpack.c.bf16 %v4731, %v4731
  %4735 = vmatpush.bf16.msra.mxu0 %v2809
  %4736 = vmatpush.bf16.msra.mxu0 %v2805
  %4737 = vmatpush.bf16.msra.mxu0 %v2801
  %4738 = vmatpush.bf16.msra.mxu0 %v2797
  %4739 = vmatpush.bf16.msra.mxu0 %v2793
  %4740 = vmatpush.bf16.msra.mxu0 %v2789
  %4741 = vmatpush.bf16.msra.mxu0 %v2785
  %4742 = vmatpush.bf16.msra.mxu0 %v2781
  %4743 = vmatmul.bf16.gmra.mxu0 %v4734
  %v4744 = vpop.f32.mrf.mxu0
  %v4745 = vadd.f32 0.0, %v4744
  %v4746 = vpop.f32.mrf.mxu0
  %4747 = vdwg.mxu0
  %4748 = vmatpush.bf16.msra.mxu0 %v2810
  %4749 = vmatpush.bf16.msra.mxu0 %v2806
  %4750 = vmatpush.bf16.msra.mxu0 %v2802
  %4751 = vmatpush.bf16.msra.mxu0 %v2798
  %4752 = vmatpush.bf16.msra.mxu0 %v2794
  %4753 = vmatpush.bf16.msra.mxu0 %v2790
  %4754 = vmatpush.bf16.msra.mxu0 %v2786
  %4755 = vmatpush.bf16.msra.mxu0 %v2782
  %4756 = vmatmul.bf16.gmra.mxu0 %v4734
  %v4757 = vpop.f32.mrf.mxu0
  %v4758 = vadd.f32 0.0, %v4757
  %v4759 = vpop.f32.mrf.mxu0
  %4760 = vdwg.mxu0
  %4761 = vmatpush.bf16.msra.mxu0 %v2811
  %4762 = vmatpush.bf16.msra.mxu0 %v2807
  %4763 = vmatpush.bf16.msra.mxu0 %v2803
  %4764 = vmatpush.bf16.msra.mxu0 %v2799
  %4765 = vmatpush.bf16.msra.mxu0 %v2795
  %4766 = vmatpush.bf16.msra.mxu0 %v2791
  %4767 = vmatpush.bf16.msra.mxu0 %v2787
  %4768 = vmatpush.bf16.msra.mxu0 %v2783
  %4769 = vmatmul.bf16.gmra.mxu0 %v4734
  %v4770 = vpop.f32.mrf.mxu0
  %v4771 = vadd.f32 0.0, %v4770
  %v4772 = vpop.f32.mrf.mxu0
  %4773 = vdwg.mxu0
  %4774 = vmatpush.bf16.msra.mxu0 %v2812
  %4775 = vmatpush.bf16.msra.mxu0 %v2808
  %4776 = vmatpush.bf16.msra.mxu0 %v2804
  %4777 = vmatpush.bf16.msra.mxu0 %v2800
  %4778 = vmatpush.bf16.msra.mxu0 %v2796
  %4779 = vmatpush.bf16.msra.mxu0 %v2792
  %4780 = vmatpush.bf16.msra.mxu0 %v2788
  %4781 = vmatpush.bf16.msra.mxu0 %v2784
  %4782 = vmatmul.bf16.gmra.mxu0 %v4734
  %v4783 = vpop.f32.mrf.mxu0
  %v4784 = vadd.f32 0.0, %v4783
  %v4785 = vpop.f32.mrf.mxu0
  %4786 = vdwg.mxu0
  %v4787 = vadd.f32 %v4065, %v4745
  %v4788 = vadd.f32 %v4066, %v4758
  %v4789 = vadd.f32 %v4067, %v4771
  %v4790 = vadd.f32 %v4068, %v4784
  %v4791 = vpack.c.bf16 %v4787, %v4787
  %v4792 = vpack.c.bf16 %v4788, %v4788
  %v4793 = vpack.c.bf16 %v4789, %v4789
  %v4794 = vpack.c.bf16 %v4790, %v4790
  %4795 = vmatpush.bf16.xpose.msra.mxu0 0
  %4796 = vmatpush.bf16.xpose.msra.mxu0 0
  %4797 = vmatpush.bf16.xpose.msra.mxu0 0
  %4798 = vmatpush.bf16.xpose.msra.mxu0 0
  %4799 = vmatpush.bf16.xpose.msra.mxu0 0
  %4800 = vmatpush.bf16.xpose.msra.mxu0 0
  %4801 = vmatpush.bf16.xpose.msra.mxu0 0
  %4802 = vmatpush.bf16.xpose.msra.mxu0 %v1673
  %4803 = vmatmul.bf16.gmra.mxu0 %v4791
  %v4804 = vpop.f32.mrf.mxu0
  %v4805 = vadd.f32 0.0, %v4804
  %v4806 = vpop.f32.mrf.mxu0
  %4807 = vdwg.mxu0
  %4808 = vmatpush.bf16.xpose.msra.mxu0 0
  %4809 = vmatpush.bf16.xpose.msra.mxu0 0
  %4810 = vmatpush.bf16.xpose.msra.mxu0 0
  %4811 = vmatpush.bf16.xpose.msra.mxu0 0
  %4812 = vmatpush.bf16.xpose.msra.mxu0 0
  %4813 = vmatpush.bf16.xpose.msra.mxu0 0
  %4814 = vmatpush.bf16.xpose.msra.mxu0 0
  %4815 = vmatpush.bf16.xpose.msra.mxu0 %v1674
  %4816 = vmatmul.bf16.gmra.mxu0 %v4792
  %v4817 = vpop.f32.mrf.mxu0
  %v4818 = vadd.f32 %v4805, %v4817
  %v4819 = vpop.f32.mrf.mxu0
  %4820 = vdwg.mxu0
  %4821 = vmatpush.bf16.xpose.msra.mxu0 0
  %4822 = vmatpush.bf16.xpose.msra.mxu0 0
  %4823 = vmatpush.bf16.xpose.msra.mxu0 0
  %4824 = vmatpush.bf16.xpose.msra.mxu0 0
  %4825 = vmatpush.bf16.xpose.msra.mxu0 0
  %4826 = vmatpush.bf16.xpose.msra.mxu0 0
  %4827 = vmatpush.bf16.xpose.msra.mxu0 0
  %4828 = vmatpush.bf16.xpose.msra.mxu0 %v1675
  %4829 = vmatmul.bf16.gmra.mxu0 %v4793
  %v4830 = vpop.f32.mrf.mxu0
  %v4831 = vadd.f32 %v4818, %v4830
  %v4832 = vpop.f32.mrf.mxu0
  %4833 = vdwg.mxu0
  %4834 = vmatpush.bf16.xpose.msra.mxu0 0
  %4835 = vmatpush.bf16.xpose.msra.mxu0 0
  %4836 = vmatpush.bf16.xpose.msra.mxu0 0
  %4837 = vmatpush.bf16.xpose.msra.mxu0 0
  %4838 = vmatpush.bf16.xpose.msra.mxu0 0
  %4839 = vmatpush.bf16.xpose.msra.mxu0 0
  %4840 = vmatpush.bf16.xpose.msra.mxu0 0
  %4841 = vmatpush.bf16.xpose.msra.mxu0 %v1676
  %4842 = vmatmul.bf16.gmra.mxu0 %v4794
  %v4843 = vpop.f32.mrf.mxu0
  %v4844 = vadd.f32 %v4831, %v4843
  %v4845 = vpop.f32.mrf.mxu0
  %4846 = vdwg.mxu0
  %v4847 = vmul.f32 %v4844, 0.00390625
  %v4848 = vpack.c.bf16 %v4847, %v4847
  %v4850 = vsel %vm588, %v4848, 0
  %4852 = vmatpush.bf16.msra.mxu0 0
  %4853 = vmatpush.bf16.msra.mxu0 0
  %4854 = vmatpush.bf16.msra.mxu0 0
  %4855 = vmatpush.bf16.msra.mxu0 0
  %4856 = vmatpush.bf16.msra.mxu0 0
  %4857 = vmatpush.bf16.msra.mxu0 0
  %4858 = vmatpush.bf16.msra.mxu0 0
  %4859 = vmatpush.bf16.msra.mxu0 %v4850
  %4860 = vmatmul.bf16.gmra.mxu0 %v2961
  %v4861 = vpop.f32.mrf.mxu0
  %v4862 = vadd.f32 0.0, %v4861
  %v4863 = vpop.f32.mrf.mxu0
  %4864 = vdwg.mxu0
  %v4865 = vmul.f32 %v4862, 0.2
  %v4866 = vmax.f32 %v4862, %v4865
  %v4867 = vpack.c.bf16 %v4866, %v4866
  %v4869 = vsel %vm588, %v4867, 0
  %4871 = vmatpush.bf16.msra.mxu0 0
  %4872 = vmatpush.bf16.msra.mxu0 0
  %4873 = vmatpush.bf16.msra.mxu0 0
  %4874 = vmatpush.bf16.msra.mxu0 0
  %4875 = vmatpush.bf16.msra.mxu0 0
  %4876 = vmatpush.bf16.msra.mxu0 0
  %4877 = vmatpush.bf16.msra.mxu0 0
  %4878 = vmatpush.bf16.msra.mxu0 %v4869
  %4879 = vmatmul.bf16.gmra.mxu0 %v2984
  %v4880 = vpop.f32.mrf.mxu0
  %v4881 = vadd.f32 0.0, %v4880
  %v4882 = vpop.f32.mrf.mxu0
  %4883 = vdwg.mxu0
  %4884 = vmatpush.bf16.msra.mxu0 0
  %4885 = vmatpush.bf16.msra.mxu0 0
  %4886 = vmatpush.bf16.msra.mxu0 0
  %4887 = vmatpush.bf16.msra.mxu0 0
  %4888 = vmatpush.bf16.msra.mxu0 0
  %4889 = vmatpush.bf16.msra.mxu0 0
  %4890 = vmatpush.bf16.msra.mxu0 0
  %4891 = vmatpush.bf16.msra.mxu0 %v4869
  %4892 = vmatmul.bf16.gmra.mxu0 %v3004
  %v4893 = vpop.f32.mrf.mxu0
  %v4894 = vadd.f32 0.0, %v4893
  %v4895 = vpop.f32.mrf.mxu0
  %4896 = vdwg.mxu0
  %v4897 = vmax.f32 %v4881, %v4894
  %v4898 = vsub.f32 %v4881, %v4897
  %v4899 = vmul.f32 %v4898, 1.442695
  %v4900 = vpow.pop %v4899
  %v4901 = vsub.f32 %v4894, %v4897
  %v4902 = vmul.f32 %v4901, 1.442695
  %v4903 = vpow.pop %v4902
  %v4904 = vadd.f32 %v4900, %v4903
  %v4905 = vrcp.pop %v4904
  %v4906 = vmul.f32 %v4900, %v4905
  %v4907 = vpack.c.bf16 %v4906, %v4906
  %v4909 = vsel %vm1774, %v4907, 0
  %4911 = vmatpush.bf16.msra.mxu0 0
  %4912 = vmatpush.bf16.msra.mxu0 0
  %4913 = vmatpush.bf16.msra.mxu0 0
  %4914 = vmatpush.bf16.msra.mxu0 0
  %4915 = vmatpush.bf16.msra.mxu0 0
  %4916 = vmatpush.bf16.msra.mxu0 0
  %4917 = vmatpush.bf16.msra.mxu0 0
  %4918 = vmatpush.bf16.msra.mxu0 %v1780
  %4919 = vmatmul.bf16.gmra.mxu0 %v4909
  %v4920 = vpop.f32.mrf.mxu0
  %v4921 = vadd.f32 0.0, %v4920
  %v4922 = vpop.f32.mrf.mxu0
  %4923 = vdwg.mxu0
  %4924 = vmatpush.bf16.msra.mxu0 0
  %4925 = vmatpush.bf16.msra.mxu0 0
  %4926 = vmatpush.bf16.msra.mxu0 0
  %4927 = vmatpush.bf16.msra.mxu0 0
  %4928 = vmatpush.bf16.msra.mxu0 0
  %4929 = vmatpush.bf16.msra.mxu0 0
  %4930 = vmatpush.bf16.msra.mxu0 0
  %4931 = vmatpush.bf16.msra.mxu0 %v1783
  %4932 = vmatmul.bf16.gmra.mxu0 %v4909
  %v4933 = vpop.f32.mrf.mxu0
  %v4934 = vadd.f32 0.0, %v4933
  %v4935 = vpop.f32.mrf.mxu0
  %4936 = vdwg.mxu0
  %4937 = vmatpush.bf16.msra.mxu0 0
  %4938 = vmatpush.bf16.msra.mxu0 0
  %4939 = vmatpush.bf16.msra.mxu0 0
  %4940 = vmatpush.bf16.msra.mxu0 0
  %4941 = vmatpush.bf16.msra.mxu0 0
  %4942 = vmatpush.bf16.msra.mxu0 0
  %4943 = vmatpush.bf16.msra.mxu0 0
  %4944 = vmatpush.bf16.msra.mxu0 %v1786
  %4945 = vmatmul.bf16.gmra.mxu0 %v4909
  %v4946 = vpop.f32.mrf.mxu0
  %v4947 = vadd.f32 0.0, %v4946
  %v4948 = vpop.f32.mrf.mxu0
  %4949 = vdwg.mxu0
  %4950 = vmatpush.bf16.msra.mxu0 0
  %4951 = vmatpush.bf16.msra.mxu0 0
  %4952 = vmatpush.bf16.msra.mxu0 0
  %4953 = vmatpush.bf16.msra.mxu0 0
  %4954 = vmatpush.bf16.msra.mxu0 0
  %4955 = vmatpush.bf16.msra.mxu0 0
  %4956 = vmatpush.bf16.msra.mxu0 0
  %4957 = vmatpush.bf16.msra.mxu0 %v1789
  %4958 = vmatmul.bf16.gmra.mxu0 %v4909
  %v4959 = vpop.f32.mrf.mxu0
  %v4960 = vadd.f32 0.0, %v4959
  %v4961 = vpop.f32.mrf.mxu0
  %4962 = vdwg.mxu0
  %v4963 = vmul.f32 %v4065, %v4921
  %v4964 = vmul.f32 %v4066, %v4934
  %v4965 = vmul.f32 %v4067, %v4947
  %v4966 = vmul.f32 %v4068, %v4960
  %v4967 = vmul.f32 %v4903, %v4905
  %v4968 = vpack.c.bf16 %v4967, %v4967
  %v4970 = vsel %vm1774, %v4968, 0
  %4972 = vmatpush.bf16.msra.mxu0 0
  %4973 = vmatpush.bf16.msra.mxu0 0
  %4974 = vmatpush.bf16.msra.mxu0 0
  %4975 = vmatpush.bf16.msra.mxu0 0
  %4976 = vmatpush.bf16.msra.mxu0 0
  %4977 = vmatpush.bf16.msra.mxu0 0
  %4978 = vmatpush.bf16.msra.mxu0 0
  %4979 = vmatpush.bf16.msra.mxu0 %v1780
  %4980 = vmatmul.bf16.gmra.mxu0 %v4970
  %v4981 = vpop.f32.mrf.mxu0
  %v4982 = vadd.f32 0.0, %v4981
  %v4983 = vpop.f32.mrf.mxu0
  %4984 = vdwg.mxu0
  %4985 = vmatpush.bf16.msra.mxu0 0
  %4986 = vmatpush.bf16.msra.mxu0 0
  %4987 = vmatpush.bf16.msra.mxu0 0
  %4988 = vmatpush.bf16.msra.mxu0 0
  %4989 = vmatpush.bf16.msra.mxu0 0
  %4990 = vmatpush.bf16.msra.mxu0 0
  %4991 = vmatpush.bf16.msra.mxu0 0
  %4992 = vmatpush.bf16.msra.mxu0 %v1783
  %4993 = vmatmul.bf16.gmra.mxu0 %v4970
  %v4994 = vpop.f32.mrf.mxu0
  %v4995 = vadd.f32 0.0, %v4994
  %v4996 = vpop.f32.mrf.mxu0
  %4997 = vdwg.mxu0
  %4998 = vmatpush.bf16.msra.mxu0 0
  %4999 = vmatpush.bf16.msra.mxu0 0
  %5000 = vmatpush.bf16.msra.mxu0 0
  %5001 = vmatpush.bf16.msra.mxu0 0
  %5002 = vmatpush.bf16.msra.mxu0 0
  %5003 = vmatpush.bf16.msra.mxu0 0
  %5004 = vmatpush.bf16.msra.mxu0 0
  %5005 = vmatpush.bf16.msra.mxu0 %v1786
  %5006 = vmatmul.bf16.gmra.mxu0 %v4970
  %v5007 = vpop.f32.mrf.mxu0
  %v5008 = vadd.f32 0.0, %v5007
  %v5009 = vpop.f32.mrf.mxu0
  %5010 = vdwg.mxu0
  %5011 = vmatpush.bf16.msra.mxu0 0
  %5012 = vmatpush.bf16.msra.mxu0 0
  %5013 = vmatpush.bf16.msra.mxu0 0
  %5014 = vmatpush.bf16.msra.mxu0 0
  %5015 = vmatpush.bf16.msra.mxu0 0
  %5016 = vmatpush.bf16.msra.mxu0 0
  %5017 = vmatpush.bf16.msra.mxu0 0
  %5018 = vmatpush.bf16.msra.mxu0 %v1789
  %5019 = vmatmul.bf16.gmra.mxu0 %v4970
  %v5020 = vpop.f32.mrf.mxu0
  %v5021 = vadd.f32 0.0, %v5020
  %v5022 = vpop.f32.mrf.mxu0
  %5023 = vdwg.mxu0
  %v5024 = vmul.f32 %v4745, %v4982
  %v5025 = vmul.f32 %v4758, %v4995
  %v5026 = vmul.f32 %v4771, %v5008
  %v5027 = vmul.f32 %v4784, %v5021
  %v5028 = vadd.f32 %v4963, %v5024
  %v5029 = vadd.f32 %v4964, %v5025
  %v5030 = vadd.f32 %v4965, %v5026
  %v5031 = vadd.f32 %v4966, %v5027
  %v5032 = vld [vmem:[%s37] sm:$0x3]
  %v5033 = vpack.c.bf16 %v5028, %v5028
  %v5034 = vpack.c.bf16 %v5029, %v5029
  %v5035 = vpack.c.bf16 %v5030, %v5030
  %v5036 = vpack.c.bf16 %v5031, %v5031
  %5037 = vst [vmem:[#allocation1] ss:$2 sm:$0xff] %v319
  %s5038 = scalar_lea.vmem [#allocation1], 16
  %5039 = vst [vmem:[%s5038] ss:$2 sm:$0xff] %v320
  %v5040 = vld.sshfl [vmem:[#allocation1] sm:$0xff pattern:$0x75316420]
  %v5041 = vld.sshfl [vmem:[#allocation1 + $0x8] sm:$0xff pattern:$0x75316420]
  %v5042 = vld.sshfl [vmem:[#allocation1 + $0x10] sm:$0xff pattern:$0x75316420]
  %v5043 = vld.sshfl [vmem:[#allocation1 + $0x18] sm:$0xff pattern:$0x75316420]
  %v5049 = vsel %vm584, %v5032, 0
  %v5052 = vsel %vm588, %v5033, 0
  %v5055 = vsel %vm588, %v5034, 0
  %v5058 = vsel %vm588, %v5035, 0
  %v5061 = vsel %vm588, %v5036, 0
  %5063 = vmatpush.bf16.msra.mxu0 0
  %5064 = vmatpush.bf16.msra.mxu0 0
  %5065 = vmatpush.bf16.msra.mxu0 0
  %5066 = vmatpush.bf16.msra.mxu0 0
  %5067 = vmatpush.bf16.msra.mxu0 0
  %5068 = vmatpush.bf16.msra.mxu0 0
  %5069 = vmatpush.bf16.msra.mxu0 0
  %5070 = vmatpush.bf16.msra.mxu0 %v5052
  %5071 = vmatmul.bf16.gmra.mxu0 %v5049
  %v5072 = vpop.f32.mrf.mxu0
  %v5073 = vadd.f32 %v5040, %v5072
  %v5074 = vpop.f32.mrf.mxu0
  %5075 = vdwg.mxu0
  %5076 = vmatpush.bf16.msra.mxu0 0
  %5077 = vmatpush.bf16.msra.mxu0 0
  %5078 = vmatpush.bf16.msra.mxu0 0
  %5079 = vmatpush.bf16.msra.mxu0 0
  %5080 = vmatpush.bf16.msra.mxu0 0
  %5081 = vmatpush.bf16.msra.mxu0 0
  %5082 = vmatpush.bf16.msra.mxu0 0
  %5083 = vmatpush.bf16.msra.mxu0 %v5055
  %5084 = vmatmul.bf16.gmra.mxu0 %v5049
  %v5085 = vpop.f32.mrf.mxu0
  %v5086 = vadd.f32 %v5041, %v5085
  %v5087 = vpop.f32.mrf.mxu0
  %5088 = vdwg.mxu0
  %5089 = vmatpush.bf16.msra.mxu0 0
  %5090 = vmatpush.bf16.msra.mxu0 0
  %5091 = vmatpush.bf16.msra.mxu0 0
  %5092 = vmatpush.bf16.msra.mxu0 0
  %5093 = vmatpush.bf16.msra.mxu0 0
  %5094 = vmatpush.bf16.msra.mxu0 0
  %5095 = vmatpush.bf16.msra.mxu0 0
  %5096 = vmatpush.bf16.msra.mxu0 %v5058
  %5097 = vmatmul.bf16.gmra.mxu0 %v5049
  %v5098 = vpop.f32.mrf.mxu0
  %v5099 = vadd.f32 %v5042, %v5098
  %v5100 = vpop.f32.mrf.mxu0
  %5101 = vdwg.mxu0
  %5102 = vmatpush.bf16.msra.mxu0 0
  %5103 = vmatpush.bf16.msra.mxu0 0
  %5104 = vmatpush.bf16.msra.mxu0 0
  %5105 = vmatpush.bf16.msra.mxu0 0
  %5106 = vmatpush.bf16.msra.mxu0 0
  %5107 = vmatpush.bf16.msra.mxu0 0
  %5108 = vmatpush.bf16.msra.mxu0 0
  %5109 = vmatpush.bf16.msra.mxu0 %v5061
  %5110 = vmatmul.bf16.gmra.mxu0 %v5049
  %v5111 = vpop.f32.mrf.mxu0
  %v5112 = vadd.f32 %v5043, %v5111
  %v5113 = vpop.f32.mrf.mxu0
  %5114 = vdwg.mxu0
  %v5119 = vrot.slane %v5086, 4
  %v5120 = vrot.slane %v5112, 4
  %v5121 = vsel %vm696, %v5073, %v5119
  %v5122 = vsel %vm696, %v5099, %v5120
  %5125 = vst [vmem:[%s81] sm:$0xff] %v5121
  %5126 = vst [vmem:[%s81 + $0x8] sm:$0xff] %v5122
  // Predicated region
  $region162: #{mrb_forward.1} parent=0 // pred_check
    _
  $region163: #{mrb_forward.1} parent=0 // pred_check_branch
    %5128 = sbr.rel (0) target = $region165
  $region164: #{mrb_forward.1} parent=0 // pred_region
    _
  $region165: #{mrb_forward.1} parent=0 // pred_fallthru
    _
  // Predicated region
  $region166: #{mrb_forward.1} parent=0 // pred_check
    _
  $region167: #{mrb_forward.1} parent=0 // pred_check_branch
    %5130 = sbr.rel (0) target = $region169
  $region168: #{mrb_forward.1} parent=0 // pred_region
    _
  $region169: #{mrb_forward.1} parent=0 // pred_fallthru
    _

</llo_original>
